<compile_context>
chip_gen: v5e
topology: v5e:2x2
jax: 0.10.0
libtpu: 0.0.40
codegen_flags: <defaults>
</compile_context>

<pallas_src>
import jax
import jax.numpy as jnp
import numpy as np
from jax import lax
from jax.experimental import pallas as pl
from jax.experimental.pallas import tpu as pltpu


def _round_up(v, m):
    return (v + m - 1) // m * m


def _make_fused_kernel(H, W, C):
    """Whole Res_Block64 forward for one batch element, fully VMEM-resident."""
    HW = H * W
    Hp = H + 2                   # padded rows
    Wp = _round_up(W + 2, 8)     # sublane-friendly pitch (>= W + 2)
    K3 = 3 * C                   # per-ky matmul depth

    def kernel(x_ref, w_ref, a_ref, out_ref,
               xpad_ref, cols_ref, res1_ref, rescur_ref):
        # x_ref:    (1, H*W, C) f32    input image (flattened spatial)
        # w_ref:    (27, 3*C, C) bf16  weights, index layer*3+ky -> (kx,Cin)xCout
        # a_ref:    (8,) f32 SMEM      PReLU slopes
        # out_ref:  (1, H*W, C) f32
        # xpad_ref: (Hp, Wp, C) bf16   zero-padded running activation
        # cols_ref: (Hp*W, 3*C) bf16   3-tap im2col buffer
        # res1_ref / rescur_ref: (H*W, C) f32 residual snapshots

        # Zero the padded buffer once per image; the halo stays zero for all
        # 9 layers, the centre is overwritten before every conv.
        xpad_ref[...] = jnp.zeros(xpad_ref.shape, xpad_ref.dtype)

        x0 = x_ref[0]                       # (HW, C) f32
        res1_ref[...] = x0
        rescur_ref[...] = x0

        def set_act(y_f32):
            # bf16 activation goes straight into the padded centre
            # (no f32 act scratch round-trip).
            xpad_ref[1:H + 1, 1:W + 1, :] = (
                y_f32.reshape(H, W, C).astype(jnp.bfloat16))

        set_act(x0)

        def conv(layer):
            # 3-tap im2col: cols[yp*W + x, kx*C + ci] = xpad[yp, x + kx, ci]
            for kx in range(3):
                cols_ref[:, kx * C:(kx + 1) * C] = (
                    xpad_ref[:, kx:kx + W, :].reshape(Hp * W, C))
            # 3 accumulating MXU matmuls (K = 3*C); the ky tap is the
            # contiguous, sublane-aligned row slice cols[ky*W : ky*W + HW].
            acc = jnp.zeros((HW, C), jnp.float32)
            for ky in range(3):
                acc = acc + jnp.dot(
                    cols_ref[ky * W:ky * W + HW, :],
                    w_ref[layer * 3 + ky],
                    preferred_element_type=jnp.float32)
            return acc                      # (HW, C) f32

        def prelu(y, idx):
            a = a_ref[idx]                  # scalar slope from SMEM
            return jnp.where(y > 0, y, a * y)

        # Four (conv, PReLU, conv, PReLU, +res, snapshot) pairs, rolled.
        def pair(p, carry):
            l0 = 2 * p
            y = prelu(conv(l0), l0)
            set_act(y)
            y = prelu(conv(l0 + 1), l0 + 1) + rescur_ref[...]
            set_act(y)
            rescur_ref[...] = y
            return carry

        lax.fori_loop(0, 4, pair, 0)

        # conv17 (no PReLU) + res1
        out_ref[0] = (conv(8) + res1_ref[...]).astype(out_ref.dtype)

    return kernel, Hp, Wp


def res_block64_forward(x_nhwc, params):
    """Res_Block64 forward (bf16 MXU inputs, f32 accumulate / residuals)."""
    N, H, W, C = x_nhwc.shape
    assert C == 64, "Res_Block64 is a 64-channel block"
    HW = H * W
    K3 = 3 * C

    # HWIO (3,3,Cin,Cout) -> per-ky (3*Cin, Cout) slabs, kx-major then Cin,
    # matching the im2col column order; stacked as (27, 3*C, C) bf16.
    w_all = jnp.stack([w.reshape(3, K3, C) for w in params["w"]], axis=0)
    w_all = w_all.reshape(27, K3, C).astype(jnp.bfloat16)
    alphas = jnp.concatenate(params["a"]).astype(jnp.float32)      # (8,)

    x_flat = x_nhwc.reshape(N, HW, C).astype(jnp.float32)

    kernel, Hp, Wp = _make_fused_kernel(H, W, C)

    flops = 2 * N * 9 * HW * (9 * C) * C
    bytes_accessed = (x_flat.size * 4 + w_all.size * 2 + alphas.size * 4
                      + N * HW * C * 4)

    out = pl.pallas_call(
        kernel,
        grid=(N,),
        in_specs=[
            pl.BlockSpec((1, HW, C), lambda n: (n, 0, 0)),
            # Constant index map -> weights stay VMEM-resident across steps.
            # (Single-buffering via pl.Buffered(1) would save ~0.65 MiB but is
            # not needed at this size.)
            pl.BlockSpec((27, K3, C), lambda n: (0, 0, 0)),
            pl.BlockSpec(memory_space=pltpu.MemorySpace.SMEM),
        ],
        out_specs=pl.BlockSpec((1, HW, C), lambda n: (n, 0, 0)),
        out_shape=jax.ShapeDtypeStruct((N, HW, C), jnp.float32),
        scratch_shapes=[
            pltpu.VMEM((Hp, Wp, C), jnp.bfloat16),   # zero-padded activation
            pltpu.VMEM((Hp * W, K3), jnp.bfloat16),  # 3-tap im2col buffer
            pltpu.VMEM((HW, C), jnp.float32),        # res1 (outer residual)
            pltpu.VMEM((HW, C), jnp.float32),        # rotating res2/res3/res4
        ],
        compiler_params=pltpu.CompilerParams(
            dimension_semantics=("parallel",)),
        cost_estimate=pl.CostEstimate(
            flops=flops, transcendentals=0, bytes_accessed=bytes_accessed),
    )(x_flat, w_all, alphas)

    # TODO(synk): for large H/W add an H-row tiling grid axis with a 2-row
    # halo (mandatory on v7x's 64 MiB VMEM; on v6e raising vmem_limit_bytes
    # suffices longer), make the HBM-facing blocks lane-dense (N, H, W*C),
    # and batch B0 images per grid step when N is large and HW is small.
    return out.reshape(N, H, W, C)


def ref_forward(x_nhwc, params):
    """Pure-JAX reference mirroring the kernel math exactly:
    3x3 SAME conv as im2col matmuls with bf16 MXU inputs, f32 accumulation,
    f32 PReLU and residual adds (equal to the PyTorch module up to the bf16
    rounding of each conv input)."""
    N, H, W, C = x_nhwc.shape
    K3 = 3 * C
    ws = [w.reshape(3, K3, C).astype(jnp.bfloat16) for w in params["w"]]
    al = [a[0] for a in params["a"]]

    def conv3x3(act_f32, w3):
        a_bf = act_f32.astype(jnp.bfloat16)
        pad = jnp.pad(a_bf, ((0, 0), (1, 1), (1, 1), (0, 0)))
        out = jnp.zeros((N, H, W, C), jnp.float32)
        for ky in range(3):
            cols = jnp.concatenate(
                [pad[:, ky:ky + H, kx:kx + W, :] for kx in range(3)], axis=-1)
            out = out + jnp.dot(
                cols.reshape(N * H * W, K3), w3[ky],
                preferred_element_type=jnp.float32).reshape(N, H, W, C)
        return out

    def prelu(y, a):
        return jnp.where(y > 0, y, a * y)

    res1 = x_nhwc
    out = prelu(conv3x3(x_nhwc, ws[0]), al[0])
    out = prelu(conv3x3(out, ws[1]), al[1]) + res1
    res2 = out
    out = prelu(conv3x3(out, ws[2]), al[2])
    out = prelu(conv3x3(out, ws[3]), al[3]) + res2
    res3 = out
    out = prelu(conv3x3(out, ws[4]), al[4])
    out = prelu(conv3x3(out, ws[5]), al[5]) + res3
    res4 = out
    out = prelu(conv3x3(out, ws[6]), al[6])
    out = prelu(conv3x3(out, ws[7]), al[7]) + res4
    out = conv3x3(out, ws[8]) + res1
    return out


def init_params(key, C=64):
    kw, ka = jax.random.split(key)
    wkeys = jax.random.split(kw, 9)
    ws = [0.05 * jax.random.normal(k, (3, 3, C, C), dtype=jnp.float32)
          for k in wkeys]
    # nn.PReLU() default init is 0.25; perturb slightly so slope wiring is
    # actually exercised by the check.
    akeys = jax.random.split(ka, 8)
    alphas = [0.25 + 0.1 * jax.random.uniform(k, (1,), dtype=jnp.float32)
              for k in akeys]
    return {"w": ws, "a": alphas}


if __name__ == "__main__":
    key = jax.random.PRNGKey(0)
    k_x, k_p = jax.random.split(key)

    # Module requires 64 input channels; keep batch/spatial small.
    N, C, H, W = 2, 64, 16, 16
    x_nchw = jax.random.normal(k_x, (N, C, H, W), dtype=jnp.float32)
    x_nhwc = jnp.transpose(x_nchw, (0, 2, 3, 1))

    params = init_params(k_p, C)

    out_nhwc = jax.block_until_ready(res_block64_forward(x_nhwc, params))
    ref_nhwc = jax.block_until_ready(ref_forward(x_nhwc, params))

    # Kernel and reference share the same bf16-input / f32-accumulate math and
    # the same accumulation order, so a modest tolerance is safe.
    np.testing.assert_allclose(np.asarray(out_nhwc), np.asarray(ref_nhwc),
                               rtol=2e-2, atol=2e-2)

    # Back to NCHW to match the PyTorch module's output convention.
    out_nchw = jnp.transpose(out_nhwc, (0, 3, 1, 2))
    assert out_nchw.shape == (N, C, H, W)

    print("KERNEL_OK")
</pallas_src>

<mosaic_0001>
module attributes {stable_mosaic.version = 11 : i64} {
  func.func @kernel(%arg0: i32, %arg1: memref<1x256x64xf32, #tpu.memory_space<vmem>>, %arg2: memref<27x192x64xbf16, #tpu.memory_space<vmem>>, %arg3: memref<8xf32, #tpu.memory_space<smem>>, %arg4: memref<1x256x64xf32, #tpu.memory_space<vmem>>, %arg5: memref<18x24x64xbf16, #tpu.memory_space<vmem>>, %arg6: memref<288x192xbf16, #tpu.memory_space<vmem>>, %arg7: memref<256x64xf32, #tpu.memory_space<vmem>>, %arg8: memref<256x64xf32, #tpu.memory_space<vmem>>) attributes {dimension_semantics = [#tpu.dimension_semantics<parallel>], iteration_bounds = array<i64: 2>, scalar_prefetch = 0 : i64, scratch_operands = 4 : i64, tpu.core_type = #tpu.core_type<tc>, window_params = [{transform_indices = @transform_0, window_bounds = array<i64: 1, 256, 64>}, {pipeline_mode = #tpu.pipeline_mode<synchronous>, transform_indices = @transform_1, window_bounds = array<i64: 27, 192, 64>}, {transform_indices = @transform_2, window_bounds = array<i64: 8>}, {transform_indices = @transform_3, window_bounds = array<i64: 1, 256, 64>}]} {
    %cst = arith.constant 0.000000e+00 : bf16
    %0 = vector.broadcast %cst : bf16 to vector<18x24x64xbf16>
    %c0 = arith.constant 0 : index
    %c0_0 = arith.constant 0 : index
    %c0_1 = arith.constant 0 : index
    %1 = vector.load %arg5[%c0, %c0_0, %c0_1] : memref<18x24x64xbf16, #tpu.memory_space<vmem>>, vector<18x24x64xbf16>
    tpu.vector_store %arg5[%c0, %c0_0, %c0_1], %0 {strides = array<i32>} : memref<18x24x64xbf16, #tpu.memory_space<vmem>>, vector<18x24x64xbf16>,
    %c0_2 = arith.constant 0 : index
    %c0_3 = arith.constant 0 : index
    %c0_4 = arith.constant 0 : index
    %2 = vector.load %arg1[%c0_2, %c0_3, %c0_4] : memref<1x256x64xf32, #tpu.memory_space<vmem>>, vector<1x256x64xf32>
    %3 = vector.shape_cast %2 : vector<1x256x64xf32> to vector<256x64xf32>
    %c0_5 = arith.constant 0 : index
    %c0_6 = arith.constant 0 : index
    %4 = vector.load %arg7[%c0_5, %c0_6] : memref<256x64xf32, #tpu.memory_space<vmem>>, vector<256x64xf32>
    tpu.vector_store %arg7[%c0_5, %c0_6], %3 {strides = array<i32>} : memref<256x64xf32, #tpu.memory_space<vmem>>, vector<256x64xf32>,
    %c0_7 = arith.constant 0 : index
    %c0_8 = arith.constant 0 : index
    %5 = vector.load %arg8[%c0_7, %c0_8] : memref<256x64xf32, #tpu.memory_space<vmem>>, vector<256x64xf32>
    tpu.vector_store %arg8[%c0_7, %c0_8], %3 {strides = array<i32>} : memref<256x64xf32, #tpu.memory_space<vmem>>, vector<256x64xf32>,
    %6 = vector.shape_cast %3 : vector<256x64xf32> to vector<16x16x64xf32>
    %7 = arith.truncf %6 : vector<16x16x64xf32> to vector<16x16x64xbf16>
    %c1 = arith.constant 1 : index
    %c1_9 = arith.constant 1 : index
    %c0_10 = arith.constant 0 : index
    %8 = vector.load %arg5[%c1, %c1_9, %c0_10] : memref<18x24x64xbf16, #tpu.memory_space<vmem>>, vector<16x16x64xbf16>
    tpu.vector_store %arg5[%c1, %c1_9, %c0_10], %7 {strides = array<i32>} : memref<18x24x64xbf16, #tpu.memory_space<vmem>>, vector<16x16x64xbf16>,
    %c0_i32 = arith.constant 0 : i32
    %c4_i32 = arith.constant 4 : i32
    %9 = arith.addi %c0_i32, %c4_i32 : i32
    %c1_i32 = arith.constant 1 : i32
    scf.for %arg9 = %c0_i32 to %9 step %c1_i32  : i32 {
      %c2_i32 = arith.constant 2 : i32
      %40 = arith.muli %c2_i32, %arg9 : i32
      %c0_43 = arith.constant 0 : index
      %c0_44 = arith.constant 0 : index
      %c0_45 = arith.constant 0 : index
      %41 = vector.load %arg5[%c0_43, %c0_44, %c0_45] : memref<18x24x64xbf16, #tpu.memory_space<vmem>>, vector<18x16x64xbf16>
      %42 = vector.shape_cast %41 : vector<18x16x64xbf16> to vector<288x64xbf16>
      %c0_46 = arith.constant 0 : index
      %c0_47 = arith.constant 0 : index
      %43 = vector.load %arg6[%c0_46, %c0_47] : memref<288x192xbf16, #tpu.memory_space<vmem>>, vector<288x64xbf16>
      tpu.vector_store %arg6[%c0_46, %c0_47], %42 {strides = array<i32>} : memref<288x192xbf16, #tpu.memory_space<vmem>>, vector<288x64xbf16>,
      %c0_48 = arith.constant 0 : index
      %c1_49 = arith.constant 1 : index
      %c0_50 = arith.constant 0 : index
      %44 = vector.load %arg5[%c0_48, %c1_49, %c0_50] : memref<18x24x64xbf16, #tpu.memory_space<vmem>>, vector<18x16x64xbf16>
      %45 = vector.shape_cast %44 : vector<18x16x64xbf16> to vector<288x64xbf16>
      %c0_51 = arith.constant 0 : index
      %c64_52 = arith.constant 64 : index
      %46 = vector.load %arg6[%c0_51, %c64_52] : memref<288x192xbf16, #tpu.memory_space<vmem>>, vector<288x64xbf16>
      tpu.vector_store %arg6[%c0_51, %c64_52], %45 {strides = array<i32>} : memref<288x192xbf16, #tpu.memory_space<vmem>>, vector<288x64xbf16>,
      %c0_53 = arith.constant 0 : index
      %c2_54 = arith.constant 2 : index
      %c0_55 = arith.constant 0 : index
      %47 = vector.load %arg5[%c0_53, %c2_54, %c0_55] : memref<18x24x64xbf16, #tpu.memory_space<vmem>>, vector<18x16x64xbf16>
      %48 = vector.shape_cast %47 : vector<18x16x64xbf16> to vector<288x64xbf16>
      %c0_56 = arith.constant 0 : index
      %c128_57 = arith.constant 128 : index
      %49 = vector.load %arg6[%c0_56, %c128_57] : memref<288x192xbf16, #tpu.memory_space<vmem>>, vector<288x64xbf16>
      tpu.vector_store %arg6[%c0_56, %c128_57], %48 {strides = array<i32>} : memref<288x192xbf16, #tpu.memory_space<vmem>>, vector<288x64xbf16>,
      %cst_58 = arith.constant 0.000000e+00 : f32
      %50 = vector.broadcast %cst_58 : f32 to vector<256x64xf32>
      %c0_59 = arith.constant 0 : index
      %c0_60 = arith.constant 0 : index
      %51 = vector.load %arg6[%c0_59, %c0_60] : memref<288x192xbf16, #tpu.memory_space<vmem>>, vector<256x192xbf16>
      %c3_i32 = arith.constant 3 : i32
      %52 = arith.muli %40, %c3_i32 : i32
      %c0_i32_61 = arith.constant 0 : i32
      %53 = arith.addi %52, %c0_i32_61 : i32
      %54 = arith.index_cast %53 : i32 to index
      %c0_62 = arith.constant 0 : index
      %c0_63 = arith.constant 0 : index
      %55 = vector.load %arg2[%54, %c0_62, %c0_63] : memref<27x192x64xbf16, #tpu.memory_space<vmem>>, vector<1x192x64xbf16>
      %56 = vector.shape_cast %55 : vector<1x192x64xbf16> to vector<192x64xbf16>
      %cst_64 = arith.constant dense<0.000000e+00> : vector<256x64xf32>
      %57 = tpu.matmul %51, %56, %cst_64 {dimension_numbers = #tpu.dot_dimension_numbers<[1], [0], [0], [1], [0, 0, 1, 1], [], []>} : vector<256x192xbf16>, vector<192x64xbf16>, vector<256x64xf32> -> vector<256x64xf32>
      %58 = arith.addf %50, %57 : vector<256x64xf32>
      %c16_65 = arith.constant 16 : index
      %c0_66 = arith.constant 0 : index
      %59 = vector.load %arg6[%c16_65, %c0_66] : memref<288x192xbf16, #tpu.memory_space<vmem>>, vector<256x192xbf16>
      %c3_i32_67 = arith.constant 3 : i32
      %60 = arith.muli %40, %c3_i32_67 : i32
      %c1_i32_68 = arith.constant 1 : i32
      %61 = arith.addi %60, %c1_i32_68 : i32
      %62 = arith.index_cast %61 : i32 to index
      %c0_69 = arith.constant 0 : index
      %c0_70 = arith.constant 0 : index
      %63 = vector.load %arg2[%62, %c0_69, %c0_70] : memref<27x192x64xbf16, #tpu.memory_space<vmem>>, vector<1x192x64xbf16>
      %64 = vector.shape_cast %63 : vector<1x192x64xbf16> to vector<192x64xbf16>
      %cst_71 = arith.constant dense<0.000000e+00> : vector<256x64xf32>
      %65 = tpu.matmul %59, %64, %cst_71 {dimension_numbers = #tpu.dot_dimension_numbers<[1], [0], [0], [1], [0, 0, 1, 1], [], []>} : vector<256x192xbf16>, vector<192x64xbf16>, vector<256x64xf32> -> vector<256x64xf32>
      %66 = arith.addf %58, %65 : vector<256x64xf32>
      %c32_72 = arith.constant 32 : index
      %c0_73 = arith.constant 0 : index
      %67 = vector.load %arg6[%c32_72, %c0_73] : memref<288x192xbf16, #tpu.memory_space<vmem>>, vector<256x192xbf16>
      %c3_i32_74 = arith.constant 3 : i32
      %68 = arith.muli %40, %c3_i32_74 : i32
      %c2_i32_75 = arith.constant 2 : i32
      %69 = arith.addi %68, %c2_i32_75 : i32
      %70 = arith.index_cast %69 : i32 to index
      %c0_76 = arith.constant 0 : index
      %c0_77 = arith.constant 0 : index
      %71 = vector.load %arg2[%70, %c0_76, %c0_77] : memref<27x192x64xbf16, #tpu.memory_space<vmem>>, vector<1x192x64xbf16>
      %72 = vector.shape_cast %71 : vector<1x192x64xbf16> to vector<192x64xbf16>
      %cst_78 = arith.constant dense<0.000000e+00> : vector<256x64xf32>
      %73 = tpu.matmul %67, %72, %cst_78 {dimension_numbers = #tpu.dot_dimension_numbers<[1], [0], [0], [1], [0, 0, 1, 1], [], []>} : vector<256x192xbf16>, vector<192x64xbf16>, vector<256x64xf32> -> vector<256x64xf32>
      %74 = arith.addf %66, %73 : vector<256x64xf32>
      %75 = arith.index_cast %40 : i32 to index
      %76 = memref.load %arg3[%75] : memref<8xf32, #tpu.memory_space<smem>>
      %cst_79 = arith.constant 0.000000e+00 : f32
      %77 = vector.broadcast %cst_79 : f32 to vector<256x64xf32>
      %78 = arith.cmpf ogt, %74, %77 : vector<256x64xf32>
      %79 = vector.broadcast %76 : f32 to vector<256x64xf32>
      %80 = arith.mulf %79, %74 : vector<256x64xf32>
      %81 = arith.select %78, %74, %80 : vector<256x64xi1>, vector<256x64xf32>
      %82 = vector.shape_cast %81 : vector<256x64xf32> to vector<16x16x64xf32>
      %83 = arith.truncf %82 : vector<16x16x64xf32> to vector<16x16x64xbf16>
      %c1_80 = arith.constant 1 : index
      %c1_81 = arith.constant 1 : index
      %c0_82 = arith.constant 0 : index
      %84 = vector.load %arg5[%c1_80, %c1_81, %c0_82] : memref<18x24x64xbf16, #tpu.memory_space<vmem>>, vector<16x16x64xbf16>
      tpu.vector_store %arg5[%c1_80, %c1_81, %c0_82], %83 {strides = array<i32>} : memref<18x24x64xbf16, #tpu.memory_space<vmem>>, vector<16x16x64xbf16>,
      %c1_i32_83 = arith.constant 1 : i32
      %85 = arith.addi %40, %c1_i32_83 : i32
      %c0_84 = arith.constant 0 : index
      %c0_85 = arith.constant 0 : index
      %c0_86 = arith.constant 0 : index
      %86 = vector.load %arg5[%c0_84, %c0_85, %c0_86] : memref<18x24x64xbf16, #tpu.memory_space<vmem>>, vector<18x16x64xbf16>
      %87 = vector.shape_cast %86 : vector<18x16x64xbf16> to vector<288x64xbf16>
      %c0_87 = arith.constant 0 : index
      %c0_88 = arith.constant 0 : index
      %88 = vector.load %arg6[%c0_87, %c0_88] : memref<288x192xbf16, #tpu.memory_space<vmem>>, vector<288x64xbf16>
      tpu.vector_store %arg6[%c0_87, %c0_88], %87 {strides = array<i32>} : memref<288x192xbf16, #tpu.memory_space<vmem>>, vector<288x64xbf16>,
      %c0_89 = arith.constant 0 : index
      %c1_90 = arith.constant 1 : index
      %c0_91 = arith.constant 0 : index
      %89 = vector.load %arg5[%c0_89, %c1_90, %c0_91] : memref<18x24x64xbf16, #tpu.memory_space<vmem>>, vector<18x16x64xbf16>
      %90 = vector.shape_cast %89 : vector<18x16x64xbf16> to vector<288x64xbf16>
      %c0_92 = arith.constant 0 : index
      %c64_93 = arith.constant 64 : index
      %91 = vector.load %arg6[%c0_92, %c64_93] : memref<288x192xbf16, #tpu.memory_space<vmem>>, vector<288x64xbf16>
      tpu.vector_store %arg6[%c0_92, %c64_93], %90 {strides = array<i32>} : memref<288x192xbf16, #tpu.memory_space<vmem>>, vector<288x64xbf16>,
      %c0_94 = arith.constant 0 : index
      %c2_95 = arith.constant 2 : index
      %c0_96 = arith.constant 0 : index
      %92 = vector.load %arg5[%c0_94, %c2_95, %c0_96] : memref<18x24x64xbf16, #tpu.memory_space<vmem>>, vector<18x16x64xbf16>
      %93 = vector.shape_cast %92 : vector<18x16x64xbf16> to vector<288x64xbf16>
      %c0_97 = arith.constant 0 : index
      %c128_98 = arith.constant 128 : index
      %94 = vector.load %arg6[%c0_97, %c128_98] : memref<288x192xbf16, #tpu.memory_space<vmem>>, vector<288x64xbf16>
      tpu.vector_store %arg6[%c0_97, %c128_98], %93 {strides = array<i32>} : memref<288x192xbf16, #tpu.memory_space<vmem>>, vector<288x64xbf16>,
      %cst_99 = arith.constant 0.000000e+00 : f32
      %95 = vector.broadcast %cst_99 : f32 to vector<256x64xf32>
      %c0_100 = arith.constant 0 : index
      %c0_101 = arith.constant 0 : index
      %96 = vector.load %arg6[%c0_100, %c0_101] : memref<288x192xbf16, #tpu.memory_space<vmem>>, vector<256x192xbf16>
      %c3_i32_102 = arith.constant 3 : i32
      %97 = arith.muli %85, %c3_i32_102 : i32
      %c0_i32_103 = arith.constant 0 : i32
      %98 = arith.addi %97, %c0_i32_103 : i32
      %99 = arith.index_cast %98 : i32 to index
      %c0_104 = arith.constant 0 : index
      %c0_105 = arith.constant 0 : index
      %100 = vector.load %arg2[%99, %c0_104, %c0_105] : memref<27x192x64xbf16, #tpu.memory_space<vmem>>, vector<1x192x64xbf16>
      %101 = vector.shape_cast %100 : vector<1x192x64xbf16> to vector<192x64xbf16>
      %cst_106 = arith.constant dense<0.000000e+00> : vector<256x64xf32>
      %102 = tpu.matmul %96, %101, %cst_106 {dimension_numbers = #tpu.dot_dimension_numbers<[1], [0], [0], [1], [0, 0, 1, 1], [], []>} : vector<256x192xbf16>, vector<192x64xbf16>, vector<256x64xf32> -> vector<256x64xf32>
      %103 = arith.addf %95, %102 : vector<256x64xf32>
      %c16_107 = arith.constant 16 : index
      %c0_108 = arith.constant 0 : index
      %104 = vector.load %arg6[%c16_107, %c0_108] : memref<288x192xbf16, #tpu.memory_space<vmem>>, vector<256x192xbf16>
      %c3_i32_109 = arith.constant 3 : i32
      %105 = arith.muli %85, %c3_i32_109 : i32
      %c1_i32_110 = arith.constant 1 : i32
      %106 = arith.addi %105, %c1_i32_110 : i32
      %107 = arith.index_cast %106 : i32 to index
      %c0_111 = arith.constant 0 : index
      %c0_112 = arith.constant 0 : index
      %108 = vector.load %arg2[%107, %c0_111, %c0_112] : memref<27x192x64xbf16, #tpu.memory_space<vmem>>, vector<1x192x64xbf16>
      %109 = vector.shape_cast %108 : vector<1x192x64xbf16> to vector<192x64xbf16>
      %cst_113 = arith.constant dense<0.000000e+00> : vector<256x64xf32>
      %110 = tpu.matmul %104, %109, %cst_113 {dimension_numbers = #tpu.dot_dimension_numbers<[1], [0], [0], [1], [0, 0, 1, 1], [], []>} : vector<256x192xbf16>, vector<192x64xbf16>, vector<256x64xf32> -> vector<256x64xf32>
      %111 = arith.addf %103, %110 : vector<256x64xf32>
      %c32_114 = arith.constant 32 : index
      %c0_115 = arith.constant 0 : index
      %112 = vector.load %arg6[%c32_114, %c0_115] : memref<288x192xbf16, #tpu.memory_space<vmem>>, vector<256x192xbf16>
      %c3_i32_116 = arith.constant 3 : i32
      %113 = arith.muli %85, %c3_i32_116 : i32
      %c2_i32_117 = arith.constant 2 : i32
      %114 = arith.addi %113, %c2_i32_117 : i32
      %115 = arith.index_cast %114 : i32 to index
      %c0_118 = arith.constant 0 : index
      %c0_119 = arith.constant 0 : index
      %116 = vector.load %arg2[%115, %c0_118, %c0_119] : memref<27x192x64xbf16, #tpu.memory_space<vmem>>, vector<1x192x64xbf16>
      %117 = vector.shape_cast %116 : vector<1x192x64xbf16> to vector<192x64xbf16>
      %cst_120 = arith.constant dense<0.000000e+00> : vector<256x64xf32>
      %118 = tpu.matmul %112, %117, %cst_120 {dimension_numbers = #tpu.dot_dimension_numbers<[1], [0], [0], [1], [0, 0, 1, 1], [], []>} : vector<256x192xbf16>, vector<192x64xbf16>, vector<256x64xf32> -> vector<256x64xf32>
      %119 = arith.addf %111, %118 : vector<256x64xf32>
      %c1_i32_121 = arith.constant 1 : i32
      %120 = arith.addi %40, %c1_i32_121 : i32
      %121 = arith.index_cast %120 : i32 to index
      %122 = memref.load %arg3[%121] : memref<8xf32, #tpu.memory_space<smem>>
      %cst_122 = arith.constant 0.000000e+00 : f32
      %123 = vector.broadcast %cst_122 : f32 to vector<256x64xf32>
      %124 = arith.cmpf ogt, %119, %123 : vector<256x64xf32>
      %125 = vector.broadcast %122 : f32 to vector<256x64xf32>
      %126 = arith.mulf %125, %119 : vector<256x64xf32>
      %127 = arith.select %124, %119, %126 : vector<256x64xi1>, vector<256x64xf32>
      %c0_123 = arith.constant 0 : index
      %c0_124 = arith.constant 0 : index
      %128 = vector.load %arg8[%c0_123, %c0_124] : memref<256x64xf32, #tpu.memory_space<vmem>>, vector<256x64xf32>
      %129 = arith.addf %127, %128 : vector<256x64xf32>
      %130 = vector.shape_cast %129 : vector<256x64xf32> to vector<16x16x64xf32>
      %131 = arith.truncf %130 : vector<16x16x64xf32> to vector<16x16x64xbf16>
      %c1_125 = arith.constant 1 : index
      %c1_126 = arith.constant 1 : index
      %c0_127 = arith.constant 0 : index
      %132 = vector.load %arg5[%c1_125, %c1_126, %c0_127] : memref<18x24x64xbf16, #tpu.memory_space<vmem>>, vector<16x16x64xbf16>
      tpu.vector_store %arg5[%c1_125, %c1_126, %c0_127], %131 {strides = array<i32>} : memref<18x24x64xbf16, #tpu.memory_space<vmem>>, vector<16x16x64xbf16>,
      %c0_128 = arith.constant 0 : index
      %c0_129 = arith.constant 0 : index
      %133 = vector.load %arg8[%c0_128, %c0_129] : memref<256x64xf32, #tpu.memory_space<vmem>>, vector<256x64xf32>
      tpu.vector_store %arg8[%c0_128, %c0_129], %129 {strides = array<i32>} : memref<256x64xf32, #tpu.memory_space<vmem>>, vector<256x64xf32>,
    }
    %c4_i32_11 = arith.constant 4 : i32
    %c0_12 = arith.constant 0 : index
    %c0_13 = arith.constant 0 : index
    %c0_14 = arith.constant 0 : index
    %10 = vector.load %arg5[%c0_12, %c0_13, %c0_14] : memref<18x24x64xbf16, #tpu.memory_space<vmem>>, vector<18x16x64xbf16>
    %11 = vector.shape_cast %10 : vector<18x16x64xbf16> to vector<288x64xbf16>
    %c0_15 = arith.constant 0 : index
    %c0_16 = arith.constant 0 : index
    %12 = vector.load %arg6[%c0_15, %c0_16] : memref<288x192xbf16, #tpu.memory_space<vmem>>, vector<288x64xbf16>
    tpu.vector_store %arg6[%c0_15, %c0_16], %11 {strides = array<i32>} : memref<288x192xbf16, #tpu.memory_space<vmem>>, vector<288x64xbf16>,
    %c0_17 = arith.constant 0 : index
    %c1_18 = arith.constant 1 : index
    %c0_19 = arith.constant 0 : index
    %13 = vector.load %arg5[%c0_17, %c1_18, %c0_19] : memref<18x24x64xbf16, #tpu.memory_space<vmem>>, vector<18x16x64xbf16>
    %14 = vector.shape_cast %13 : vector<18x16x64xbf16> to vector<288x64xbf16>
    %c0_20 = arith.constant 0 : index
    %c64 = arith.constant 64 : index
    %15 = vector.load %arg6[%c0_20, %c64] : memref<288x192xbf16, #tpu.memory_space<vmem>>, vector<288x64xbf16>
    tpu.vector_store %arg6[%c0_20, %c64], %14 {strides = array<i32>} : memref<288x192xbf16, #tpu.memory_space<vmem>>, vector<288x64xbf16>,
    %c0_21 = arith.constant 0 : index
    %c2 = arith.constant 2 : index
    %c0_22 = arith.constant 0 : index
    %16 = vector.load %arg5[%c0_21, %c2, %c0_22] : memref<18x24x64xbf16, #tpu.memory_space<vmem>>, vector<18x16x64xbf16>
    %17 = vector.shape_cast %16 : vector<18x16x64xbf16> to vector<288x64xbf16>
    %c0_23 = arith.constant 0 : index
    %c128 = arith.constant 128 : index
    %18 = vector.load %arg6[%c0_23, %c128] : memref<288x192xbf16, #tpu.memory_space<vmem>>, vector<288x64xbf16>
    tpu.vector_store %arg6[%c0_23, %c128], %17 {strides = array<i32>} : memref<288x192xbf16, #tpu.memory_space<vmem>>, vector<288x64xbf16>,
    %cst_24 = arith.constant 0.000000e+00 : f32
    %19 = vector.broadcast %cst_24 : f32 to vector<256x64xf32>
    %c0_25 = arith.constant 0 : index
    %c0_26 = arith.constant 0 : index
    %20 = vector.load %arg6[%c0_25, %c0_26] : memref<288x192xbf16, #tpu.memory_space<vmem>>, vector<256x192xbf16>
    %c24 = arith.constant 24 : index
    %c0_27 = arith.constant 0 : index
    %c0_28 = arith.constant 0 : index
    %21 = vector.load %arg2[%c24, %c0_27, %c0_28] : memref<27x192x64xbf16, #tpu.memory_space<vmem>>, vector<1x192x64xbf16>
    %22 = vector.shape_cast %21 : vector<1x192x64xbf16> to vector<192x64xbf16>
    %cst_29 = arith.constant dense<0.000000e+00> : vector<256x64xf32>
    %23 = tpu.matmul %20, %22, %cst_29 {dimension_numbers = #tpu.dot_dimension_numbers<[1], [0], [0], [1], [0, 0, 1, 1], [], []>} : vector<256x192xbf16>, vector<192x64xbf16>, vector<256x64xf32> -> vector<256x64xf32>
    %24 = arith.addf %19, %23 : vector<256x64xf32>
    %c16 = arith.constant 16 : index
    %c0_30 = arith.constant 0 : index
    %25 = vector.load %arg6[%c16, %c0_30] : memref<288x192xbf16, #tpu.memory_space<vmem>>, vector<256x192xbf16>
    %c25 = arith.constant 25 : index
    %c0_31 = arith.constant 0 : index
    %c0_32 = arith.constant 0 : index
    %26 = vector.load %arg2[%c25, %c0_31, %c0_32] : memref<27x192x64xbf16, #tpu.memory_space<vmem>>, vector<1x192x64xbf16>
    %27 = vector.shape_cast %26 : vector<1x192x64xbf16> to vector<192x64xbf16>
    %cst_33 = arith.constant dense<0.000000e+00> : vector<256x64xf32>
    %28 = tpu.matmul %25, %27, %cst_33 {dimension_numbers = #tpu.dot_dimension_numbers<[1], [0], [0], [1], [0, 0, 1, 1], [], []>} : vector<256x192xbf16>, vector<192x64xbf16>, vector<256x64xf32> -> vector<256x64xf32>
    %29 = arith.addf %24, %28 : vector<256x64xf32>
    %c32 = arith.constant 32 : index
    %c0_34 = arith.constant 0 : index
    %30 = vector.load %arg6[%c32, %c0_34] : memref<288x192xbf16, #tpu.memory_space<vmem>>, vector<256x192xbf16>
    %c26 = arith.constant 26 : index
    %c0_35 = arith.constant 0 : index
    %c0_36 = arith.constant 0 : index
    %31 = vector.load %arg2[%c26, %c0_35, %c0_36] : memref<27x192x64xbf16, #tpu.memory_space<vmem>>, vector<1x192x64xbf16>
    %32 = vector.shape_cast %31 : vector<1x192x64xbf16> to vector<192x64xbf16>
    %cst_37 = arith.constant dense<0.000000e+00> : vector<256x64xf32>
    %33 = tpu.matmul %30, %32, %cst_37 {dimension_numbers = #tpu.dot_dimension_numbers<[1], [0], [0], [1], [0, 0, 1, 1], [], []>} : vector<256x192xbf16>, vector<192x64xbf16>, vector<256x64xf32> -> vector<256x64xf32>
    %34 = arith.addf %29, %33 : vector<256x64xf32>
    %c0_38 = arith.constant 0 : index
    %c0_39 = arith.constant 0 : index
    %35 = vector.load %arg7[%c0_38, %c0_39] : memref<256x64xf32, #tpu.memory_space<vmem>>, vector<256x64xf32>
    %36 = arith.addf %34, %35 : vector<256x64xf32>
    %c0_40 = arith.constant 0 : index
    %c0_41 = arith.constant 0 : index
    %c0_42 = arith.constant 0 : index
    %37 = vector.load %arg4[%c0_40, %c0_41, %c0_42] : memref<1x256x64xf32, #tpu.memory_space<vmem>>, vector<1x256x64xf32>
    %38 = vector.shape_cast %37 : vector<1x256x64xf32> to vector<256x64xf32>
    %39 = vector.shape_cast %36 : vector<256x64xf32> to vector<1x256x64xf32>
    tpu.vector_store %arg4[%c0_40, %c0_41, %c0_42], %39 {strides = array<i32>} : memref<1x256x64xf32, #tpu.memory_space<vmem>>, vector<1x256x64xf32>,
    return
  }
  func.func @transform_0(%arg0: i32) -> (i32, i32, i32) {
    %c0_i32 = arith.constant 0 : i32
    %c0_i32_0 = arith.constant 0 : i32
    %c0_i32_1 = arith.constant 0 : i32
    return %arg0, %c0_i32, %c0_i32_0 : i32, i32, i32
  }
  func.func @transform_1(%arg0: i32) -> (i32, i32, i32) {
    %c0_i32 = arith.constant 0 : i32
    %c0_i32_0 = arith.constant 0 : i32
    %c0_i32_1 = arith.constant 0 : i32
    %c0_i32_2 = arith.constant 0 : i32
    return %c0_i32, %c0_i32_0, %c0_i32_1 : i32, i32, i32
  }
  func.func @transform_2(%arg0: i32) -> i32 {
    %c0_i32 = arith.constant 0 : i32
    %c0_i32_0 = arith.constant 0 : i32
    return %c0_i32 : i32
  }
  func.func @transform_3(%arg0: i32) -> (i32, i32, i32) {
    %c0_i32 = arith.constant 0 : i32
    %c0_i32_0 = arith.constant 0 : i32
    %c0_i32_1 = arith.constant 0 : i32
    return %arg0, %c0_i32, %c0_i32_0 : i32, i32, i32
  }
}

</mosaic_0001>

<llo_original>
// kernel: tpu_custom_call.1
$region0: #{tpu_custom_call.1}
  #allocation0 [shape = 'u32[]', space=smem, size = 0x4, offset = 0x4, fixed_abs, tag = 'smem constant byte address 0x4 - core index']
  #allocation1 [shape = 'u32[72,128]{1,0:T(1,128)}', space=vmem, size = 0x9000, scoped, tag = 'internal scratch']
  #allocation2 [shape = 'bf16[18,24,64]{2,1,0:T(8,128)(2,1)}', space=vmem, size = 0x1b000, scoped, tag = 'scratch operand']
  #allocation3 [shape = 'bf16[288,192]{1,0:T(8,128)(2,1)}', space=vmem, size = 0x24000, scoped, tag = 'scratch operand']
  #allocation4 [shape = 'f32[256,64]{1,0:T(8,128)}', space=vmem, size = 0x20000, scoped, tag = 'scratch operand']
  #allocation5 [shape = 'f32[256,64]{1,0:T(8,128)}', space=vmem, size = 0x20000, scoped, tag = 'scratch operand']
  %s0 = inlined_call_operand.vmem [shape: f32[2,256,64], index: 0, kind: input, shape index: {}]
  %s1 = inlined_call_operand.vmem [shape: bf16[27,192,64], index: 1, kind: input, shape index: {}]
  %s2 = inlined_call_operand.vmem [shape: f32[8], index: 2, kind: input, shape index: {}]
  %s3 = inlined_call_operand.vmem [shape: f32[2,256,64], index: 3, kind: output, shape index: {}]
  %s4 = sld [smem:[#allocation0]]
  $region56: #{tpu_custom_call.1} parent=0
    _
  %s6 = ssub.s32 1, %s4
  %s7 = scalar_select 0, %s6, %s4
  $region1: #{tpu_custom_call.1} parent=0
    #allocation6 [shape = 'u8[512]{0}', space=smem, size = 0x200, scoped, tag = 'input window, operand 2, single buffered']
    #allocation7 [shape = 's32[2]{0}', space=sflag, size = 0x8, scoped, tag = 'scoped memory for tpu_custom_call.1']
    %8 = vsyncpa [#allocation7], 0
    loop: start=0, step=1, limit=4
    $region2: #{tpu_custom_call.1} parent=1 // loop_pre_header
      _
    $region3: #{tpu_custom_call.1} parent=1 // loop_header
      %s10 = sphi 0, %s14
      %p11 = scmp.ge.s32.totalorder %s10, 4
      %s20 = sphi 0, %s22
      %s23 = sphi 0, %s20
      %s24 = sphi 0, %s23
      %s40 = sphi 0, %s24
      %s44 = sphi 0, %s44
      %s46 = sphi 0, %s44
      %s47 = sphi 0, %s46
      %s61 = sphi 0, %s47
      %s65 = sphi 0, %s65
      %s67 = sphi 0, %s65
      %s68 = sphi 0, %s67
      %s82 = sphi 0, %s68
      %s88 = sphi 0, %s90
      %s91 = sphi 0, %s88
      %s92 = sphi 0, %s91
      %s108 = sphi 0, %s92
    $region4: #{tpu_custom_call.1} parent=1 // loop_header_branch
      %13 = sbr.rel (%p11) target = $region8
    $region5: #{tpu_custom_call.1} parent=1 // loop_body
      %s15 = ssub.s32 %s10, 1
      %s16 = ssub.s32 %s10, 2
      %s17 = sadd.s32 %s10, 1
      %s18 = ssub.s32 %s10, %s17
      %p19 = scmp.eq.s32.totalorder %s18, 0
      %s21 = sadd.s32 %s20, 1
      %s22 = scalar_select %p19, %s20, %s21
      %p25 = pneg %p19
      %p26 = scmp.eq.s32.totalorder %s10, 1
      %p27 = por %p25, %p26
      %p28 = scmp.ne.s32.totalorder %s20, %s23
      %p29 = scmp.eq.s32.totalorder %s10, 0
      %p30 = por %p28, %p29
      %p31 = scmp.ne.s32.totalorder %s20, %s23
      %p32 = scmp.eq.s32.totalorder %s15, 1
      %p33 = por %p31, %p32
      %p34 = scmp.ne.s32.totalorder %s23, %s24
      %p35 = scmp.eq.s32.totalorder %s15, 0
      %p36 = por %p34, %p35
      %p37 = scmp.ne.s32.totalorder %s23, %s24
      %p38 = scmp.eq.s32.totalorder %s16, 1
      %p39 = por %p37, %p38
      %p41 = scmp.ne.s32.totalorder %s24, %s40
      %p42 = scmp.eq.s32.totalorder %s16, 0
      %p43 = por %p41, %p42
      %s45 = sadd.s32 %s44, 1
      %p48 = scmp.eq.s32.totalorder %s10, 1
      %p49 = scmp.ne.s32.totalorder %s44, %s46
      %p50 = scmp.eq.s32.totalorder %s10, 0
      %p51 = por %p49, %p50
      %p52 = scmp.ne.s32.totalorder %s44, %s46
      %p53 = scmp.eq.s32.totalorder %s15, 1
      %p54 = por %p52, %p53
      %p55 = scmp.ne.s32.totalorder %s46, %s47
      %p56 = scmp.eq.s32.totalorder %s15, 0
      %p57 = por %p55, %p56
      %p58 = scmp.ne.s32.totalorder %s46, %s47
      %p59 = scmp.eq.s32.totalorder %s16, 1
      %p60 = por %p58, %p59
      %p62 = scmp.ne.s32.totalorder %s47, %s61
      %p63 = scmp.eq.s32.totalorder %s16, 0
      %p64 = por %p62, %p63
      %s66 = sadd.s32 %s65, 1
      %p69 = scmp.eq.s32.totalorder %s10, 1
      %p70 = scmp.ne.s32.totalorder %s65, %s67
      %p71 = scmp.eq.s32.totalorder %s10, 0
      %p72 = por %p70, %p71
      %p73 = scmp.ne.s32.totalorder %s65, %s67
      %p74 = scmp.eq.s32.totalorder %s15, 1
      %p75 = por %p73, %p74
      %p76 = scmp.ne.s32.totalorder %s67, %s68
      %p77 = scmp.eq.s32.totalorder %s15, 0
      %p78 = por %p76, %p77
      %p79 = scmp.ne.s32.totalorder %s67, %s68
      %p80 = scmp.eq.s32.totalorder %s16, 1
      %p81 = por %p79, %p80
      %p83 = scmp.ne.s32.totalorder %s68, %s82
      %p84 = scmp.eq.s32.totalorder %s16, 0
      %p85 = por %p83, %p84
      %s86 = ssub.s32 %s10, %s17
      %p87 = scmp.eq.s32.totalorder %s86, 0
      %s89 = sadd.s32 %s88, 1
      %s90 = scalar_select %p87, %s88, %s89
      %p93 = pneg %p87
      %p94 = scmp.eq.s32.totalorder %s10, 1
      %p95 = por %p93, %p94
      %p96 = scmp.ne.s32.totalorder %s88, %s91
      %p97 = scmp.eq.s32.totalorder %s10, 0
      %p98 = por %p96, %p97
      %p99 = scmp.ne.s32.totalorder %s88, %s91
      %p100 = scmp.eq.s32.totalorder %s15, 1
      %p101 = por %p99, %p100
      %p102 = scmp.ne.s32.totalorder %s91, %s92
      %p103 = scmp.eq.s32.totalorder %s15, 0
      %p104 = por %p102, %p103
      %p105 = scmp.ne.s32.totalorder %s91, %s92
      %p106 = scmp.eq.s32.totalorder %s16, 1
      %p107 = por %p105, %p106
      %p109 = scmp.ne.s32.totalorder %s92, %s108
      %p110 = scmp.eq.s32.totalorder %s16, 0
      %p111 = por %p109, %p110
      %p112 = scmp.le.s32.totalorder 1, %s10
      %p113 = scmp.lt.s32.totalorder %s10, 3
      %p114 = pnand %p112, %p113
      %p115 = pneg %p114
      // Predicated region
      $region9: #{tpu_custom_call.1} parent=5 // pred_check
        _
      $region10: #{tpu_custom_call.1} parent=5 // pred_check_branch
        %117 = sbr.rel (%p114) target = $region12
      $region11: #{tpu_custom_call.1} parent=5 // pred_region
        %s118 = ssub.s32 %s10, 1
        // Predicated region
        $region13: #{tpu_custom_call.1} parent=11 // pred_check
          %p119 = pneg %p57
        $region14: #{tpu_custom_call.1} parent=11 // pred_check_branch
          %121 = sbr.rel (%p119) target = $region16
        $region15: #{tpu_custom_call.1} parent=11 // pred_region
          _
        $region16: #{tpu_custom_call.1} parent=11 // pred_fallthru
          _
        // Predicated region
        $region17: #{tpu_custom_call.1} parent=11 // pred_check
          %p122 = pneg %p78
        $region18: #{tpu_custom_call.1} parent=11 // pred_check_branch
          %124 = sbr.rel (%p122) target = $region20
        $region19: #{tpu_custom_call.1} parent=11 // pred_region
          %126 = vsyncadd [#allocation7], 0
          %s128 = sshll.u32 %s2, 4
          %s129 = int_to_ptr.vmem [resolvable:$true] %s128
          %131 = dma.vmem_to_smem %s129, 16, [#allocation6], [#allocation7]
        $region20: #{tpu_custom_call.1} parent=11 // pred_fallthru
          _
      $region12: #{tpu_custom_call.1} parent=5 // pred_fallthru
        _
      %p132 = scmp.lt.s32.totalorder %s10, 2
      // Predicated region
      $region21: #{tpu_custom_call.1} parent=5 // pred_check
        %p133 = pneg %p132
      $region22: #{tpu_custom_call.1} parent=5 // pred_check_branch
        %135 = sbr.rel (%p133) target = $region24
      $region23: #{tpu_custom_call.1} parent=5 // pred_region
        // Predicated region
        $region25: #{tpu_custom_call.1} parent=23 // pred_check
          %p136 = pneg %p30
        $region26: #{tpu_custom_call.1} parent=23 // pred_check_branch
          %138 = sbr.rel (%p136) target = $region28
        $region27: #{tpu_custom_call.1} parent=23 // pred_region
          %p139 = scmp.lt.s32.totalorder %s10, 1
          %s140 = scalar_select %p139, %s10, 1
          %s141 = smul.addr %s140, 32
          %s142 = smul.addr %s141, 8
          %s143 = scalar_lea.vmem %s0, %s142
        $region28: #{tpu_custom_call.1} parent=23 // pred_fallthru
          _
      $region24: #{tpu_custom_call.1} parent=5 // pred_fallthru
        _
      %p144 = scmp.le.s32.totalorder 1, %s10
      %p145 = scmp.lt.s32.totalorder %s10, 3
      %p146 = pnand %p144, %p145
      %p147 = pneg %p146
      // Predicated region
      $region29: #{tpu_custom_call.1} parent=5 // pred_check
        _
      $region30: #{tpu_custom_call.1} parent=5 // pred_check_branch
        %149 = sbr.rel (%p146) target = $region32
      $region31: #{tpu_custom_call.1} parent=5 // pred_region
        %s150 = ssub.s32 %s10, 1
        // Predicated region
        $region33: #{tpu_custom_call.1} parent=31 // pred_check
          %p151 = pneg %p78
        $region34: #{tpu_custom_call.1} parent=31 // pred_check_branch
          %153 = sbr.rel (%p151) target = $region36
        $region35: #{tpu_custom_call.1} parent=31 // pred_region
          %155 = dma.done [#allocation7], 16
        $region36: #{tpu_custom_call.1} parent=31 // pred_fallthru
          _
        %156 = sfence
        %p157 = scmp.lt.s32.totalorder %s15, 1
        %s158 = scalar_select %p157, %s15, 1
        %s159 = smul.addr %s158, 32
        %s160 = smul.addr %s159, 8
        %s161 = scalar_lea.vmem %s0, %s160
        %p162 = pneg %p36
        %p163 = pneg %p33
        %p164 = pneg %p57
        %p165 = pneg %p54
        %p166 = pneg %p78
        %p167 = pneg %p75
        %p168 = pneg %p104
        %p169 = pneg %p101
        %p170 = scmp.lt.s32.totalorder %s15, 1
        %s171 = scalar_select %p170, %s15, 1
        %s172 = smul.addr %s171, 32
        %s173 = smul.addr %s172, 8
        %s174 = scalar_lea.vmem %s3, %s173
        %p175 = scmp.lt.s32.totalorder %s15, 1
        %s176 = scalar_select %p175, %s15, 1
        %s177 = smul.addr %s176, 32
        %s178 = smul.addr %s177, 8
        %s179 = scalar_lea.vmem %s0, %s178
        %p180 = scmp.lt.s32.totalorder %s15, 1
        %s181 = scalar_select %p180, %s15, 1
        %s182 = smul.addr %s181, 32
        %s183 = smul.addr %s182, 8
        %s184 = scalar_lea.vmem %s3, %s183
        %vm186 = vcmask 519168
        %187 = vst.msk [vmem:[#allocation2] sm:$0xf] %vm186, 0
        %188 = vst.msk [vmem:[#allocation2 + $0x4] sm:$0xf] %vm186, 0
        %189 = vst.msk [vmem:[#allocation2 + $0x8] sm:$0xf] %vm186, 0
        %190 = vst.msk [vmem:[#allocation2 + $0xc] sm:$0xf] %vm186, 0
        %191 = vst.msk [vmem:[#allocation2 + $0x10] sm:$0xf] %vm186, 0
        %192 = vst.msk [vmem:[#allocation2 + $0x14] sm:$0xf] %vm186, 0
        %193 = vst.msk [vmem:[#allocation2 + $0x18] sm:$0xf] %vm186, 0
        %194 = vst.msk [vmem:[#allocation2 + $0x1c] sm:$0xf] %vm186, 0
        %195 = vst.msk [vmem:[#allocation2 + $0x20] sm:$0xf] %vm186, 0
        %196 = vst.msk [vmem:[#allocation2 + $0x24] sm:$0xf] %vm186, 0
        %197 = vst.msk [vmem:[#allocation2 + $0x28] sm:$0xf] %vm186, 0
        %198 = vst.msk [vmem:[#allocation2 + $0x2c] sm:$0xf] %vm186, 0
        %199 = vst.msk [vmem:[#allocation2 + $0x30] sm:$0xf] %vm186, 0
        %200 = vst.msk [vmem:[#allocation2 + $0x34] sm:$0xf] %vm186, 0
        %201 = vst.msk [vmem:[#allocation2 + $0x38] sm:$0xf] %vm186, 0
        %202 = vst.msk [vmem:[#allocation2 + $0x3c] sm:$0xf] %vm186, 0
        %203 = vst.msk [vmem:[#allocation2 + $0x40] sm:$0xf] %vm186, 0
        %204 = vst.msk [vmem:[#allocation2 + $0x44] sm:$0xf] %vm186, 0
        %205 = vst.msk [vmem:[#allocation2 + $0x48] sm:$0xf] %vm186, 0
        %206 = vst.msk [vmem:[#allocation2 + $0x4c] sm:$0xf] %vm186, 0
        %207 = vst.msk [vmem:[#allocation2 + $0x50] sm:$0xf] %vm186, 0
        %208 = vst.msk [vmem:[#allocation2 + $0x54] sm:$0xf] %vm186, 0
        %209 = vst.msk [vmem:[#allocation2 + $0x58] sm:$0xf] %vm186, 0
        %210 = vst.msk [vmem:[#allocation2 + $0x5c] sm:$0xf] %vm186, 0
        %211 = vst.msk [vmem:[#allocation2 + $0x60] sm:$0xf] %vm186, 0
        %212 = vst.msk [vmem:[#allocation2 + $0x64] sm:$0xf] %vm186, 0
        %213 = vst.msk [vmem:[#allocation2 + $0x68] sm:$0xf] %vm186, 0
        %214 = vst.msk [vmem:[#allocation2 + $0x6c] sm:$0xf] %vm186, 0
        %215 = vst.msk [vmem:[#allocation2 + $0x70] sm:$0xf] %vm186, 0
        %216 = vst.msk [vmem:[#allocation2 + $0x74] sm:$0xf] %vm186, 0
        %217 = vst.msk [vmem:[#allocation2 + $0x78] sm:$0xf] %vm186, 0
        %218 = vst.msk [vmem:[#allocation2 + $0x7c] sm:$0xf] %vm186, 0
        %219 = vst.msk [vmem:[#allocation2 + $0x80] sm:$0xf] %vm186, 0
        %220 = vst.msk [vmem:[#allocation2 + $0x84] sm:$0xf] %vm186, 0
        %221 = vst.msk [vmem:[#allocation2 + $0x88] sm:$0xf] %vm186, 0
        %222 = vst.msk [vmem:[#allocation2 + $0x8c] sm:$0xf] %vm186, 0
        %223 = vst.msk [vmem:[#allocation2 + $0x90] sm:$0xf] %vm186, 0
        %224 = vst.msk [vmem:[#allocation2 + $0x94] sm:$0xf] %vm186, 0
        %225 = vst.msk [vmem:[#allocation2 + $0x98] sm:$0xf] %vm186, 0
        %226 = vst.msk [vmem:[#allocation2 + $0x9c] sm:$0xf] %vm186, 0
        %227 = vst.msk [vmem:[#allocation2 + $0xa0] sm:$0xf] %vm186, 0
        %228 = vst.msk [vmem:[#allocation2 + $0xa4] sm:$0xf] %vm186, 0
        %229 = vst.msk [vmem:[#allocation2 + $0xa8] sm:$0xf] %vm186, 0
        %230 = vst.msk [vmem:[#allocation2 + $0xac] sm:$0xf] %vm186, 0
        %231 = vst.msk [vmem:[#allocation2 + $0xb0] sm:$0xf] %vm186, 0
        %232 = vst.msk [vmem:[#allocation2 + $0xb4] sm:$0xf] %vm186, 0
        %233 = vst.msk [vmem:[#allocation2 + $0xb8] sm:$0xf] %vm186, 0
        %234 = vst.msk [vmem:[#allocation2 + $0xbc] sm:$0xf] %vm186, 0
        %235 = vst.msk [vmem:[#allocation2 + $0xc0] sm:$0xf] %vm186, 0
        %236 = vst.msk [vmem:[#allocation2 + $0xc4] sm:$0xf] %vm186, 0
        %237 = vst.msk [vmem:[#allocation2 + $0xc8] sm:$0xf] %vm186, 0
        %238 = vst.msk [vmem:[#allocation2 + $0xcc] sm:$0xf] %vm186, 0
        %239 = vst.msk [vmem:[#allocation2 + $0xd0] sm:$0xf] %vm186, 0
        %240 = vst.msk [vmem:[#allocation2 + $0xd4] sm:$0xf] %vm186, 0
        %v241 = vld [vmem:[%s179] sm:$0xff]
        %v242 = vld [vmem:[%s179 + $0x8] sm:$0xff]
        %v243 = vld [vmem:[%s179 + $0x10] sm:$0xff]
        %v244 = vld [vmem:[%s179 + $0x18] sm:$0xff]
        %v245 = vld [vmem:[%s179 + $0x20] sm:$0xff]
        %v246 = vld [vmem:[%s179 + $0x28] sm:$0xff]
        %v247 = vld [vmem:[%s179 + $0x30] sm:$0xff]
        %v248 = vld [vmem:[%s179 + $0x38] sm:$0xff]
        %v249 = vld [vmem:[%s179 + $0x40] sm:$0xff]
        %v250 = vld [vmem:[%s179 + $0x48] sm:$0xff]
        %v251 = vld [vmem:[%s179 + $0x50] sm:$0xff]
        %v252 = vld [vmem:[%s179 + $0x58] sm:$0xff]
        %v253 = vld [vmem:[%s179 + $0x60] sm:$0xff]
        %v254 = vld [vmem:[%s179 + $0x68] sm:$0xff]
        %v255 = vld [vmem:[%s179 + $0x70] sm:$0xff]
        %v256 = vld [vmem:[%s179 + $0x78] sm:$0xff]
        %v257 = vld [vmem:[%s179 + $0x80] sm:$0xff]
        %v258 = vld [vmem:[%s179 + $0x88] sm:$0xff]
        %v259 = vld [vmem:[%s179 + $0x90] sm:$0xff]
        %v260 = vld [vmem:[%s179 + $0x98] sm:$0xff]
        %v261 = vld [vmem:[%s179 + $0xa0] sm:$0xff]
        %v262 = vld [vmem:[%s179 + $0xa8] sm:$0xff]
        %v263 = vld [vmem:[%s179 + $0xb0] sm:$0xff]
        %v264 = vld [vmem:[%s179 + $0xb8] sm:$0xff]
        %v265 = vld [vmem:[%s179 + $0xc0] sm:$0xff]
        %v266 = vld [vmem:[%s179 + $0xc8] sm:$0xff]
        %v267 = vld [vmem:[%s179 + $0xd0] sm:$0xff]
        %v268 = vld [vmem:[%s179 + $0xd8] sm:$0xff]
        %v269 = vld [vmem:[%s179 + $0xe0] sm:$0xff]
        %v270 = vld [vmem:[%s179 + $0xe8] sm:$0xff]
        %v271 = vld [vmem:[%s179 + $0xf0] sm:$0xff]
        %v272 = vld [vmem:[%s179 + $0xf8] sm:$0xff]
        %vm273 = vcmask 523264
        %274 = vst.msk [vmem:[#allocation4] sm:$0xff] %vm273, %v241
        %275 = vst.msk [vmem:[#allocation4 + $0x8] sm:$0xff] %vm273, %v242
        %276 = vst.msk [vmem:[#allocation4 + $0x10] sm:$0xff] %vm273, %v243
        %277 = vst.msk [vmem:[#allocation4 + $0x18] sm:$0xff] %vm273, %v244
        %278 = vst.msk [vmem:[#allocation4 + $0x20] sm:$0xff] %vm273, %v245
        %279 = vst.msk [vmem:[#allocation4 + $0x28] sm:$0xff] %vm273, %v246
        %280 = vst.msk [vmem:[#allocation4 + $0x30] sm:$0xff] %vm273, %v247
        %281 = vst.msk [vmem:[#allocation4 + $0x38] sm:$0xff] %vm273, %v248
        %282 = vst.msk [vmem:[#allocation4 + $0x40] sm:$0xff] %vm273, %v249
        %283 = vst.msk [vmem:[#allocation4 + $0x48] sm:$0xff] %vm273, %v250
        %284 = vst.msk [vmem:[#allocation4 + $0x50] sm:$0xff] %vm273, %v251
        %285 = vst.msk [vmem:[#allocation4 + $0x58] sm:$0xff] %vm273, %v252
        %286 = vst.msk [vmem:[#allocation4 + $0x60] sm:$0xff] %vm273, %v253
        %287 = vst.msk [vmem:[#allocation4 + $0x68] sm:$0xff] %vm273, %v254
        %288 = vst.msk [vmem:[#allocation4 + $0x70] sm:$0xff] %vm273, %v255
        %289 = vst.msk [vmem:[#allocation4 + $0x78] sm:$0xff] %vm273, %v256
        %290 = vst.msk [vmem:[#allocation4 + $0x80] sm:$0xff] %vm273, %v257
        %291 = vst.msk [vmem:[#allocation4 + $0x88] sm:$0xff] %vm273, %v258
        %292 = vst.msk [vmem:[#allocation4 + $0x90] sm:$0xff] %vm273, %v259
        %293 = vst.msk [vmem:[#allocation4 + $0x98] sm:$0xff] %vm273, %v260
        %294 = vst.msk [vmem:[#allocation4 + $0xa0] sm:$0xff] %vm273, %v261
        %295 = vst.msk [vmem:[#allocation4 + $0xa8] sm:$0xff] %vm273, %v262
        %296 = vst.msk [vmem:[#allocation4 + $0xb0] sm:$0xff] %vm273, %v263
        %297 = vst.msk [vmem:[#allocation4 + $0xb8] sm:$0xff] %vm273, %v264
        %298 = vst.msk [vmem:[#allocation4 + $0xc0] sm:$0xff] %vm273, %v265
        %299 = vst.msk [vmem:[#allocation4 + $0xc8] sm:$0xff] %vm273, %v266
        %300 = vst.msk [vmem:[#allocation4 + $0xd0] sm:$0xff] %vm273, %v267
        %301 = vst.msk [vmem:[#allocation4 + $0xd8] sm:$0xff] %vm273, %v268
        %302 = vst.msk [vmem:[#allocation4 + $0xe0] sm:$0xff] %vm273, %v269
        %303 = vst.msk [vmem:[#allocation4 + $0xe8] sm:$0xff] %vm273, %v270
        %304 = vst.msk [vmem:[#allocation4 + $0xf0] sm:$0xff] %vm273, %v271
        %305 = vst.msk [vmem:[#allocation4 + $0xf8] sm:$0xff] %vm273, %v272
        %306 = vst.msk [vmem:[#allocation5] sm:$0xff] %vm273, %v241
        %307 = vst.msk [vmem:[#allocation5 + $0x8] sm:$0xff] %vm273, %v242
        %308 = vst.msk [vmem:[#allocation5 + $0x10] sm:$0xff] %vm273, %v243
        %309 = vst.msk [vmem:[#allocation5 + $0x18] sm:$0xff] %vm273, %v244
        %310 = vst.msk [vmem:[#allocation5 + $0x20] sm:$0xff] %vm273, %v245
        %311 = vst.msk [vmem:[#allocation5 + $0x28] sm:$0xff] %vm273, %v246
        %312 = vst.msk [vmem:[#allocation5 + $0x30] sm:$0xff] %vm273, %v247
        %313 = vst.msk [vmem:[#allocation5 + $0x38] sm:$0xff] %vm273, %v248
        %314 = vst.msk [vmem:[#allocation5 + $0x40] sm:$0xff] %vm273, %v249
        %315 = vst.msk [vmem:[#allocation5 + $0x48] sm:$0xff] %vm273, %v250
        %316 = vst.msk [vmem:[#allocation5 + $0x50] sm:$0xff] %vm273, %v251
        %317 = vst.msk [vmem:[#allocation5 + $0x58] sm:$0xff] %vm273, %v252
        %318 = vst.msk [vmem:[#allocation5 + $0x60] sm:$0xff] %vm273, %v253
        %319 = vst.msk [vmem:[#allocation5 + $0x68] sm:$0xff] %vm273, %v254
        %320 = vst.msk [vmem:[#allocation5 + $0x70] sm:$0xff] %vm273, %v255
        %321 = vst.msk [vmem:[#allocation5 + $0x78] sm:$0xff] %vm273, %v256
        %322 = vst.msk [vmem:[#allocation5 + $0x80] sm:$0xff] %vm273, %v257
        %323 = vst.msk [vmem:[#allocation5 + $0x88] sm:$0xff] %vm273, %v258
        %324 = vst.msk [vmem:[#allocation5 + $0x90] sm:$0xff] %vm273, %v259
        %325 = vst.msk [vmem:[#allocation5 + $0x98] sm:$0xff] %vm273, %v260
        %326 = vst.msk [vmem:[#allocation5 + $0xa0] sm:$0xff] %vm273, %v261
        %327 = vst.msk [vmem:[#allocation5 + $0xa8] sm:$0xff] %vm273, %v262
        %328 = vst.msk [vmem:[#allocation5 + $0xb0] sm:$0xff] %vm273, %v263
        %329 = vst.msk [vmem:[#allocation5 + $0xb8] sm:$0xff] %vm273, %v264
        %330 = vst.msk [vmem:[#allocation5 + $0xc0] sm:$0xff] %vm273, %v265
        %331 = vst.msk [vmem:[#allocation5 + $0xc8] sm:$0xff] %vm273, %v266
        %332 = vst.msk [vmem:[#allocation5 + $0xd0] sm:$0xff] %vm273, %v267
        %333 = vst.msk [vmem:[#allocation5 + $0xd8] sm:$0xff] %vm273, %v268
        %334 = vst.msk [vmem:[#allocation5 + $0xe0] sm:$0xff] %vm273, %v269
        %335 = vst.msk [vmem:[#allocation5 + $0xe8] sm:$0xff] %vm273, %v270
        %336 = vst.msk [vmem:[#allocation5 + $0xf0] sm:$0xff] %vm273, %v271
        %337 = vst.msk [vmem:[#allocation5 + $0xf8] sm:$0xff] %vm273, %v272
        %v338 = vpack.c.bf16 %v241, %v241
        %v339 = vpack.c.bf16 %v242, %v242
        %v340 = vpack.c.bf16 %v243, %v243
        %v341 = vpack.c.bf16 %v244, %v244
        %v342 = vpack.c.bf16 %v245, %v245
        %v343 = vpack.c.bf16 %v246, %v246
        %v344 = vpack.c.bf16 %v247, %v247
        %v345 = vpack.c.bf16 %v248, %v248
        %v346 = vpack.c.bf16 %v249, %v249
        %v347 = vpack.c.bf16 %v250, %v250
        %v348 = vpack.c.bf16 %v251, %v251
        %v349 = vpack.c.bf16 %v252, %v252
        %v350 = vpack.c.bf16 %v253, %v253
        %v351 = vpack.c.bf16 %v254, %v254
        %v352 = vpack.c.bf16 %v255, %v255
        %v353 = vpack.c.bf16 %v256, %v256
        %v354 = vpack.c.bf16 %v257, %v257
        %v355 = vpack.c.bf16 %v258, %v258
        %v356 = vpack.c.bf16 %v259, %v259
        %v357 = vpack.c.bf16 %v260, %v260
        %v358 = vpack.c.bf16 %v261, %v261
        %v359 = vpack.c.bf16 %v262, %v262
        %v360 = vpack.c.bf16 %v263, %v263
        %v361 = vpack.c.bf16 %v264, %v264
        %v362 = vpack.c.bf16 %v265, %v265
        %v363 = vpack.c.bf16 %v266, %v266
        %v364 = vpack.c.bf16 %v267, %v267
        %v365 = vpack.c.bf16 %v268, %v268
        %v366 = vpack.c.bf16 %v269, %v269
        %v367 = vpack.c.bf16 %v270, %v270
        %v368 = vpack.c.bf16 %v271, %v271
        %v369 = vpack.c.bf16 %v272, %v272
        %vm370 = vsmask.f32 256
        %vm371 = vsmask.f32 4368
        %vm372 = vmor %vm370, %vm371
        %v374 = vshrl.u32 %v338, 16
        %v376 = vrot.slane %v374, 7
        %v377 = vshll.u32 %v338, 16
        %v379 = vor.u32 %v376, %v377
        %v380 = vrot.slane %v376, 4
        %v382 = vshrl.u32 %v339, 16
        %v384 = vrot.slane %v382, 7
        %v385 = vshll.u32 %v339, 16
        %v387 = vor.u32 %v384, %v385
        %v388 = vsel %vm372, %v380, %v387
        %v389 = vrot.slane %v384, 4
        %v391 = vshrl.u32 %v340, 16
        %v393 = vrot.slane %v391, 7
        %v394 = vshll.u32 %v340, 16
        %v396 = vor.u32 %v393, %v394
        %v397 = vrot.slane %v393, 4
        %v399 = vshrl.u32 %v341, 16
        %v401 = vrot.slane %v399, 7
        %v402 = vshll.u32 %v341, 16
        %v404 = vor.u32 %v401, %v402
        %v405 = vsel %vm372, %v397, %v404
        %v406 = vrot.slane %v401, 4
        %v408 = vshrl.u32 %v342, 16
        %v410 = vrot.slane %v408, 7
        %v411 = vshll.u32 %v342, 16
        %v413 = vor.u32 %v410, %v411
        %v414 = vrot.slane %v410, 4
        %v416 = vshrl.u32 %v343, 16
        %v418 = vrot.slane %v416, 7
        %v419 = vshll.u32 %v343, 16
        %v421 = vor.u32 %v418, %v419
        %v422 = vsel %vm372, %v414, %v421
        %v423 = vrot.slane %v418, 4
        %v425 = vshrl.u32 %v344, 16
        %v427 = vrot.slane %v425, 7
        %v428 = vshll.u32 %v344, 16
        %v430 = vor.u32 %v427, %v428
        %v431 = vrot.slane %v427, 4
        %v433 = vshrl.u32 %v345, 16
        %v435 = vrot.slane %v433, 7
        %v436 = vshll.u32 %v345, 16
        %v438 = vor.u32 %v435, %v436
        %v439 = vsel %vm372, %v431, %v438
        %v440 = vrot.slane %v435, 4
        %v442 = vshrl.u32 %v346, 16
        %v444 = vrot.slane %v442, 7
        %v445 = vshll.u32 %v346, 16
        %v447 = vor.u32 %v444, %v445
        %v448 = vrot.slane %v444, 4
        %v450 = vshrl.u32 %v347, 16
        %v452 = vrot.slane %v450, 7
        %v453 = vshll.u32 %v347, 16
        %v455 = vor.u32 %v452, %v453
        %v456 = vsel %vm372, %v448, %v455
        %v457 = vrot.slane %v452, 4
        %v459 = vshrl.u32 %v348, 16
        %v461 = vrot.slane %v459, 7
        %v462 = vshll.u32 %v348, 16
        %v464 = vor.u32 %v461, %v462
        %v465 = vrot.slane %v461, 4
        %v467 = vshrl.u32 %v349, 16
        %v469 = vrot.slane %v467, 7
        %v470 = vshll.u32 %v349, 16
        %v472 = vor.u32 %v469, %v470
        %v473 = vsel %vm372, %v465, %v472
        %v474 = vrot.slane %v469, 4
        %v476 = vshrl.u32 %v350, 16
        %v478 = vrot.slane %v476, 7
        %v479 = vshll.u32 %v350, 16
        %v481 = vor.u32 %v478, %v479
        %v482 = vrot.slane %v478, 4
        %v484 = vshrl.u32 %v351, 16
        %v486 = vrot.slane %v484, 7
        %v487 = vshll.u32 %v351, 16
        %v489 = vor.u32 %v486, %v487
        %v490 = vsel %vm372, %v482, %v489
        %v491 = vrot.slane %v486, 4
        %v493 = vshrl.u32 %v352, 16
        %v495 = vrot.slane %v493, 7
        %v496 = vshll.u32 %v352, 16
        %v498 = vor.u32 %v495, %v496
        %v499 = vrot.slane %v495, 4
        %v501 = vshrl.u32 %v353, 16
        %v503 = vrot.slane %v501, 7
        %v504 = vshll.u32 %v353, 16
        %v506 = vor.u32 %v503, %v504
        %v507 = vsel %vm372, %v499, %v506
        %v508 = vrot.slane %v503, 4
        %v510 = vshrl.u32 %v354, 16
        %v512 = vrot.slane %v510, 7
        %v513 = vshll.u32 %v354, 16
        %v515 = vor.u32 %v512, %v513
        %v516 = vrot.slane %v512, 4
        %v518 = vshrl.u32 %v355, 16
        %v520 = vrot.slane %v518, 7
        %v521 = vshll.u32 %v355, 16
        %v523 = vor.u32 %v520, %v521
        %v524 = vsel %vm372, %v516, %v523
        %v525 = vrot.slane %v520, 4
        %v527 = vshrl.u32 %v356, 16
        %v529 = vrot.slane %v527, 7
        %v530 = vshll.u32 %v356, 16
        %v532 = vor.u32 %v529, %v530
        %v533 = vrot.slane %v529, 4
        %v535 = vshrl.u32 %v357, 16
        %v537 = vrot.slane %v535, 7
        %v538 = vshll.u32 %v357, 16
        %v540 = vor.u32 %v537, %v538
        %v541 = vsel %vm372, %v533, %v540
        %v542 = vrot.slane %v537, 4
        %v544 = vshrl.u32 %v358, 16
        %v546 = vrot.slane %v544, 7
        %v547 = vshll.u32 %v358, 16
        %v549 = vor.u32 %v546, %v547
        %v550 = vrot.slane %v546, 4
        %v552 = vshrl.u32 %v359, 16
        %v554 = vrot.slane %v552, 7
        %v555 = vshll.u32 %v359, 16
        %v557 = vor.u32 %v554, %v555
        %v558 = vsel %vm372, %v550, %v557
        %v559 = vrot.slane %v554, 4
        %v561 = vshrl.u32 %v360, 16
        %v563 = vrot.slane %v561, 7
        %v564 = vshll.u32 %v360, 16
        %v566 = vor.u32 %v563, %v564
        %v567 = vrot.slane %v563, 4
        %v569 = vshrl.u32 %v361, 16
        %v571 = vrot.slane %v569, 7
        %v572 = vshll.u32 %v361, 16
        %v574 = vor.u32 %v571, %v572
        %v575 = vsel %vm372, %v567, %v574
        %v576 = vrot.slane %v571, 4
        %v578 = vshrl.u32 %v362, 16
        %v580 = vrot.slane %v578, 7
        %v581 = vshll.u32 %v362, 16
        %v583 = vor.u32 %v580, %v581
        %v584 = vrot.slane %v580, 4
        %v586 = vshrl.u32 %v363, 16
        %v588 = vrot.slane %v586, 7
        %v589 = vshll.u32 %v363, 16
        %v591 = vor.u32 %v588, %v589
        %v592 = vsel %vm372, %v584, %v591
        %v593 = vrot.slane %v588, 4
        %v595 = vshrl.u32 %v364, 16
        %v597 = vrot.slane %v595, 7
        %v598 = vshll.u32 %v364, 16
        %v600 = vor.u32 %v597, %v598
        %v601 = vrot.slane %v597, 4
        %v603 = vshrl.u32 %v365, 16
        %v605 = vrot.slane %v603, 7
        %v606 = vshll.u32 %v365, 16
        %v608 = vor.u32 %v605, %v606
        %v609 = vsel %vm372, %v601, %v608
        %v610 = vrot.slane %v605, 4
        %v612 = vshrl.u32 %v366, 16
        %v614 = vrot.slane %v612, 7
        %v615 = vshll.u32 %v366, 16
        %v617 = vor.u32 %v614, %v615
        %v618 = vrot.slane %v614, 4
        %v620 = vshrl.u32 %v367, 16
        %v622 = vrot.slane %v620, 7
        %v623 = vshll.u32 %v367, 16
        %v625 = vor.u32 %v622, %v623
        %v626 = vsel %vm372, %v618, %v625
        %v627 = vrot.slane %v622, 4
        %v629 = vshrl.u32 %v368, 16
        %v631 = vrot.slane %v629, 7
        %v632 = vshll.u32 %v368, 16
        %v634 = vor.u32 %v631, %v632
        %v635 = vrot.slane %v631, 4
        %v637 = vshrl.u32 %v369, 16
        %v639 = vrot.slane %v637, 7
        %v640 = vshll.u32 %v369, 16
        %v642 = vor.u32 %v639, %v640
        %v643 = vsel %vm372, %v635, %v642
        %v644 = vrot.slane %v639, 4
        %s693 = scalar_lea.vmem [#allocation2], 12
        %vm694 = vcmask 519168
        %vm695 = vsmask.f32 7938
        %vm696 = vmand %vm694, %vm695
        %v697 = vld [vmem:[%s693] sm:$0xf]
        %v698 = vsel %vm696, %v379, %v697
        %699 = vst [vmem:[%s693] sm:$0xf] %v698
        %700 = vst.msk [vmem:[%s693 + $0x4] sm:$0xf] %vm186, %v388
        %vm701 = vcmask 516096
        %vm702 = vmand %vm701, %vm370
        %v703 = vld [vmem:[%s693 + $0x8] sm:$0x1]
        %v704 = vsel %vm702, %v389, %v703
        %705 = vst [vmem:[%s693 + $0x8] sm:$0x1] %v704
        %v706 = vld [vmem:[%s693 + $0xc] sm:$0xf]
        %v707 = vsel %vm696, %v396, %v706
        %708 = vst [vmem:[%s693 + $0xc] sm:$0xf] %v707
        %709 = vst.msk [vmem:[%s693 + $0x10] sm:$0xf] %vm186, %v405
        %v710 = vld [vmem:[%s693 + $0x14] sm:$0x1]
        %v711 = vsel %vm702, %v406, %v710
        %712 = vst [vmem:[%s693 + $0x14] sm:$0x1] %v711
        %v713 = vld [vmem:[%s693 + $0x18] sm:$0xf]
        %v714 = vsel %vm696, %v413, %v713
        %715 = vst [vmem:[%s693 + $0x18] sm:$0xf] %v714
        %716 = vst.msk [vmem:[%s693 + $0x1c] sm:$0xf] %vm186, %v422
        %v717 = vld [vmem:[%s693 + $0x20] sm:$0x1]
        %v718 = vsel %vm702, %v423, %v717
        %719 = vst [vmem:[%s693 + $0x20] sm:$0x1] %v718
        %v720 = vld [vmem:[%s693 + $0x24] sm:$0xf]
        %v721 = vsel %vm696, %v430, %v720
        %722 = vst [vmem:[%s693 + $0x24] sm:$0xf] %v721
        %723 = vst.msk [vmem:[%s693 + $0x28] sm:$0xf] %vm186, %v439
        %v724 = vld [vmem:[%s693 + $0x2c] sm:$0x1]
        %v725 = vsel %vm702, %v440, %v724
        %726 = vst [vmem:[%s693 + $0x2c] sm:$0x1] %v725
        %v727 = vld [vmem:[%s693 + $0x30] sm:$0xf]
        %v728 = vsel %vm696, %v447, %v727
        %729 = vst [vmem:[%s693 + $0x30] sm:$0xf] %v728
        %730 = vst.msk [vmem:[%s693 + $0x34] sm:$0xf] %vm186, %v456
        %v731 = vld [vmem:[%s693 + $0x38] sm:$0x1]
        %v732 = vsel %vm702, %v457, %v731
        %733 = vst [vmem:[%s693 + $0x38] sm:$0x1] %v732
        %v734 = vld [vmem:[%s693 + $0x3c] sm:$0xf]
        %v735 = vsel %vm696, %v464, %v734
        %736 = vst [vmem:[%s693 + $0x3c] sm:$0xf] %v735
        %737 = vst.msk [vmem:[%s693 + $0x40] sm:$0xf] %vm186, %v473
        %v738 = vld [vmem:[%s693 + $0x44] sm:$0x1]
        %v739 = vsel %vm702, %v474, %v738
        %740 = vst [vmem:[%s693 + $0x44] sm:$0x1] %v739
        %v741 = vld [vmem:[%s693 + $0x48] sm:$0xf]
        %v742 = vsel %vm696, %v481, %v741
        %743 = vst [vmem:[%s693 + $0x48] sm:$0xf] %v742
        %744 = vst.msk [vmem:[%s693 + $0x4c] sm:$0xf] %vm186, %v490
        %v745 = vld [vmem:[%s693 + $0x50] sm:$0x1]
        %v746 = vsel %vm702, %v491, %v745
        %747 = vst [vmem:[%s693 + $0x50] sm:$0x1] %v746
        %v748 = vld [vmem:[%s693 + $0x54] sm:$0xf]
        %v749 = vsel %vm696, %v498, %v748
        %750 = vst [vmem:[%s693 + $0x54] sm:$0xf] %v749
        %751 = vst.msk [vmem:[%s693 + $0x58] sm:$0xf] %vm186, %v507
        %v752 = vld [vmem:[%s693 + $0x5c] sm:$0x1]
        %v753 = vsel %vm702, %v508, %v752
        %754 = vst [vmem:[%s693 + $0x5c] sm:$0x1] %v753
        %v755 = vld [vmem:[%s693 + $0x60] sm:$0xf]
        %v756 = vsel %vm696, %v515, %v755
        %757 = vst [vmem:[%s693 + $0x60] sm:$0xf] %v756
        %758 = vst.msk [vmem:[%s693 + $0x64] sm:$0xf] %vm186, %v524
        %v759 = vld [vmem:[%s693 + $0x68] sm:$0x1]
        %v760 = vsel %vm702, %v525, %v759
        %761 = vst [vmem:[%s693 + $0x68] sm:$0x1] %v760
        %v762 = vld [vmem:[%s693 + $0x6c] sm:$0xf]
        %v763 = vsel %vm696, %v532, %v762
        %764 = vst [vmem:[%s693 + $0x6c] sm:$0xf] %v763
        %765 = vst.msk [vmem:[%s693 + $0x70] sm:$0xf] %vm186, %v541
        %v766 = vld [vmem:[%s693 + $0x74] sm:$0x1]
        %v767 = vsel %vm702, %v542, %v766
        %768 = vst [vmem:[%s693 + $0x74] sm:$0x1] %v767
        %v769 = vld [vmem:[%s693 + $0x78] sm:$0xf]
        %v770 = vsel %vm696, %v549, %v769
        %771 = vst [vmem:[%s693 + $0x78] sm:$0xf] %v770
        %772 = vst.msk [vmem:[%s693 + $0x7c] sm:$0xf] %vm186, %v558
        %v773 = vld [vmem:[%s693 + $0x80] sm:$0x1]
        %v774 = vsel %vm702, %v559, %v773
        %775 = vst [vmem:[%s693 + $0x80] sm:$0x1] %v774
        %v776 = vld [vmem:[%s693 + $0x84] sm:$0xf]
        %v777 = vsel %vm696, %v566, %v776
        %778 = vst [vmem:[%s693 + $0x84] sm:$0xf] %v777
        %779 = vst.msk [vmem:[%s693 + $0x88] sm:$0xf] %vm186, %v575
        %v780 = vld [vmem:[%s693 + $0x8c] sm:$0x1]
        %v781 = vsel %vm702, %v576, %v780
        %782 = vst [vmem:[%s693 + $0x8c] sm:$0x1] %v781
        %v783 = vld [vmem:[%s693 + $0x90] sm:$0xf]
        %v784 = vsel %vm696, %v583, %v783
        %785 = vst [vmem:[%s693 + $0x90] sm:$0xf] %v784
        %786 = vst.msk [vmem:[%s693 + $0x94] sm:$0xf] %vm186, %v592
        %v787 = vld [vmem:[%s693 + $0x98] sm:$0x1]
        %v788 = vsel %vm702, %v593, %v787
        %789 = vst [vmem:[%s693 + $0x98] sm:$0x1] %v788
        %v790 = vld [vmem:[%s693 + $0x9c] sm:$0xf]
        %v791 = vsel %vm696, %v600, %v790
        %792 = vst [vmem:[%s693 + $0x9c] sm:$0xf] %v791
        %793 = vst.msk [vmem:[%s693 + $0xa0] sm:$0xf] %vm186, %v609
        %v794 = vld [vmem:[%s693 + $0xa4] sm:$0x1]
        %v795 = vsel %vm702, %v610, %v794
        %796 = vst [vmem:[%s693 + $0xa4] sm:$0x1] %v795
        %v797 = vld [vmem:[%s693 + $0xa8] sm:$0xf]
        %v798 = vsel %vm696, %v617, %v797
        %799 = vst [vmem:[%s693 + $0xa8] sm:$0xf] %v798
        %800 = vst.msk [vmem:[%s693 + $0xac] sm:$0xf] %vm186, %v626
        %v801 = vld [vmem:[%s693 + $0xb0] sm:$0x1]
        %v802 = vsel %vm702, %v627, %v801
        %803 = vst [vmem:[%s693 + $0xb0] sm:$0x1] %v802
        %v804 = vld [vmem:[%s693 + $0xb4] sm:$0xf]
        %v805 = vsel %vm696, %v634, %v804
        %806 = vst [vmem:[%s693 + $0xb4] sm:$0xf] %v805
        %807 = vst.msk [vmem:[%s693 + $0xb8] sm:$0xf] %vm186, %v643
        %v808 = vld [vmem:[%s693 + $0xbc] sm:$0x1]
        %v809 = vsel %vm702, %v644, %v808
        %810 = vst [vmem:[%s693 + $0xbc] sm:$0x1] %v809
        loop: start=0, step=1, limit=4
        $region37: #{tpu_custom_call.1} parent=31 // loop_pre_header
          _
        $region38: #{tpu_custom_call.1} parent=31 // loop_header
          %s812 = sphi 0, %s816
          %p813 = scmp.ge.s32.totalorder %s812, 4
        $region39: #{tpu_custom_call.1} parent=31 // loop_header_branch
          %815 = sbr.rel (%p813) target = $region43
        $region40: #{tpu_custom_call.1} parent=31 // loop_body
          %s817 = smul.u32 %s812, 2
          %v818 = vld [vmem:[#allocation2] sm:$0xf]
          %v819 = vld [vmem:[#allocation2 + $0x4] sm:$0xf]
          %v820 = vld [vmem:[#allocation2 + $0xc] sm:$0xf]
          %v821 = vld [vmem:[#allocation2 + $0x10] sm:$0xf]
          %v822 = vld [vmem:[#allocation2 + $0x18] sm:$0xf]
          %v823 = vld [vmem:[#allocation2 + $0x1c] sm:$0xf]
          %v824 = vld [vmem:[#allocation2 + $0x24] sm:$0xf]
          %v825 = vld [vmem:[#allocation2 + $0x28] sm:$0xf]
          %v826 = vld [vmem:[#allocation2 + $0x30] sm:$0xf]
          %v827 = vld [vmem:[#allocation2 + $0x34] sm:$0xf]
          %v828 = vld [vmem:[#allocation2 + $0x3c] sm:$0xf]
          %v829 = vld [vmem:[#allocation2 + $0x40] sm:$0xf]
          %v830 = vld [vmem:[#allocation2 + $0x48] sm:$0xf]
          %v831 = vld [vmem:[#allocation2 + $0x4c] sm:$0xf]
          %v832 = vld [vmem:[#allocation2 + $0x54] sm:$0xf]
          %v833 = vld [vmem:[#allocation2 + $0x58] sm:$0xf]
          %v834 = vld [vmem:[#allocation2 + $0x60] sm:$0xf]
          %v835 = vld [vmem:[#allocation2 + $0x64] sm:$0xf]
          %v836 = vld [vmem:[#allocation2 + $0x6c] sm:$0xf]
          %v837 = vld [vmem:[#allocation2 + $0x70] sm:$0xf]
          %v838 = vld [vmem:[#allocation2 + $0x78] sm:$0xf]
          %v839 = vld [vmem:[#allocation2 + $0x7c] sm:$0xf]
          %v840 = vld [vmem:[#allocation2 + $0x84] sm:$0xf]
          %v841 = vld [vmem:[#allocation2 + $0x88] sm:$0xf]
          %v842 = vld [vmem:[#allocation2 + $0x90] sm:$0xf]
          %v843 = vld [vmem:[#allocation2 + $0x94] sm:$0xf]
          %v844 = vld [vmem:[#allocation2 + $0x9c] sm:$0xf]
          %v845 = vld [vmem:[#allocation2 + $0xa0] sm:$0xf]
          %v846 = vld [vmem:[#allocation2 + $0xa8] sm:$0xf]
          %v847 = vld [vmem:[#allocation2 + $0xac] sm:$0xf]
          %v848 = vld [vmem:[#allocation2 + $0xb4] sm:$0xf]
          %v849 = vld [vmem:[#allocation2 + $0xb8] sm:$0xf]
          %v850 = vld [vmem:[#allocation2 + $0xc0] sm:$0xf]
          %v851 = vld [vmem:[#allocation2 + $0xc4] sm:$0xf]
          %v852 = vld [vmem:[#allocation2 + $0xcc] sm:$0xf]
          %v853 = vld [vmem:[#allocation2 + $0xd0] sm:$0xf]
          %854 = vst.msk [vmem:[#allocation3] sm:$0xf] %vm186, %v818
          %855 = vst.msk [vmem:[#allocation3 + $0x8] sm:$0xf] %vm186, %v819
          %856 = vst.msk [vmem:[#allocation3 + $0x10] sm:$0xf] %vm186, %v820
          %857 = vst.msk [vmem:[#allocation3 + $0x18] sm:$0xf] %vm186, %v821
          %858 = vst.msk [vmem:[#allocation3 + $0x20] sm:$0xf] %vm186, %v822
          %859 = vst.msk [vmem:[#allocation3 + $0x28] sm:$0xf] %vm186, %v823
          %860 = vst.msk [vmem:[#allocation3 + $0x30] sm:$0xf] %vm186, %v824
          %861 = vst.msk [vmem:[#allocation3 + $0x38] sm:$0xf] %vm186, %v825
          %862 = vst.msk [vmem:[#allocation3 + $0x40] sm:$0xf] %vm186, %v826
          %863 = vst.msk [vmem:[#allocation3 + $0x48] sm:$0xf] %vm186, %v827
          %864 = vst.msk [vmem:[#allocation3 + $0x50] sm:$0xf] %vm186, %v828
          %865 = vst.msk [vmem:[#allocation3 + $0x58] sm:$0xf] %vm186, %v829
          %866 = vst.msk [vmem:[#allocation3 + $0x60] sm:$0xf] %vm186, %v830
          %867 = vst.msk [vmem:[#allocation3 + $0x68] sm:$0xf] %vm186, %v831
          %868 = vst.msk [vmem:[#allocation3 + $0x70] sm:$0xf] %vm186, %v832
          %869 = vst.msk [vmem:[#allocation3 + $0x78] sm:$0xf] %vm186, %v833
          %870 = vst.msk [vmem:[#allocation3 + $0x80] sm:$0xf] %vm186, %v834
          %871 = vst.msk [vmem:[#allocation3 + $0x88] sm:$0xf] %vm186, %v835
          %872 = vst.msk [vmem:[#allocation3 + $0x90] sm:$0xf] %vm186, %v836
          %873 = vst.msk [vmem:[#allocation3 + $0x98] sm:$0xf] %vm186, %v837
          %874 = vst.msk [vmem:[#allocation3 + $0xa0] sm:$0xf] %vm186, %v838
          %875 = vst.msk [vmem:[#allocation3 + $0xa8] sm:$0xf] %vm186, %v839
          %876 = vst.msk [vmem:[#allocation3 + $0xb0] sm:$0xf] %vm186, %v840
          %877 = vst.msk [vmem:[#allocation3 + $0xb8] sm:$0xf] %vm186, %v841
          %878 = vst.msk [vmem:[#allocation3 + $0xc0] sm:$0xf] %vm186, %v842
          %879 = vst.msk [vmem:[#allocation3 + $0xc8] sm:$0xf] %vm186, %v843
          %880 = vst.msk [vmem:[#allocation3 + $0xd0] sm:$0xf] %vm186, %v844
          %881 = vst.msk [vmem:[#allocation3 + $0xd8] sm:$0xf] %vm186, %v845
          %882 = vst.msk [vmem:[#allocation3 + $0xe0] sm:$0xf] %vm186, %v846
          %883 = vst.msk [vmem:[#allocation3 + $0xe8] sm:$0xf] %vm186, %v847
          %884 = vst.msk [vmem:[#allocation3 + $0xf0] sm:$0xf] %vm186, %v848
          %885 = vst.msk [vmem:[#allocation3 + $0xf8] sm:$0xf] %vm186, %v849
          %886 = vst.msk [vmem:[#allocation3 + $0x100] sm:$0xf] %vm186, %v850
          %887 = vst.msk [vmem:[#allocation3 + $0x108] sm:$0xf] %vm186, %v851
          %888 = vst.msk [vmem:[#allocation3 + $0x110] sm:$0xf] %vm186, %v852
          %889 = vst.msk [vmem:[#allocation3 + $0x118] sm:$0xf] %vm186, %v853
          %v890 = vld [vmem:[#allocation2] sm:$0xf]
          %v891 = vld [vmem:[#allocation2 + $0x4] sm:$0xf]
          %v892 = vld [vmem:[#allocation2 + $0x8] sm:$0x1]
          %v893 = vld [vmem:[#allocation2 + $0xc] sm:$0xf]
          %v894 = vld [vmem:[#allocation2 + $0x10] sm:$0xf]
          %v895 = vld [vmem:[#allocation2 + $0x14] sm:$0x1]
          %v896 = vld [vmem:[#allocation2 + $0x18] sm:$0xf]
          %v897 = vld [vmem:[#allocation2 + $0x1c] sm:$0xf]
          %v898 = vld [vmem:[#allocation2 + $0x20] sm:$0x1]
          %v899 = vld [vmem:[#allocation2 + $0x24] sm:$0xf]
          %v900 = vld [vmem:[#allocation2 + $0x28] sm:$0xf]
          %v901 = vld [vmem:[#allocation2 + $0x2c] sm:$0x1]
          %v902 = vld [vmem:[#allocation2 + $0x30] sm:$0xf]
          %v903 = vld [vmem:[#allocation2 + $0x34] sm:$0xf]
          %v904 = vld [vmem:[#allocation2 + $0x38] sm:$0x1]
          %v905 = vld [vmem:[#allocation2 + $0x3c] sm:$0xf]
          %v906 = vld [vmem:[#allocation2 + $0x40] sm:$0xf]
          %v907 = vld [vmem:[#allocation2 + $0x44] sm:$0x1]
          %v908 = vld [vmem:[#allocation2 + $0x48] sm:$0xf]
          %v909 = vld [vmem:[#allocation2 + $0x4c] sm:$0xf]
          %v910 = vld [vmem:[#allocation2 + $0x50] sm:$0x1]
          %v911 = vld [vmem:[#allocation2 + $0x54] sm:$0xf]
          %v912 = vld [vmem:[#allocation2 + $0x58] sm:$0xf]
          %v913 = vld [vmem:[#allocation2 + $0x5c] sm:$0x1]
          %v914 = vld [vmem:[#allocation2 + $0x60] sm:$0xf]
          %v915 = vld [vmem:[#allocation2 + $0x64] sm:$0xf]
          %v916 = vld [vmem:[#allocation2 + $0x68] sm:$0x1]
          %v917 = vld [vmem:[#allocation2 + $0x6c] sm:$0xf]
          %v918 = vld [vmem:[#allocation2 + $0x70] sm:$0xf]
          %v919 = vld [vmem:[#allocation2 + $0x74] sm:$0x1]
          %v920 = vld [vmem:[#allocation2 + $0x78] sm:$0xf]
          %v921 = vld [vmem:[#allocation2 + $0x7c] sm:$0xf]
          %v922 = vld [vmem:[#allocation2 + $0x80] sm:$0x1]
          %v923 = vld [vmem:[#allocation2 + $0x84] sm:$0xf]
          %v924 = vld [vmem:[#allocation2 + $0x88] sm:$0xf]
          %v925 = vld [vmem:[#allocation2 + $0x8c] sm:$0x1]
          %v926 = vld [vmem:[#allocation2 + $0x90] sm:$0xf]
          %v927 = vld [vmem:[#allocation2 + $0x94] sm:$0xf]
          %v928 = vld [vmem:[#allocation2 + $0x98] sm:$0x1]
          %v929 = vld [vmem:[#allocation2 + $0x9c] sm:$0xf]
          %v930 = vld [vmem:[#allocation2 + $0xa0] sm:$0xf]
          %v931 = vld [vmem:[#allocation2 + $0xa4] sm:$0x1]
          %v932 = vld [vmem:[#allocation2 + $0xa8] sm:$0xf]
          %v933 = vld [vmem:[#allocation2 + $0xac] sm:$0xf]
          %v934 = vld [vmem:[#allocation2 + $0xb0] sm:$0x1]
          %v935 = vld [vmem:[#allocation2 + $0xb4] sm:$0xf]
          %v936 = vld [vmem:[#allocation2 + $0xb8] sm:$0xf]
          %v937 = vld [vmem:[#allocation2 + $0xbc] sm:$0x1]
          %v938 = vld [vmem:[#allocation2 + $0xc0] sm:$0xf]
          %v939 = vld [vmem:[#allocation2 + $0xc4] sm:$0xf]
          %v940 = vld [vmem:[#allocation2 + $0xc8] sm:$0x1]
          %v941 = vld [vmem:[#allocation2 + $0xcc] sm:$0xf]
          %v942 = vld [vmem:[#allocation2 + $0xd0] sm:$0xf]
          %v943 = vld [vmem:[#allocation2 + $0xd4] sm:$0x1]
          %vm944 = vsmask.f32 3328
          %vm945 = vsmask.f32 7440
          %vm946 = vmor %vm944, %vm945
          %v948 = vshrl.u32 %v890, 16
          %v950 = vrot.slane %v948, 4
          %v951 = vshll.u32 %v890, 16
          %v953 = vrot.slane %v951, 5
          %v954 = vor.u32 %v950, %v953
          %v955 = vrot.slane %v954, 4
          %v957 = vshll.u32 %v891, 16
          %v959 = vrot.slane %v957, 5
          %v960 = vsel %vm946, %v955, %v959
          %v961 = vshrl.u32 %v891, 16
          %v963 = vrot.slane %v961, 4
          %v964 = vor.u32 %v963, %v959
          %v965 = vrot.slane %v964, 4
          %v967 = vshll.u32 %v892, 16
          %v969 = vrot.slane %v967, 5
          %v970 = vsel %vm946, %v965, %v969
          %v972 = vshrl.u32 %v893, 16
          %v974 = vrot.slane %v972, 4
          %v975 = vshll.u32 %v893, 16
          %v977 = vrot.slane %v975, 5
          %v978 = vor.u32 %v974, %v977
          %v979 = vrot.slane %v978, 4
          %v981 = vshll.u32 %v894, 16
          %v983 = vrot.slane %v981, 5
          %v984 = vsel %vm946, %v979, %v983
          %v985 = vshrl.u32 %v894, 16
          %v987 = vrot.slane %v985, 4
          %v988 = vor.u32 %v987, %v983
          %v989 = vrot.slane %v988, 4
          %v991 = vshll.u32 %v895, 16
          %v993 = vrot.slane %v991, 5
          %v994 = vsel %vm946, %v989, %v993
          %v996 = vshrl.u32 %v896, 16
          %v998 = vrot.slane %v996, 4
          %v999 = vshll.u32 %v896, 16
          %v1001 = vrot.slane %v999, 5
          %v1002 = vor.u32 %v998, %v1001
          %v1003 = vrot.slane %v1002, 4
          %v1005 = vshll.u32 %v897, 16
          %v1007 = vrot.slane %v1005, 5
          %v1008 = vsel %vm946, %v1003, %v1007
          %v1009 = vshrl.u32 %v897, 16
          %v1011 = vrot.slane %v1009, 4
          %v1012 = vor.u32 %v1011, %v1007
          %v1013 = vrot.slane %v1012, 4
          %v1015 = vshll.u32 %v898, 16
          %v1017 = vrot.slane %v1015, 5
          %v1018 = vsel %vm946, %v1013, %v1017
          %v1020 = vshrl.u32 %v899, 16
          %v1022 = vrot.slane %v1020, 4
          %v1023 = vshll.u32 %v899, 16
          %v1025 = vrot.slane %v1023, 5
          %v1026 = vor.u32 %v1022, %v1025
          %v1027 = vrot.slane %v1026, 4
          %v1029 = vshll.u32 %v900, 16
          %v1031 = vrot.slane %v1029, 5
          %v1032 = vsel %vm946, %v1027, %v1031
          %v1033 = vshrl.u32 %v900, 16
          %v1035 = vrot.slane %v1033, 4
          %v1036 = vor.u32 %v1035, %v1031
          %v1037 = vrot.slane %v1036, 4
          %v1039 = vshll.u32 %v901, 16
          %v1041 = vrot.slane %v1039, 5
          %v1042 = vsel %vm946, %v1037, %v1041
          %v1044 = vshrl.u32 %v902, 16
          %v1046 = vrot.slane %v1044, 4
          %v1047 = vshll.u32 %v902, 16
          %v1049 = vrot.slane %v1047, 5
          %v1050 = vor.u32 %v1046, %v1049
          %v1051 = vrot.slane %v1050, 4
          %v1053 = vshll.u32 %v903, 16
          %v1055 = vrot.slane %v1053, 5
          %v1056 = vsel %vm946, %v1051, %v1055
          %v1057 = vshrl.u32 %v903, 16
          %v1059 = vrot.slane %v1057, 4
          %v1060 = vor.u32 %v1059, %v1055
          %v1061 = vrot.slane %v1060, 4
          %v1063 = vshll.u32 %v904, 16
          %v1065 = vrot.slane %v1063, 5
          %v1066 = vsel %vm946, %v1061, %v1065
          %v1068 = vshrl.u32 %v905, 16
          %v1070 = vrot.slane %v1068, 4
          %v1071 = vshll.u32 %v905, 16
          %v1073 = vrot.slane %v1071, 5
          %v1074 = vor.u32 %v1070, %v1073
          %v1075 = vrot.slane %v1074, 4
          %v1077 = vshll.u32 %v906, 16
          %v1079 = vrot.slane %v1077, 5
          %v1080 = vsel %vm946, %v1075, %v1079
          %v1081 = vshrl.u32 %v906, 16
          %v1083 = vrot.slane %v1081, 4
          %v1084 = vor.u32 %v1083, %v1079
          %v1085 = vrot.slane %v1084, 4
          %v1087 = vshll.u32 %v907, 16
          %v1089 = vrot.slane %v1087, 5
          %v1090 = vsel %vm946, %v1085, %v1089
          %v1092 = vshrl.u32 %v908, 16
          %v1094 = vrot.slane %v1092, 4
          %v1095 = vshll.u32 %v908, 16
          %v1097 = vrot.slane %v1095, 5
          %v1098 = vor.u32 %v1094, %v1097
          %v1099 = vrot.slane %v1098, 4
          %v1101 = vshll.u32 %v909, 16
          %v1103 = vrot.slane %v1101, 5
          %v1104 = vsel %vm946, %v1099, %v1103
          %v1105 = vshrl.u32 %v909, 16
          %v1107 = vrot.slane %v1105, 4
          %v1108 = vor.u32 %v1107, %v1103
          %v1109 = vrot.slane %v1108, 4
          %v1111 = vshll.u32 %v910, 16
          %v1113 = vrot.slane %v1111, 5
          %v1114 = vsel %vm946, %v1109, %v1113
          %v1116 = vshrl.u32 %v911, 16
          %v1118 = vrot.slane %v1116, 4
          %v1119 = vshll.u32 %v911, 16
          %v1121 = vrot.slane %v1119, 5
          %v1122 = vor.u32 %v1118, %v1121
          %v1123 = vrot.slane %v1122, 4
          %v1125 = vshll.u32 %v912, 16
          %v1127 = vrot.slane %v1125, 5
          %v1128 = vsel %vm946, %v1123, %v1127
          %v1129 = vshrl.u32 %v912, 16
          %v1131 = vrot.slane %v1129, 4
          %v1132 = vor.u32 %v1131, %v1127
          %v1133 = vrot.slane %v1132, 4
          %v1135 = vshll.u32 %v913, 16
          %v1137 = vrot.slane %v1135, 5
          %v1138 = vsel %vm946, %v1133, %v1137
          %v1140 = vshrl.u32 %v914, 16
          %v1142 = vrot.slane %v1140, 4
          %v1143 = vshll.u32 %v914, 16
          %v1145 = vrot.slane %v1143, 5
          %v1146 = vor.u32 %v1142, %v1145
          %v1147 = vrot.slane %v1146, 4
          %v1149 = vshll.u32 %v915, 16
          %v1151 = vrot.slane %v1149, 5
          %v1152 = vsel %vm946, %v1147, %v1151
          %v1153 = vshrl.u32 %v915, 16
          %v1155 = vrot.slane %v1153, 4
          %v1156 = vor.u32 %v1155, %v1151
          %v1157 = vrot.slane %v1156, 4
          %v1159 = vshll.u32 %v916, 16
          %v1161 = vrot.slane %v1159, 5
          %v1162 = vsel %vm946, %v1157, %v1161
          %v1164 = vshrl.u32 %v917, 16
          %v1166 = vrot.slane %v1164, 4
          %v1167 = vshll.u32 %v917, 16
          %v1169 = vrot.slane %v1167, 5
          %v1170 = vor.u32 %v1166, %v1169
          %v1171 = vrot.slane %v1170, 4
          %v1173 = vshll.u32 %v918, 16
          %v1175 = vrot.slane %v1173, 5
          %v1176 = vsel %vm946, %v1171, %v1175
          %v1177 = vshrl.u32 %v918, 16
          %v1179 = vrot.slane %v1177, 4
          %v1180 = vor.u32 %v1179, %v1175
          %v1181 = vrot.slane %v1180, 4
          %v1183 = vshll.u32 %v919, 16
          %v1185 = vrot.slane %v1183, 5
          %v1186 = vsel %vm946, %v1181, %v1185
          %v1188 = vshrl.u32 %v920, 16
          %v1190 = vrot.slane %v1188, 4
          %v1191 = vshll.u32 %v920, 16
          %v1193 = vrot.slane %v1191, 5
          %v1194 = vor.u32 %v1190, %v1193
          %v1195 = vrot.slane %v1194, 4
          %v1197 = vshll.u32 %v921, 16
          %v1199 = vrot.slane %v1197, 5
          %v1200 = vsel %vm946, %v1195, %v1199
          %v1201 = vshrl.u32 %v921, 16
          %v1203 = vrot.slane %v1201, 4
          %v1204 = vor.u32 %v1203, %v1199
          %v1205 = vrot.slane %v1204, 4
          %v1207 = vshll.u32 %v922, 16
          %v1209 = vrot.slane %v1207, 5
          %v1210 = vsel %vm946, %v1205, %v1209
          %v1212 = vshrl.u32 %v923, 16
          %v1214 = vrot.slane %v1212, 4
          %v1215 = vshll.u32 %v923, 16
          %v1217 = vrot.slane %v1215, 5
          %v1218 = vor.u32 %v1214, %v1217
          %v1219 = vrot.slane %v1218, 4
          %v1221 = vshll.u32 %v924, 16
          %v1223 = vrot.slane %v1221, 5
          %v1224 = vsel %vm946, %v1219, %v1223
          %v1225 = vshrl.u32 %v924, 16
          %v1227 = vrot.slane %v1225, 4
          %v1228 = vor.u32 %v1227, %v1223
          %v1229 = vrot.slane %v1228, 4
          %v1231 = vshll.u32 %v925, 16
          %v1233 = vrot.slane %v1231, 5
          %v1234 = vsel %vm946, %v1229, %v1233
          %v1236 = vshrl.u32 %v926, 16
          %v1238 = vrot.slane %v1236, 4
          %v1239 = vshll.u32 %v926, 16
          %v1241 = vrot.slane %v1239, 5
          %v1242 = vor.u32 %v1238, %v1241
          %v1243 = vrot.slane %v1242, 4
          %v1245 = vshll.u32 %v927, 16
          %v1247 = vrot.slane %v1245, 5
          %v1248 = vsel %vm946, %v1243, %v1247
          %v1249 = vshrl.u32 %v927, 16
          %v1251 = vrot.slane %v1249, 4
          %v1252 = vor.u32 %v1251, %v1247
          %v1253 = vrot.slane %v1252, 4
          %v1255 = vshll.u32 %v928, 16
          %v1257 = vrot.slane %v1255, 5
          %v1258 = vsel %vm946, %v1253, %v1257
          %v1260 = vshrl.u32 %v929, 16
          %v1262 = vrot.slane %v1260, 4
          %v1263 = vshll.u32 %v929, 16
          %v1265 = vrot.slane %v1263, 5
          %v1266 = vor.u32 %v1262, %v1265
          %v1267 = vrot.slane %v1266, 4
          %v1269 = vshll.u32 %v930, 16
          %v1271 = vrot.slane %v1269, 5
          %v1272 = vsel %vm946, %v1267, %v1271
          %v1273 = vshrl.u32 %v930, 16
          %v1275 = vrot.slane %v1273, 4
          %v1276 = vor.u32 %v1275, %v1271
          %v1277 = vrot.slane %v1276, 4
          %v1279 = vshll.u32 %v931, 16
          %v1281 = vrot.slane %v1279, 5
          %v1282 = vsel %vm946, %v1277, %v1281
          %v1284 = vshrl.u32 %v932, 16
          %v1286 = vrot.slane %v1284, 4
          %v1287 = vshll.u32 %v932, 16
          %v1289 = vrot.slane %v1287, 5
          %v1290 = vor.u32 %v1286, %v1289
          %v1291 = vrot.slane %v1290, 4
          %v1293 = vshll.u32 %v933, 16
          %v1295 = vrot.slane %v1293, 5
          %v1296 = vsel %vm946, %v1291, %v1295
          %v1297 = vshrl.u32 %v933, 16
          %v1299 = vrot.slane %v1297, 4
          %v1300 = vor.u32 %v1299, %v1295
          %v1301 = vrot.slane %v1300, 4
          %v1303 = vshll.u32 %v934, 16
          %v1305 = vrot.slane %v1303, 5
          %v1306 = vsel %vm946, %v1301, %v1305
          %v1308 = vshrl.u32 %v935, 16
          %v1310 = vrot.slane %v1308, 4
          %v1311 = vshll.u32 %v935, 16
          %v1313 = vrot.slane %v1311, 5
          %v1314 = vor.u32 %v1310, %v1313
          %v1315 = vrot.slane %v1314, 4
          %v1317 = vshll.u32 %v936, 16
          %v1319 = vrot.slane %v1317, 5
          %v1320 = vsel %vm946, %v1315, %v1319
          %v1321 = vshrl.u32 %v936, 16
          %v1323 = vrot.slane %v1321, 4
          %v1324 = vor.u32 %v1323, %v1319
          %v1325 = vrot.slane %v1324, 4
          %v1327 = vshll.u32 %v937, 16
          %v1329 = vrot.slane %v1327, 5
          %v1330 = vsel %vm946, %v1325, %v1329
          %v1332 = vshrl.u32 %v938, 16
          %v1334 = vrot.slane %v1332, 4
          %v1335 = vshll.u32 %v938, 16
          %v1337 = vrot.slane %v1335, 5
          %v1338 = vor.u32 %v1334, %v1337
          %v1339 = vrot.slane %v1338, 4
          %v1341 = vshll.u32 %v939, 16
          %v1343 = vrot.slane %v1341, 5
          %v1344 = vsel %vm946, %v1339, %v1343
          %v1345 = vshrl.u32 %v939, 16
          %v1347 = vrot.slane %v1345, 4
          %v1348 = vor.u32 %v1347, %v1343
          %v1349 = vrot.slane %v1348, 4
          %v1351 = vshll.u32 %v940, 16
          %v1353 = vrot.slane %v1351, 5
          %v1354 = vsel %vm946, %v1349, %v1353
          %v1356 = vshrl.u32 %v941, 16
          %v1358 = vrot.slane %v1356, 4
          %v1359 = vshll.u32 %v941, 16
          %v1361 = vrot.slane %v1359, 5
          %v1362 = vor.u32 %v1358, %v1361
          %v1363 = vrot.slane %v1362, 4
          %v1365 = vshll.u32 %v942, 16
          %v1367 = vrot.slane %v1365, 5
          %v1368 = vsel %vm946, %v1363, %v1367
          %v1369 = vshrl.u32 %v942, 16
          %v1371 = vrot.slane %v1369, 4
          %v1372 = vor.u32 %v1371, %v1367
          %v1373 = vrot.slane %v1372, 4
          %v1375 = vshll.u32 %v943, 16
          %v1377 = vrot.slane %v1375, 5
          %v1378 = vsel %vm946, %v1373, %v1377
          %1379 = vrot.lane.b32.xlu0 %v960, 64
          %v1380 = vpop.permute.xlu0 %1379
          %1381 = vrot.lane.b32.xlu0 %v970, 64
          %v1382 = vpop.permute.xlu0 %1381
          %1383 = vrot.lane.b32.xlu0 %v984, 64
          %v1384 = vpop.permute.xlu0 %1383
          %1385 = vrot.lane.b32.xlu0 %v994, 64
          %v1386 = vpop.permute.xlu0 %1385
          %1387 = vrot.lane.b32.xlu0 %v1008, 64
          %v1388 = vpop.permute.xlu0 %1387
          %1389 = vrot.lane.b32.xlu0 %v1018, 64
          %v1390 = vpop.permute.xlu0 %1389
          %1391 = vrot.lane.b32.xlu0 %v1032, 64
          %v1392 = vpop.permute.xlu0 %1391
          %1393 = vrot.lane.b32.xlu0 %v1042, 64
          %v1394 = vpop.permute.xlu0 %1393
          %1395 = vrot.lane.b32.xlu0 %v1056, 64
          %v1396 = vpop.permute.xlu0 %1395
          %1397 = vrot.lane.b32.xlu0 %v1066, 64
          %v1398 = vpop.permute.xlu0 %1397
          %1399 = vrot.lane.b32.xlu0 %v1080, 64
          %v1400 = vpop.permute.xlu0 %1399
          %1401 = vrot.lane.b32.xlu0 %v1090, 64
          %v1402 = vpop.permute.xlu0 %1401
          %1403 = vrot.lane.b32.xlu0 %v1104, 64
          %v1404 = vpop.permute.xlu0 %1403
          %1405 = vrot.lane.b32.xlu0 %v1114, 64
          %v1406 = vpop.permute.xlu0 %1405
          %1407 = vrot.lane.b32.xlu0 %v1128, 64
          %v1408 = vpop.permute.xlu0 %1407
          %1409 = vrot.lane.b32.xlu0 %v1138, 64
          %v1410 = vpop.permute.xlu0 %1409
          %1411 = vrot.lane.b32.xlu0 %v1152, 64
          %v1412 = vpop.permute.xlu0 %1411
          %1413 = vrot.lane.b32.xlu0 %v1162, 64
          %v1414 = vpop.permute.xlu0 %1413
          %1415 = vrot.lane.b32.xlu0 %v1176, 64
          %v1416 = vpop.permute.xlu0 %1415
          %1417 = vrot.lane.b32.xlu0 %v1186, 64
          %v1418 = vpop.permute.xlu0 %1417
          %1419 = vrot.lane.b32.xlu0 %v1200, 64
          %v1420 = vpop.permute.xlu0 %1419
          %1421 = vrot.lane.b32.xlu0 %v1210, 64
          %v1422 = vpop.permute.xlu0 %1421
          %1423 = vrot.lane.b32.xlu0 %v1224, 64
          %v1424 = vpop.permute.xlu0 %1423
          %1425 = vrot.lane.b32.xlu0 %v1234, 64
          %v1426 = vpop.permute.xlu0 %1425
          %1427 = vrot.lane.b32.xlu0 %v1248, 64
          %v1428 = vpop.permute.xlu0 %1427
          %1429 = vrot.lane.b32.xlu0 %v1258, 64
          %v1430 = vpop.permute.xlu0 %1429
          %1431 = vrot.lane.b32.xlu0 %v1272, 64
          %v1432 = vpop.permute.xlu0 %1431
          %1433 = vrot.lane.b32.xlu0 %v1282, 64
          %v1434 = vpop.permute.xlu0 %1433
          %1435 = vrot.lane.b32.xlu0 %v1296, 64
          %v1436 = vpop.permute.xlu0 %1435
          %1437 = vrot.lane.b32.xlu0 %v1306, 64
          %v1438 = vpop.permute.xlu0 %1437
          %1439 = vrot.lane.b32.xlu0 %v1320, 64
          %v1440 = vpop.permute.xlu0 %1439
          %1441 = vrot.lane.b32.xlu0 %v1330, 64
          %v1442 = vpop.permute.xlu0 %1441
          %1443 = vrot.lane.b32.xlu0 %v1344, 64
          %v1444 = vpop.permute.xlu0 %1443
          %1445 = vrot.lane.b32.xlu0 %v1354, 64
          %v1446 = vpop.permute.xlu0 %1445
          %1447 = vrot.lane.b32.xlu0 %v1368, 64
          %v1448 = vpop.permute.xlu0 %1447
          %1449 = vrot.lane.b32.xlu0 %v1378, 64
          %v1450 = vpop.permute.xlu0 %1449
          %vm1487 = vcmask 1043968
          %1488 = vst.msk [vmem:[#allocation3] sm:$0xf] %vm1487, %v1380
          %1489 = vst.msk [vmem:[#allocation3 + $0x8] sm:$0xf] %vm1487, %v1382
          %1490 = vst.msk [vmem:[#allocation3 + $0x10] sm:$0xf] %vm1487, %v1384
          %1491 = vst.msk [vmem:[#allocation3 + $0x18] sm:$0xf] %vm1487, %v1386
          %1492 = vst.msk [vmem:[#allocation3 + $0x20] sm:$0xf] %vm1487, %v1388
          %1493 = vst.msk [vmem:[#allocation3 + $0x28] sm:$0xf] %vm1487, %v1390
          %1494 = vst.msk [vmem:[#allocation3 + $0x30] sm:$0xf] %vm1487, %v1392
          %1495 = vst.msk [vmem:[#allocation3 + $0x38] sm:$0xf] %vm1487, %v1394
          %1496 = vst.msk [vmem:[#allocation3 + $0x40] sm:$0xf] %vm1487, %v1396
          %1497 = vst.msk [vmem:[#allocation3 + $0x48] sm:$0xf] %vm1487, %v1398
          %1498 = vst.msk [vmem:[#allocation3 + $0x50] sm:$0xf] %vm1487, %v1400
          %1499 = vst.msk [vmem:[#allocation3 + $0x58] sm:$0xf] %vm1487, %v1402
          %1500 = vst.msk [vmem:[#allocation3 + $0x60] sm:$0xf] %vm1487, %v1404
          %1501 = vst.msk [vmem:[#allocation3 + $0x68] sm:$0xf] %vm1487, %v1406
          %1502 = vst.msk [vmem:[#allocation3 + $0x70] sm:$0xf] %vm1487, %v1408
          %1503 = vst.msk [vmem:[#allocation3 + $0x78] sm:$0xf] %vm1487, %v1410
          %1504 = vst.msk [vmem:[#allocation3 + $0x80] sm:$0xf] %vm1487, %v1412
          %1505 = vst.msk [vmem:[#allocation3 + $0x88] sm:$0xf] %vm1487, %v1414
          %1506 = vst.msk [vmem:[#allocation3 + $0x90] sm:$0xf] %vm1487, %v1416
          %1507 = vst.msk [vmem:[#allocation3 + $0x98] sm:$0xf] %vm1487, %v1418
          %1508 = vst.msk [vmem:[#allocation3 + $0xa0] sm:$0xf] %vm1487, %v1420
          %1509 = vst.msk [vmem:[#allocation3 + $0xa8] sm:$0xf] %vm1487, %v1422
          %1510 = vst.msk [vmem:[#allocation3 + $0xb0] sm:$0xf] %vm1487, %v1424
          %1511 = vst.msk [vmem:[#allocation3 + $0xb8] sm:$0xf] %vm1487, %v1426
          %1512 = vst.msk [vmem:[#allocation3 + $0xc0] sm:$0xf] %vm1487, %v1428
          %1513 = vst.msk [vmem:[#allocation3 + $0xc8] sm:$0xf] %vm1487, %v1430
          %1514 = vst.msk [vmem:[#allocation3 + $0xd0] sm:$0xf] %vm1487, %v1432
          %1515 = vst.msk [vmem:[#allocation3 + $0xd8] sm:$0xf] %vm1487, %v1434
          %1516 = vst.msk [vmem:[#allocation3 + $0xe0] sm:$0xf] %vm1487, %v1436
          %1517 = vst.msk [vmem:[#allocation3 + $0xe8] sm:$0xf] %vm1487, %v1438
          %1518 = vst.msk [vmem:[#allocation3 + $0xf0] sm:$0xf] %vm1487, %v1440
          %1519 = vst.msk [vmem:[#allocation3 + $0xf8] sm:$0xf] %vm1487, %v1442
          %1520 = vst.msk [vmem:[#allocation3 + $0x100] sm:$0xf] %vm1487, %v1444
          %1521 = vst.msk [vmem:[#allocation3 + $0x108] sm:$0xf] %vm1487, %v1446
          %1522 = vst.msk [vmem:[#allocation3 + $0x110] sm:$0xf] %vm1487, %v1448
          %1523 = vst.msk [vmem:[#allocation3 + $0x118] sm:$0xf] %vm1487, %v1450
          %v1524 = vld [vmem:[#allocation2] sm:$0xe]
          %v1525 = vld [vmem:[#allocation2 + $0x4] sm:$0xf]
          %v1526 = vld [vmem:[#allocation2 + $0x8] sm:$0x1]
          %v1527 = vld [vmem:[#allocation2 + $0xc] sm:$0xe]
          %v1528 = vld [vmem:[#allocation2 + $0x10] sm:$0xf]
          %v1529 = vld [vmem:[#allocation2 + $0x14] sm:$0x1]
          %v1530 = vld [vmem:[#allocation2 + $0x18] sm:$0xe]
          %v1531 = vld [vmem:[#allocation2 + $0x1c] sm:$0xf]
          %v1532 = vld [vmem:[#allocation2 + $0x20] sm:$0x1]
          %v1533 = vld [vmem:[#allocation2 + $0x24] sm:$0xe]
          %v1534 = vld [vmem:[#allocation2 + $0x28] sm:$0xf]
          %v1535 = vld [vmem:[#allocation2 + $0x2c] sm:$0x1]
          %v1536 = vld [vmem:[#allocation2 + $0x30] sm:$0xe]
          %v1537 = vld [vmem:[#allocation2 + $0x34] sm:$0xf]
          %v1538 = vld [vmem:[#allocation2 + $0x38] sm:$0x1]
          %v1539 = vld [vmem:[#allocation2 + $0x3c] sm:$0xe]
          %v1540 = vld [vmem:[#allocation2 + $0x40] sm:$0xf]
          %v1541 = vld [vmem:[#allocation2 + $0x44] sm:$0x1]
          %v1542 = vld [vmem:[#allocation2 + $0x48] sm:$0xe]
          %v1543 = vld [vmem:[#allocation2 + $0x4c] sm:$0xf]
          %v1544 = vld [vmem:[#allocation2 + $0x50] sm:$0x1]
          %v1545 = vld [vmem:[#allocation2 + $0x54] sm:$0xe]
          %v1546 = vld [vmem:[#allocation2 + $0x58] sm:$0xf]
          %v1547 = vld [vmem:[#allocation2 + $0x5c] sm:$0x1]
          %v1548 = vld [vmem:[#allocation2 + $0x60] sm:$0xe]
          %v1549 = vld [vmem:[#allocation2 + $0x64] sm:$0xf]
          %v1550 = vld [vmem:[#allocation2 + $0x68] sm:$0x1]
          %v1551 = vld [vmem:[#allocation2 + $0x6c] sm:$0xe]
          %v1552 = vld [vmem:[#allocation2 + $0x70] sm:$0xf]
          %v1553 = vld [vmem:[#allocation2 + $0x74] sm:$0x1]
          %v1554 = vld [vmem:[#allocation2 + $0x78] sm:$0xe]
          %v1555 = vld [vmem:[#allocation2 + $0x7c] sm:$0xf]
          %v1556 = vld [vmem:[#allocation2 + $0x80] sm:$0x1]
          %v1557 = vld [vmem:[#allocation2 + $0x84] sm:$0xe]
          %v1558 = vld [vmem:[#allocation2 + $0x88] sm:$0xf]
          %v1559 = vld [vmem:[#allocation2 + $0x8c] sm:$0x1]
          %v1560 = vld [vmem:[#allocation2 + $0x90] sm:$0xe]
          %v1561 = vld [vmem:[#allocation2 + $0x94] sm:$0xf]
          %v1562 = vld [vmem:[#allocation2 + $0x98] sm:$0x1]
          %v1563 = vld [vmem:[#allocation2 + $0x9c] sm:$0xe]
          %v1564 = vld [vmem:[#allocation2 + $0xa0] sm:$0xf]
          %v1565 = vld [vmem:[#allocation2 + $0xa4] sm:$0x1]
          %v1566 = vld [vmem:[#allocation2 + $0xa8] sm:$0xe]
          %v1567 = vld [vmem:[#allocation2 + $0xac] sm:$0xf]
          %v1568 = vld [vmem:[#allocation2 + $0xb0] sm:$0x1]
          %v1569 = vld [vmem:[#allocation2 + $0xb4] sm:$0xe]
          %v1570 = vld [vmem:[#allocation2 + $0xb8] sm:$0xf]
          %v1571 = vld [vmem:[#allocation2 + $0xbc] sm:$0x1]
          %v1572 = vld [vmem:[#allocation2 + $0xc0] sm:$0xe]
          %v1573 = vld [vmem:[#allocation2 + $0xc4] sm:$0xf]
          %v1574 = vld [vmem:[#allocation2 + $0xc8] sm:$0x1]
          %v1575 = vld [vmem:[#allocation2 + $0xcc] sm:$0xe]
          %v1576 = vld [vmem:[#allocation2 + $0xd0] sm:$0xf]
          %v1577 = vld [vmem:[#allocation2 + $0xd4] sm:$0x1]
          %vm1632 = vcmask 1042432
          %vm1633 = vcmask 1046532
          %vm1634 = vmor %vm1632, %vm1633
          %v1635 = vrot.slane %v1524, 5
          %v1636 = vrot.slane %v1635, 4
          %v1637 = vrot.slane %v1525, 5
          %v1638 = vsel %vm1634, %v1636, %v1637
          %v1639 = vrot.slane %v1637, 4
          %v1640 = vrot.slane %v1526, 5
          %v1641 = vsel %vm1634, %v1639, %v1640
          %v1642 = vrot.slane %v1527, 5
          %v1643 = vrot.slane %v1642, 4
          %v1644 = vrot.slane %v1528, 5
          %v1645 = vsel %vm1634, %v1643, %v1644
          %v1646 = vrot.slane %v1644, 4
          %v1647 = vrot.slane %v1529, 5
          %v1648 = vsel %vm1634, %v1646, %v1647
          %v1649 = vrot.slane %v1530, 5
          %v1650 = vrot.slane %v1649, 4
          %v1651 = vrot.slane %v1531, 5
          %v1652 = vsel %vm1634, %v1650, %v1651
          %v1653 = vrot.slane %v1651, 4
          %v1654 = vrot.slane %v1532, 5
          %v1655 = vsel %vm1634, %v1653, %v1654
          %v1656 = vrot.slane %v1533, 5
          %v1657 = vrot.slane %v1656, 4
          %v1658 = vrot.slane %v1534, 5
          %v1659 = vsel %vm1634, %v1657, %v1658
          %v1660 = vrot.slane %v1658, 4
          %v1661 = vrot.slane %v1535, 5
          %v1662 = vsel %vm1634, %v1660, %v1661
          %v1663 = vrot.slane %v1536, 5
          %v1664 = vrot.slane %v1663, 4
          %v1665 = vrot.slane %v1537, 5
          %v1666 = vsel %vm1634, %v1664, %v1665
          %v1667 = vrot.slane %v1665, 4
          %v1668 = vrot.slane %v1538, 5
          %v1669 = vsel %vm1634, %v1667, %v1668
          %v1670 = vrot.slane %v1539, 5
          %v1671 = vrot.slane %v1670, 4
          %v1672 = vrot.slane %v1540, 5
          %v1673 = vsel %vm1634, %v1671, %v1672
          %v1674 = vrot.slane %v1672, 4
          %v1675 = vrot.slane %v1541, 5
          %v1676 = vsel %vm1634, %v1674, %v1675
          %v1677 = vrot.slane %v1542, 5
          %v1678 = vrot.slane %v1677, 4
          %v1679 = vrot.slane %v1543, 5
          %v1680 = vsel %vm1634, %v1678, %v1679
          %v1681 = vrot.slane %v1679, 4
          %v1682 = vrot.slane %v1544, 5
          %v1683 = vsel %vm1634, %v1681, %v1682
          %v1684 = vrot.slane %v1545, 5
          %v1685 = vrot.slane %v1684, 4
          %v1686 = vrot.slane %v1546, 5
          %v1687 = vsel %vm1634, %v1685, %v1686
          %v1688 = vrot.slane %v1686, 4
          %v1689 = vrot.slane %v1547, 5
          %v1690 = vsel %vm1634, %v1688, %v1689
          %v1691 = vrot.slane %v1548, 5
          %v1692 = vrot.slane %v1691, 4
          %v1693 = vrot.slane %v1549, 5
          %v1694 = vsel %vm1634, %v1692, %v1693
          %v1695 = vrot.slane %v1693, 4
          %v1696 = vrot.slane %v1550, 5
          %v1697 = vsel %vm1634, %v1695, %v1696
          %v1698 = vrot.slane %v1551, 5
          %v1699 = vrot.slane %v1698, 4
          %v1700 = vrot.slane %v1552, 5
          %v1701 = vsel %vm1634, %v1699, %v1700
          %v1702 = vrot.slane %v1700, 4
          %v1703 = vrot.slane %v1553, 5
          %v1704 = vsel %vm1634, %v1702, %v1703
          %v1705 = vrot.slane %v1554, 5
          %v1706 = vrot.slane %v1705, 4
          %v1707 = vrot.slane %v1555, 5
          %v1708 = vsel %vm1634, %v1706, %v1707
          %v1709 = vrot.slane %v1707, 4
          %v1710 = vrot.slane %v1556, 5
          %v1711 = vsel %vm1634, %v1709, %v1710
          %v1712 = vrot.slane %v1557, 5
          %v1713 = vrot.slane %v1712, 4
          %v1714 = vrot.slane %v1558, 5
          %v1715 = vsel %vm1634, %v1713, %v1714
          %v1716 = vrot.slane %v1714, 4
          %v1717 = vrot.slane %v1559, 5
          %v1718 = vsel %vm1634, %v1716, %v1717
          %v1719 = vrot.slane %v1560, 5
          %v1720 = vrot.slane %v1719, 4
          %v1721 = vrot.slane %v1561, 5
          %v1722 = vsel %vm1634, %v1720, %v1721
          %v1723 = vrot.slane %v1721, 4
          %v1724 = vrot.slane %v1562, 5
          %v1725 = vsel %vm1634, %v1723, %v1724
          %v1726 = vrot.slane %v1563, 5
          %v1727 = vrot.slane %v1726, 4
          %v1728 = vrot.slane %v1564, 5
          %v1729 = vsel %vm1634, %v1727, %v1728
          %v1730 = vrot.slane %v1728, 4
          %v1731 = vrot.slane %v1565, 5
          %v1732 = vsel %vm1634, %v1730, %v1731
          %v1733 = vrot.slane %v1566, 5
          %v1734 = vrot.slane %v1733, 4
          %v1735 = vrot.slane %v1567, 5
          %v1736 = vsel %vm1634, %v1734, %v1735
          %v1737 = vrot.slane %v1735, 4
          %v1738 = vrot.slane %v1568, 5
          %v1739 = vsel %vm1634, %v1737, %v1738
          %v1740 = vrot.slane %v1569, 5
          %v1741 = vrot.slane %v1740, 4
          %v1742 = vrot.slane %v1570, 5
          %v1743 = vsel %vm1634, %v1741, %v1742
          %v1744 = vrot.slane %v1742, 4
          %v1745 = vrot.slane %v1571, 5
          %v1746 = vsel %vm1634, %v1744, %v1745
          %v1747 = vrot.slane %v1572, 5
          %v1748 = vrot.slane %v1747, 4
          %v1749 = vrot.slane %v1573, 5
          %v1750 = vsel %vm1634, %v1748, %v1749
          %v1751 = vrot.slane %v1749, 4
          %v1752 = vrot.slane %v1574, 5
          %v1753 = vsel %vm1634, %v1751, %v1752
          %v1754 = vrot.slane %v1575, 5
          %v1755 = vrot.slane %v1754, 4
          %v1756 = vrot.slane %v1576, 5
          %v1757 = vsel %vm1634, %v1755, %v1756
          %v1758 = vrot.slane %v1756, 4
          %v1759 = vrot.slane %v1577, 5
          %v1760 = vsel %vm1634, %v1758, %v1759
          %1797 = vst.msk [vmem:[#allocation3 + $0x4] sm:$0xf] %vm186, %v1638
          %1798 = vst.msk [vmem:[#allocation3 + $0xc] sm:$0xf] %vm186, %v1641
          %1799 = vst.msk [vmem:[#allocation3 + $0x14] sm:$0xf] %vm186, %v1645
          %1800 = vst.msk [vmem:[#allocation3 + $0x1c] sm:$0xf] %vm186, %v1648
          %1801 = vst.msk [vmem:[#allocation3 + $0x24] sm:$0xf] %vm186, %v1652
          %1802 = vst.msk [vmem:[#allocation3 + $0x2c] sm:$0xf] %vm186, %v1655
          %1803 = vst.msk [vmem:[#allocation3 + $0x34] sm:$0xf] %vm186, %v1659
          %1804 = vst.msk [vmem:[#allocation3 + $0x3c] sm:$0xf] %vm186, %v1662
          %1805 = vst.msk [vmem:[#allocation3 + $0x44] sm:$0xf] %vm186, %v1666
          %1806 = vst.msk [vmem:[#allocation3 + $0x4c] sm:$0xf] %vm186, %v1669
          %1807 = vst.msk [vmem:[#allocation3 + $0x54] sm:$0xf] %vm186, %v1673
          %1808 = vst.msk [vmem:[#allocation3 + $0x5c] sm:$0xf] %vm186, %v1676
          %1809 = vst.msk [vmem:[#allocation3 + $0x64] sm:$0xf] %vm186, %v1680
          %1810 = vst.msk [vmem:[#allocation3 + $0x6c] sm:$0xf] %vm186, %v1683
          %1811 = vst.msk [vmem:[#allocation3 + $0x74] sm:$0xf] %vm186, %v1687
          %1812 = vst.msk [vmem:[#allocation3 + $0x7c] sm:$0xf] %vm186, %v1690
          %1813 = vst.msk [vmem:[#allocation3 + $0x84] sm:$0xf] %vm186, %v1694
          %1814 = vst.msk [vmem:[#allocation3 + $0x8c] sm:$0xf] %vm186, %v1697
          %1815 = vst.msk [vmem:[#allocation3 + $0x94] sm:$0xf] %vm186, %v1701
          %1816 = vst.msk [vmem:[#allocation3 + $0x9c] sm:$0xf] %vm186, %v1704
          %1817 = vst.msk [vmem:[#allocation3 + $0xa4] sm:$0xf] %vm186, %v1708
          %1818 = vst.msk [vmem:[#allocation3 + $0xac] sm:$0xf] %vm186, %v1711
          %1819 = vst.msk [vmem:[#allocation3 + $0xb4] sm:$0xf] %vm186, %v1715
          %1820 = vst.msk [vmem:[#allocation3 + $0xbc] sm:$0xf] %vm186, %v1718
          %1821 = vst.msk [vmem:[#allocation3 + $0xc4] sm:$0xf] %vm186, %v1722
          %1822 = vst.msk [vmem:[#allocation3 + $0xcc] sm:$0xf] %vm186, %v1725
          %1823 = vst.msk [vmem:[#allocation3 + $0xd4] sm:$0xf] %vm186, %v1729
          %1824 = vst.msk [vmem:[#allocation3 + $0xdc] sm:$0xf] %vm186, %v1732
          %1825 = vst.msk [vmem:[#allocation3 + $0xe4] sm:$0xf] %vm186, %v1736
          %1826 = vst.msk [vmem:[#allocation3 + $0xec] sm:$0xf] %vm186, %v1739
          %1827 = vst.msk [vmem:[#allocation3 + $0xf4] sm:$0xf] %vm186, %v1743
          %1828 = vst.msk [vmem:[#allocation3 + $0xfc] sm:$0xf] %vm186, %v1746
          %1829 = vst.msk [vmem:[#allocation3 + $0x104] sm:$0xf] %vm186, %v1750
          %1830 = vst.msk [vmem:[#allocation3 + $0x10c] sm:$0xf] %vm186, %v1753
          %1831 = vst.msk [vmem:[#allocation3 + $0x114] sm:$0xf] %vm186, %v1757
          %1832 = vst.msk [vmem:[#allocation3 + $0x11c] sm:$0xf] %vm186, %v1760
          %v1833 = vld [vmem:[#allocation3] sm:$0xff]
          %v1834 = vld [vmem:[#allocation3 + $0x8] sm:$0xff]
          %v1835 = vld [vmem:[#allocation3 + $0x10] sm:$0xff]
          %v1836 = vld [vmem:[#allocation3 + $0x18] sm:$0xff]
          %v1837 = vld [vmem:[#allocation3 + $0x20] sm:$0xff]
          %v1838 = vld [vmem:[#allocation3 + $0x28] sm:$0xff]
          %v1839 = vld [vmem:[#allocation3 + $0x30] sm:$0xff]
          %v1840 = vld [vmem:[#allocation3 + $0x38] sm:$0xff]
          %v1841 = vld [vmem:[#allocation3 + $0x40] sm:$0xff]
          %v1842 = vld [vmem:[#allocation3 + $0x48] sm:$0xff]
          %v1843 = vld [vmem:[#allocation3 + $0x50] sm:$0xff]
          %v1844 = vld [vmem:[#allocation3 + $0x58] sm:$0xff]
          %v1845 = vld [vmem:[#allocation3 + $0x60] sm:$0xff]
          %v1846 = vld [vmem:[#allocation3 + $0x68] sm:$0xff]
          %v1847 = vld [vmem:[#allocation3 + $0x70] sm:$0xff]
          %v1848 = vld [vmem:[#allocation3 + $0x78] sm:$0xff]
          %v1849 = vld [vmem:[#allocation3 + $0x80] sm:$0xff]
          %v1850 = vld [vmem:[#allocation3 + $0x88] sm:$0xff]
          %v1851 = vld [vmem:[#allocation3 + $0x90] sm:$0xff]
          %v1852 = vld [vmem:[#allocation3 + $0x98] sm:$0xff]
          %v1853 = vld [vmem:[#allocation3 + $0xa0] sm:$0xff]
          %v1854 = vld [vmem:[#allocation3 + $0xa8] sm:$0xff]
          %v1855 = vld [vmem:[#allocation3 + $0xb0] sm:$0xff]
          %v1856 = vld [vmem:[#allocation3 + $0xb8] sm:$0xff]
          %v1857 = vld [vmem:[#allocation3 + $0xc0] sm:$0xff]
          %v1858 = vld [vmem:[#allocation3 + $0xc8] sm:$0xff]
          %v1859 = vld [vmem:[#allocation3 + $0xd0] sm:$0xff]
          %v1860 = vld [vmem:[#allocation3 + $0xd8] sm:$0xff]
          %v1861 = vld [vmem:[#allocation3 + $0xe0] sm:$0xff]
          %v1862 = vld [vmem:[#allocation3 + $0xe8] sm:$0xff]
          %v1863 = vld [vmem:[#allocation3 + $0xf0] sm:$0xff]
          %v1864 = vld [vmem:[#allocation3 + $0xf8] sm:$0xff]
          %s1865 = smul.u32 %s812, 6
          %s1866 = smul.u32 %s1865, 24
          %s1867 = smul.addr %s1866, 4
          %s1868 = scalar_lea.vmem %s1, %s1867
          %v1869 = vld [vmem:[%s1868] sm:$0xf]
          %v1870 = vld [vmem:[%s1868 + $0x4] sm:$0xf]
          %v1871 = vld [vmem:[%s1868 + $0x8] sm:$0xf]
          %v1872 = vld [vmem:[%s1868 + $0xc] sm:$0xf]
          %v1873 = vld [vmem:[%s1868 + $0x10] sm:$0xf]
          %v1874 = vld [vmem:[%s1868 + $0x14] sm:$0xf]
          %v1875 = vld [vmem:[%s1868 + $0x18] sm:$0xf]
          %v1876 = vld [vmem:[%s1868 + $0x1c] sm:$0xf]
          %v1877 = vld [vmem:[%s1868 + $0x20] sm:$0xf]
          %v1878 = vld [vmem:[%s1868 + $0x24] sm:$0xf]
          %v1879 = vld [vmem:[%s1868 + $0x28] sm:$0xf]
          %v1880 = vld [vmem:[%s1868 + $0x2c] sm:$0xf]
          %v1881 = vld [vmem:[%s1868 + $0x30] sm:$0xf]
          %v1882 = vld [vmem:[%s1868 + $0x34] sm:$0xf]
          %v1883 = vld [vmem:[%s1868 + $0x38] sm:$0xf]
          %v1884 = vld [vmem:[%s1868 + $0x3c] sm:$0xf]
          %v1885 = vld [vmem:[%s1868 + $0x40] sm:$0xf]
          %v1886 = vld [vmem:[%s1868 + $0x44] sm:$0xf]
          %v1887 = vld [vmem:[%s1868 + $0x48] sm:$0xf]
          %v1888 = vld [vmem:[%s1868 + $0x4c] sm:$0xf]
          %v1889 = vld [vmem:[%s1868 + $0x50] sm:$0xf]
          %v1890 = vld [vmem:[%s1868 + $0x54] sm:$0xf]
          %v1891 = vld [vmem:[%s1868 + $0x58] sm:$0xf]
          %v1892 = vld [vmem:[%s1868 + $0x5c] sm:$0xf]
          %v1893 = vld [vmem:[#allocation3 + $0x100] sm:$0xff]
          %v1894 = vld [vmem:[#allocation3 + $0x108] sm:$0xff]
          %s1895 = sadd.s32 %s1865, 1
          %s1896 = smul.u32 %s1895, 24
          %s1897 = smul.addr %s1896, 4
          %s1898 = scalar_lea.vmem %s1, %s1897
          %v1899 = vld [vmem:[%s1898] sm:$0xf]
          %v1900 = vld [vmem:[%s1898 + $0x4] sm:$0xf]
          %v1901 = vld [vmem:[%s1898 + $0x8] sm:$0xf]
          %v1902 = vld [vmem:[%s1898 + $0xc] sm:$0xf]
          %v1903 = vld [vmem:[%s1898 + $0x10] sm:$0xf]
          %v1904 = vld [vmem:[%s1898 + $0x14] sm:$0xf]
          %v1905 = vld [vmem:[%s1898 + $0x18] sm:$0xf]
          %v1906 = vld [vmem:[%s1898 + $0x1c] sm:$0xf]
          %v1907 = vld [vmem:[%s1898 + $0x20] sm:$0xf]
          %v1908 = vld [vmem:[%s1898 + $0x24] sm:$0xf]
          %v1909 = vld [vmem:[%s1898 + $0x28] sm:$0xf]
          %v1910 = vld [vmem:[%s1898 + $0x2c] sm:$0xf]
          %v1911 = vld [vmem:[%s1898 + $0x30] sm:$0xf]
          %v1912 = vld [vmem:[%s1898 + $0x34] sm:$0xf]
          %v1913 = vld [vmem:[%s1898 + $0x38] sm:$0xf]
          %v1914 = vld [vmem:[%s1898 + $0x3c] sm:$0xf]
          %v1915 = vld [vmem:[%s1898 + $0x40] sm:$0xf]
          %v1916 = vld [vmem:[%s1898 + $0x44] sm:$0xf]
          %v1917 = vld [vmem:[%s1898 + $0x48] sm:$0xf]
          %v1918 = vld [vmem:[%s1898 + $0x4c] sm:$0xf]
          %v1919 = vld [vmem:[%s1898 + $0x50] sm:$0xf]
          %v1920 = vld [vmem:[%s1898 + $0x54] sm:$0xf]
          %v1921 = vld [vmem:[%s1898 + $0x58] sm:$0xf]
          %v1922 = vld [vmem:[%s1898 + $0x5c] sm:$0xf]
          %v1955 = vunpack.c.l.b16 %v1835
          %v1956 = vunpack.c.h.b16 %v1835
          %v1957 = vunpack.c.l.b16 %v1836
          %v1958 = vunpack.c.h.b16 %v1836
          %v1959 = vunpack.c.l.b16 %v1837
          %v1960 = vunpack.c.h.b16 %v1837
          %v1961 = vunpack.c.l.b16 %v1838
          %v1962 = vunpack.c.h.b16 %v1838
          %v1963 = vunpack.c.l.b16 %v1839
          %v1964 = vunpack.c.h.b16 %v1839
          %v1965 = vunpack.c.l.b16 %v1840
          %v1966 = vunpack.c.h.b16 %v1840
          %v1967 = vunpack.c.l.b16 %v1841
          %v1968 = vunpack.c.h.b16 %v1841
          %v1969 = vunpack.c.l.b16 %v1842
          %v1970 = vunpack.c.h.b16 %v1842
          %v1971 = vunpack.c.l.b16 %v1843
          %v1972 = vunpack.c.h.b16 %v1843
          %v1973 = vunpack.c.l.b16 %v1844
          %v1974 = vunpack.c.h.b16 %v1844
          %v1975 = vunpack.c.l.b16 %v1845
          %v1976 = vunpack.c.h.b16 %v1845
          %v1977 = vunpack.c.l.b16 %v1846
          %v1978 = vunpack.c.h.b16 %v1846
          %v1979 = vunpack.c.l.b16 %v1847
          %v1980 = vunpack.c.h.b16 %v1847
          %v1981 = vunpack.c.l.b16 %v1848
          %v1982 = vunpack.c.h.b16 %v1848
          %v1983 = vunpack.c.l.b16 %v1849
          %v1984 = vunpack.c.h.b16 %v1849
          %v1985 = vunpack.c.l.b16 %v1850
          %v1986 = vunpack.c.h.b16 %v1850
          %v1987 = vunpack.c.l.b16 %v1851
          %v1988 = vunpack.c.h.b16 %v1851
          %v1989 = vunpack.c.l.b16 %v1852
          %v1990 = vunpack.c.h.b16 %v1852
          %v1991 = vunpack.c.l.b16 %v1853
          %v1992 = vunpack.c.h.b16 %v1853
          %v1993 = vunpack.c.l.b16 %v1854
          %v1994 = vunpack.c.h.b16 %v1854
          %v1995 = vunpack.c.l.b16 %v1855
          %v1996 = vunpack.c.h.b16 %v1855
          %v1997 = vunpack.c.l.b16 %v1856
          %v1998 = vunpack.c.h.b16 %v1856
          %v1999 = vunpack.c.l.b16 %v1857
          %v2000 = vunpack.c.h.b16 %v1857
          %v2001 = vunpack.c.l.b16 %v1858
          %v2002 = vunpack.c.h.b16 %v1858
          %v2003 = vunpack.c.l.b16 %v1859
          %v2004 = vunpack.c.h.b16 %v1859
          %v2005 = vunpack.c.l.b16 %v1860
          %v2006 = vunpack.c.h.b16 %v1860
          %v2007 = vunpack.c.l.b16 %v1861
          %v2008 = vunpack.c.h.b16 %v1861
          %v2009 = vunpack.c.l.b16 %v1862
          %v2010 = vunpack.c.h.b16 %v1862
          %v2011 = vunpack.c.l.b16 %v1863
          %v2012 = vunpack.c.h.b16 %v1863
          %v2013 = vunpack.c.l.b16 %v1864
          %v2014 = vunpack.c.h.b16 %v1864
          %v2015 = vunpack.c.l.b16 %v1893
          %v2016 = vunpack.c.h.b16 %v1893
          %v2017 = vunpack.c.l.b16 %v1894
          %v2018 = vunpack.c.h.b16 %v1894
          %v2019 = vpack.c.b16 %v1957, %v1955
          %v2020 = vpack.c.b16 %v1958, %v1956
          %v2021 = vpack.c.b16 %v1961, %v1959
          %v2022 = vpack.c.b16 %v1962, %v1960
          %v2023 = vpack.c.b16 %v1965, %v1963
          %v2024 = vpack.c.b16 %v1966, %v1964
          %v2025 = vpack.c.b16 %v1969, %v1967
          %v2026 = vpack.c.b16 %v1970, %v1968
          %v2027 = vpack.c.b16 %v1973, %v1971
          %v2028 = vpack.c.b16 %v1974, %v1972
          %v2029 = vpack.c.b16 %v1977, %v1975
          %v2030 = vpack.c.b16 %v1978, %v1976
          %v2031 = vpack.c.b16 %v1981, %v1979
          %v2032 = vpack.c.b16 %v1982, %v1980
          %v2033 = vpack.c.b16 %v1985, %v1983
          %v2034 = vpack.c.b16 %v1986, %v1984
          %v2035 = vpack.c.b16 %v1989, %v1987
          %v2036 = vpack.c.b16 %v1990, %v1988
          %v2037 = vpack.c.b16 %v1993, %v1991
          %v2038 = vpack.c.b16 %v1994, %v1992
          %v2039 = vpack.c.b16 %v1997, %v1995
          %v2040 = vpack.c.b16 %v1998, %v1996
          %v2041 = vpack.c.b16 %v2001, %v1999
          %v2042 = vpack.c.b16 %v2002, %v2000
          %v2043 = vpack.c.b16 %v2005, %v2003
          %v2044 = vpack.c.b16 %v2006, %v2004
          %v2045 = vpack.c.b16 %v2009, %v2007
          %v2046 = vpack.c.b16 %v2010, %v2008
          %v2047 = vpack.c.b16 %v2013, %v2011
          %v2048 = vpack.c.b16 %v2014, %v2012
          %v2049 = vpack.c.b16 %v2017, %v2015
          %v2050 = vpack.c.b16 %v2018, %v2016
          %v2091 = vunpack.c.l.b16 %v1899
          %v2092 = vunpack.c.l.b16 %v1900
          %v2093 = vunpack.c.l.b16 %v1901
          %v2094 = vunpack.c.l.b16 %v1902
          %v2095 = vunpack.c.l.b16 %v1903
          %v2096 = vunpack.c.l.b16 %v1904
          %v2097 = vunpack.c.l.b16 %v1905
          %v2098 = vunpack.c.l.b16 %v1906
          %v2099 = vunpack.c.l.b16 %v1907
          %v2100 = vunpack.c.l.b16 %v1908
          %v2101 = vunpack.c.l.b16 %v1909
          %v2102 = vunpack.c.l.b16 %v1910
          %v2103 = vunpack.c.l.b16 %v1911
          %v2104 = vunpack.c.l.b16 %v1912
          %v2105 = vunpack.c.l.b16 %v1913
          %v2106 = vunpack.c.l.b16 %v1914
          %v2107 = vunpack.c.l.b16 %v1915
          %v2108 = vunpack.c.l.b16 %v1916
          %v2109 = vunpack.c.l.b16 %v1917
          %v2110 = vunpack.c.l.b16 %v1918
          %v2111 = vunpack.c.l.b16 %v1919
          %v2112 = vunpack.c.l.b16 %v1920
          %v2113 = vunpack.c.l.b16 %v1921
          %v2114 = vunpack.c.l.b16 %v1922
          %v2115 = vpack.c.b16 %v2092, %v2091
          %v2116 = vpack.c.b16 %v2094, %v2093
          %v2117 = vpack.c.b16 %v2096, %v2095
          %v2118 = vpack.c.b16 %v2098, %v2097
          %v2119 = vpack.c.b16 %v2100, %v2099
          %v2120 = vpack.c.b16 %v2102, %v2101
          %v2121 = vpack.c.b16 %v2104, %v2103
          %v2122 = vpack.c.b16 %v2106, %v2105
          %v2123 = vpack.c.b16 %v2108, %v2107
          %v2124 = vpack.c.b16 %v2110, %v2109
          %v2125 = vpack.c.b16 %v2112, %v2111
          %v2126 = vpack.c.b16 %v2114, %v2113
          %v2140 = vsel %vm273, %v2020, 0
          %v2143 = vsel %vm273, %v2022, 0
          %v2146 = vsel %vm273, %v2024, 0
          %v2149 = vsel %vm273, %v2026, 0
          %v2152 = vsel %vm273, %v2028, 0
          %v2155 = vsel %vm273, %v2030, 0
          %v2158 = vsel %vm273, %v2032, 0
          %v2161 = vsel %vm273, %v2034, 0
          %v2164 = vsel %vm273, %v2036, 0
          %v2167 = vsel %vm273, %v2038, 0
          %v2170 = vsel %vm273, %v2040, 0
          %v2173 = vsel %vm273, %v2042, 0
          %v2176 = vsel %vm273, %v2044, 0
          %v2179 = vsel %vm273, %v2046, 0
          %v2182 = vsel %vm273, %v2048, 0
          %v2185 = vsel %vm273, %v2050, 0
          %2187 = vmatpush.bf16.msra.mxu0 %v2122
          %2188 = vmatpush.bf16.msra.mxu0 %v2121
          %2189 = vmatpush.bf16.msra.mxu0 %v2120
          %2190 = vmatpush.bf16.msra.mxu0 %v2119
          %2191 = vmatpush.bf16.msra.mxu0 %v2118
          %2192 = vmatpush.bf16.msra.mxu0 %v2117
          %2193 = vmatpush.bf16.msra.mxu0 %v2116
          %2194 = vmatpush.bf16.msra.mxu0 %v2115
          %2195 = vmatmul.bf16.gmra.mxu0 %v2019
          %v2196 = vpop.f32.mrf.mxu0
          %v2197 = vadd.f32 0.0, %v2196
          %v2198 = vpop.f32.mrf.mxu0
          %v2199 = vadd.f32 0.0, %v2198
          %2200 = vmatmul.bf16.gmra.mxu0 %v2021
          %v2201 = vpop.f32.mrf.mxu0
          %v2202 = vadd.f32 0.0, %v2201
          %v2203 = vpop.f32.mrf.mxu0
          %v2204 = vadd.f32 0.0, %v2203
          %2205 = vmatmul.bf16.gmra.mxu0 %v2023
          %v2206 = vpop.f32.mrf.mxu0
          %v2207 = vadd.f32 0.0, %v2206
          %v2208 = vpop.f32.mrf.mxu0
          %v2209 = vadd.f32 0.0, %v2208
          %2210 = vmatmul.bf16.gmra.mxu0 %v2025
          %v2211 = vpop.f32.mrf.mxu0
          %v2212 = vadd.f32 0.0, %v2211
          %v2213 = vpop.f32.mrf.mxu0
          %v2214 = vadd.f32 0.0, %v2213
          %2215 = vmatmul.bf16.gmra.mxu0 %v2027
          %v2216 = vpop.f32.mrf.mxu0
          %v2217 = vadd.f32 0.0, %v2216
          %v2218 = vpop.f32.mrf.mxu0
          %v2219 = vadd.f32 0.0, %v2218
          %2220 = vmatmul.bf16.gmra.mxu0 %v2029
          %v2221 = vpop.f32.mrf.mxu0
          %v2222 = vadd.f32 0.0, %v2221
          %v2223 = vpop.f32.mrf.mxu0
          %v2224 = vadd.f32 0.0, %v2223
          %2225 = vmatmul.bf16.gmra.mxu0 %v2031
          %v2226 = vpop.f32.mrf.mxu0
          %v2227 = vadd.f32 0.0, %v2226
          %v2228 = vpop.f32.mrf.mxu0
          %v2229 = vadd.f32 0.0, %v2228
          %2230 = vmatmul.bf16.gmra.mxu0 %v2033
          %v2231 = vpop.f32.mrf.mxu0
          %v2232 = vadd.f32 0.0, %v2231
          %v2233 = vpop.f32.mrf.mxu0
          %v2234 = vadd.f32 0.0, %v2233
          %2235 = vmatmul.bf16.gmra.mxu0 %v2035
          %v2236 = vpop.f32.mrf.mxu0
          %v2237 = vadd.f32 0.0, %v2236
          %v2238 = vpop.f32.mrf.mxu0
          %v2239 = vadd.f32 0.0, %v2238
          %2240 = vmatmul.bf16.gmra.mxu0 %v2037
          %v2241 = vpop.f32.mrf.mxu0
          %v2242 = vadd.f32 0.0, %v2241
          %v2243 = vpop.f32.mrf.mxu0
          %v2244 = vadd.f32 0.0, %v2243
          %2245 = vmatmul.bf16.gmra.mxu0 %v2039
          %v2246 = vpop.f32.mrf.mxu0
          %v2247 = vadd.f32 0.0, %v2246
          %v2248 = vpop.f32.mrf.mxu0
          %v2249 = vadd.f32 0.0, %v2248
          %2250 = vmatmul.bf16.gmra.mxu0 %v2041
          %v2251 = vpop.f32.mrf.mxu0
          %v2252 = vadd.f32 0.0, %v2251
          %v2253 = vpop.f32.mrf.mxu0
          %v2254 = vadd.f32 0.0, %v2253
          %2255 = vmatmul.bf16.gmra.mxu0 %v2043
          %v2256 = vpop.f32.mrf.mxu0
          %v2257 = vadd.f32 0.0, %v2256
          %v2258 = vpop.f32.mrf.mxu0
          %v2259 = vadd.f32 0.0, %v2258
          %2260 = vmatmul.bf16.gmra.mxu0 %v2045
          %v2261 = vpop.f32.mrf.mxu0
          %v2262 = vadd.f32 0.0, %v2261
          %v2263 = vpop.f32.mrf.mxu0
          %v2264 = vadd.f32 0.0, %v2263
          %2265 = vmatmul.bf16.gmra.mxu0 %v2047
          %v2266 = vpop.f32.mrf.mxu0
          %v2267 = vadd.f32 0.0, %v2266
          %v2268 = vpop.f32.mrf.mxu0
          %v2269 = vadd.f32 0.0, %v2268
          %2270 = vmatmul.bf16.gmra.mxu0 %v2049
          %v2271 = vpop.f32.mrf.mxu0
          %v2272 = vadd.f32 0.0, %v2271
          %v2273 = vpop.f32.mrf.mxu0
          %v2274 = vadd.f32 0.0, %v2273
          %2275 = vdwg.mxu0
          %2276 = vmatpush.bf16.msra.mxu0 0
          %2277 = vmatpush.bf16.msra.mxu0 0
          %2278 = vmatpush.bf16.msra.mxu0 0
          %2279 = vmatpush.bf16.msra.mxu0 0
          %2280 = vmatpush.bf16.msra.mxu0 %v2126
          %2281 = vmatpush.bf16.msra.mxu0 %v2125
          %2282 = vmatpush.bf16.msra.mxu0 %v2124
          %2283 = vmatpush.bf16.msra.mxu0 %v2123
          %2284 = vmatmul.bf16.gmra.mxu0 %v2140
          %v2285 = vpop.f32.mrf.mxu0
          %v2286 = vadd.f32 %v2197, %v2285
          %v2287 = vpop.f32.mrf.mxu0
          %v2288 = vadd.f32 %v2199, %v2287
          %2289 = vmatmul.bf16.gmra.mxu0 %v2143
          %v2290 = vpop.f32.mrf.mxu0
          %v2291 = vadd.f32 %v2202, %v2290
          %v2292 = vpop.f32.mrf.mxu0
          %v2293 = vadd.f32 %v2204, %v2292
          %2294 = vmatmul.bf16.gmra.mxu0 %v2146
          %v2295 = vpop.f32.mrf.mxu0
          %v2296 = vadd.f32 %v2207, %v2295
          %v2297 = vpop.f32.mrf.mxu0
          %v2298 = vadd.f32 %v2209, %v2297
          %2299 = vmatmul.bf16.gmra.mxu0 %v2149
          %v2300 = vpop.f32.mrf.mxu0
          %v2301 = vadd.f32 %v2212, %v2300
          %v2302 = vpop.f32.mrf.mxu0
          %v2303 = vadd.f32 %v2214, %v2302
          %2304 = vmatmul.bf16.gmra.mxu0 %v2152
          %v2305 = vpop.f32.mrf.mxu0
          %v2306 = vadd.f32 %v2217, %v2305
          %v2307 = vpop.f32.mrf.mxu0
          %v2308 = vadd.f32 %v2219, %v2307
          %2309 = vmatmul.bf16.gmra.mxu0 %v2155
          %v2310 = vpop.f32.mrf.mxu0
          %v2311 = vadd.f32 %v2222, %v2310
          %v2312 = vpop.f32.mrf.mxu0
          %v2313 = vadd.f32 %v2224, %v2312
          %2314 = vmatmul.bf16.gmra.mxu0 %v2158
          %v2315 = vpop.f32.mrf.mxu0
          %v2316 = vadd.f32 %v2227, %v2315
          %v2317 = vpop.f32.mrf.mxu0
          %v2318 = vadd.f32 %v2229, %v2317
          %2319 = vmatmul.bf16.gmra.mxu0 %v2161
          %v2320 = vpop.f32.mrf.mxu0
          %v2321 = vadd.f32 %v2232, %v2320
          %v2322 = vpop.f32.mrf.mxu0
          %v2323 = vadd.f32 %v2234, %v2322
          %2324 = vmatmul.bf16.gmra.mxu0 %v2164
          %v2325 = vpop.f32.mrf.mxu0
          %v2326 = vadd.f32 %v2237, %v2325
          %v2327 = vpop.f32.mrf.mxu0
          %v2328 = vadd.f32 %v2239, %v2327
          %2329 = vmatmul.bf16.gmra.mxu0 %v2167
          %v2330 = vpop.f32.mrf.mxu0
          %v2331 = vadd.f32 %v2242, %v2330
          %v2332 = vpop.f32.mrf.mxu0
          %v2333 = vadd.f32 %v2244, %v2332
          %2334 = vmatmul.bf16.gmra.mxu0 %v2170
          %v2335 = vpop.f32.mrf.mxu0
          %v2336 = vadd.f32 %v2247, %v2335
          %v2337 = vpop.f32.mrf.mxu0
          %v2338 = vadd.f32 %v2249, %v2337
          %2339 = vmatmul.bf16.gmra.mxu0 %v2173
          %v2340 = vpop.f32.mrf.mxu0
          %v2341 = vadd.f32 %v2252, %v2340
          %v2342 = vpop.f32.mrf.mxu0
          %v2343 = vadd.f32 %v2254, %v2342
          %2344 = vmatmul.bf16.gmra.mxu0 %v2176
          %v2345 = vpop.f32.mrf.mxu0
          %v2346 = vadd.f32 %v2257, %v2345
          %v2347 = vpop.f32.mrf.mxu0
          %v2348 = vadd.f32 %v2259, %v2347
          %2349 = vmatmul.bf16.gmra.mxu0 %v2179
          %v2350 = vpop.f32.mrf.mxu0
          %v2351 = vadd.f32 %v2262, %v2350
          %v2352 = vpop.f32.mrf.mxu0
          %v2353 = vadd.f32 %v2264, %v2352
          %2354 = vmatmul.bf16.gmra.mxu0 %v2182
          %v2355 = vpop.f32.mrf.mxu0
          %v2356 = vadd.f32 %v2267, %v2355
          %v2357 = vpop.f32.mrf.mxu0
          %v2358 = vadd.f32 %v2269, %v2357
          %2359 = vmatmul.bf16.gmra.mxu0 %v2185
          %v2360 = vpop.f32.mrf.mxu0
          %v2361 = vadd.f32 %v2272, %v2360
          %v2362 = vpop.f32.mrf.mxu0
          %v2363 = vadd.f32 %v2274, %v2362
          %2364 = vdwg.mxu0
          %v2367 = vunpack.c.l.b16 %v1833
          %v2368 = vunpack.c.h.b16 %v1833
          %v2369 = vunpack.c.l.b16 %v1834
          %v2370 = vunpack.c.h.b16 %v1834
          %v2371 = vpack.c.b16 %v2369, %v2367
          %v2372 = vpack.c.b16 %v2370, %v2368
          %v2398 = vunpack.c.l.b16 %v1869
          %v2399 = vunpack.c.l.b16 %v1870
          %v2400 = vunpack.c.l.b16 %v1871
          %v2401 = vunpack.c.l.b16 %v1872
          %v2402 = vunpack.c.l.b16 %v1873
          %v2403 = vunpack.c.l.b16 %v1874
          %v2404 = vunpack.c.l.b16 %v1875
          %v2405 = vunpack.c.l.b16 %v1876
          %v2406 = vunpack.c.l.b16 %v1877
          %v2407 = vunpack.c.l.b16 %v1878
          %v2408 = vunpack.c.l.b16 %v1879
          %v2409 = vunpack.c.l.b16 %v1880
          %v2410 = vunpack.c.l.b16 %v1881
          %v2411 = vunpack.c.l.b16 %v1882
          %v2412 = vunpack.c.l.b16 %v1883
          %v2413 = vunpack.c.l.b16 %v1884
          %v2414 = vunpack.c.l.b16 %v1885
          %v2415 = vunpack.c.l.b16 %v1886
          %v2416 = vunpack.c.l.b16 %v1887
          %v2417 = vunpack.c.l.b16 %v1888
          %v2418 = vunpack.c.l.b16 %v1889
          %v2419 = vunpack.c.l.b16 %v1890
          %v2420 = vunpack.c.l.b16 %v1891
          %v2421 = vunpack.c.l.b16 %v1892
          %v2422 = vpack.c.b16 %v2399, %v2398
          %v2423 = vpack.c.b16 %v2401, %v2400
          %v2424 = vpack.c.b16 %v2403, %v2402
          %v2425 = vpack.c.b16 %v2405, %v2404
          %v2426 = vpack.c.b16 %v2407, %v2406
          %v2427 = vpack.c.b16 %v2409, %v2408
          %v2428 = vpack.c.b16 %v2411, %v2410
          %v2429 = vpack.c.b16 %v2413, %v2412
          %v2430 = vpack.c.b16 %v2415, %v2414
          %v2431 = vpack.c.b16 %v2417, %v2416
          %v2432 = vpack.c.b16 %v2419, %v2418
          %v2433 = vpack.c.b16 %v2421, %v2420
          %v2447 = vsel %vm273, %v2372, 0
          %2449 = vmatpush.bf16.msra.mxu0 %v2429
          %2450 = vmatpush.bf16.msra.mxu0 %v2428
          %2451 = vmatpush.bf16.msra.mxu0 %v2427
          %2452 = vmatpush.bf16.msra.mxu0 %v2426
          %2453 = vmatpush.bf16.msra.mxu0 %v2425
          %2454 = vmatpush.bf16.msra.mxu0 %v2424
          %2455 = vmatpush.bf16.msra.mxu0 %v2423
          %2456 = vmatpush.bf16.msra.mxu0 %v2422
          %2457 = vmatmul.bf16.gmra.mxu0 %v2371
          %v2458 = vpop.f32.mrf.mxu0
          %v2459 = vadd.f32 %v2286, %v2458
          %v2460 = vpop.f32.mrf.mxu0
          %v2461 = vadd.f32 %v2288, %v2460
          %2462 = vmatmul.bf16.gmra.mxu0 %v2019
          %v2463 = vpop.f32.mrf.mxu0
          %v2464 = vadd.f32 %v2291, %v2463
          %v2465 = vpop.f32.mrf.mxu0
          %v2466 = vadd.f32 %v2293, %v2465
          %2467 = vmatmul.bf16.gmra.mxu0 %v2021
          %v2468 = vpop.f32.mrf.mxu0
          %v2469 = vadd.f32 %v2296, %v2468
          %v2470 = vpop.f32.mrf.mxu0
          %v2471 = vadd.f32 %v2298, %v2470
          %2472 = vmatmul.bf16.gmra.mxu0 %v2023
          %v2473 = vpop.f32.mrf.mxu0
          %v2474 = vadd.f32 %v2301, %v2473
          %v2475 = vpop.f32.mrf.mxu0
          %v2476 = vadd.f32 %v2303, %v2475
          %2477 = vmatmul.bf16.gmra.mxu0 %v2025
          %v2478 = vpop.f32.mrf.mxu0
          %v2479 = vadd.f32 %v2306, %v2478
          %v2480 = vpop.f32.mrf.mxu0
          %v2481 = vadd.f32 %v2308, %v2480
          %2482 = vmatmul.bf16.gmra.mxu0 %v2027
          %v2483 = vpop.f32.mrf.mxu0
          %v2484 = vadd.f32 %v2311, %v2483
          %v2485 = vpop.f32.mrf.mxu0
          %v2486 = vadd.f32 %v2313, %v2485
          %2487 = vmatmul.bf16.gmra.mxu0 %v2029
          %v2488 = vpop.f32.mrf.mxu0
          %v2489 = vadd.f32 %v2316, %v2488
          %v2490 = vpop.f32.mrf.mxu0
          %v2491 = vadd.f32 %v2318, %v2490
          %2492 = vmatmul.bf16.gmra.mxu0 %v2031
          %v2493 = vpop.f32.mrf.mxu0
          %v2494 = vadd.f32 %v2321, %v2493
          %v2495 = vpop.f32.mrf.mxu0
          %v2496 = vadd.f32 %v2323, %v2495
          %2497 = vmatmul.bf16.gmra.mxu0 %v2033
          %v2498 = vpop.f32.mrf.mxu0
          %v2499 = vadd.f32 %v2326, %v2498
          %v2500 = vpop.f32.mrf.mxu0
          %v2501 = vadd.f32 %v2328, %v2500
          %2502 = vmatmul.bf16.gmra.mxu0 %v2035
          %v2503 = vpop.f32.mrf.mxu0
          %v2504 = vadd.f32 %v2331, %v2503
          %v2505 = vpop.f32.mrf.mxu0
          %v2506 = vadd.f32 %v2333, %v2505
          %2507 = vmatmul.bf16.gmra.mxu0 %v2037
          %v2508 = vpop.f32.mrf.mxu0
          %v2509 = vadd.f32 %v2336, %v2508
          %v2510 = vpop.f32.mrf.mxu0
          %v2511 = vadd.f32 %v2338, %v2510
          %2512 = vmatmul.bf16.gmra.mxu0 %v2039
          %v2513 = vpop.f32.mrf.mxu0
          %v2514 = vadd.f32 %v2341, %v2513
          %v2515 = vpop.f32.mrf.mxu0
          %v2516 = vadd.f32 %v2343, %v2515
          %2517 = vmatmul.bf16.gmra.mxu0 %v2041
          %v2518 = vpop.f32.mrf.mxu0
          %v2519 = vadd.f32 %v2346, %v2518
          %v2520 = vpop.f32.mrf.mxu0
          %v2521 = vadd.f32 %v2348, %v2520
          %2522 = vmatmul.bf16.gmra.mxu0 %v2043
          %v2523 = vpop.f32.mrf.mxu0
          %v2524 = vadd.f32 %v2351, %v2523
          %v2525 = vpop.f32.mrf.mxu0
          %v2526 = vadd.f32 %v2353, %v2525
          %2527 = vmatmul.bf16.gmra.mxu0 %v2045
          %v2528 = vpop.f32.mrf.mxu0
          %v2529 = vadd.f32 %v2356, %v2528
          %v2530 = vpop.f32.mrf.mxu0
          %v2531 = vadd.f32 %v2358, %v2530
          %2532 = vmatmul.bf16.gmra.mxu0 %v2047
          %v2533 = vpop.f32.mrf.mxu0
          %v2534 = vadd.f32 %v2361, %v2533
          %v2535 = vpop.f32.mrf.mxu0
          %v2536 = vadd.f32 %v2363, %v2535
          %2537 = vdwg.mxu0
          %2538 = vmatpush.bf16.msra.mxu0 0
          %2539 = vmatpush.bf16.msra.mxu0 0
          %2540 = vmatpush.bf16.msra.mxu0 0
          %2541 = vmatpush.bf16.msra.mxu0 0
          %2542 = vmatpush.bf16.msra.mxu0 %v2433
          %2543 = vmatpush.bf16.msra.mxu0 %v2432
          %2544 = vmatpush.bf16.msra.mxu0 %v2431
          %2545 = vmatpush.bf16.msra.mxu0 %v2430
          %2546 = vmatmul.bf16.gmra.mxu0 %v2447
          %v2547 = vpop.f32.mrf.mxu0
          %v2548 = vadd.f32 %v2459, %v2547
          %v2549 = vpop.f32.mrf.mxu0
          %v2550 = vadd.f32 %v2461, %v2549
          %2551 = vmatmul.bf16.gmra.mxu0 %v2140
          %v2552 = vpop.f32.mrf.mxu0
          %v2553 = vadd.f32 %v2464, %v2552
          %v2554 = vpop.f32.mrf.mxu0
          %v2555 = vadd.f32 %v2466, %v2554
          %2556 = vmatmul.bf16.gmra.mxu0 %v2143
          %v2557 = vpop.f32.mrf.mxu0
          %v2558 = vadd.f32 %v2469, %v2557
          %v2559 = vpop.f32.mrf.mxu0
          %v2560 = vadd.f32 %v2471, %v2559
          %2561 = vmatmul.bf16.gmra.mxu0 %v2146
          %v2562 = vpop.f32.mrf.mxu0
          %v2563 = vadd.f32 %v2474, %v2562
          %v2564 = vpop.f32.mrf.mxu0
          %v2565 = vadd.f32 %v2476, %v2564
          %2566 = vmatmul.bf16.gmra.mxu0 %v2149
          %v2567 = vpop.f32.mrf.mxu0
          %v2568 = vadd.f32 %v2479, %v2567
          %v2569 = vpop.f32.mrf.mxu0
          %v2570 = vadd.f32 %v2481, %v2569
          %2571 = vmatmul.bf16.gmra.mxu0 %v2152
          %v2572 = vpop.f32.mrf.mxu0
          %v2573 = vadd.f32 %v2484, %v2572
          %v2574 = vpop.f32.mrf.mxu0
          %v2575 = vadd.f32 %v2486, %v2574
          %2576 = vmatmul.bf16.gmra.mxu0 %v2155
          %v2577 = vpop.f32.mrf.mxu0
          %v2578 = vadd.f32 %v2489, %v2577
          %v2579 = vpop.f32.mrf.mxu0
          %v2580 = vadd.f32 %v2491, %v2579
          %2581 = vmatmul.bf16.gmra.mxu0 %v2158
          %v2582 = vpop.f32.mrf.mxu0
          %v2583 = vadd.f32 %v2494, %v2582
          %v2584 = vpop.f32.mrf.mxu0
          %v2585 = vadd.f32 %v2496, %v2584
          %2586 = vmatmul.bf16.gmra.mxu0 %v2161
          %v2587 = vpop.f32.mrf.mxu0
          %v2588 = vadd.f32 %v2499, %v2587
          %v2589 = vpop.f32.mrf.mxu0
          %v2590 = vadd.f32 %v2501, %v2589
          %2591 = vmatmul.bf16.gmra.mxu0 %v2164
          %v2592 = vpop.f32.mrf.mxu0
          %v2593 = vadd.f32 %v2504, %v2592
          %v2594 = vpop.f32.mrf.mxu0
          %v2595 = vadd.f32 %v2506, %v2594
          %2596 = vmatmul.bf16.gmra.mxu0 %v2167
          %v2597 = vpop.f32.mrf.mxu0
          %v2598 = vadd.f32 %v2509, %v2597
          %v2599 = vpop.f32.mrf.mxu0
          %v2600 = vadd.f32 %v2511, %v2599
          %2601 = vmatmul.bf16.gmra.mxu0 %v2170
          %v2602 = vpop.f32.mrf.mxu0
          %v2603 = vadd.f32 %v2514, %v2602
          %v2604 = vpop.f32.mrf.mxu0
          %v2605 = vadd.f32 %v2516, %v2604
          %2606 = vmatmul.bf16.gmra.mxu0 %v2173
          %v2607 = vpop.f32.mrf.mxu0
          %v2608 = vadd.f32 %v2519, %v2607
          %v2609 = vpop.f32.mrf.mxu0
          %v2610 = vadd.f32 %v2521, %v2609
          %2611 = vmatmul.bf16.gmra.mxu0 %v2176
          %v2612 = vpop.f32.mrf.mxu0
          %v2613 = vadd.f32 %v2524, %v2612
          %v2614 = vpop.f32.mrf.mxu0
          %v2615 = vadd.f32 %v2526, %v2614
          %2616 = vmatmul.bf16.gmra.mxu0 %v2179
          %v2617 = vpop.f32.mrf.mxu0
          %v2618 = vadd.f32 %v2529, %v2617
          %v2619 = vpop.f32.mrf.mxu0
          %v2620 = vadd.f32 %v2531, %v2619
          %2621 = vmatmul.bf16.gmra.mxu0 %v2182
          %v2622 = vpop.f32.mrf.mxu0
          %v2623 = vadd.f32 %v2534, %v2622
          %v2624 = vpop.f32.mrf.mxu0
          %v2625 = vadd.f32 %v2536, %v2624
          %2626 = vdwg.mxu0
          %v2627 = vld [vmem:[#allocation3 + $0x20] sm:$0xff]
          %v2628 = vld [vmem:[#allocation3 + $0x28] sm:$0xff]
          %v2629 = vld [vmem:[#allocation3 + $0x30] sm:$0xff]
          %v2630 = vld [vmem:[#allocation3 + $0x38] sm:$0xff]
          %v2631 = vld [vmem:[#allocation3 + $0x40] sm:$0xff]
          %v2632 = vld [vmem:[#allocation3 + $0x48] sm:$0xff]
          %v2633 = vld [vmem:[#allocation3 + $0x50] sm:$0xff]
          %v2634 = vld [vmem:[#allocation3 + $0x58] sm:$0xff]
          %v2635 = vld [vmem:[#allocation3 + $0x60] sm:$0xff]
          %v2636 = vld [vmem:[#allocation3 + $0x68] sm:$0xff]
          %v2637 = vld [vmem:[#allocation3 + $0x70] sm:$0xff]
          %v2638 = vld [vmem:[#allocation3 + $0x78] sm:$0xff]
          %v2639 = vld [vmem:[#allocation3 + $0x80] sm:$0xff]
          %v2640 = vld [vmem:[#allocation3 + $0x88] sm:$0xff]
          %v2641 = vld [vmem:[#allocation3 + $0x90] sm:$0xff]
          %v2642 = vld [vmem:[#allocation3 + $0x98] sm:$0xff]
          %v2643 = vld [vmem:[#allocation3 + $0xa0] sm:$0xff]
          %v2644 = vld [vmem:[#allocation3 + $0xa8] sm:$0xff]
          %v2645 = vld [vmem:[#allocation3 + $0xb0] sm:$0xff]
          %v2646 = vld [vmem:[#allocation3 + $0xb8] sm:$0xff]
          %v2647 = vld [vmem:[#allocation3 + $0xc0] sm:$0xff]
          %v2648 = vld [vmem:[#allocation3 + $0xc8] sm:$0xff]
          %v2649 = vld [vmem:[#allocation3 + $0xd0] sm:$0xff]
          %v2650 = vld [vmem:[#allocation3 + $0xd8] sm:$0xff]
          %v2651 = vld [vmem:[#allocation3 + $0xe0] sm:$0xff]
          %v2652 = vld [vmem:[#allocation3 + $0xe8] sm:$0xff]
          %v2653 = vld [vmem:[#allocation3 + $0xf0] sm:$0xff]
          %v2654 = vld [vmem:[#allocation3 + $0xf8] sm:$0xff]
          %v2655 = vld [vmem:[#allocation3 + $0x100] sm:$0xff]
          %v2656 = vld [vmem:[#allocation3 + $0x108] sm:$0xff]
          %v2657 = vld [vmem:[#allocation3 + $0x110] sm:$0xff]
          %v2658 = vld [vmem:[#allocation3 + $0x118] sm:$0xff]
          %s2659 = sadd.s32 %s1865, 2
          %s2660 = smul.u32 %s2659, 24
          %s2661 = smul.addr %s2660, 4
          %s2662 = scalar_lea.vmem %s1, %s2661
          %v2663 = vld [vmem:[%s2662] sm:$0xf]
          %v2664 = vld [vmem:[%s2662 + $0x4] sm:$0xf]
          %v2665 = vld [vmem:[%s2662 + $0x8] sm:$0xf]
          %v2666 = vld [vmem:[%s2662 + $0xc] sm:$0xf]
          %v2667 = vld [vmem:[%s2662 + $0x10] sm:$0xf]
          %v2668 = vld [vmem:[%s2662 + $0x14] sm:$0xf]
          %v2669 = vld [vmem:[%s2662 + $0x18] sm:$0xf]
          %v2670 = vld [vmem:[%s2662 + $0x1c] sm:$0xf]
          %v2671 = vld [vmem:[%s2662 + $0x20] sm:$0xf]
          %v2672 = vld [vmem:[%s2662 + $0x24] sm:$0xf]
          %v2673 = vld [vmem:[%s2662 + $0x28] sm:$0xf]
          %v2674 = vld [vmem:[%s2662 + $0x2c] sm:$0xf]
          %v2675 = vld [vmem:[%s2662 + $0x30] sm:$0xf]
          %v2676 = vld [vmem:[%s2662 + $0x34] sm:$0xf]
          %v2677 = vld [vmem:[%s2662 + $0x38] sm:$0xf]
          %v2678 = vld [vmem:[%s2662 + $0x3c] sm:$0xf]
          %v2679 = vld [vmem:[%s2662 + $0x40] sm:$0xf]
          %v2680 = vld [vmem:[%s2662 + $0x44] sm:$0xf]
          %v2681 = vld [vmem:[%s2662 + $0x48] sm:$0xf]
          %v2682 = vld [vmem:[%s2662 + $0x4c] sm:$0xf]
          %v2683 = vld [vmem:[%s2662 + $0x50] sm:$0xf]
          %v2684 = vld [vmem:[%s2662 + $0x54] sm:$0xf]
          %v2685 = vld [vmem:[%s2662 + $0x58] sm:$0xf]
          %v2686 = vld [vmem:[%s2662 + $0x5c] sm:$0xf]
          %v2719 = vunpack.c.l.b16 %v2627
          %v2720 = vunpack.c.h.b16 %v2627
          %v2721 = vunpack.c.l.b16 %v2628
          %v2722 = vunpack.c.h.b16 %v2628
          %v2723 = vunpack.c.l.b16 %v2629
          %v2724 = vunpack.c.h.b16 %v2629
          %v2725 = vunpack.c.l.b16 %v2630
          %v2726 = vunpack.c.h.b16 %v2630
          %v2727 = vunpack.c.l.b16 %v2631
          %v2728 = vunpack.c.h.b16 %v2631
          %v2729 = vunpack.c.l.b16 %v2632
          %v2730 = vunpack.c.h.b16 %v2632
          %v2731 = vunpack.c.l.b16 %v2633
          %v2732 = vunpack.c.h.b16 %v2633
          %v2733 = vunpack.c.l.b16 %v2634
          %v2734 = vunpack.c.h.b16 %v2634
          %v2735 = vunpack.c.l.b16 %v2635
          %v2736 = vunpack.c.h.b16 %v2635
          %v2737 = vunpack.c.l.b16 %v2636
          %v2738 = vunpack.c.h.b16 %v2636
          %v2739 = vunpack.c.l.b16 %v2637
          %v2740 = vunpack.c.h.b16 %v2637
          %v2741 = vunpack.c.l.b16 %v2638
          %v2742 = vunpack.c.h.b16 %v2638
          %v2743 = vunpack.c.l.b16 %v2639
          %v2744 = vunpack.c.h.b16 %v2639
          %v2745 = vunpack.c.l.b16 %v2640
          %v2746 = vunpack.c.h.b16 %v2640
          %v2747 = vunpack.c.l.b16 %v2641
          %v2748 = vunpack.c.h.b16 %v2641
          %v2749 = vunpack.c.l.b16 %v2642
          %v2750 = vunpack.c.h.b16 %v2642
          %v2751 = vunpack.c.l.b16 %v2643
          %v2752 = vunpack.c.h.b16 %v2643
          %v2753 = vunpack.c.l.b16 %v2644
          %v2754 = vunpack.c.h.b16 %v2644
          %v2755 = vunpack.c.l.b16 %v2645
          %v2756 = vunpack.c.h.b16 %v2645
          %v2757 = vunpack.c.l.b16 %v2646
          %v2758 = vunpack.c.h.b16 %v2646
          %v2759 = vunpack.c.l.b16 %v2647
          %v2760 = vunpack.c.h.b16 %v2647
          %v2761 = vunpack.c.l.b16 %v2648
          %v2762 = vunpack.c.h.b16 %v2648
          %v2763 = vunpack.c.l.b16 %v2649
          %v2764 = vunpack.c.h.b16 %v2649
          %v2765 = vunpack.c.l.b16 %v2650
          %v2766 = vunpack.c.h.b16 %v2650
          %v2767 = vunpack.c.l.b16 %v2651
          %v2768 = vunpack.c.h.b16 %v2651
          %v2769 = vunpack.c.l.b16 %v2652
          %v2770 = vunpack.c.h.b16 %v2652
          %v2771 = vunpack.c.l.b16 %v2653
          %v2772 = vunpack.c.h.b16 %v2653
          %v2773 = vunpack.c.l.b16 %v2654
          %v2774 = vunpack.c.h.b16 %v2654
          %v2775 = vunpack.c.l.b16 %v2655
          %v2776 = vunpack.c.h.b16 %v2655
          %v2777 = vunpack.c.l.b16 %v2656
          %v2778 = vunpack.c.h.b16 %v2656
          %v2779 = vunpack.c.l.b16 %v2657
          %v2780 = vunpack.c.h.b16 %v2657
          %v2781 = vunpack.c.l.b16 %v2658
          %v2782 = vunpack.c.h.b16 %v2658
          %v2783 = vpack.c.b16 %v2721, %v2719
          %v2784 = vpack.c.b16 %v2722, %v2720
          %v2785 = vpack.c.b16 %v2725, %v2723
          %v2786 = vpack.c.b16 %v2726, %v2724
          %v2787 = vpack.c.b16 %v2729, %v2727
          %v2788 = vpack.c.b16 %v2730, %v2728
          %v2789 = vpack.c.b16 %v2733, %v2731
          %v2790 = vpack.c.b16 %v2734, %v2732
          %v2791 = vpack.c.b16 %v2737, %v2735
          %v2792 = vpack.c.b16 %v2738, %v2736
          %v2793 = vpack.c.b16 %v2741, %v2739
          %v2794 = vpack.c.b16 %v2742, %v2740
          %v2795 = vpack.c.b16 %v2745, %v2743
          %v2796 = vpack.c.b16 %v2746, %v2744
          %v2797 = vpack.c.b16 %v2749, %v2747
          %v2798 = vpack.c.b16 %v2750, %v2748
          %v2799 = vpack.c.b16 %v2753, %v2751
          %v2800 = vpack.c.b16 %v2754, %v2752
          %v2801 = vpack.c.b16 %v2757, %v2755
          %v2802 = vpack.c.b16 %v2758, %v2756
          %v2803 = vpack.c.b16 %v2761, %v2759
          %v2804 = vpack.c.b16 %v2762, %v2760
          %v2805 = vpack.c.b16 %v2765, %v2763
          %v2806 = vpack.c.b16 %v2766, %v2764
          %v2807 = vpack.c.b16 %v2769, %v2767
          %v2808 = vpack.c.b16 %v2770, %v2768
          %v2809 = vpack.c.b16 %v2773, %v2771
          %v2810 = vpack.c.b16 %v2774, %v2772
          %v2811 = vpack.c.b16 %v2777, %v2775
          %v2812 = vpack.c.b16 %v2778, %v2776
          %v2813 = vpack.c.b16 %v2781, %v2779
          %v2814 = vpack.c.b16 %v2782, %v2780
          %v2855 = vunpack.c.l.b16 %v2663
          %v2856 = vunpack.c.l.b16 %v2664
          %v2857 = vunpack.c.l.b16 %v2665
          %v2858 = vunpack.c.l.b16 %v2666
          %v2859 = vunpack.c.l.b16 %v2667
          %v2860 = vunpack.c.l.b16 %v2668
          %v2861 = vunpack.c.l.b16 %v2669
          %v2862 = vunpack.c.l.b16 %v2670
          %v2863 = vunpack.c.l.b16 %v2671
          %v2864 = vunpack.c.l.b16 %v2672
          %v2865 = vunpack.c.l.b16 %v2673
          %v2866 = vunpack.c.l.b16 %v2674
          %v2867 = vunpack.c.l.b16 %v2675
          %v2868 = vunpack.c.l.b16 %v2676
          %v2869 = vunpack.c.l.b16 %v2677
          %v2870 = vunpack.c.l.b16 %v2678
          %v2871 = vunpack.c.l.b16 %v2679
          %v2872 = vunpack.c.l.b16 %v2680
          %v2873 = vunpack.c.l.b16 %v2681
          %v2874 = vunpack.c.l.b16 %v2682
          %v2875 = vunpack.c.l.b16 %v2683
          %v2876 = vunpack.c.l.b16 %v2684
          %v2877 = vunpack.c.l.b16 %v2685
          %v2878 = vunpack.c.l.b16 %v2686
          %v2879 = vpack.c.b16 %v2856, %v2855
          %v2880 = vpack.c.b16 %v2858, %v2857
          %v2881 = vpack.c.b16 %v2860, %v2859
          %v2882 = vpack.c.b16 %v2862, %v2861
          %v2883 = vpack.c.b16 %v2864, %v2863
          %v2884 = vpack.c.b16 %v2866, %v2865
          %v2885 = vpack.c.b16 %v2868, %v2867
          %v2886 = vpack.c.b16 %v2870, %v2869
          %v2887 = vpack.c.b16 %v2872, %v2871
          %v2888 = vpack.c.b16 %v2874, %v2873
          %v2889 = vpack.c.b16 %v2876, %v2875
          %v2890 = vpack.c.b16 %v2878, %v2877
          %v2904 = vsel %vm273, %v2784, 0
          %v2907 = vsel %vm273, %v2786, 0
          %v2910 = vsel %vm273, %v2788, 0
          %v2913 = vsel %vm273, %v2790, 0
          %v2916 = vsel %vm273, %v2792, 0
          %v2919 = vsel %vm273, %v2794, 0
          %v2922 = vsel %vm273, %v2796, 0
          %v2925 = vsel %vm273, %v2798, 0
          %v2928 = vsel %vm273, %v2800, 0
          %v2931 = vsel %vm273, %v2802, 0
          %v2934 = vsel %vm273, %v2804, 0
          %v2937 = vsel %vm273, %v2806, 0
          %v2940 = vsel %vm273, %v2808, 0
          %v2943 = vsel %vm273, %v2810, 0
          %v2946 = vsel %vm273, %v2812, 0
          %v2949 = vsel %vm273, %v2814, 0
          %2951 = vmatpush.bf16.msra.mxu0 %v2886
          %2952 = vmatpush.bf16.msra.mxu0 %v2885
          %2953 = vmatpush.bf16.msra.mxu0 %v2884
          %2954 = vmatpush.bf16.msra.mxu0 %v2883
          %2955 = vmatpush.bf16.msra.mxu0 %v2882
          %2956 = vmatpush.bf16.msra.mxu0 %v2881
          %2957 = vmatpush.bf16.msra.mxu0 %v2880
          %2958 = vmatpush.bf16.msra.mxu0 %v2879
          %2959 = vmatmul.bf16.gmra.mxu0 %v2783
          %v2960 = vpop.f32.mrf.mxu0
          %v2961 = vadd.f32 0.0, %v2960
          %v2962 = vpop.f32.mrf.mxu0
          %v2963 = vadd.f32 0.0, %v2962
          %2964 = vmatmul.bf16.gmra.mxu0 %v2785
          %v2965 = vpop.f32.mrf.mxu0
          %v2966 = vadd.f32 0.0, %v2965
          %v2967 = vpop.f32.mrf.mxu0
          %v2968 = vadd.f32 0.0, %v2967
          %2969 = vmatmul.bf16.gmra.mxu0 %v2787
          %v2970 = vpop.f32.mrf.mxu0
          %v2971 = vadd.f32 0.0, %v2970
          %v2972 = vpop.f32.mrf.mxu0
          %v2973 = vadd.f32 0.0, %v2972
          %2974 = vmatmul.bf16.gmra.mxu0 %v2789
          %v2975 = vpop.f32.mrf.mxu0
          %v2976 = vadd.f32 0.0, %v2975
          %v2977 = vpop.f32.mrf.mxu0
          %v2978 = vadd.f32 0.0, %v2977
          %2979 = vmatmul.bf16.gmra.mxu0 %v2791
          %v2980 = vpop.f32.mrf.mxu0
          %v2981 = vadd.f32 0.0, %v2980
          %v2982 = vpop.f32.mrf.mxu0
          %v2983 = vadd.f32 0.0, %v2982
          %2984 = vmatmul.bf16.gmra.mxu0 %v2793
          %v2985 = vpop.f32.mrf.mxu0
          %v2986 = vadd.f32 0.0, %v2985
          %v2987 = vpop.f32.mrf.mxu0
          %v2988 = vadd.f32 0.0, %v2987
          %2989 = vmatmul.bf16.gmra.mxu0 %v2795
          %v2990 = vpop.f32.mrf.mxu0
          %v2991 = vadd.f32 0.0, %v2990
          %v2992 = vpop.f32.mrf.mxu0
          %v2993 = vadd.f32 0.0, %v2992
          %2994 = vmatmul.bf16.gmra.mxu0 %v2797
          %v2995 = vpop.f32.mrf.mxu0
          %v2996 = vadd.f32 0.0, %v2995
          %v2997 = vpop.f32.mrf.mxu0
          %v2998 = vadd.f32 0.0, %v2997
          %2999 = vmatmul.bf16.gmra.mxu0 %v2799
          %v3000 = vpop.f32.mrf.mxu0
          %v3001 = vadd.f32 0.0, %v3000
          %v3002 = vpop.f32.mrf.mxu0
          %v3003 = vadd.f32 0.0, %v3002
          %3004 = vmatmul.bf16.gmra.mxu0 %v2801
          %v3005 = vpop.f32.mrf.mxu0
          %v3006 = vadd.f32 0.0, %v3005
          %v3007 = vpop.f32.mrf.mxu0
          %v3008 = vadd.f32 0.0, %v3007
          %3009 = vmatmul.bf16.gmra.mxu0 %v2803
          %v3010 = vpop.f32.mrf.mxu0
          %v3011 = vadd.f32 0.0, %v3010
          %v3012 = vpop.f32.mrf.mxu0
          %v3013 = vadd.f32 0.0, %v3012
          %3014 = vmatmul.bf16.gmra.mxu0 %v2805
          %v3015 = vpop.f32.mrf.mxu0
          %v3016 = vadd.f32 0.0, %v3015
          %v3017 = vpop.f32.mrf.mxu0
          %v3018 = vadd.f32 0.0, %v3017
          %3019 = vmatmul.bf16.gmra.mxu0 %v2807
          %v3020 = vpop.f32.mrf.mxu0
          %v3021 = vadd.f32 0.0, %v3020
          %v3022 = vpop.f32.mrf.mxu0
          %v3023 = vadd.f32 0.0, %v3022
          %3024 = vmatmul.bf16.gmra.mxu0 %v2809
          %v3025 = vpop.f32.mrf.mxu0
          %v3026 = vadd.f32 0.0, %v3025
          %v3027 = vpop.f32.mrf.mxu0
          %v3028 = vadd.f32 0.0, %v3027
          %3029 = vmatmul.bf16.gmra.mxu0 %v2811
          %v3030 = vpop.f32.mrf.mxu0
          %v3031 = vadd.f32 0.0, %v3030
          %v3032 = vpop.f32.mrf.mxu0
          %v3033 = vadd.f32 0.0, %v3032
          %3034 = vmatmul.bf16.gmra.mxu0 %v2813
          %v3035 = vpop.f32.mrf.mxu0
          %v3036 = vadd.f32 0.0, %v3035
          %v3037 = vpop.f32.mrf.mxu0
          %v3038 = vadd.f32 0.0, %v3037
          %3039 = vdwg.mxu0
          %3040 = vmatpush.bf16.msra.mxu0 0
          %3041 = vmatpush.bf16.msra.mxu0 0
          %3042 = vmatpush.bf16.msra.mxu0 0
          %3043 = vmatpush.bf16.msra.mxu0 0
          %3044 = vmatpush.bf16.msra.mxu0 %v2890
          %3045 = vmatpush.bf16.msra.mxu0 %v2889
          %3046 = vmatpush.bf16.msra.mxu0 %v2888
          %3047 = vmatpush.bf16.msra.mxu0 %v2887
          %3048 = vmatmul.bf16.gmra.mxu0 %v2904
          %v3049 = vpop.f32.mrf.mxu0
          %v3050 = vadd.f32 %v2961, %v3049
          %v3051 = vpop.f32.mrf.mxu0
          %v3052 = vadd.f32 %v2963, %v3051
          %3053 = vmatmul.bf16.gmra.mxu0 %v2907
          %v3054 = vpop.f32.mrf.mxu0
          %v3055 = vadd.f32 %v2966, %v3054
          %v3056 = vpop.f32.mrf.mxu0
          %v3057 = vadd.f32 %v2968, %v3056
          %3058 = vmatmul.bf16.gmra.mxu0 %v2910
          %v3059 = vpop.f32.mrf.mxu0
          %v3060 = vadd.f32 %v2971, %v3059
          %v3061 = vpop.f32.mrf.mxu0
          %v3062 = vadd.f32 %v2973, %v3061
          %3063 = vmatmul.bf16.gmra.mxu0 %v2913
          %v3064 = vpop.f32.mrf.mxu0
          %v3065 = vadd.f32 %v2976, %v3064
          %v3066 = vpop.f32.mrf.mxu0
          %v3067 = vadd.f32 %v2978, %v3066
          %3068 = vmatmul.bf16.gmra.mxu0 %v2916
          %v3069 = vpop.f32.mrf.mxu0
          %v3070 = vadd.f32 %v2981, %v3069
          %v3071 = vpop.f32.mrf.mxu0
          %v3072 = vadd.f32 %v2983, %v3071
          %3073 = vmatmul.bf16.gmra.mxu0 %v2919
          %v3074 = vpop.f32.mrf.mxu0
          %v3075 = vadd.f32 %v2986, %v3074
          %v3076 = vpop.f32.mrf.mxu0
          %v3077 = vadd.f32 %v2988, %v3076
          %3078 = vmatmul.bf16.gmra.mxu0 %v2922
          %v3079 = vpop.f32.mrf.mxu0
          %v3080 = vadd.f32 %v2991, %v3079
          %v3081 = vpop.f32.mrf.mxu0
          %v3082 = vadd.f32 %v2993, %v3081
          %3083 = vmatmul.bf16.gmra.mxu0 %v2925
          %v3084 = vpop.f32.mrf.mxu0
          %v3085 = vadd.f32 %v2996, %v3084
          %v3086 = vpop.f32.mrf.mxu0
          %v3087 = vadd.f32 %v2998, %v3086
          %3088 = vmatmul.bf16.gmra.mxu0 %v2928
          %v3089 = vpop.f32.mrf.mxu0
          %v3090 = vadd.f32 %v3001, %v3089
          %v3091 = vpop.f32.mrf.mxu0
          %v3092 = vadd.f32 %v3003, %v3091
          %3093 = vmatmul.bf16.gmra.mxu0 %v2931
          %v3094 = vpop.f32.mrf.mxu0
          %v3095 = vadd.f32 %v3006, %v3094
          %v3096 = vpop.f32.mrf.mxu0
          %v3097 = vadd.f32 %v3008, %v3096
          %3098 = vmatmul.bf16.gmra.mxu0 %v2934
          %v3099 = vpop.f32.mrf.mxu0
          %v3100 = vadd.f32 %v3011, %v3099
          %v3101 = vpop.f32.mrf.mxu0
          %v3102 = vadd.f32 %v3013, %v3101
          %3103 = vmatmul.bf16.gmra.mxu0 %v2937
          %v3104 = vpop.f32.mrf.mxu0
          %v3105 = vadd.f32 %v3016, %v3104
          %v3106 = vpop.f32.mrf.mxu0
          %v3107 = vadd.f32 %v3018, %v3106
          %3108 = vmatmul.bf16.gmra.mxu0 %v2940
          %v3109 = vpop.f32.mrf.mxu0
          %v3110 = vadd.f32 %v3021, %v3109
          %v3111 = vpop.f32.mrf.mxu0
          %v3112 = vadd.f32 %v3023, %v3111
          %3113 = vmatmul.bf16.gmra.mxu0 %v2943
          %v3114 = vpop.f32.mrf.mxu0
          %v3115 = vadd.f32 %v3026, %v3114
          %v3116 = vpop.f32.mrf.mxu0
          %v3117 = vadd.f32 %v3028, %v3116
          %3118 = vmatmul.bf16.gmra.mxu0 %v2946
          %v3119 = vpop.f32.mrf.mxu0
          %v3120 = vadd.f32 %v3031, %v3119
          %v3121 = vpop.f32.mrf.mxu0
          %v3122 = vadd.f32 %v3033, %v3121
          %3123 = vmatmul.bf16.gmra.mxu0 %v2949
          %v3124 = vpop.f32.mrf.mxu0
          %v3125 = vadd.f32 %v3036, %v3124
          %v3126 = vpop.f32.mrf.mxu0
          %v3127 = vadd.f32 %v3038, %v3126
          %3128 = vdwg.mxu0
          %v3129 = vadd.f32 %v2548, %v3050
          %v3130 = vadd.f32 %v2550, %v3052
          %v3131 = vadd.f32 %v2553, %v3055
          %v3132 = vadd.f32 %v2555, %v3057
          %v3133 = vadd.f32 %v2558, %v3060
          %v3134 = vadd.f32 %v2560, %v3062
          %v3135 = vadd.f32 %v2563, %v3065
          %v3136 = vadd.f32 %v2565, %v3067
          %v3137 = vadd.f32 %v2568, %v3070
          %v3138 = vadd.f32 %v2570, %v3072
          %v3139 = vadd.f32 %v2573, %v3075
          %v3140 = vadd.f32 %v2575, %v3077
          %v3141 = vadd.f32 %v2578, %v3080
          %v3142 = vadd.f32 %v2580, %v3082
          %v3143 = vadd.f32 %v2583, %v3085
          %v3144 = vadd.f32 %v2585, %v3087
          %v3145 = vadd.f32 %v2588, %v3090
          %v3146 = vadd.f32 %v2590, %v3092
          %v3147 = vadd.f32 %v2593, %v3095
          %v3148 = vadd.f32 %v2595, %v3097
          %v3149 = vadd.f32 %v2598, %v3100
          %v3150 = vadd.f32 %v2600, %v3102
          %v3151 = vadd.f32 %v2603, %v3105
          %v3152 = vadd.f32 %v2605, %v3107
          %v3153 = vadd.f32 %v2608, %v3110
          %v3154 = vadd.f32 %v2610, %v3112
          %v3155 = vadd.f32 %v2613, %v3115
          %v3156 = vadd.f32 %v2615, %v3117
          %v3157 = vadd.f32 %v2618, %v3120
          %v3158 = vadd.f32 %v2620, %v3122
          %v3159 = vadd.f32 %v2623, %v3125
          %v3160 = vadd.f32 %v2625, %v3127
          %s3161 = sld [smem:[#allocation6 + %s817]]
          %vm3162 = vcmp.gt.f32.partialorder %v3129, 0.0
          %vm3163 = vcmp.gt.f32.partialorder %v3130, 0.0
          %vm3164 = vcmp.gt.f32.partialorder %v3131, 0.0
          %vm3165 = vcmp.gt.f32.partialorder %v3132, 0.0
          %vm3166 = vcmp.gt.f32.partialorder %v3133, 0.0
          %vm3167 = vcmp.gt.f32.partialorder %v3134, 0.0
          %vm3168 = vcmp.gt.f32.partialorder %v3135, 0.0
          %vm3169 = vcmp.gt.f32.partialorder %v3136, 0.0
          %vm3170 = vcmp.gt.f32.partialorder %v3137, 0.0
          %vm3171 = vcmp.gt.f32.partialorder %v3138, 0.0
          %vm3172 = vcmp.gt.f32.partialorder %v3139, 0.0
          %vm3173 = vcmp.gt.f32.partialorder %v3140, 0.0
          %vm3174 = vcmp.gt.f32.partialorder %v3141, 0.0
          %vm3175 = vcmp.gt.f32.partialorder %v3142, 0.0
          %vm3176 = vcmp.gt.f32.partialorder %v3143, 0.0
          %vm3177 = vcmp.gt.f32.partialorder %v3144, 0.0
          %vm3178 = vcmp.gt.f32.partialorder %v3145, 0.0
          %vm3179 = vcmp.gt.f32.partialorder %v3146, 0.0
          %vm3180 = vcmp.gt.f32.partialorder %v3147, 0.0
          %vm3181 = vcmp.gt.f32.partialorder %v3148, 0.0
          %vm3182 = vcmp.gt.f32.partialorder %v3149, 0.0
          %vm3183 = vcmp.gt.f32.partialorder %v3150, 0.0
          %vm3184 = vcmp.gt.f32.partialorder %v3151, 0.0
          %vm3185 = vcmp.gt.f32.partialorder %v3152, 0.0
          %vm3186 = vcmp.gt.f32.partialorder %v3153, 0.0
          %vm3187 = vcmp.gt.f32.partialorder %v3154, 0.0
          %vm3188 = vcmp.gt.f32.partialorder %v3155, 0.0
          %vm3189 = vcmp.gt.f32.partialorder %v3156, 0.0
          %vm3190 = vcmp.gt.f32.partialorder %v3157, 0.0
          %vm3191 = vcmp.gt.f32.partialorder %v3158, 0.0
          %vm3192 = vcmp.gt.f32.partialorder %v3159, 0.0
          %vm3193 = vcmp.gt.f32.partialorder %v3160, 0.0
          %v3194 = vstv %s3161
          %v3195 = vmul.f32 %v3194, %v3129
          %v3196 = vmul.f32 %v3194, %v3130
          %v3197 = vmul.f32 %v3194, %v3131
          %v3198 = vmul.f32 %v3194, %v3132
          %v3199 = vmul.f32 %v3194, %v3133
          %v3200 = vmul.f32 %v3194, %v3134
          %v3201 = vmul.f32 %v3194, %v3135
          %v3202 = vmul.f32 %v3194, %v3136
          %v3203 = vmul.f32 %v3194, %v3137
          %v3204 = vmul.f32 %v3194, %v3138
          %v3205 = vmul.f32 %v3194, %v3139
          %v3206 = vmul.f32 %v3194, %v3140
          %v3207 = vmul.f32 %v3194, %v3141
          %v3208 = vmul.f32 %v3194, %v3142
          %v3209 = vmul.f32 %v3194, %v3143
          %v3210 = vmul.f32 %v3194, %v3144
          %v3211 = vmul.f32 %v3194, %v3145
          %v3212 = vmul.f32 %v3194, %v3146
          %v3213 = vmul.f32 %v3194, %v3147
          %v3214 = vmul.f32 %v3194, %v3148
          %v3215 = vmul.f32 %v3194, %v3149
          %v3216 = vmul.f32 %v3194, %v3150
          %v3217 = vmul.f32 %v3194, %v3151
          %v3218 = vmul.f32 %v3194, %v3152
          %v3219 = vmul.f32 %v3194, %v3153
          %v3220 = vmul.f32 %v3194, %v3154
          %v3221 = vmul.f32 %v3194, %v3155
          %v3222 = vmul.f32 %v3194, %v3156
          %v3223 = vmul.f32 %v3194, %v3157
          %v3224 = vmul.f32 %v3194, %v3158
          %v3225 = vmul.f32 %v3194, %v3159
          %v3226 = vmul.f32 %v3194, %v3160
          %v3227 = vsel %vm3162, %v3129, %v3195
          %v3228 = vsel %vm3163, %v3130, %v3196
          %v3229 = vsel %vm3164, %v3131, %v3197
          %v3230 = vsel %vm3165, %v3132, %v3198
          %v3231 = vsel %vm3166, %v3133, %v3199
          %v3232 = vsel %vm3167, %v3134, %v3200
          %v3233 = vsel %vm3168, %v3135, %v3201
          %v3234 = vsel %vm3169, %v3136, %v3202
          %v3235 = vsel %vm3170, %v3137, %v3203
          %v3236 = vsel %vm3171, %v3138, %v3204
          %v3237 = vsel %vm3172, %v3139, %v3205
          %v3238 = vsel %vm3173, %v3140, %v3206
          %v3239 = vsel %vm3174, %v3141, %v3207
          %v3240 = vsel %vm3175, %v3142, %v3208
          %v3241 = vsel %vm3176, %v3143, %v3209
          %v3242 = vsel %vm3177, %v3144, %v3210
          %v3243 = vsel %vm3178, %v3145, %v3211
          %v3244 = vsel %vm3179, %v3146, %v3212
          %v3245 = vsel %vm3180, %v3147, %v3213
          %v3246 = vsel %vm3181, %v3148, %v3214
          %v3247 = vsel %vm3182, %v3149, %v3215
          %v3248 = vsel %vm3183, %v3150, %v3216
          %v3249 = vsel %vm3184, %v3151, %v3217
          %v3250 = vsel %vm3185, %v3152, %v3218
          %v3251 = vsel %vm3186, %v3153, %v3219
          %v3252 = vsel %vm3187, %v3154, %v3220
          %v3253 = vsel %vm3188, %v3155, %v3221
          %v3254 = vsel %vm3189, %v3156, %v3222
          %v3255 = vsel %vm3190, %v3157, %v3223
          %v3256 = vsel %vm3191, %v3158, %v3224
          %v3257 = vsel %vm3192, %v3159, %v3225
          %v3258 = vsel %vm3193, %v3160, %v3226
          %v3259 = vpack.c.bf16 %v3227, %v3227
          %v3260 = vpack.c.bf16 %v3228, %v3228
          %v3261 = vpack.c.bf16 %v3229, %v3229
          %v3262 = vpack.c.bf16 %v3230, %v3230
          %v3263 = vpack.c.bf16 %v3231, %v3231
          %v3264 = vpack.c.bf16 %v3232, %v3232
          %v3265 = vpack.c.bf16 %v3233, %v3233
          %v3266 = vpack.c.bf16 %v3234, %v3234
          %v3267 = vpack.c.bf16 %v3235, %v3235
          %v3268 = vpack.c.bf16 %v3236, %v3236
          %v3269 = vpack.c.bf16 %v3237, %v3237
          %v3270 = vpack.c.bf16 %v3238, %v3238
          %v3271 = vpack.c.bf16 %v3239, %v3239
          %v3272 = vpack.c.bf16 %v3240, %v3240
          %v3273 = vpack.c.bf16 %v3241, %v3241
          %v3274 = vpack.c.bf16 %v3242, %v3242
          %v3275 = vpack.c.bf16 %v3243, %v3243
          %v3276 = vpack.c.bf16 %v3244, %v3244
          %v3277 = vpack.c.bf16 %v3245, %v3245
          %v3278 = vpack.c.bf16 %v3246, %v3246
          %v3279 = vpack.c.bf16 %v3247, %v3247
          %v3280 = vpack.c.bf16 %v3248, %v3248
          %v3281 = vpack.c.bf16 %v3249, %v3249
          %v3282 = vpack.c.bf16 %v3250, %v3250
          %v3283 = vpack.c.bf16 %v3251, %v3251
          %v3284 = vpack.c.bf16 %v3252, %v3252
          %v3285 = vpack.c.bf16 %v3253, %v3253
          %v3286 = vpack.c.bf16 %v3254, %v3254
          %v3287 = vpack.c.bf16 %v3255, %v3255
          %v3288 = vpack.c.bf16 %v3256, %v3256
          %v3289 = vpack.c.bf16 %v3257, %v3257
          %v3290 = vpack.c.bf16 %v3258, %v3258
          %v3292 = vshrl.u32 %v3259, 16
          %v3294 = vrot.slane %v3292, 7
          %v3295 = vshll.u32 %v3259, 16
          %v3297 = vor.u32 %v3294, %v3295
          %v3298 = vrot.slane %v3294, 4
          %v3300 = vshrl.u32 %v3260, 16
          %v3302 = vrot.slane %v3300, 7
          %v3303 = vshll.u32 %v3260, 16
          %v3305 = vor.u32 %v3302, %v3303
          %v3306 = vsel %vm372, %v3298, %v3305
          %v3307 = vrot.slane %v3302, 4
          %v3309 = vshrl.u32 %v3261, 16
          %v3311 = vrot.slane %v3309, 7
          %v3312 = vshll.u32 %v3261, 16
          %v3314 = vor.u32 %v3311, %v3312
          %v3315 = vrot.slane %v3311, 4
          %v3317 = vshrl.u32 %v3262, 16
          %v3319 = vrot.slane %v3317, 7
          %v3320 = vshll.u32 %v3262, 16
          %v3322 = vor.u32 %v3319, %v3320
          %v3323 = vsel %vm372, %v3315, %v3322
          %v3324 = vrot.slane %v3319, 4
          %v3326 = vshrl.u32 %v3263, 16
          %v3328 = vrot.slane %v3326, 7
          %v3329 = vshll.u32 %v3263, 16
          %v3331 = vor.u32 %v3328, %v3329
          %v3332 = vrot.slane %v3328, 4
          %v3334 = vshrl.u32 %v3264, 16
          %v3336 = vrot.slane %v3334, 7
          %v3337 = vshll.u32 %v3264, 16
          %v3339 = vor.u32 %v3336, %v3337
          %v3340 = vsel %vm372, %v3332, %v3339
          %v3341 = vrot.slane %v3336, 4
          %v3343 = vshrl.u32 %v3265, 16
          %v3345 = vrot.slane %v3343, 7
          %v3346 = vshll.u32 %v3265, 16
          %v3348 = vor.u32 %v3345, %v3346
          %v3349 = vrot.slane %v3345, 4
          %v3351 = vshrl.u32 %v3266, 16
          %v3353 = vrot.slane %v3351, 7
          %v3354 = vshll.u32 %v3266, 16
          %v3356 = vor.u32 %v3353, %v3354
          %v3357 = vsel %vm372, %v3349, %v3356
          %v3358 = vrot.slane %v3353, 4
          %v3360 = vshrl.u32 %v3267, 16
          %v3362 = vrot.slane %v3360, 7
          %v3363 = vshll.u32 %v3267, 16
          %v3365 = vor.u32 %v3362, %v3363
          %v3366 = vrot.slane %v3362, 4
          %v3368 = vshrl.u32 %v3268, 16
          %v3370 = vrot.slane %v3368, 7
          %v3371 = vshll.u32 %v3268, 16
          %v3373 = vor.u32 %v3370, %v3371
          %v3374 = vsel %vm372, %v3366, %v3373
          %v3375 = vrot.slane %v3370, 4
          %v3377 = vshrl.u32 %v3269, 16
          %v3379 = vrot.slane %v3377, 7
          %v3380 = vshll.u32 %v3269, 16
          %v3382 = vor.u32 %v3379, %v3380
          %v3383 = vrot.slane %v3379, 4
          %v3385 = vshrl.u32 %v3270, 16
          %v3387 = vrot.slane %v3385, 7
          %v3388 = vshll.u32 %v3270, 16
          %v3390 = vor.u32 %v3387, %v3388
          %v3391 = vsel %vm372, %v3383, %v3390
          %v3392 = vrot.slane %v3387, 4
          %v3394 = vshrl.u32 %v3271, 16
          %v3396 = vrot.slane %v3394, 7
          %v3397 = vshll.u32 %v3271, 16
          %v3399 = vor.u32 %v3396, %v3397
          %v3400 = vrot.slane %v3396, 4
          %v3402 = vshrl.u32 %v3272, 16
          %v3404 = vrot.slane %v3402, 7
          %v3405 = vshll.u32 %v3272, 16
          %v3407 = vor.u32 %v3404, %v3405
          %v3408 = vsel %vm372, %v3400, %v3407
          %v3409 = vrot.slane %v3404, 4
          %v3411 = vshrl.u32 %v3273, 16
          %v3413 = vrot.slane %v3411, 7
          %v3414 = vshll.u32 %v3273, 16
          %v3416 = vor.u32 %v3413, %v3414
          %v3417 = vrot.slane %v3413, 4
          %v3419 = vshrl.u32 %v3274, 16
          %v3421 = vrot.slane %v3419, 7
          %v3422 = vshll.u32 %v3274, 16
          %v3424 = vor.u32 %v3421, %v3422
          %v3425 = vsel %vm372, %v3417, %v3424
          %v3426 = vrot.slane %v3421, 4
          %v3428 = vshrl.u32 %v3275, 16
          %v3430 = vrot.slane %v3428, 7
          %v3431 = vshll.u32 %v3275, 16
          %v3433 = vor.u32 %v3430, %v3431
          %v3434 = vrot.slane %v3430, 4
          %v3436 = vshrl.u32 %v3276, 16
          %v3438 = vrot.slane %v3436, 7
          %v3439 = vshll.u32 %v3276, 16
          %v3441 = vor.u32 %v3438, %v3439
          %v3442 = vsel %vm372, %v3434, %v3441
          %v3443 = vrot.slane %v3438, 4
          %v3445 = vshrl.u32 %v3277, 16
          %v3447 = vrot.slane %v3445, 7
          %v3448 = vshll.u32 %v3277, 16
          %v3450 = vor.u32 %v3447, %v3448
          %v3451 = vrot.slane %v3447, 4
          %v3453 = vshrl.u32 %v3278, 16
          %v3455 = vrot.slane %v3453, 7
          %v3456 = vshll.u32 %v3278, 16
          %v3458 = vor.u32 %v3455, %v3456
          %v3459 = vsel %vm372, %v3451, %v3458
          %v3460 = vrot.slane %v3455, 4
          %v3462 = vshrl.u32 %v3279, 16
          %v3464 = vrot.slane %v3462, 7
          %v3465 = vshll.u32 %v3279, 16
          %v3467 = vor.u32 %v3464, %v3465
          %v3468 = vrot.slane %v3464, 4
          %v3470 = vshrl.u32 %v3280, 16
          %v3472 = vrot.slane %v3470, 7
          %v3473 = vshll.u32 %v3280, 16
          %v3475 = vor.u32 %v3472, %v3473
          %v3476 = vsel %vm372, %v3468, %v3475
          %v3477 = vrot.slane %v3472, 4
          %v3479 = vshrl.u32 %v3281, 16
          %v3481 = vrot.slane %v3479, 7
          %v3482 = vshll.u32 %v3281, 16
          %v3484 = vor.u32 %v3481, %v3482
          %v3485 = vrot.slane %v3481, 4
          %v3487 = vshrl.u32 %v3282, 16
          %v3489 = vrot.slane %v3487, 7
          %v3490 = vshll.u32 %v3282, 16
          %v3492 = vor.u32 %v3489, %v3490
          %v3493 = vsel %vm372, %v3485, %v3492
          %v3494 = vrot.slane %v3489, 4
          %v3496 = vshrl.u32 %v3283, 16
          %v3498 = vrot.slane %v3496, 7
          %v3499 = vshll.u32 %v3283, 16
          %v3501 = vor.u32 %v3498, %v3499
          %v3502 = vrot.slane %v3498, 4
          %v3504 = vshrl.u32 %v3284, 16
          %v3506 = vrot.slane %v3504, 7
          %v3507 = vshll.u32 %v3284, 16
          %v3509 = vor.u32 %v3506, %v3507
          %v3510 = vsel %vm372, %v3502, %v3509
          %v3511 = vrot.slane %v3506, 4
          %v3513 = vshrl.u32 %v3285, 16
          %v3515 = vrot.slane %v3513, 7
          %v3516 = vshll.u32 %v3285, 16
          %v3518 = vor.u32 %v3515, %v3516
          %v3519 = vrot.slane %v3515, 4
          %v3521 = vshrl.u32 %v3286, 16
          %v3523 = vrot.slane %v3521, 7
          %v3524 = vshll.u32 %v3286, 16
          %v3526 = vor.u32 %v3523, %v3524
          %v3527 = vsel %vm372, %v3519, %v3526
          %v3528 = vrot.slane %v3523, 4
          %v3530 = vshrl.u32 %v3287, 16
          %v3532 = vrot.slane %v3530, 7
          %v3533 = vshll.u32 %v3287, 16
          %v3535 = vor.u32 %v3532, %v3533
          %v3536 = vrot.slane %v3532, 4
          %v3538 = vshrl.u32 %v3288, 16
          %v3540 = vrot.slane %v3538, 7
          %v3541 = vshll.u32 %v3288, 16
          %v3543 = vor.u32 %v3540, %v3541
          %v3544 = vsel %vm372, %v3536, %v3543
          %v3545 = vrot.slane %v3540, 4
          %v3547 = vshrl.u32 %v3289, 16
          %v3549 = vrot.slane %v3547, 7
          %v3550 = vshll.u32 %v3289, 16
          %v3552 = vor.u32 %v3549, %v3550
          %v3553 = vrot.slane %v3549, 4
          %v3555 = vshrl.u32 %v3290, 16
          %v3557 = vrot.slane %v3555, 7
          %v3558 = vshll.u32 %v3290, 16
          %v3560 = vor.u32 %v3557, %v3558
          %v3561 = vsel %vm372, %v3553, %v3560
          %v3562 = vrot.slane %v3557, 4
          %v3611 = vld [vmem:[%s693] sm:$0xf]
          %v3612 = vsel %vm696, %v3297, %v3611
          %3613 = vst [vmem:[%s693] sm:$0xf] %v3612
          %3614 = vst.msk [vmem:[%s693 + $0x4] sm:$0xf] %vm186, %v3306
          %v3615 = vld [vmem:[%s693 + $0x8] sm:$0x1]
          %v3616 = vsel %vm702, %v3307, %v3615
          %3617 = vst [vmem:[%s693 + $0x8] sm:$0x1] %v3616
          %v3618 = vld [vmem:[%s693 + $0xc] sm:$0xf]
          %v3619 = vsel %vm696, %v3314, %v3618
          %3620 = vst [vmem:[%s693 + $0xc] sm:$0xf] %v3619
          %3621 = vst.msk [vmem:[%s693 + $0x10] sm:$0xf] %vm186, %v3323
          %v3622 = vld [vmem:[%s693 + $0x14] sm:$0x1]
          %v3623 = vsel %vm702, %v3324, %v3622
          %3624 = vst [vmem:[%s693 + $0x14] sm:$0x1] %v3623
          %v3625 = vld [vmem:[%s693 + $0x18] sm:$0xf]
          %v3626 = vsel %vm696, %v3331, %v3625
          %3627 = vst [vmem:[%s693 + $0x18] sm:$0xf] %v3626
          %3628 = vst.msk [vmem:[%s693 + $0x1c] sm:$0xf] %vm186, %v3340
          %v3629 = vld [vmem:[%s693 + $0x20] sm:$0x1]
          %v3630 = vsel %vm702, %v3341, %v3629
          %3631 = vst [vmem:[%s693 + $0x20] sm:$0x1] %v3630
          %v3632 = vld [vmem:[%s693 + $0x24] sm:$0xf]
          %v3633 = vsel %vm696, %v3348, %v3632
          %3634 = vst [vmem:[%s693 + $0x24] sm:$0xf] %v3633
          %3635 = vst.msk [vmem:[%s693 + $0x28] sm:$0xf] %vm186, %v3357
          %v3636 = vld [vmem:[%s693 + $0x2c] sm:$0x1]
          %v3637 = vsel %vm702, %v3358, %v3636
          %3638 = vst [vmem:[%s693 + $0x2c] sm:$0x1] %v3637
          %v3639 = vld [vmem:[%s693 + $0x30] sm:$0xf]
          %v3640 = vsel %vm696, %v3365, %v3639
          %3641 = vst [vmem:[%s693 + $0x30] sm:$0xf] %v3640
          %3642 = vst.msk [vmem:[%s693 + $0x34] sm:$0xf] %vm186, %v3374
          %v3643 = vld [vmem:[%s693 + $0x38] sm:$0x1]
          %v3644 = vsel %vm702, %v3375, %v3643
          %3645 = vst [vmem:[%s693 + $0x38] sm:$0x1] %v3644
          %v3646 = vld [vmem:[%s693 + $0x3c] sm:$0xf]
          %v3647 = vsel %vm696, %v3382, %v3646
          %3648 = vst [vmem:[%s693 + $0x3c] sm:$0xf] %v3647
          %3649 = vst.msk [vmem:[%s693 + $0x40] sm:$0xf] %vm186, %v3391
          %v3650 = vld [vmem:[%s693 + $0x44] sm:$0x1]
          %v3651 = vsel %vm702, %v3392, %v3650
          %3652 = vst [vmem:[%s693 + $0x44] sm:$0x1] %v3651
          %v3653 = vld [vmem:[%s693 + $0x48] sm:$0xf]
          %v3654 = vsel %vm696, %v3399, %v3653
          %3655 = vst [vmem:[%s693 + $0x48] sm:$0xf] %v3654
          %3656 = vst.msk [vmem:[%s693 + $0x4c] sm:$0xf] %vm186, %v3408
          %v3657 = vld [vmem:[%s693 + $0x50] sm:$0x1]
          %v3658 = vsel %vm702, %v3409, %v3657
          %3659 = vst [vmem:[%s693 + $0x50] sm:$0x1] %v3658
          %v3660 = vld [vmem:[%s693 + $0x54] sm:$0xf]
          %v3661 = vsel %vm696, %v3416, %v3660
          %3662 = vst [vmem:[%s693 + $0x54] sm:$0xf] %v3661
          %3663 = vst.msk [vmem:[%s693 + $0x58] sm:$0xf] %vm186, %v3425
          %v3664 = vld [vmem:[%s693 + $0x5c] sm:$0x1]
          %v3665 = vsel %vm702, %v3426, %v3664
          %3666 = vst [vmem:[%s693 + $0x5c] sm:$0x1] %v3665
          %v3667 = vld [vmem:[%s693 + $0x60] sm:$0xf]
          %v3668 = vsel %vm696, %v3433, %v3667
          %3669 = vst [vmem:[%s693 + $0x60] sm:$0xf] %v3668
          %3670 = vst.msk [vmem:[%s693 + $0x64] sm:$0xf] %vm186, %v3442
          %v3671 = vld [vmem:[%s693 + $0x68] sm:$0x1]
          %v3672 = vsel %vm702, %v3443, %v3671
          %3673 = vst [vmem:[%s693 + $0x68] sm:$0x1] %v3672
          %v3674 = vld [vmem:[%s693 + $0x6c] sm:$0xf]
          %v3675 = vsel %vm696, %v3450, %v3674
          %3676 = vst [vmem:[%s693 + $0x6c] sm:$0xf] %v3675
          %3677 = vst.msk [vmem:[%s693 + $0x70] sm:$0xf] %vm186, %v3459
          %v3678 = vld [vmem:[%s693 + $0x74] sm:$0x1]
          %v3679 = vsel %vm702, %v3460, %v3678
          %3680 = vst [vmem:[%s693 + $0x74] sm:$0x1] %v3679
          %v3681 = vld [vmem:[%s693 + $0x78] sm:$0xf]
          %v3682 = vsel %vm696, %v3467, %v3681
          %3683 = vst [vmem:[%s693 + $0x78] sm:$0xf] %v3682
          %3684 = vst.msk [vmem:[%s693 + $0x7c] sm:$0xf] %vm186, %v3476
          %v3685 = vld [vmem:[%s693 + $0x80] sm:$0x1]
          %v3686 = vsel %vm702, %v3477, %v3685
          %3687 = vst [vmem:[%s693 + $0x80] sm:$0x1] %v3686
          %v3688 = vld [vmem:[%s693 + $0x84] sm:$0xf]
          %v3689 = vsel %vm696, %v3484, %v3688
          %3690 = vst [vmem:[%s693 + $0x84] sm:$0xf] %v3689
          %3691 = vst.msk [vmem:[%s693 + $0x88] sm:$0xf] %vm186, %v3493
          %v3692 = vld [vmem:[%s693 + $0x8c] sm:$0x1]
          %v3693 = vsel %vm702, %v3494, %v3692
          %3694 = vst [vmem:[%s693 + $0x8c] sm:$0x1] %v3693
          %v3695 = vld [vmem:[%s693 + $0x90] sm:$0xf]
          %v3696 = vsel %vm696, %v3501, %v3695
          %3697 = vst [vmem:[%s693 + $0x90] sm:$0xf] %v3696
          %3698 = vst.msk [vmem:[%s693 + $0x94] sm:$0xf] %vm186, %v3510
          %v3699 = vld [vmem:[%s693 + $0x98] sm:$0x1]
          %v3700 = vsel %vm702, %v3511, %v3699
          %3701 = vst [vmem:[%s693 + $0x98] sm:$0x1] %v3700
          %v3702 = vld [vmem:[%s693 + $0x9c] sm:$0xf]
          %v3703 = vsel %vm696, %v3518, %v3702
          %3704 = vst [vmem:[%s693 + $0x9c] sm:$0xf] %v3703
          %3705 = vst.msk [vmem:[%s693 + $0xa0] sm:$0xf] %vm186, %v3527
          %v3706 = vld [vmem:[%s693 + $0xa4] sm:$0x1]
          %v3707 = vsel %vm702, %v3528, %v3706
          %3708 = vst [vmem:[%s693 + $0xa4] sm:$0x1] %v3707
          %v3709 = vld [vmem:[%s693 + $0xa8] sm:$0xf]
          %v3710 = vsel %vm696, %v3535, %v3709
          %3711 = vst [vmem:[%s693 + $0xa8] sm:$0xf] %v3710
          %3712 = vst.msk [vmem:[%s693 + $0xac] sm:$0xf] %vm186, %v3544
          %v3713 = vld [vmem:[%s693 + $0xb0] sm:$0x1]
          %v3714 = vsel %vm702, %v3545, %v3713
          %3715 = vst [vmem:[%s693 + $0xb0] sm:$0x1] %v3714
          %v3716 = vld [vmem:[%s693 + $0xb4] sm:$0xf]
          %v3717 = vsel %vm696, %v3552, %v3716
          %3718 = vst [vmem:[%s693 + $0xb4] sm:$0xf] %v3717
          %3719 = vst.msk [vmem:[%s693 + $0xb8] sm:$0xf] %vm186, %v3561
          %v3720 = vld [vmem:[%s693 + $0xbc] sm:$0x1]
          %v3721 = vsel %vm702, %v3562, %v3720
          %3722 = vst [vmem:[%s693 + $0xbc] sm:$0x1] %v3721
          %s3723 = sadd.s32 %s817, 1
          %v3724 = vld [vmem:[#allocation2] sm:$0xf]
          %v3725 = vld [vmem:[#allocation2 + $0x4] sm:$0xf]
          %v3726 = vld [vmem:[#allocation2 + $0xc] sm:$0xf]
          %v3727 = vld [vmem:[#allocation2 + $0x10] sm:$0xf]
          %v3728 = vld [vmem:[#allocation2 + $0x18] sm:$0xf]
          %v3729 = vld [vmem:[#allocation2 + $0x1c] sm:$0xf]
          %v3730 = vld [vmem:[#allocation2 + $0x24] sm:$0xf]
          %v3731 = vld [vmem:[#allocation2 + $0x28] sm:$0xf]
          %v3732 = vld [vmem:[#allocation2 + $0x30] sm:$0xf]
          %v3733 = vld [vmem:[#allocation2 + $0x34] sm:$0xf]
          %v3734 = vld [vmem:[#allocation2 + $0x3c] sm:$0xf]
          %v3735 = vld [vmem:[#allocation2 + $0x40] sm:$0xf]
          %v3736 = vld [vmem:[#allocation2 + $0x48] sm:$0xf]
          %v3737 = vld [vmem:[#allocation2 + $0x4c] sm:$0xf]
          %v3738 = vld [vmem:[#allocation2 + $0x54] sm:$0xf]
          %v3739 = vld [vmem:[#allocation2 + $0x58] sm:$0xf]
          %v3740 = vld [vmem:[#allocation2 + $0x60] sm:$0xf]
          %v3741 = vld [vmem:[#allocation2 + $0x64] sm:$0xf]
          %v3742 = vld [vmem:[#allocation2 + $0x6c] sm:$0xf]
          %v3743 = vld [vmem:[#allocation2 + $0x70] sm:$0xf]
          %v3744 = vld [vmem:[#allocation2 + $0x78] sm:$0xf]
          %v3745 = vld [vmem:[#allocation2 + $0x7c] sm:$0xf]
          %v3746 = vld [vmem:[#allocation2 + $0x84] sm:$0xf]
          %v3747 = vld [vmem:[#allocation2 + $0x88] sm:$0xf]
          %v3748 = vld [vmem:[#allocation2 + $0x90] sm:$0xf]
          %v3749 = vld [vmem:[#allocation2 + $0x94] sm:$0xf]
          %v3750 = vld [vmem:[#allocation2 + $0x9c] sm:$0xf]
          %v3751 = vld [vmem:[#allocation2 + $0xa0] sm:$0xf]
          %v3752 = vld [vmem:[#allocation2 + $0xa8] sm:$0xf]
          %v3753 = vld [vmem:[#allocation2 + $0xac] sm:$0xf]
          %v3754 = vld [vmem:[#allocation2 + $0xb4] sm:$0xf]
          %v3755 = vld [vmem:[#allocation2 + $0xb8] sm:$0xf]
          %v3756 = vld [vmem:[#allocation2 + $0xc0] sm:$0xf]
          %v3757 = vld [vmem:[#allocation2 + $0xc4] sm:$0xf]
          %v3758 = vld [vmem:[#allocation2 + $0xcc] sm:$0xf]
          %v3759 = vld [vmem:[#allocation2 + $0xd0] sm:$0xf]
          %3760 = vst.msk [vmem:[#allocation3] sm:$0xf] %vm186, %v3724
          %3761 = vst.msk [vmem:[#allocation3 + $0x8] sm:$0xf] %vm186, %v3725
          %3762 = vst.msk [vmem:[#allocation3 + $0x10] sm:$0xf] %vm186, %v3726
          %3763 = vst.msk [vmem:[#allocation3 + $0x18] sm:$0xf] %vm186, %v3727
          %3764 = vst.msk [vmem:[#allocation3 + $0x20] sm:$0xf] %vm186, %v3728
          %3765 = vst.msk [vmem:[#allocation3 + $0x28] sm:$0xf] %vm186, %v3729
          %3766 = vst.msk [vmem:[#allocation3 + $0x30] sm:$0xf] %vm186, %v3730
          %3767 = vst.msk [vmem:[#allocation3 + $0x38] sm:$0xf] %vm186, %v3731
          %3768 = vst.msk [vmem:[#allocation3 + $0x40] sm:$0xf] %vm186, %v3732
          %3769 = vst.msk [vmem:[#allocation3 + $0x48] sm:$0xf] %vm186, %v3733
          %3770 = vst.msk [vmem:[#allocation3 + $0x50] sm:$0xf] %vm186, %v3734
          %3771 = vst.msk [vmem:[#allocation3 + $0x58] sm:$0xf] %vm186, %v3735
          %3772 = vst.msk [vmem:[#allocation3 + $0x60] sm:$0xf] %vm186, %v3736
          %3773 = vst.msk [vmem:[#allocation3 + $0x68] sm:$0xf] %vm186, %v3737
          %3774 = vst.msk [vmem:[#allocation3 + $0x70] sm:$0xf] %vm186, %v3738
          %3775 = vst.msk [vmem:[#allocation3 + $0x78] sm:$0xf] %vm186, %v3739
          %3776 = vst.msk [vmem:[#allocation3 + $0x80] sm:$0xf] %vm186, %v3740
          %3777 = vst.msk [vmem:[#allocation3 + $0x88] sm:$0xf] %vm186, %v3741
          %3778 = vst.msk [vmem:[#allocation3 + $0x90] sm:$0xf] %vm186, %v3742
          %3779 = vst.msk [vmem:[#allocation3 + $0x98] sm:$0xf] %vm186, %v3743
          %3780 = vst.msk [vmem:[#allocation3 + $0xa0] sm:$0xf] %vm186, %v3744
          %3781 = vst.msk [vmem:[#allocation3 + $0xa8] sm:$0xf] %vm186, %v3745
          %3782 = vst.msk [vmem:[#allocation3 + $0xb0] sm:$0xf] %vm186, %v3746
          %3783 = vst.msk [vmem:[#allocation3 + $0xb8] sm:$0xf] %vm186, %v3747
          %3784 = vst.msk [vmem:[#allocation3 + $0xc0] sm:$0xf] %vm186, %v3748
          %3785 = vst.msk [vmem:[#allocation3 + $0xc8] sm:$0xf] %vm186, %v3749
          %3786 = vst.msk [vmem:[#allocation3 + $0xd0] sm:$0xf] %vm186, %v3750
          %3787 = vst.msk [vmem:[#allocation3 + $0xd8] sm:$0xf] %vm186, %v3751
          %3788 = vst.msk [vmem:[#allocation3 + $0xe0] sm:$0xf] %vm186, %v3752
          %3789 = vst.msk [vmem:[#allocation3 + $0xe8] sm:$0xf] %vm186, %v3753
          %3790 = vst.msk [vmem:[#allocation3 + $0xf0] sm:$0xf] %vm186, %v3754
          %3791 = vst.msk [vmem:[#allocation3 + $0xf8] sm:$0xf] %vm186, %v3755
          %3792 = vst.msk [vmem:[#allocation3 + $0x100] sm:$0xf] %vm186, %v3756
          %3793 = vst.msk [vmem:[#allocation3 + $0x108] sm:$0xf] %vm186, %v3757
          %3794 = vst.msk [vmem:[#allocation3 + $0x110] sm:$0xf] %vm186, %v3758
          %3795 = vst.msk [vmem:[#allocation3 + $0x118] sm:$0xf] %vm186, %v3759
          %v3796 = vld [vmem:[#allocation2] sm:$0xf]
          %v3797 = vld [vmem:[#allocation2 + $0x4] sm:$0xf]
          %v3798 = vld [vmem:[#allocation2 + $0x8] sm:$0x1]
          %v3799 = vld [vmem:[#allocation2 + $0xc] sm:$0xf]
          %v3800 = vld [vmem:[#allocation2 + $0x10] sm:$0xf]
          %v3801 = vld [vmem:[#allocation2 + $0x14] sm:$0x1]
          %v3802 = vld [vmem:[#allocation2 + $0x18] sm:$0xf]
          %v3803 = vld [vmem:[#allocation2 + $0x1c] sm:$0xf]
          %v3804 = vld [vmem:[#allocation2 + $0x20] sm:$0x1]
          %v3805 = vld [vmem:[#allocation2 + $0x24] sm:$0xf]
          %v3806 = vld [vmem:[#allocation2 + $0x28] sm:$0xf]
          %v3807 = vld [vmem:[#allocation2 + $0x2c] sm:$0x1]
          %v3808 = vld [vmem:[#allocation2 + $0x30] sm:$0xf]
          %v3809 = vld [vmem:[#allocation2 + $0x34] sm:$0xf]
          %v3810 = vld [vmem:[#allocation2 + $0x38] sm:$0x1]
          %v3811 = vld [vmem:[#allocation2 + $0x3c] sm:$0xf]
          %v3812 = vld [vmem:[#allocation2 + $0x40] sm:$0xf]
          %v3813 = vld [vmem:[#allocation2 + $0x44] sm:$0x1]
          %v3814 = vld [vmem:[#allocation2 + $0x48] sm:$0xf]
          %v3815 = vld [vmem:[#allocation2 + $0x4c] sm:$0xf]
          %v3816 = vld [vmem:[#allocation2 + $0x50] sm:$0x1]
          %v3817 = vld [vmem:[#allocation2 + $0x54] sm:$0xf]
          %v3818 = vld [vmem:[#allocation2 + $0x58] sm:$0xf]
          %v3819 = vld [vmem:[#allocation2 + $0x5c] sm:$0x1]
          %v3820 = vld [vmem:[#allocation2 + $0x60] sm:$0xf]
          %v3821 = vld [vmem:[#allocation2 + $0x64] sm:$0xf]
          %v3822 = vld [vmem:[#allocation2 + $0x68] sm:$0x1]
          %v3823 = vld [vmem:[#allocation2 + $0x6c] sm:$0xf]
          %v3824 = vld [vmem:[#allocation2 + $0x70] sm:$0xf]
          %v3825 = vld [vmem:[#allocation2 + $0x74] sm:$0x1]
          %v3826 = vld [vmem:[#allocation2 + $0x78] sm:$0xf]
          %v3827 = vld [vmem:[#allocation2 + $0x7c] sm:$0xf]
          %v3828 = vld [vmem:[#allocation2 + $0x80] sm:$0x1]
          %v3829 = vld [vmem:[#allocation2 + $0x84] sm:$0xf]
          %v3830 = vld [vmem:[#allocation2 + $0x88] sm:$0xf]
          %v3831 = vld [vmem:[#allocation2 + $0x8c] sm:$0x1]
          %v3832 = vld [vmem:[#allocation2 + $0x90] sm:$0xf]
          %v3833 = vld [vmem:[#allocation2 + $0x94] sm:$0xf]
          %v3834 = vld [vmem:[#allocation2 + $0x98] sm:$0x1]
          %v3835 = vld [vmem:[#allocation2 + $0x9c] sm:$0xf]
          %v3836 = vld [vmem:[#allocation2 + $0xa0] sm:$0xf]
          %v3837 = vld [vmem:[#allocation2 + $0xa4] sm:$0x1]
          %v3838 = vld [vmem:[#allocation2 + $0xa8] sm:$0xf]
          %v3839 = vld [vmem:[#allocation2 + $0xac] sm:$0xf]
          %v3840 = vld [vmem:[#allocation2 + $0xb0] sm:$0x1]
          %v3841 = vld [vmem:[#allocation2 + $0xb4] sm:$0xf]
          %v3842 = vld [vmem:[#allocation2 + $0xb8] sm:$0xf]
          %v3843 = vld [vmem:[#allocation2 + $0xbc] sm:$0x1]
          %v3844 = vld [vmem:[#allocation2 + $0xc0] sm:$0xf]
          %v3845 = vld [vmem:[#allocation2 + $0xc4] sm:$0xf]
          %v3846 = vld [vmem:[#allocation2 + $0xc8] sm:$0x1]
          %v3847 = vld [vmem:[#allocation2 + $0xcc] sm:$0xf]
          %v3848 = vld [vmem:[#allocation2 + $0xd0] sm:$0xf]
          %v3849 = vld [vmem:[#allocation2 + $0xd4] sm:$0x1]
          %v3851 = vshrl.u32 %v3796, 16
          %v3853 = vrot.slane %v3851, 4
          %v3854 = vshll.u32 %v3796, 16
          %v3856 = vrot.slane %v3854, 5
          %v3857 = vor.u32 %v3853, %v3856
          %v3858 = vrot.slane %v3857, 4
          %v3860 = vshll.u32 %v3797, 16
          %v3862 = vrot.slane %v3860, 5
          %v3863 = vsel %vm946, %v3858, %v3862
          %v3864 = vshrl.u32 %v3797, 16
          %v3866 = vrot.slane %v3864, 4
          %v3867 = vor.u32 %v3866, %v3862
          %v3868 = vrot.slane %v3867, 4
          %v3870 = vshll.u32 %v3798, 16
          %v3872 = vrot.slane %v3870, 5
          %v3873 = vsel %vm946, %v3868, %v3872
          %v3875 = vshrl.u32 %v3799, 16
          %v3877 = vrot.slane %v3875, 4
          %v3878 = vshll.u32 %v3799, 16
          %v3880 = vrot.slane %v3878, 5
          %v3881 = vor.u32 %v3877, %v3880
          %v3882 = vrot.slane %v3881, 4
          %v3884 = vshll.u32 %v3800, 16
          %v3886 = vrot.slane %v3884, 5
          %v3887 = vsel %vm946, %v3882, %v3886
          %v3888 = vshrl.u32 %v3800, 16
          %v3890 = vrot.slane %v3888, 4
          %v3891 = vor.u32 %v3890, %v3886
          %v3892 = vrot.slane %v3891, 4
          %v3894 = vshll.u32 %v3801, 16
          %v3896 = vrot.slane %v3894, 5
          %v3897 = vsel %vm946, %v3892, %v3896
          %v3899 = vshrl.u32 %v3802, 16
          %v3901 = vrot.slane %v3899, 4
          %v3902 = vshll.u32 %v3802, 16
          %v3904 = vrot.slane %v3902, 5
          %v3905 = vor.u32 %v3901, %v3904
          %v3906 = vrot.slane %v3905, 4
          %v3908 = vshll.u32 %v3803, 16
          %v3910 = vrot.slane %v3908, 5
          %v3911 = vsel %vm946, %v3906, %v3910
          %v3912 = vshrl.u32 %v3803, 16
          %v3914 = vrot.slane %v3912, 4
          %v3915 = vor.u32 %v3914, %v3910
          %v3916 = vrot.slane %v3915, 4
          %v3918 = vshll.u32 %v3804, 16
          %v3920 = vrot.slane %v3918, 5
          %v3921 = vsel %vm946, %v3916, %v3920
          %v3923 = vshrl.u32 %v3805, 16
          %v3925 = vrot.slane %v3923, 4
          %v3926 = vshll.u32 %v3805, 16
          %v3928 = vrot.slane %v3926, 5
          %v3929 = vor.u32 %v3925, %v3928
          %v3930 = vrot.slane %v3929, 4
          %v3932 = vshll.u32 %v3806, 16
          %v3934 = vrot.slane %v3932, 5
          %v3935 = vsel %vm946, %v3930, %v3934
          %v3936 = vshrl.u32 %v3806, 16
          %v3938 = vrot.slane %v3936, 4
          %v3939 = vor.u32 %v3938, %v3934
          %v3940 = vrot.slane %v3939, 4
          %v3942 = vshll.u32 %v3807, 16
          %v3944 = vrot.slane %v3942, 5
          %v3945 = vsel %vm946, %v3940, %v3944
          %v3947 = vshrl.u32 %v3808, 16
          %v3949 = vrot.slane %v3947, 4
          %v3950 = vshll.u32 %v3808, 16
          %v3952 = vrot.slane %v3950, 5
          %v3953 = vor.u32 %v3949, %v3952
          %v3954 = vrot.slane %v3953, 4
          %v3956 = vshll.u32 %v3809, 16
          %v3958 = vrot.slane %v3956, 5
          %v3959 = vsel %vm946, %v3954, %v3958
          %v3960 = vshrl.u32 %v3809, 16
          %v3962 = vrot.slane %v3960, 4
          %v3963 = vor.u32 %v3962, %v3958
          %v3964 = vrot.slane %v3963, 4
          %v3966 = vshll.u32 %v3810, 16
          %v3968 = vrot.slane %v3966, 5
          %v3969 = vsel %vm946, %v3964, %v3968
          %v3971 = vshrl.u32 %v3811, 16
          %v3973 = vrot.slane %v3971, 4
          %v3974 = vshll.u32 %v3811, 16
          %v3976 = vrot.slane %v3974, 5
          %v3977 = vor.u32 %v3973, %v3976
          %v3978 = vrot.slane %v3977, 4
          %v3980 = vshll.u32 %v3812, 16
          %v3982 = vrot.slane %v3980, 5
          %v3983 = vsel %vm946, %v3978, %v3982
          %v3984 = vshrl.u32 %v3812, 16
          %v3986 = vrot.slane %v3984, 4
          %v3987 = vor.u32 %v3986, %v3982
          %v3988 = vrot.slane %v3987, 4
          %v3990 = vshll.u32 %v3813, 16
          %v3992 = vrot.slane %v3990, 5
          %v3993 = vsel %vm946, %v3988, %v3992
          %v3995 = vshrl.u32 %v3814, 16
          %v3997 = vrot.slane %v3995, 4
          %v3998 = vshll.u32 %v3814, 16
          %v4000 = vrot.slane %v3998, 5
          %v4001 = vor.u32 %v3997, %v4000
          %v4002 = vrot.slane %v4001, 4
          %v4004 = vshll.u32 %v3815, 16
          %v4006 = vrot.slane %v4004, 5
          %v4007 = vsel %vm946, %v4002, %v4006
          %v4008 = vshrl.u32 %v3815, 16
          %v4010 = vrot.slane %v4008, 4
          %v4011 = vor.u32 %v4010, %v4006
          %v4012 = vrot.slane %v4011, 4
          %v4014 = vshll.u32 %v3816, 16
          %v4016 = vrot.slane %v4014, 5
          %v4017 = vsel %vm946, %v4012, %v4016
          %v4019 = vshrl.u32 %v3817, 16
          %v4021 = vrot.slane %v4019, 4
          %v4022 = vshll.u32 %v3817, 16
          %v4024 = vrot.slane %v4022, 5
          %v4025 = vor.u32 %v4021, %v4024
          %v4026 = vrot.slane %v4025, 4
          %v4028 = vshll.u32 %v3818, 16
          %v4030 = vrot.slane %v4028, 5
          %v4031 = vsel %vm946, %v4026, %v4030
          %v4032 = vshrl.u32 %v3818, 16
          %v4034 = vrot.slane %v4032, 4
          %v4035 = vor.u32 %v4034, %v4030
          %v4036 = vrot.slane %v4035, 4
          %v4038 = vshll.u32 %v3819, 16
          %v4040 = vrot.slane %v4038, 5
          %v4041 = vsel %vm946, %v4036, %v4040
          %v4043 = vshrl.u32 %v3820, 16
          %v4045 = vrot.slane %v4043, 4
          %v4046 = vshll.u32 %v3820, 16
          %v4048 = vrot.slane %v4046, 5
          %v4049 = vor.u32 %v4045, %v4048
          %v4050 = vrot.slane %v4049, 4
          %v4052 = vshll.u32 %v3821, 16
          %v4054 = vrot.slane %v4052, 5
          %v4055 = vsel %vm946, %v4050, %v4054
          %v4056 = vshrl.u32 %v3821, 16
          %v4058 = vrot.slane %v4056, 4
          %v4059 = vor.u32 %v4058, %v4054
          %v4060 = vrot.slane %v4059, 4
          %v4062 = vshll.u32 %v3822, 16
          %v4064 = vrot.slane %v4062, 5
          %v4065 = vsel %vm946, %v4060, %v4064
          %v4067 = vshrl.u32 %v3823, 16
          %v4069 = vrot.slane %v4067, 4
          %v4070 = vshll.u32 %v3823, 16
          %v4072 = vrot.slane %v4070, 5
          %v4073 = vor.u32 %v4069, %v4072
          %v4074 = vrot.slane %v4073, 4
          %v4076 = vshll.u32 %v3824, 16
          %v4078 = vrot.slane %v4076, 5
          %v4079 = vsel %vm946, %v4074, %v4078
          %v4080 = vshrl.u32 %v3824, 16
          %v4082 = vrot.slane %v4080, 4
          %v4083 = vor.u32 %v4082, %v4078
          %v4084 = vrot.slane %v4083, 4
          %v4086 = vshll.u32 %v3825, 16
          %v4088 = vrot.slane %v4086, 5
          %v4089 = vsel %vm946, %v4084, %v4088
          %v4091 = vshrl.u32 %v3826, 16
          %v4093 = vrot.slane %v4091, 4
          %v4094 = vshll.u32 %v3826, 16
          %v4096 = vrot.slane %v4094, 5
          %v4097 = vor.u32 %v4093, %v4096
          %v4098 = vrot.slane %v4097, 4
          %v4100 = vshll.u32 %v3827, 16
          %v4102 = vrot.slane %v4100, 5
          %v4103 = vsel %vm946, %v4098, %v4102
          %v4104 = vshrl.u32 %v3827, 16
          %v4106 = vrot.slane %v4104, 4
          %v4107 = vor.u32 %v4106, %v4102
          %v4108 = vrot.slane %v4107, 4
          %v4110 = vshll.u32 %v3828, 16
          %v4112 = vrot.slane %v4110, 5
          %v4113 = vsel %vm946, %v4108, %v4112
          %v4115 = vshrl.u32 %v3829, 16
          %v4117 = vrot.slane %v4115, 4
          %v4118 = vshll.u32 %v3829, 16
          %v4120 = vrot.slane %v4118, 5
          %v4121 = vor.u32 %v4117, %v4120
          %v4122 = vrot.slane %v4121, 4
          %v4124 = vshll.u32 %v3830, 16
          %v4126 = vrot.slane %v4124, 5
          %v4127 = vsel %vm946, %v4122, %v4126
          %v4128 = vshrl.u32 %v3830, 16
          %v4130 = vrot.slane %v4128, 4
          %v4131 = vor.u32 %v4130, %v4126
          %v4132 = vrot.slane %v4131, 4
          %v4134 = vshll.u32 %v3831, 16
          %v4136 = vrot.slane %v4134, 5
          %v4137 = vsel %vm946, %v4132, %v4136
          %v4139 = vshrl.u32 %v3832, 16
          %v4141 = vrot.slane %v4139, 4
          %v4142 = vshll.u32 %v3832, 16
          %v4144 = vrot.slane %v4142, 5
          %v4145 = vor.u32 %v4141, %v4144
          %v4146 = vrot.slane %v4145, 4
          %v4148 = vshll.u32 %v3833, 16
          %v4150 = vrot.slane %v4148, 5
          %v4151 = vsel %vm946, %v4146, %v4150
          %v4152 = vshrl.u32 %v3833, 16
          %v4154 = vrot.slane %v4152, 4
          %v4155 = vor.u32 %v4154, %v4150
          %v4156 = vrot.slane %v4155, 4
          %v4158 = vshll.u32 %v3834, 16
          %v4160 = vrot.slane %v4158, 5
          %v4161 = vsel %vm946, %v4156, %v4160
          %v4163 = vshrl.u32 %v3835, 16
          %v4165 = vrot.slane %v4163, 4
          %v4166 = vshll.u32 %v3835, 16
          %v4168 = vrot.slane %v4166, 5
          %v4169 = vor.u32 %v4165, %v4168
          %v4170 = vrot.slane %v4169, 4
          %v4172 = vshll.u32 %v3836, 16
          %v4174 = vrot.slane %v4172, 5
          %v4175 = vsel %vm946, %v4170, %v4174
          %v4176 = vshrl.u32 %v3836, 16
          %v4178 = vrot.slane %v4176, 4
          %v4179 = vor.u32 %v4178, %v4174
          %v4180 = vrot.slane %v4179, 4
          %v4182 = vshll.u32 %v3837, 16
          %v4184 = vrot.slane %v4182, 5
          %v4185 = vsel %vm946, %v4180, %v4184
          %v4187 = vshrl.u32 %v3838, 16
          %v4189 = vrot.slane %v4187, 4
          %v4190 = vshll.u32 %v3838, 16
          %v4192 = vrot.slane %v4190, 5
          %v4193 = vor.u32 %v4189, %v4192
          %v4194 = vrot.slane %v4193, 4
          %v4196 = vshll.u32 %v3839, 16
          %v4198 = vrot.slane %v4196, 5
          %v4199 = vsel %vm946, %v4194, %v4198
          %v4200 = vshrl.u32 %v3839, 16
          %v4202 = vrot.slane %v4200, 4
          %v4203 = vor.u32 %v4202, %v4198
          %v4204 = vrot.slane %v4203, 4
          %v4206 = vshll.u32 %v3840, 16
          %v4208 = vrot.slane %v4206, 5
          %v4209 = vsel %vm946, %v4204, %v4208
          %v4211 = vshrl.u32 %v3841, 16
          %v4213 = vrot.slane %v4211, 4
          %v4214 = vshll.u32 %v3841, 16
          %v4216 = vrot.slane %v4214, 5
          %v4217 = vor.u32 %v4213, %v4216
          %v4218 = vrot.slane %v4217, 4
          %v4220 = vshll.u32 %v3842, 16
          %v4222 = vrot.slane %v4220, 5
          %v4223 = vsel %vm946, %v4218, %v4222
          %v4224 = vshrl.u32 %v3842, 16
          %v4226 = vrot.slane %v4224, 4
          %v4227 = vor.u32 %v4226, %v4222
          %v4228 = vrot.slane %v4227, 4
          %v4230 = vshll.u32 %v3843, 16
          %v4232 = vrot.slane %v4230, 5
          %v4233 = vsel %vm946, %v4228, %v4232
          %v4235 = vshrl.u32 %v3844, 16
          %v4237 = vrot.slane %v4235, 4
          %v4238 = vshll.u32 %v3844, 16
          %v4240 = vrot.slane %v4238, 5
          %v4241 = vor.u32 %v4237, %v4240
          %v4242 = vrot.slane %v4241, 4
          %v4244 = vshll.u32 %v3845, 16
          %v4246 = vrot.slane %v4244, 5
          %v4247 = vsel %vm946, %v4242, %v4246
          %v4248 = vshrl.u32 %v3845, 16
          %v4250 = vrot.slane %v4248, 4
          %v4251 = vor.u32 %v4250, %v4246
          %v4252 = vrot.slane %v4251, 4
          %v4254 = vshll.u32 %v3846, 16
          %v4256 = vrot.slane %v4254, 5
          %v4257 = vsel %vm946, %v4252, %v4256
          %v4259 = vshrl.u32 %v3847, 16
          %v4261 = vrot.slane %v4259, 4
          %v4262 = vshll.u32 %v3847, 16
          %v4264 = vrot.slane %v4262, 5
          %v4265 = vor.u32 %v4261, %v4264
          %v4266 = vrot.slane %v4265, 4
          %v4268 = vshll.u32 %v3848, 16
          %v4270 = vrot.slane %v4268, 5
          %v4271 = vsel %vm946, %v4266, %v4270
          %v4272 = vshrl.u32 %v3848, 16
          %v4274 = vrot.slane %v4272, 4
          %v4275 = vor.u32 %v4274, %v4270
          %v4276 = vrot.slane %v4275, 4
          %v4278 = vshll.u32 %v3849, 16
          %v4280 = vrot.slane %v4278, 5
          %v4281 = vsel %vm946, %v4276, %v4280
          %4282 = vrot.lane.b32.xlu0 %v3863, 64
          %v4283 = vpop.permute.xlu0 %4282
          %4284 = vrot.lane.b32.xlu0 %v3873, 64
          %v4285 = vpop.permute.xlu0 %4284
          %4286 = vrot.lane.b32.xlu0 %v3887, 64
          %v4287 = vpop.permute.xlu0 %4286
          %4288 = vrot.lane.b32.xlu0 %v3897, 64
          %v4289 = vpop.permute.xlu0 %4288
          %4290 = vrot.lane.b32.xlu0 %v3911, 64
          %v4291 = vpop.permute.xlu0 %4290
          %4292 = vrot.lane.b32.xlu0 %v3921, 64
          %v4293 = vpop.permute.xlu0 %4292
          %4294 = vrot.lane.b32.xlu0 %v3935, 64
          %v4295 = vpop.permute.xlu0 %4294
          %4296 = vrot.lane.b32.xlu0 %v3945, 64
          %v4297 = vpop.permute.xlu0 %4296
          %4298 = vrot.lane.b32.xlu0 %v3959, 64
          %v4299 = vpop.permute.xlu0 %4298
          %4300 = vrot.lane.b32.xlu0 %v3969, 64
          %v4301 = vpop.permute.xlu0 %4300
          %4302 = vrot.lane.b32.xlu0 %v3983, 64
          %v4303 = vpop.permute.xlu0 %4302
          %4304 = vrot.lane.b32.xlu0 %v3993, 64
          %v4305 = vpop.permute.xlu0 %4304
          %4306 = vrot.lane.b32.xlu0 %v4007, 64
          %v4307 = vpop.permute.xlu0 %4306
          %4308 = vrot.lane.b32.xlu0 %v4017, 64
          %v4309 = vpop.permute.xlu0 %4308
          %4310 = vrot.lane.b32.xlu0 %v4031, 64
          %v4311 = vpop.permute.xlu0 %4310
          %4312 = vrot.lane.b32.xlu0 %v4041, 64
          %v4313 = vpop.permute.xlu0 %4312
          %4314 = vrot.lane.b32.xlu0 %v4055, 64
          %v4315 = vpop.permute.xlu0 %4314
          %4316 = vrot.lane.b32.xlu0 %v4065, 64
          %v4317 = vpop.permute.xlu0 %4316
          %4318 = vrot.lane.b32.xlu0 %v4079, 64
          %v4319 = vpop.permute.xlu0 %4318
          %4320 = vrot.lane.b32.xlu0 %v4089, 64
          %v4321 = vpop.permute.xlu0 %4320
          %4322 = vrot.lane.b32.xlu0 %v4103, 64
          %v4323 = vpop.permute.xlu0 %4322
          %4324 = vrot.lane.b32.xlu0 %v4113, 64
          %v4325 = vpop.permute.xlu0 %4324
          %4326 = vrot.lane.b32.xlu0 %v4127, 64
          %v4327 = vpop.permute.xlu0 %4326
          %4328 = vrot.lane.b32.xlu0 %v4137, 64
          %v4329 = vpop.permute.xlu0 %4328
          %4330 = vrot.lane.b32.xlu0 %v4151, 64
          %v4331 = vpop.permute.xlu0 %4330
          %4332 = vrot.lane.b32.xlu0 %v4161, 64
          %v4333 = vpop.permute.xlu0 %4332
          %4334 = vrot.lane.b32.xlu0 %v4175, 64
          %v4335 = vpop.permute.xlu0 %4334
          %4336 = vrot.lane.b32.xlu0 %v4185, 64
          %v4337 = vpop.permute.xlu0 %4336
          %4338 = vrot.lane.b32.xlu0 %v4199, 64
          %v4339 = vpop.permute.xlu0 %4338
          %4340 = vrot.lane.b32.xlu0 %v4209, 64
          %v4341 = vpop.permute.xlu0 %4340
          %4342 = vrot.lane.b32.xlu0 %v4223, 64
          %v4343 = vpop.permute.xlu0 %4342
          %4344 = vrot.lane.b32.xlu0 %v4233, 64
          %v4345 = vpop.permute.xlu0 %4344
          %4346 = vrot.lane.b32.xlu0 %v4247, 64
          %v4347 = vpop.permute.xlu0 %4346
          %4348 = vrot.lane.b32.xlu0 %v4257, 64
          %v4349 = vpop.permute.xlu0 %4348
          %4350 = vrot.lane.b32.xlu0 %v4271, 64
          %v4351 = vpop.permute.xlu0 %4350
          %4352 = vrot.lane.b32.xlu0 %v4281, 64
          %v4353 = vpop.permute.xlu0 %4352
          %4390 = vst.msk [vmem:[#allocation3] sm:$0xf] %vm1487, %v4283
          %4391 = vst.msk [vmem:[#allocation3 + $0x8] sm:$0xf] %vm1487, %v4285
          %4392 = vst.msk [vmem:[#allocation3 + $0x10] sm:$0xf] %vm1487, %v4287
          %4393 = vst.msk [vmem:[#allocation3 + $0x18] sm:$0xf] %vm1487, %v4289
          %4394 = vst.msk [vmem:[#allocation3 + $0x20] sm:$0xf] %vm1487, %v4291
          %4395 = vst.msk [vmem:[#allocation3 + $0x28] sm:$0xf] %vm1487, %v4293
          %4396 = vst.msk [vmem:[#allocation3 + $0x30] sm:$0xf] %vm1487, %v4295
          %4397 = vst.msk [vmem:[#allocation3 + $0x38] sm:$0xf] %vm1487, %v4297
          %4398 = vst.msk [vmem:[#allocation3 + $0x40] sm:$0xf] %vm1487, %v4299
          %4399 = vst.msk [vmem:[#allocation3 + $0x48] sm:$0xf] %vm1487, %v4301
          %4400 = vst.msk [vmem:[#allocation3 + $0x50] sm:$0xf] %vm1487, %v4303
          %4401 = vst.msk [vmem:[#allocation3 + $0x58] sm:$0xf] %vm1487, %v4305
          %4402 = vst.msk [vmem:[#allocation3 + $0x60] sm:$0xf] %vm1487, %v4307
          %4403 = vst.msk [vmem:[#allocation3 + $0x68] sm:$0xf] %vm1487, %v4309
          %4404 = vst.msk [vmem:[#allocation3 + $0x70] sm:$0xf] %vm1487, %v4311
          %4405 = vst.msk [vmem:[#allocation3 + $0x78] sm:$0xf] %vm1487, %v4313
          %4406 = vst.msk [vmem:[#allocation3 + $0x80] sm:$0xf] %vm1487, %v4315
          %4407 = vst.msk [vmem:[#allocation3 + $0x88] sm:$0xf] %vm1487, %v4317
          %4408 = vst.msk [vmem:[#allocation3 + $0x90] sm:$0xf] %vm1487, %v4319
          %4409 = vst.msk [vmem:[#allocation3 + $0x98] sm:$0xf] %vm1487, %v4321
          %4410 = vst.msk [vmem:[#allocation3 + $0xa0] sm:$0xf] %vm1487, %v4323
          %4411 = vst.msk [vmem:[#allocation3 + $0xa8] sm:$0xf] %vm1487, %v4325
          %4412 = vst.msk [vmem:[#allocation3 + $0xb0] sm:$0xf] %vm1487, %v4327
          %4413 = vst.msk [vmem:[#allocation3 + $0xb8] sm:$0xf] %vm1487, %v4329
          %4414 = vst.msk [vmem:[#allocation3 + $0xc0] sm:$0xf] %vm1487, %v4331
          %4415 = vst.msk [vmem:[#allocation3 + $0xc8] sm:$0xf] %vm1487, %v4333
          %4416 = vst.msk [vmem:[#allocation3 + $0xd0] sm:$0xf] %vm1487, %v4335
          %4417 = vst.msk [vmem:[#allocation3 + $0xd8] sm:$0xf] %vm1487, %v4337
          %4418 = vst.msk [vmem:[#allocation3 + $0xe0] sm:$0xf] %vm1487, %v4339
          %4419 = vst.msk [vmem:[#allocation3 + $0xe8] sm:$0xf] %vm1487, %v4341
          %4420 = vst.msk [vmem:[#allocation3 + $0xf0] sm:$0xf] %vm1487, %v4343
          %4421 = vst.msk [vmem:[#allocation3 + $0xf8] sm:$0xf] %vm1487, %v4345
          %4422 = vst.msk [vmem:[#allocation3 + $0x100] sm:$0xf] %vm1487, %v4347
          %4423 = vst.msk [vmem:[#allocation3 + $0x108] sm:$0xf] %vm1487, %v4349
          %4424 = vst.msk [vmem:[#allocation3 + $0x110] sm:$0xf] %vm1487, %v4351
          %4425 = vst.msk [vmem:[#allocation3 + $0x118] sm:$0xf] %vm1487, %v4353
          %v4426 = vld [vmem:[#allocation2] sm:$0xe]
          %v4427 = vld [vmem:[#allocation2 + $0x4] sm:$0xf]
          %v4428 = vld [vmem:[#allocation2 + $0x8] sm:$0x1]
          %v4429 = vld [vmem:[#allocation2 + $0xc] sm:$0xe]
          %v4430 = vld [vmem:[#allocation2 + $0x10] sm:$0xf]
          %v4431 = vld [vmem:[#allocation2 + $0x14] sm:$0x1]
          %v4432 = vld [vmem:[#allocation2 + $0x18] sm:$0xe]
          %v4433 = vld [vmem:[#allocation2 + $0x1c] sm:$0xf]
          %v4434 = vld [vmem:[#allocation2 + $0x20] sm:$0x1]
          %v4435 = vld [vmem:[#allocation2 + $0x24] sm:$0xe]
          %v4436 = vld [vmem:[#allocation2 + $0x28] sm:$0xf]
          %v4437 = vld [vmem:[#allocation2 + $0x2c] sm:$0x1]
          %v4438 = vld [vmem:[#allocation2 + $0x30] sm:$0xe]
          %v4439 = vld [vmem:[#allocation2 + $0x34] sm:$0xf]
          %v4440 = vld [vmem:[#allocation2 + $0x38] sm:$0x1]
          %v4441 = vld [vmem:[#allocation2 + $0x3c] sm:$0xe]
          %v4442 = vld [vmem:[#allocation2 + $0x40] sm:$0xf]
          %v4443 = vld [vmem:[#allocation2 + $0x44] sm:$0x1]
          %v4444 = vld [vmem:[#allocation2 + $0x48] sm:$0xe]
          %v4445 = vld [vmem:[#allocation2 + $0x4c] sm:$0xf]
          %v4446 = vld [vmem:[#allocation2 + $0x50] sm:$0x1]
          %v4447 = vld [vmem:[#allocation2 + $0x54] sm:$0xe]
          %v4448 = vld [vmem:[#allocation2 + $0x58] sm:$0xf]
          %v4449 = vld [vmem:[#allocation2 + $0x5c] sm:$0x1]
          %v4450 = vld [vmem:[#allocation2 + $0x60] sm:$0xe]
          %v4451 = vld [vmem:[#allocation2 + $0x64] sm:$0xf]
          %v4452 = vld [vmem:[#allocation2 + $0x68] sm:$0x1]
          %v4453 = vld [vmem:[#allocation2 + $0x6c] sm:$0xe]
          %v4454 = vld [vmem:[#allocation2 + $0x70] sm:$0xf]
          %v4455 = vld [vmem:[#allocation2 + $0x74] sm:$0x1]
          %v4456 = vld [vmem:[#allocation2 + $0x78] sm:$0xe]
          %v4457 = vld [vmem:[#allocation2 + $0x7c] sm:$0xf]
          %v4458 = vld [vmem:[#allocation2 + $0x80] sm:$0x1]
          %v4459 = vld [vmem:[#allocation2 + $0x84] sm:$0xe]
          %v4460 = vld [vmem:[#allocation2 + $0x88] sm:$0xf]
          %v4461 = vld [vmem:[#allocation2 + $0x8c] sm:$0x1]
          %v4462 = vld [vmem:[#allocation2 + $0x90] sm:$0xe]
          %v4463 = vld [vmem:[#allocation2 + $0x94] sm:$0xf]
          %v4464 = vld [vmem:[#allocation2 + $0x98] sm:$0x1]
          %v4465 = vld [vmem:[#allocation2 + $0x9c] sm:$0xe]
          %v4466 = vld [vmem:[#allocation2 + $0xa0] sm:$0xf]
          %v4467 = vld [vmem:[#allocation2 + $0xa4] sm:$0x1]
          %v4468 = vld [vmem:[#allocation2 + $0xa8] sm:$0xe]
          %v4469 = vld [vmem:[#allocation2 + $0xac] sm:$0xf]
          %v4470 = vld [vmem:[#allocation2 + $0xb0] sm:$0x1]
          %v4471 = vld [vmem:[#allocation2 + $0xb4] sm:$0xe]
          %v4472 = vld [vmem:[#allocation2 + $0xb8] sm:$0xf]
          %v4473 = vld [vmem:[#allocation2 + $0xbc] sm:$0x1]
          %v4474 = vld [vmem:[#allocation2 + $0xc0] sm:$0xe]
          %v4475 = vld [vmem:[#allocation2 + $0xc4] sm:$0xf]
          %v4476 = vld [vmem:[#allocation2 + $0xc8] sm:$0x1]
          %v4477 = vld [vmem:[#allocation2 + $0xcc] sm:$0xe]
          %v4478 = vld [vmem:[#allocation2 + $0xd0] sm:$0xf]
          %v4479 = vld [vmem:[#allocation2 + $0xd4] sm:$0x1]
          %v4534 = vrot.slane %v4426, 5
          %v4535 = vrot.slane %v4534, 4
          %v4536 = vrot.slane %v4427, 5
          %v4537 = vsel %vm1634, %v4535, %v4536
          %v4538 = vrot.slane %v4536, 4
          %v4539 = vrot.slane %v4428, 5
          %v4540 = vsel %vm1634, %v4538, %v4539
          %v4541 = vrot.slane %v4429, 5
          %v4542 = vrot.slane %v4541, 4
          %v4543 = vrot.slane %v4430, 5
          %v4544 = vsel %vm1634, %v4542, %v4543
          %v4545 = vrot.slane %v4543, 4
          %v4546 = vrot.slane %v4431, 5
          %v4547 = vsel %vm1634, %v4545, %v4546
          %v4548 = vrot.slane %v4432, 5
          %v4549 = vrot.slane %v4548, 4
          %v4550 = vrot.slane %v4433, 5
          %v4551 = vsel %vm1634, %v4549, %v4550
          %v4552 = vrot.slane %v4550, 4
          %v4553 = vrot.slane %v4434, 5
          %v4554 = vsel %vm1634, %v4552, %v4553
          %v4555 = vrot.slane %v4435, 5
          %v4556 = vrot.slane %v4555, 4
          %v4557 = vrot.slane %v4436, 5
          %v4558 = vsel %vm1634, %v4556, %v4557
          %v4559 = vrot.slane %v4557, 4
          %v4560 = vrot.slane %v4437, 5
          %v4561 = vsel %vm1634, %v4559, %v4560
          %v4562 = vrot.slane %v4438, 5
          %v4563 = vrot.slane %v4562, 4
          %v4564 = vrot.slane %v4439, 5
          %v4565 = vsel %vm1634, %v4563, %v4564
          %v4566 = vrot.slane %v4564, 4
          %v4567 = vrot.slane %v4440, 5
          %v4568 = vsel %vm1634, %v4566, %v4567
          %v4569 = vrot.slane %v4441, 5
          %v4570 = vrot.slane %v4569, 4
          %v4571 = vrot.slane %v4442, 5
          %v4572 = vsel %vm1634, %v4570, %v4571
          %v4573 = vrot.slane %v4571, 4
          %v4574 = vrot.slane %v4443, 5
          %v4575 = vsel %vm1634, %v4573, %v4574
          %v4576 = vrot.slane %v4444, 5
          %v4577 = vrot.slane %v4576, 4
          %v4578 = vrot.slane %v4445, 5
          %v4579 = vsel %vm1634, %v4577, %v4578
          %v4580 = vrot.slane %v4578, 4
          %v4581 = vrot.slane %v4446, 5
          %v4582 = vsel %vm1634, %v4580, %v4581
          %v4583 = vrot.slane %v4447, 5
          %v4584 = vrot.slane %v4583, 4
          %v4585 = vrot.slane %v4448, 5
          %v4586 = vsel %vm1634, %v4584, %v4585
          %v4587 = vrot.slane %v4585, 4
          %v4588 = vrot.slane %v4449, 5
          %v4589 = vsel %vm1634, %v4587, %v4588
          %v4590 = vrot.slane %v4450, 5
          %v4591 = vrot.slane %v4590, 4
          %v4592 = vrot.slane %v4451, 5
          %v4593 = vsel %vm1634, %v4591, %v4592
          %v4594 = vrot.slane %v4592, 4
          %v4595 = vrot.slane %v4452, 5
          %v4596 = vsel %vm1634, %v4594, %v4595
          %v4597 = vrot.slane %v4453, 5
          %v4598 = vrot.slane %v4597, 4
          %v4599 = vrot.slane %v4454, 5
          %v4600 = vsel %vm1634, %v4598, %v4599
          %v4601 = vrot.slane %v4599, 4
          %v4602 = vrot.slane %v4455, 5
          %v4603 = vsel %vm1634, %v4601, %v4602
          %v4604 = vrot.slane %v4456, 5
          %v4605 = vrot.slane %v4604, 4
          %v4606 = vrot.slane %v4457, 5
          %v4607 = vsel %vm1634, %v4605, %v4606
          %v4608 = vrot.slane %v4606, 4
          %v4609 = vrot.slane %v4458, 5
          %v4610 = vsel %vm1634, %v4608, %v4609
          %v4611 = vrot.slane %v4459, 5
          %v4612 = vrot.slane %v4611, 4
          %v4613 = vrot.slane %v4460, 5
          %v4614 = vsel %vm1634, %v4612, %v4613
          %v4615 = vrot.slane %v4613, 4
          %v4616 = vrot.slane %v4461, 5
          %v4617 = vsel %vm1634, %v4615, %v4616
          %v4618 = vrot.slane %v4462, 5
          %v4619 = vrot.slane %v4618, 4
          %v4620 = vrot.slane %v4463, 5
          %v4621 = vsel %vm1634, %v4619, %v4620
          %v4622 = vrot.slane %v4620, 4
          %v4623 = vrot.slane %v4464, 5
          %v4624 = vsel %vm1634, %v4622, %v4623
          %v4625 = vrot.slane %v4465, 5
          %v4626 = vrot.slane %v4625, 4
          %v4627 = vrot.slane %v4466, 5
          %v4628 = vsel %vm1634, %v4626, %v4627
          %v4629 = vrot.slane %v4627, 4
          %v4630 = vrot.slane %v4467, 5
          %v4631 = vsel %vm1634, %v4629, %v4630
          %v4632 = vrot.slane %v4468, 5
          %v4633 = vrot.slane %v4632, 4
          %v4634 = vrot.slane %v4469, 5
          %v4635 = vsel %vm1634, %v4633, %v4634
          %v4636 = vrot.slane %v4634, 4
          %v4637 = vrot.slane %v4470, 5
          %v4638 = vsel %vm1634, %v4636, %v4637
          %v4639 = vrot.slane %v4471, 5
          %v4640 = vrot.slane %v4639, 4
          %v4641 = vrot.slane %v4472, 5
          %v4642 = vsel %vm1634, %v4640, %v4641
          %v4643 = vrot.slane %v4641, 4
          %v4644 = vrot.slane %v4473, 5
          %v4645 = vsel %vm1634, %v4643, %v4644
          %v4646 = vrot.slane %v4474, 5
          %v4647 = vrot.slane %v4646, 4
          %v4648 = vrot.slane %v4475, 5
          %v4649 = vsel %vm1634, %v4647, %v4648
          %v4650 = vrot.slane %v4648, 4
          %v4651 = vrot.slane %v4476, 5
          %v4652 = vsel %vm1634, %v4650, %v4651
          %v4653 = vrot.slane %v4477, 5
          %v4654 = vrot.slane %v4653, 4
          %v4655 = vrot.slane %v4478, 5
          %v4656 = vsel %vm1634, %v4654, %v4655
          %v4657 = vrot.slane %v4655, 4
          %v4658 = vrot.slane %v4479, 5
          %v4659 = vsel %vm1634, %v4657, %v4658
          %4696 = vst.msk [vmem:[#allocation3 + $0x4] sm:$0xf] %vm186, %v4537
          %4697 = vst.msk [vmem:[#allocation3 + $0xc] sm:$0xf] %vm186, %v4540
          %4698 = vst.msk [vmem:[#allocation3 + $0x14] sm:$0xf] %vm186, %v4544
          %4699 = vst.msk [vmem:[#allocation3 + $0x1c] sm:$0xf] %vm186, %v4547
          %4700 = vst.msk [vmem:[#allocation3 + $0x24] sm:$0xf] %vm186, %v4551
          %4701 = vst.msk [vmem:[#allocation3 + $0x2c] sm:$0xf] %vm186, %v4554
          %4702 = vst.msk [vmem:[#allocation3 + $0x34] sm:$0xf] %vm186, %v4558
          %4703 = vst.msk [vmem:[#allocation3 + $0x3c] sm:$0xf] %vm186, %v4561
          %4704 = vst.msk [vmem:[#allocation3 + $0x44] sm:$0xf] %vm186, %v4565
          %4705 = vst.msk [vmem:[#allocation3 + $0x4c] sm:$0xf] %vm186, %v4568
          %4706 = vst.msk [vmem:[#allocation3 + $0x54] sm:$0xf] %vm186, %v4572
          %4707 = vst.msk [vmem:[#allocation3 + $0x5c] sm:$0xf] %vm186, %v4575
          %4708 = vst.msk [vmem:[#allocation3 + $0x64] sm:$0xf] %vm186, %v4579
          %4709 = vst.msk [vmem:[#allocation3 + $0x6c] sm:$0xf] %vm186, %v4582
          %4710 = vst.msk [vmem:[#allocation3 + $0x74] sm:$0xf] %vm186, %v4586
          %4711 = vst.msk [vmem:[#allocation3 + $0x7c] sm:$0xf] %vm186, %v4589
          %4712 = vst.msk [vmem:[#allocation3 + $0x84] sm:$0xf] %vm186, %v4593
          %4713 = vst.msk [vmem:[#allocation3 + $0x8c] sm:$0xf] %vm186, %v4596
          %4714 = vst.msk [vmem:[#allocation3 + $0x94] sm:$0xf] %vm186, %v4600
          %4715 = vst.msk [vmem:[#allocation3 + $0x9c] sm:$0xf] %vm186, %v4603
          %4716 = vst.msk [vmem:[#allocation3 + $0xa4] sm:$0xf] %vm186, %v4607
          %4717 = vst.msk [vmem:[#allocation3 + $0xac] sm:$0xf] %vm186, %v4610
          %4718 = vst.msk [vmem:[#allocation3 + $0xb4] sm:$0xf] %vm186, %v4614
          %4719 = vst.msk [vmem:[#allocation3 + $0xbc] sm:$0xf] %vm186, %v4617
          %4720 = vst.msk [vmem:[#allocation3 + $0xc4] sm:$0xf] %vm186, %v4621
          %4721 = vst.msk [vmem:[#allocation3 + $0xcc] sm:$0xf] %vm186, %v4624
          %4722 = vst.msk [vmem:[#allocation3 + $0xd4] sm:$0xf] %vm186, %v4628
          %4723 = vst.msk [vmem:[#allocation3 + $0xdc] sm:$0xf] %vm186, %v4631
          %4724 = vst.msk [vmem:[#allocation3 + $0xe4] sm:$0xf] %vm186, %v4635
          %4725 = vst.msk [vmem:[#allocation3 + $0xec] sm:$0xf] %vm186, %v4638
          %4726 = vst.msk [vmem:[#allocation3 + $0xf4] sm:$0xf] %vm186, %v4642
          %4727 = vst.msk [vmem:[#allocation3 + $0xfc] sm:$0xf] %vm186, %v4645
          %4728 = vst.msk [vmem:[#allocation3 + $0x104] sm:$0xf] %vm186, %v4649
          %4729 = vst.msk [vmem:[#allocation3 + $0x10c] sm:$0xf] %vm186, %v4652
          %4730 = vst.msk [vmem:[#allocation3 + $0x114] sm:$0xf] %vm186, %v4656
          %4731 = vst.msk [vmem:[#allocation3 + $0x11c] sm:$0xf] %vm186, %v4659
          %v4732 = vld [vmem:[#allocation3] sm:$0xff]
          %v4733 = vld [vmem:[#allocation3 + $0x8] sm:$0xff]
          %v4734 = vld [vmem:[#allocation3 + $0x10] sm:$0xff]
          %v4735 = vld [vmem:[#allocation3 + $0x18] sm:$0xff]
          %v4736 = vld [vmem:[#allocation3 + $0x20] sm:$0xff]
          %v4737 = vld [vmem:[#allocation3 + $0x28] sm:$0xff]
          %v4738 = vld [vmem:[#allocation3 + $0x30] sm:$0xff]
          %v4739 = vld [vmem:[#allocation3 + $0x38] sm:$0xff]
          %v4740 = vld [vmem:[#allocation3 + $0x40] sm:$0xff]
          %v4741 = vld [vmem:[#allocation3 + $0x48] sm:$0xff]
          %v4742 = vld [vmem:[#allocation3 + $0x50] sm:$0xff]
          %v4743 = vld [vmem:[#allocation3 + $0x58] sm:$0xff]
          %v4744 = vld [vmem:[#allocation3 + $0x60] sm:$0xff]
          %v4745 = vld [vmem:[#allocation3 + $0x68] sm:$0xff]
          %v4746 = vld [vmem:[#allocation3 + $0x70] sm:$0xff]
          %v4747 = vld [vmem:[#allocation3 + $0x78] sm:$0xff]
          %v4748 = vld [vmem:[#allocation3 + $0x80] sm:$0xff]
          %v4749 = vld [vmem:[#allocation3 + $0x88] sm:$0xff]
          %v4750 = vld [vmem:[#allocation3 + $0x90] sm:$0xff]
          %v4751 = vld [vmem:[#allocation3 + $0x98] sm:$0xff]
          %v4752 = vld [vmem:[#allocation3 + $0xa0] sm:$0xff]
          %v4753 = vld [vmem:[#allocation3 + $0xa8] sm:$0xff]
          %v4754 = vld [vmem:[#allocation3 + $0xb0] sm:$0xff]
          %v4755 = vld [vmem:[#allocation3 + $0xb8] sm:$0xff]
          %v4756 = vld [vmem:[#allocation3 + $0xc0] sm:$0xff]
          %v4757 = vld [vmem:[#allocation3 + $0xc8] sm:$0xff]
          %v4758 = vld [vmem:[#allocation3 + $0xd0] sm:$0xff]
          %v4759 = vld [vmem:[#allocation3 + $0xd8] sm:$0xff]
          %v4760 = vld [vmem:[#allocation3 + $0xe0] sm:$0xff]
          %v4761 = vld [vmem:[#allocation3 + $0xe8] sm:$0xff]
          %v4762 = vld [vmem:[#allocation3 + $0xf0] sm:$0xff]
          %v4763 = vld [vmem:[#allocation3 + $0xf8] sm:$0xff]
          %s4764 = smul.u32 %s3723, 3
          %s4765 = smul.u32 %s4764, 24
          %s4766 = smul.addr %s4765, 4
          %s4767 = scalar_lea.vmem %s1, %s4766
          %v4768 = vld [vmem:[%s4767] sm:$0xf]
          %v4769 = vld [vmem:[%s4767 + $0x4] sm:$0xf]
          %v4770 = vld [vmem:[%s4767 + $0x8] sm:$0xf]
          %v4771 = vld [vmem:[%s4767 + $0xc] sm:$0xf]
          %v4772 = vld [vmem:[%s4767 + $0x10] sm:$0xf]
          %v4773 = vld [vmem:[%s4767 + $0x14] sm:$0xf]
          %v4774 = vld [vmem:[%s4767 + $0x18] sm:$0xf]
          %v4775 = vld [vmem:[%s4767 + $0x1c] sm:$0xf]
          %v4776 = vld [vmem:[%s4767 + $0x20] sm:$0xf]
          %v4777 = vld [vmem:[%s4767 + $0x24] sm:$0xf]
          %v4778 = vld [vmem:[%s4767 + $0x28] sm:$0xf]
          %v4779 = vld [vmem:[%s4767 + $0x2c] sm:$0xf]
          %v4780 = vld [vmem:[%s4767 + $0x30] sm:$0xf]
          %v4781 = vld [vmem:[%s4767 + $0x34] sm:$0xf]
          %v4782 = vld [vmem:[%s4767 + $0x38] sm:$0xf]
          %v4783 = vld [vmem:[%s4767 + $0x3c] sm:$0xf]
          %v4784 = vld [vmem:[%s4767 + $0x40] sm:$0xf]
          %v4785 = vld [vmem:[%s4767 + $0x44] sm:$0xf]
          %v4786 = vld [vmem:[%s4767 + $0x48] sm:$0xf]
          %v4787 = vld [vmem:[%s4767 + $0x4c] sm:$0xf]
          %v4788 = vld [vmem:[%s4767 + $0x50] sm:$0xf]
          %v4789 = vld [vmem:[%s4767 + $0x54] sm:$0xf]
          %v4790 = vld [vmem:[%s4767 + $0x58] sm:$0xf]
          %v4791 = vld [vmem:[%s4767 + $0x5c] sm:$0xf]
          %v4792 = vld [vmem:[#allocation3 + $0x100] sm:$0xff]
          %v4793 = vld [vmem:[#allocation3 + $0x108] sm:$0xff]
          %s4794 = sadd.s32 %s4764, 1
          %s4795 = smul.u32 %s4794, 24
          %s4796 = smul.addr %s4795, 4
          %s4797 = scalar_lea.vmem %s1, %s4796
          %v4798 = vld [vmem:[%s4797] sm:$0xf]
          %v4799 = vld [vmem:[%s4797 + $0x4] sm:$0xf]
          %v4800 = vld [vmem:[%s4797 + $0x8] sm:$0xf]
          %v4801 = vld [vmem:[%s4797 + $0xc] sm:$0xf]
          %v4802 = vld [vmem:[%s4797 + $0x10] sm:$0xf]
          %v4803 = vld [vmem:[%s4797 + $0x14] sm:$0xf]
          %v4804 = vld [vmem:[%s4797 + $0x18] sm:$0xf]
          %v4805 = vld [vmem:[%s4797 + $0x1c] sm:$0xf]
          %v4806 = vld [vmem:[%s4797 + $0x20] sm:$0xf]
          %v4807 = vld [vmem:[%s4797 + $0x24] sm:$0xf]
          %v4808 = vld [vmem:[%s4797 + $0x28] sm:$0xf]
          %v4809 = vld [vmem:[%s4797 + $0x2c] sm:$0xf]
          %v4810 = vld [vmem:[%s4797 + $0x30] sm:$0xf]
          %v4811 = vld [vmem:[%s4797 + $0x34] sm:$0xf]
          %v4812 = vld [vmem:[%s4797 + $0x38] sm:$0xf]
          %v4813 = vld [vmem:[%s4797 + $0x3c] sm:$0xf]
          %v4814 = vld [vmem:[%s4797 + $0x40] sm:$0xf]
          %v4815 = vld [vmem:[%s4797 + $0x44] sm:$0xf]
          %v4816 = vld [vmem:[%s4797 + $0x48] sm:$0xf]
          %v4817 = vld [vmem:[%s4797 + $0x4c] sm:$0xf]
          %v4818 = vld [vmem:[%s4797 + $0x50] sm:$0xf]
          %v4819 = vld [vmem:[%s4797 + $0x54] sm:$0xf]
          %v4820 = vld [vmem:[%s4797 + $0x58] sm:$0xf]
          %v4821 = vld [vmem:[%s4797 + $0x5c] sm:$0xf]
          %v4854 = vunpack.c.l.b16 %v4734
          %v4855 = vunpack.c.h.b16 %v4734
          %v4856 = vunpack.c.l.b16 %v4735
          %v4857 = vunpack.c.h.b16 %v4735
          %v4858 = vunpack.c.l.b16 %v4736
          %v4859 = vunpack.c.h.b16 %v4736
          %v4860 = vunpack.c.l.b16 %v4737
          %v4861 = vunpack.c.h.b16 %v4737
          %v4862 = vunpack.c.l.b16 %v4738
          %v4863 = vunpack.c.h.b16 %v4738
          %v4864 = vunpack.c.l.b16 %v4739
          %v4865 = vunpack.c.h.b16 %v4739
          %v4866 = vunpack.c.l.b16 %v4740
          %v4867 = vunpack.c.h.b16 %v4740
          %v4868 = vunpack.c.l.b16 %v4741
          %v4869 = vunpack.c.h.b16 %v4741
          %v4870 = vunpack.c.l.b16 %v4742
          %v4871 = vunpack.c.h.b16 %v4742
          %v4872 = vunpack.c.l.b16 %v4743
          %v4873 = vunpack.c.h.b16 %v4743
          %v4874 = vunpack.c.l.b16 %v4744
          %v4875 = vunpack.c.h.b16 %v4744
          %v4876 = vunpack.c.l.b16 %v4745
          %v4877 = vunpack.c.h.b16 %v4745
          %v4878 = vunpack.c.l.b16 %v4746
          %v4879 = vunpack.c.h.b16 %v4746
          %v4880 = vunpack.c.l.b16 %v4747
          %v4881 = vunpack.c.h.b16 %v4747
          %v4882 = vunpack.c.l.b16 %v4748
          %v4883 = vunpack.c.h.b16 %v4748
          %v4884 = vunpack.c.l.b16 %v4749
          %v4885 = vunpack.c.h.b16 %v4749
          %v4886 = vunpack.c.l.b16 %v4750
          %v4887 = vunpack.c.h.b16 %v4750
          %v4888 = vunpack.c.l.b16 %v4751
          %v4889 = vunpack.c.h.b16 %v4751
          %v4890 = vunpack.c.l.b16 %v4752
          %v4891 = vunpack.c.h.b16 %v4752
          %v4892 = vunpack.c.l.b16 %v4753
          %v4893 = vunpack.c.h.b16 %v4753
          %v4894 = vunpack.c.l.b16 %v4754
          %v4895 = vunpack.c.h.b16 %v4754
          %v4896 = vunpack.c.l.b16 %v4755
          %v4897 = vunpack.c.h.b16 %v4755
          %v4898 = vunpack.c.l.b16 %v4756
          %v4899 = vunpack.c.h.b16 %v4756
          %v4900 = vunpack.c.l.b16 %v4757
          %v4901 = vunpack.c.h.b16 %v4757
          %v4902 = vunpack.c.l.b16 %v4758
          %v4903 = vunpack.c.h.b16 %v4758
          %v4904 = vunpack.c.l.b16 %v4759
          %v4905 = vunpack.c.h.b16 %v4759
          %v4906 = vunpack.c.l.b16 %v4760
          %v4907 = vunpack.c.h.b16 %v4760
          %v4908 = vunpack.c.l.b16 %v4761
          %v4909 = vunpack.c.h.b16 %v4761
          %v4910 = vunpack.c.l.b16 %v4762
          %v4911 = vunpack.c.h.b16 %v4762
          %v4912 = vunpack.c.l.b16 %v4763
          %v4913 = vunpack.c.h.b16 %v4763
          %v4914 = vunpack.c.l.b16 %v4792
          %v4915 = vunpack.c.h.b16 %v4792
          %v4916 = vunpack.c.l.b16 %v4793
          %v4917 = vunpack.c.h.b16 %v4793
          %v4918 = vpack.c.b16 %v4856, %v4854
          %v4919 = vpack.c.b16 %v4857, %v4855
          %v4920 = vpack.c.b16 %v4860, %v4858
          %v4921 = vpack.c.b16 %v4861, %v4859
          %v4922 = vpack.c.b16 %v4864, %v4862
          %v4923 = vpack.c.b16 %v4865, %v4863
          %v4924 = vpack.c.b16 %v4868, %v4866
          %v4925 = vpack.c.b16 %v4869, %v4867
          %v4926 = vpack.c.b16 %v4872, %v4870
          %v4927 = vpack.c.b16 %v4873, %v4871
          %v4928 = vpack.c.b16 %v4876, %v4874
          %v4929 = vpack.c.b16 %v4877, %v4875
          %v4930 = vpack.c.b16 %v4880, %v4878
          %v4931 = vpack.c.b16 %v4881, %v4879
          %v4932 = vpack.c.b16 %v4884, %v4882
          %v4933 = vpack.c.b16 %v4885, %v4883
          %v4934 = vpack.c.b16 %v4888, %v4886
          %v4935 = vpack.c.b16 %v4889, %v4887
          %v4936 = vpack.c.b16 %v4892, %v4890
          %v4937 = vpack.c.b16 %v4893, %v4891
          %v4938 = vpack.c.b16 %v4896, %v4894
          %v4939 = vpack.c.b16 %v4897, %v4895
          %v4940 = vpack.c.b16 %v4900, %v4898
          %v4941 = vpack.c.b16 %v4901, %v4899
          %v4942 = vpack.c.b16 %v4904, %v4902
          %v4943 = vpack.c.b16 %v4905, %v4903
          %v4944 = vpack.c.b16 %v4908, %v4906
          %v4945 = vpack.c.b16 %v4909, %v4907
          %v4946 = vpack.c.b16 %v4912, %v4910
          %v4947 = vpack.c.b16 %v4913, %v4911
          %v4948 = vpack.c.b16 %v4916, %v4914
          %v4949 = vpack.c.b16 %v4917, %v4915
          %v4990 = vunpack.c.l.b16 %v4798
          %v4991 = vunpack.c.l.b16 %v4799
          %v4992 = vunpack.c.l.b16 %v4800
          %v4993 = vunpack.c.l.b16 %v4801
          %v4994 = vunpack.c.l.b16 %v4802
          %v4995 = vunpack.c.l.b16 %v4803
          %v4996 = vunpack.c.l.b16 %v4804
          %v4997 = vunpack.c.l.b16 %v4805
          %v4998 = vunpack.c.l.b16 %v4806
          %v4999 = vunpack.c.l.b16 %v4807
          %v5000 = vunpack.c.l.b16 %v4808
          %v5001 = vunpack.c.l.b16 %v4809
          %v5002 = vunpack.c.l.b16 %v4810
          %v5003 = vunpack.c.l.b16 %v4811
          %v5004 = vunpack.c.l.b16 %v4812
          %v5005 = vunpack.c.l.b16 %v4813
          %v5006 = vunpack.c.l.b16 %v4814
          %v5007 = vunpack.c.l.b16 %v4815
          %v5008 = vunpack.c.l.b16 %v4816
          %v5009 = vunpack.c.l.b16 %v4817
          %v5010 = vunpack.c.l.b16 %v4818
          %v5011 = vunpack.c.l.b16 %v4819
          %v5012 = vunpack.c.l.b16 %v4820
          %v5013 = vunpack.c.l.b16 %v4821
          %v5014 = vpack.c.b16 %v4991, %v4990
          %v5015 = vpack.c.b16 %v4993, %v4992
          %v5016 = vpack.c.b16 %v4995, %v4994
          %v5017 = vpack.c.b16 %v4997, %v4996
          %v5018 = vpack.c.b16 %v4999, %v4998
          %v5019 = vpack.c.b16 %v5001, %v5000
          %v5020 = vpack.c.b16 %v5003, %v5002
          %v5021 = vpack.c.b16 %v5005, %v5004
          %v5022 = vpack.c.b16 %v5007, %v5006
          %v5023 = vpack.c.b16 %v5009, %v5008
          %v5024 = vpack.c.b16 %v5011, %v5010
          %v5025 = vpack.c.b16 %v5013, %v5012
          %v5039 = vsel %vm273, %v4919, 0
          %v5042 = vsel %vm273, %v4921, 0
          %v5045 = vsel %vm273, %v4923, 0
          %v5048 = vsel %vm273, %v4925, 0
          %v5051 = vsel %vm273, %v4927, 0
          %v5054 = vsel %vm273, %v4929, 0
          %v5057 = vsel %vm273, %v4931, 0
          %v5060 = vsel %vm273, %v4933, 0
          %v5063 = vsel %vm273, %v4935, 0
          %v5066 = vsel %vm273, %v4937, 0
          %v5069 = vsel %vm273, %v4939, 0
          %v5072 = vsel %vm273, %v4941, 0
          %v5075 = vsel %vm273, %v4943, 0
          %v5078 = vsel %vm273, %v4945, 0
          %v5081 = vsel %vm273, %v4947, 0
          %v5084 = vsel %vm273, %v4949, 0
          %5086 = vmatpush.bf16.msra.mxu0 %v5021
          %5087 = vmatpush.bf16.msra.mxu0 %v5020
          %5088 = vmatpush.bf16.msra.mxu0 %v5019
          %5089 = vmatpush.bf16.msra.mxu0 %v5018
          %5090 = vmatpush.bf16.msra.mxu0 %v5017
          %5091 = vmatpush.bf16.msra.mxu0 %v5016
          %5092 = vmatpush.bf16.msra.mxu0 %v5015
          %5093 = vmatpush.bf16.msra.mxu0 %v5014
          %5094 = vmatmul.bf16.gmra.mxu0 %v4918
          %v5095 = vpop.f32.mrf.mxu0
          %v5096 = vadd.f32 0.0, %v5095
          %v5097 = vpop.f32.mrf.mxu0
          %v5098 = vadd.f32 0.0, %v5097
          %5099 = vmatmul.bf16.gmra.mxu0 %v4920
          %v5100 = vpop.f32.mrf.mxu0
          %v5101 = vadd.f32 0.0, %v5100
          %v5102 = vpop.f32.mrf.mxu0
          %v5103 = vadd.f32 0.0, %v5102
          %5104 = vmatmul.bf16.gmra.mxu0 %v4922
          %v5105 = vpop.f32.mrf.mxu0
          %v5106 = vadd.f32 0.0, %v5105
          %v5107 = vpop.f32.mrf.mxu0
          %v5108 = vadd.f32 0.0, %v5107
          %5109 = vmatmul.bf16.gmra.mxu0 %v4924
          %v5110 = vpop.f32.mrf.mxu0
          %v5111 = vadd.f32 0.0, %v5110
          %v5112 = vpop.f32.mrf.mxu0
          %v5113 = vadd.f32 0.0, %v5112
          %5114 = vmatmul.bf16.gmra.mxu0 %v4926
          %v5115 = vpop.f32.mrf.mxu0
          %v5116 = vadd.f32 0.0, %v5115
          %v5117 = vpop.f32.mrf.mxu0
          %v5118 = vadd.f32 0.0, %v5117
          %5119 = vmatmul.bf16.gmra.mxu0 %v4928
          %v5120 = vpop.f32.mrf.mxu0
          %v5121 = vadd.f32 0.0, %v5120
          %v5122 = vpop.f32.mrf.mxu0
          %v5123 = vadd.f32 0.0, %v5122
          %5124 = vmatmul.bf16.gmra.mxu0 %v4930
          %v5125 = vpop.f32.mrf.mxu0
          %v5126 = vadd.f32 0.0, %v5125
          %v5127 = vpop.f32.mrf.mxu0
          %v5128 = vadd.f32 0.0, %v5127
          %5129 = vmatmul.bf16.gmra.mxu0 %v4932
          %v5130 = vpop.f32.mrf.mxu0
          %v5131 = vadd.f32 0.0, %v5130
          %v5132 = vpop.f32.mrf.mxu0
          %v5133 = vadd.f32 0.0, %v5132
          %5134 = vmatmul.bf16.gmra.mxu0 %v4934
          %v5135 = vpop.f32.mrf.mxu0
          %v5136 = vadd.f32 0.0, %v5135
          %v5137 = vpop.f32.mrf.mxu0
          %v5138 = vadd.f32 0.0, %v5137
          %5139 = vmatmul.bf16.gmra.mxu0 %v4936
          %v5140 = vpop.f32.mrf.mxu0
          %v5141 = vadd.f32 0.0, %v5140
          %v5142 = vpop.f32.mrf.mxu0
          %v5143 = vadd.f32 0.0, %v5142
          %5144 = vmatmul.bf16.gmra.mxu0 %v4938
          %v5145 = vpop.f32.mrf.mxu0
          %v5146 = vadd.f32 0.0, %v5145
          %v5147 = vpop.f32.mrf.mxu0
          %v5148 = vadd.f32 0.0, %v5147
          %5149 = vmatmul.bf16.gmra.mxu0 %v4940
          %v5150 = vpop.f32.mrf.mxu0
          %v5151 = vadd.f32 0.0, %v5150
          %v5152 = vpop.f32.mrf.mxu0
          %v5153 = vadd.f32 0.0, %v5152
          %5154 = vmatmul.bf16.gmra.mxu0 %v4942
          %v5155 = vpop.f32.mrf.mxu0
          %v5156 = vadd.f32 0.0, %v5155
          %v5157 = vpop.f32.mrf.mxu0
          %v5158 = vadd.f32 0.0, %v5157
          %5159 = vmatmul.bf16.gmra.mxu0 %v4944
          %v5160 = vpop.f32.mrf.mxu0
          %v5161 = vadd.f32 0.0, %v5160
          %v5162 = vpop.f32.mrf.mxu0
          %v5163 = vadd.f32 0.0, %v5162
          %5164 = vmatmul.bf16.gmra.mxu0 %v4946
          %v5165 = vpop.f32.mrf.mxu0
          %v5166 = vadd.f32 0.0, %v5165
          %v5167 = vpop.f32.mrf.mxu0
          %v5168 = vadd.f32 0.0, %v5167
          %5169 = vmatmul.bf16.gmra.mxu0 %v4948
          %v5170 = vpop.f32.mrf.mxu0
          %v5171 = vadd.f32 0.0, %v5170
          %v5172 = vpop.f32.mrf.mxu0
          %v5173 = vadd.f32 0.0, %v5172
          %5174 = vdwg.mxu0
          %5175 = vmatpush.bf16.msra.mxu0 0
          %5176 = vmatpush.bf16.msra.mxu0 0
          %5177 = vmatpush.bf16.msra.mxu0 0
          %5178 = vmatpush.bf16.msra.mxu0 0
          %5179 = vmatpush.bf16.msra.mxu0 %v5025
          %5180 = vmatpush.bf16.msra.mxu0 %v5024
          %5181 = vmatpush.bf16.msra.mxu0 %v5023
          %5182 = vmatpush.bf16.msra.mxu0 %v5022
          %5183 = vmatmul.bf16.gmra.mxu0 %v5039
          %v5184 = vpop.f32.mrf.mxu0
          %v5185 = vadd.f32 %v5096, %v5184
          %v5186 = vpop.f32.mrf.mxu0
          %v5187 = vadd.f32 %v5098, %v5186
          %5188 = vmatmul.bf16.gmra.mxu0 %v5042
          %v5189 = vpop.f32.mrf.mxu0
          %v5190 = vadd.f32 %v5101, %v5189
          %v5191 = vpop.f32.mrf.mxu0
          %v5192 = vadd.f32 %v5103, %v5191
          %5193 = vmatmul.bf16.gmra.mxu0 %v5045
          %v5194 = vpop.f32.mrf.mxu0
          %v5195 = vadd.f32 %v5106, %v5194
          %v5196 = vpop.f32.mrf.mxu0
          %v5197 = vadd.f32 %v5108, %v5196
          %5198 = vmatmul.bf16.gmra.mxu0 %v5048
          %v5199 = vpop.f32.mrf.mxu0
          %v5200 = vadd.f32 %v5111, %v5199
          %v5201 = vpop.f32.mrf.mxu0
          %v5202 = vadd.f32 %v5113, %v5201
          %5203 = vmatmul.bf16.gmra.mxu0 %v5051
          %v5204 = vpop.f32.mrf.mxu0
          %v5205 = vadd.f32 %v5116, %v5204
          %v5206 = vpop.f32.mrf.mxu0
          %v5207 = vadd.f32 %v5118, %v5206
          %5208 = vmatmul.bf16.gmra.mxu0 %v5054
          %v5209 = vpop.f32.mrf.mxu0
          %v5210 = vadd.f32 %v5121, %v5209
          %v5211 = vpop.f32.mrf.mxu0
          %v5212 = vadd.f32 %v5123, %v5211
          %5213 = vmatmul.bf16.gmra.mxu0 %v5057
          %v5214 = vpop.f32.mrf.mxu0
          %v5215 = vadd.f32 %v5126, %v5214
          %v5216 = vpop.f32.mrf.mxu0
          %v5217 = vadd.f32 %v5128, %v5216
          %5218 = vmatmul.bf16.gmra.mxu0 %v5060
          %v5219 = vpop.f32.mrf.mxu0
          %v5220 = vadd.f32 %v5131, %v5219
          %v5221 = vpop.f32.mrf.mxu0
          %v5222 = vadd.f32 %v5133, %v5221
          %5223 = vmatmul.bf16.gmra.mxu0 %v5063
          %v5224 = vpop.f32.mrf.mxu0
          %v5225 = vadd.f32 %v5136, %v5224
          %v5226 = vpop.f32.mrf.mxu0
          %v5227 = vadd.f32 %v5138, %v5226
          %5228 = vmatmul.bf16.gmra.mxu0 %v5066
          %v5229 = vpop.f32.mrf.mxu0
          %v5230 = vadd.f32 %v5141, %v5229
          %v5231 = vpop.f32.mrf.mxu0
          %v5232 = vadd.f32 %v5143, %v5231
          %5233 = vmatmul.bf16.gmra.mxu0 %v5069
          %v5234 = vpop.f32.mrf.mxu0
          %v5235 = vadd.f32 %v5146, %v5234
          %v5236 = vpop.f32.mrf.mxu0
          %v5237 = vadd.f32 %v5148, %v5236
          %5238 = vmatmul.bf16.gmra.mxu0 %v5072
          %v5239 = vpop.f32.mrf.mxu0
          %v5240 = vadd.f32 %v5151, %v5239
          %v5241 = vpop.f32.mrf.mxu0
          %v5242 = vadd.f32 %v5153, %v5241
          %5243 = vmatmul.bf16.gmra.mxu0 %v5075
          %v5244 = vpop.f32.mrf.mxu0
          %v5245 = vadd.f32 %v5156, %v5244
          %v5246 = vpop.f32.mrf.mxu0
          %v5247 = vadd.f32 %v5158, %v5246
          %5248 = vmatmul.bf16.gmra.mxu0 %v5078
          %v5249 = vpop.f32.mrf.mxu0
          %v5250 = vadd.f32 %v5161, %v5249
          %v5251 = vpop.f32.mrf.mxu0
          %v5252 = vadd.f32 %v5163, %v5251
          %5253 = vmatmul.bf16.gmra.mxu0 %v5081
          %v5254 = vpop.f32.mrf.mxu0
          %v5255 = vadd.f32 %v5166, %v5254
          %v5256 = vpop.f32.mrf.mxu0
          %v5257 = vadd.f32 %v5168, %v5256
          %5258 = vmatmul.bf16.gmra.mxu0 %v5084
          %v5259 = vpop.f32.mrf.mxu0
          %v5260 = vadd.f32 %v5171, %v5259
          %v5261 = vpop.f32.mrf.mxu0
          %v5262 = vadd.f32 %v5173, %v5261
          %5263 = vdwg.mxu0
          %v5266 = vunpack.c.l.b16 %v4732
          %v5267 = vunpack.c.h.b16 %v4732
          %v5268 = vunpack.c.l.b16 %v4733
          %v5269 = vunpack.c.h.b16 %v4733
          %v5270 = vpack.c.b16 %v5268, %v5266
          %v5271 = vpack.c.b16 %v5269, %v5267
          %v5297 = vunpack.c.l.b16 %v4768
          %v5298 = vunpack.c.l.b16 %v4769
          %v5299 = vunpack.c.l.b16 %v4770
          %v5300 = vunpack.c.l.b16 %v4771
          %v5301 = vunpack.c.l.b16 %v4772
          %v5302 = vunpack.c.l.b16 %v4773
          %v5303 = vunpack.c.l.b16 %v4774
          %v5304 = vunpack.c.l.b16 %v4775
          %v5305 = vunpack.c.l.b16 %v4776
          %v5306 = vunpack.c.l.b16 %v4777
          %v5307 = vunpack.c.l.b16 %v4778
          %v5308 = vunpack.c.l.b16 %v4779
          %v5309 = vunpack.c.l.b16 %v4780
          %v5310 = vunpack.c.l.b16 %v4781
          %v5311 = vunpack.c.l.b16 %v4782
          %v5312 = vunpack.c.l.b16 %v4783
          %v5313 = vunpack.c.l.b16 %v4784
          %v5314 = vunpack.c.l.b16 %v4785
          %v5315 = vunpack.c.l.b16 %v4786
          %v5316 = vunpack.c.l.b16 %v4787
          %v5317 = vunpack.c.l.b16 %v4788
          %v5318 = vunpack.c.l.b16 %v4789
          %v5319 = vunpack.c.l.b16 %v4790
          %v5320 = vunpack.c.l.b16 %v4791
          %v5321 = vpack.c.b16 %v5298, %v5297
          %v5322 = vpack.c.b16 %v5300, %v5299
          %v5323 = vpack.c.b16 %v5302, %v5301
          %v5324 = vpack.c.b16 %v5304, %v5303
          %v5325 = vpack.c.b16 %v5306, %v5305
          %v5326 = vpack.c.b16 %v5308, %v5307
          %v5327 = vpack.c.b16 %v5310, %v5309
          %v5328 = vpack.c.b16 %v5312, %v5311
          %v5329 = vpack.c.b16 %v5314, %v5313
          %v5330 = vpack.c.b16 %v5316, %v5315
          %v5331 = vpack.c.b16 %v5318, %v5317
          %v5332 = vpack.c.b16 %v5320, %v5319
          %v5346 = vsel %vm273, %v5271, 0
          %5348 = vmatpush.bf16.msra.mxu0 %v5328
          %5349 = vmatpush.bf16.msra.mxu0 %v5327
          %5350 = vmatpush.bf16.msra.mxu0 %v5326
          %5351 = vmatpush.bf16.msra.mxu0 %v5325
          %5352 = vmatpush.bf16.msra.mxu0 %v5324
          %5353 = vmatpush.bf16.msra.mxu0 %v5323
          %5354 = vmatpush.bf16.msra.mxu0 %v5322
          %5355 = vmatpush.bf16.msra.mxu0 %v5321
          %5356 = vmatmul.bf16.gmra.mxu0 %v5270
          %v5357 = vpop.f32.mrf.mxu0
          %v5358 = vadd.f32 %v5185, %v5357
          %v5359 = vpop.f32.mrf.mxu0
          %v5360 = vadd.f32 %v5187, %v5359
          %5361 = vmatmul.bf16.gmra.mxu0 %v4918
          %v5362 = vpop.f32.mrf.mxu0
          %v5363 = vadd.f32 %v5190, %v5362
          %v5364 = vpop.f32.mrf.mxu0
          %v5365 = vadd.f32 %v5192, %v5364
          %5366 = vmatmul.bf16.gmra.mxu0 %v4920
          %v5367 = vpop.f32.mrf.mxu0
          %v5368 = vadd.f32 %v5195, %v5367
          %v5369 = vpop.f32.mrf.mxu0
          %v5370 = vadd.f32 %v5197, %v5369
          %5371 = vmatmul.bf16.gmra.mxu0 %v4922
          %v5372 = vpop.f32.mrf.mxu0
          %v5373 = vadd.f32 %v5200, %v5372
          %v5374 = vpop.f32.mrf.mxu0
          %v5375 = vadd.f32 %v5202, %v5374
          %5376 = vmatmul.bf16.gmra.mxu0 %v4924
          %v5377 = vpop.f32.mrf.mxu0
          %v5378 = vadd.f32 %v5205, %v5377
          %v5379 = vpop.f32.mrf.mxu0
          %v5380 = vadd.f32 %v5207, %v5379
          %5381 = vmatmul.bf16.gmra.mxu0 %v4926
          %v5382 = vpop.f32.mrf.mxu0
          %v5383 = vadd.f32 %v5210, %v5382
          %v5384 = vpop.f32.mrf.mxu0
          %v5385 = vadd.f32 %v5212, %v5384
          %5386 = vmatmul.bf16.gmra.mxu0 %v4928
          %v5387 = vpop.f32.mrf.mxu0
          %v5388 = vadd.f32 %v5215, %v5387
          %v5389 = vpop.f32.mrf.mxu0
          %v5390 = vadd.f32 %v5217, %v5389
          %5391 = vmatmul.bf16.gmra.mxu0 %v4930
          %v5392 = vpop.f32.mrf.mxu0
          %v5393 = vadd.f32 %v5220, %v5392
          %v5394 = vpop.f32.mrf.mxu0
          %v5395 = vadd.f32 %v5222, %v5394
          %5396 = vmatmul.bf16.gmra.mxu0 %v4932
          %v5397 = vpop.f32.mrf.mxu0
          %v5398 = vadd.f32 %v5225, %v5397
          %v5399 = vpop.f32.mrf.mxu0
          %v5400 = vadd.f32 %v5227, %v5399
          %5401 = vmatmul.bf16.gmra.mxu0 %v4934
          %v5402 = vpop.f32.mrf.mxu0
          %v5403 = vadd.f32 %v5230, %v5402
          %v5404 = vpop.f32.mrf.mxu0
          %v5405 = vadd.f32 %v5232, %v5404
          %5406 = vmatmul.bf16.gmra.mxu0 %v4936
          %v5407 = vpop.f32.mrf.mxu0
          %v5408 = vadd.f32 %v5235, %v5407
          %v5409 = vpop.f32.mrf.mxu0
          %v5410 = vadd.f32 %v5237, %v5409
          %5411 = vmatmul.bf16.gmra.mxu0 %v4938
          %v5412 = vpop.f32.mrf.mxu0
          %v5413 = vadd.f32 %v5240, %v5412
          %v5414 = vpop.f32.mrf.mxu0
          %v5415 = vadd.f32 %v5242, %v5414
          %5416 = vmatmul.bf16.gmra.mxu0 %v4940
          %v5417 = vpop.f32.mrf.mxu0
          %v5418 = vadd.f32 %v5245, %v5417
          %v5419 = vpop.f32.mrf.mxu0
          %v5420 = vadd.f32 %v5247, %v5419
          %5421 = vmatmul.bf16.gmra.mxu0 %v4942
          %v5422 = vpop.f32.mrf.mxu0
          %v5423 = vadd.f32 %v5250, %v5422
          %v5424 = vpop.f32.mrf.mxu0
          %v5425 = vadd.f32 %v5252, %v5424
          %5426 = vmatmul.bf16.gmra.mxu0 %v4944
          %v5427 = vpop.f32.mrf.mxu0
          %v5428 = vadd.f32 %v5255, %v5427
          %v5429 = vpop.f32.mrf.mxu0
          %v5430 = vadd.f32 %v5257, %v5429
          %5431 = vmatmul.bf16.gmra.mxu0 %v4946
          %v5432 = vpop.f32.mrf.mxu0
          %v5433 = vadd.f32 %v5260, %v5432
          %v5434 = vpop.f32.mrf.mxu0
          %v5435 = vadd.f32 %v5262, %v5434
          %5436 = vdwg.mxu0
          %5437 = vmatpush.bf16.msra.mxu0 0
          %5438 = vmatpush.bf16.msra.mxu0 0
          %5439 = vmatpush.bf16.msra.mxu0 0
          %5440 = vmatpush.bf16.msra.mxu0 0
          %5441 = vmatpush.bf16.msra.mxu0 %v5332
          %5442 = vmatpush.bf16.msra.mxu0 %v5331
          %5443 = vmatpush.bf16.msra.mxu0 %v5330
          %5444 = vmatpush.bf16.msra.mxu0 %v5329
          %5445 = vmatmul.bf16.gmra.mxu0 %v5346
          %v5446 = vpop.f32.mrf.mxu0
          %v5447 = vadd.f32 %v5358, %v5446
          %v5448 = vpop.f32.mrf.mxu0
          %v5449 = vadd.f32 %v5360, %v5448
          %5450 = vmatmul.bf16.gmra.mxu0 %v5039
          %v5451 = vpop.f32.mrf.mxu0
          %v5452 = vadd.f32 %v5363, %v5451
          %v5453 = vpop.f32.mrf.mxu0
          %v5454 = vadd.f32 %v5365, %v5453
          %5455 = vmatmul.bf16.gmra.mxu0 %v5042
          %v5456 = vpop.f32.mrf.mxu0
          %v5457 = vadd.f32 %v5368, %v5456
          %v5458 = vpop.f32.mrf.mxu0
          %v5459 = vadd.f32 %v5370, %v5458
          %5460 = vmatmul.bf16.gmra.mxu0 %v5045
          %v5461 = vpop.f32.mrf.mxu0
          %v5462 = vadd.f32 %v5373, %v5461
          %v5463 = vpop.f32.mrf.mxu0
          %v5464 = vadd.f32 %v5375, %v5463
          %5465 = vmatmul.bf16.gmra.mxu0 %v5048
          %v5466 = vpop.f32.mrf.mxu0
          %v5467 = vadd.f32 %v5378, %v5466
          %v5468 = vpop.f32.mrf.mxu0
          %v5469 = vadd.f32 %v5380, %v5468
          %5470 = vmatmul.bf16.gmra.mxu0 %v5051
          %v5471 = vpop.f32.mrf.mxu0
          %v5472 = vadd.f32 %v5383, %v5471
          %v5473 = vpop.f32.mrf.mxu0
          %v5474 = vadd.f32 %v5385, %v5473
          %5475 = vmatmul.bf16.gmra.mxu0 %v5054
          %v5476 = vpop.f32.mrf.mxu0
          %v5477 = vadd.f32 %v5388, %v5476
          %v5478 = vpop.f32.mrf.mxu0
          %v5479 = vadd.f32 %v5390, %v5478
          %5480 = vmatmul.bf16.gmra.mxu0 %v5057
          %v5481 = vpop.f32.mrf.mxu0
          %v5482 = vadd.f32 %v5393, %v5481
          %v5483 = vpop.f32.mrf.mxu0
          %v5484 = vadd.f32 %v5395, %v5483
          %5485 = vmatmul.bf16.gmra.mxu0 %v5060
          %v5486 = vpop.f32.mrf.mxu0
          %v5487 = vadd.f32 %v5398, %v5486
          %v5488 = vpop.f32.mrf.mxu0
          %v5489 = vadd.f32 %v5400, %v5488
          %5490 = vmatmul.bf16.gmra.mxu0 %v5063
          %v5491 = vpop.f32.mrf.mxu0
          %v5492 = vadd.f32 %v5403, %v5491
          %v5493 = vpop.f32.mrf.mxu0
          %v5494 = vadd.f32 %v5405, %v5493
          %5495 = vmatmul.bf16.gmra.mxu0 %v5066
          %v5496 = vpop.f32.mrf.mxu0
          %v5497 = vadd.f32 %v5408, %v5496
          %v5498 = vpop.f32.mrf.mxu0
          %v5499 = vadd.f32 %v5410, %v5498
          %5500 = vmatmul.bf16.gmra.mxu0 %v5069
          %v5501 = vpop.f32.mrf.mxu0
          %v5502 = vadd.f32 %v5413, %v5501
          %v5503 = vpop.f32.mrf.mxu0
          %v5504 = vadd.f32 %v5415, %v5503
          %5505 = vmatmul.bf16.gmra.mxu0 %v5072
          %v5506 = vpop.f32.mrf.mxu0
          %v5507 = vadd.f32 %v5418, %v5506
          %v5508 = vpop.f32.mrf.mxu0
          %v5509 = vadd.f32 %v5420, %v5508
          %5510 = vmatmul.bf16.gmra.mxu0 %v5075
          %v5511 = vpop.f32.mrf.mxu0
          %v5512 = vadd.f32 %v5423, %v5511
          %v5513 = vpop.f32.mrf.mxu0
          %v5514 = vadd.f32 %v5425, %v5513
          %5515 = vmatmul.bf16.gmra.mxu0 %v5078
          %v5516 = vpop.f32.mrf.mxu0
          %v5517 = vadd.f32 %v5428, %v5516
          %v5518 = vpop.f32.mrf.mxu0
          %v5519 = vadd.f32 %v5430, %v5518
          %5520 = vmatmul.bf16.gmra.mxu0 %v5081
          %v5521 = vpop.f32.mrf.mxu0
          %v5522 = vadd.f32 %v5433, %v5521
          %v5523 = vpop.f32.mrf.mxu0
          %v5524 = vadd.f32 %v5435, %v5523
          %5525 = vdwg.mxu0
          %v5526 = vld [vmem:[#allocation3 + $0x20] sm:$0xff]
          %v5527 = vld [vmem:[#allocation3 + $0x28] sm:$0xff]
          %v5528 = vld [vmem:[#allocation3 + $0x30] sm:$0xff]
          %v5529 = vld [vmem:[#allocation3 + $0x38] sm:$0xff]
          %v5530 = vld [vmem:[#allocation3 + $0x40] sm:$0xff]
          %v5531 = vld [vmem:[#allocation3 + $0x48] sm:$0xff]
          %v5532 = vld [vmem:[#allocation3 + $0x50] sm:$0xff]
          %v5533 = vld [vmem:[#allocation3 + $0x58] sm:$0xff]
          %v5534 = vld [vmem:[#allocation3 + $0x60] sm:$0xff]
          %v5535 = vld [vmem:[#allocation3 + $0x68] sm:$0xff]
          %v5536 = vld [vmem:[#allocation3 + $0x70] sm:$0xff]
          %v5537 = vld [vmem:[#allocation3 + $0x78] sm:$0xff]
          %v5538 = vld [vmem:[#allocation3 + $0x80] sm:$0xff]
          %v5539 = vld [vmem:[#allocation3 + $0x88] sm:$0xff]
          %v5540 = vld [vmem:[#allocation3 + $0x90] sm:$0xff]
          %v5541 = vld [vmem:[#allocation3 + $0x98] sm:$0xff]
          %v5542 = vld [vmem:[#allocation3 + $0xa0] sm:$0xff]
          %v5543 = vld [vmem:[#allocation3 + $0xa8] sm:$0xff]
          %v5544 = vld [vmem:[#allocation3 + $0xb0] sm:$0xff]
          %v5545 = vld [vmem:[#allocation3 + $0xb8] sm:$0xff]
          %v5546 = vld [vmem:[#allocation3 + $0xc0] sm:$0xff]
          %v5547 = vld [vmem:[#allocation3 + $0xc8] sm:$0xff]
          %v5548 = vld [vmem:[#allocation3 + $0xd0] sm:$0xff]
          %v5549 = vld [vmem:[#allocation3 + $0xd8] sm:$0xff]
          %v5550 = vld [vmem:[#allocation3 + $0xe0] sm:$0xff]
          %v5551 = vld [vmem:[#allocation3 + $0xe8] sm:$0xff]
          %v5552 = vld [vmem:[#allocation3 + $0xf0] sm:$0xff]
          %v5553 = vld [vmem:[#allocation3 + $0xf8] sm:$0xff]
          %v5554 = vld [vmem:[#allocation3 + $0x100] sm:$0xff]
          %v5555 = vld [vmem:[#allocation3 + $0x108] sm:$0xff]
          %v5556 = vld [vmem:[#allocation3 + $0x110] sm:$0xff]
          %v5557 = vld [vmem:[#allocation3 + $0x118] sm:$0xff]
          %s5558 = sadd.s32 %s4764, 2
          %s5559 = smul.u32 %s5558, 24
          %s5560 = smul.addr %s5559, 4
          %s5561 = scalar_lea.vmem %s1, %s5560
          %v5562 = vld [vmem:[%s5561] sm:$0xf]
          %v5563 = vld [vmem:[%s5561 + $0x4] sm:$0xf]
          %v5564 = vld [vmem:[%s5561 + $0x8] sm:$0xf]
          %v5565 = vld [vmem:[%s5561 + $0xc] sm:$0xf]
          %v5566 = vld [vmem:[%s5561 + $0x10] sm:$0xf]
          %v5567 = vld [vmem:[%s5561 + $0x14] sm:$0xf]
          %v5568 = vld [vmem:[%s5561 + $0x18] sm:$0xf]
          %v5569 = vld [vmem:[%s5561 + $0x1c] sm:$0xf]
          %v5570 = vld [vmem:[%s5561 + $0x20] sm:$0xf]
          %v5571 = vld [vmem:[%s5561 + $0x24] sm:$0xf]
          %v5572 = vld [vmem:[%s5561 + $0x28] sm:$0xf]
          %v5573 = vld [vmem:[%s5561 + $0x2c] sm:$0xf]
          %v5574 = vld [vmem:[%s5561 + $0x30] sm:$0xf]
          %v5575 = vld [vmem:[%s5561 + $0x34] sm:$0xf]
          %v5576 = vld [vmem:[%s5561 + $0x38] sm:$0xf]
          %v5577 = vld [vmem:[%s5561 + $0x3c] sm:$0xf]
          %v5578 = vld [vmem:[%s5561 + $0x40] sm:$0xf]
          %v5579 = vld [vmem:[%s5561 + $0x44] sm:$0xf]
          %v5580 = vld [vmem:[%s5561 + $0x48] sm:$0xf]
          %v5581 = vld [vmem:[%s5561 + $0x4c] sm:$0xf]
          %v5582 = vld [vmem:[%s5561 + $0x50] sm:$0xf]
          %v5583 = vld [vmem:[%s5561 + $0x54] sm:$0xf]
          %v5584 = vld [vmem:[%s5561 + $0x58] sm:$0xf]
          %v5585 = vld [vmem:[%s5561 + $0x5c] sm:$0xf]
          %v5618 = vunpack.c.l.b16 %v5526
          %v5619 = vunpack.c.h.b16 %v5526
          %v5620 = vunpack.c.l.b16 %v5527
          %v5621 = vunpack.c.h.b16 %v5527
          %v5622 = vunpack.c.l.b16 %v5528
          %v5623 = vunpack.c.h.b16 %v5528
          %v5624 = vunpack.c.l.b16 %v5529
          %v5625 = vunpack.c.h.b16 %v5529
          %v5626 = vunpack.c.l.b16 %v5530
          %v5627 = vunpack.c.h.b16 %v5530
          %v5628 = vunpack.c.l.b16 %v5531
          %v5629 = vunpack.c.h.b16 %v5531
          %v5630 = vunpack.c.l.b16 %v5532
          %v5631 = vunpack.c.h.b16 %v5532
          %v5632 = vunpack.c.l.b16 %v5533
          %v5633 = vunpack.c.h.b16 %v5533
          %v5634 = vunpack.c.l.b16 %v5534
          %v5635 = vunpack.c.h.b16 %v5534
          %v5636 = vunpack.c.l.b16 %v5535
          %v5637 = vunpack.c.h.b16 %v5535
          %v5638 = vunpack.c.l.b16 %v5536
          %v5639 = vunpack.c.h.b16 %v5536
          %v5640 = vunpack.c.l.b16 %v5537
          %v5641 = vunpack.c.h.b16 %v5537
          %v5642 = vunpack.c.l.b16 %v5538
          %v5643 = vunpack.c.h.b16 %v5538
          %v5644 = vunpack.c.l.b16 %v5539
          %v5645 = vunpack.c.h.b16 %v5539
          %v5646 = vunpack.c.l.b16 %v5540
          %v5647 = vunpack.c.h.b16 %v5540
          %v5648 = vunpack.c.l.b16 %v5541
          %v5649 = vunpack.c.h.b16 %v5541
          %v5650 = vunpack.c.l.b16 %v5542
          %v5651 = vunpack.c.h.b16 %v5542
          %v5652 = vunpack.c.l.b16 %v5543
          %v5653 = vunpack.c.h.b16 %v5543
          %v5654 = vunpack.c.l.b16 %v5544
          %v5655 = vunpack.c.h.b16 %v5544
          %v5656 = vunpack.c.l.b16 %v5545
          %v5657 = vunpack.c.h.b16 %v5545
          %v5658 = vunpack.c.l.b16 %v5546
          %v5659 = vunpack.c.h.b16 %v5546
          %v5660 = vunpack.c.l.b16 %v5547
          %v5661 = vunpack.c.h.b16 %v5547
          %v5662 = vunpack.c.l.b16 %v5548
          %v5663 = vunpack.c.h.b16 %v5548
          %v5664 = vunpack.c.l.b16 %v5549
          %v5665 = vunpack.c.h.b16 %v5549
          %v5666 = vunpack.c.l.b16 %v5550
          %v5667 = vunpack.c.h.b16 %v5550
          %v5668 = vunpack.c.l.b16 %v5551
          %v5669 = vunpack.c.h.b16 %v5551
          %v5670 = vunpack.c.l.b16 %v5552
          %v5671 = vunpack.c.h.b16 %v5552
          %v5672 = vunpack.c.l.b16 %v5553
          %v5673 = vunpack.c.h.b16 %v5553
          %v5674 = vunpack.c.l.b16 %v5554
          %v5675 = vunpack.c.h.b16 %v5554
          %v5676 = vunpack.c.l.b16 %v5555
          %v5677 = vunpack.c.h.b16 %v5555
          %v5678 = vunpack.c.l.b16 %v5556
          %v5679 = vunpack.c.h.b16 %v5556
          %v5680 = vunpack.c.l.b16 %v5557
          %v5681 = vunpack.c.h.b16 %v5557
          %v5682 = vpack.c.b16 %v5620, %v5618
          %v5683 = vpack.c.b16 %v5621, %v5619
          %v5684 = vpack.c.b16 %v5624, %v5622
          %v5685 = vpack.c.b16 %v5625, %v5623
          %v5686 = vpack.c.b16 %v5628, %v5626
          %v5687 = vpack.c.b16 %v5629, %v5627
          %v5688 = vpack.c.b16 %v5632, %v5630
          %v5689 = vpack.c.b16 %v5633, %v5631
          %v5690 = vpack.c.b16 %v5636, %v5634
          %v5691 = vpack.c.b16 %v5637, %v5635
          %v5692 = vpack.c.b16 %v5640, %v5638
          %v5693 = vpack.c.b16 %v5641, %v5639
          %v5694 = vpack.c.b16 %v5644, %v5642
          %v5695 = vpack.c.b16 %v5645, %v5643
          %v5696 = vpack.c.b16 %v5648, %v5646
          %v5697 = vpack.c.b16 %v5649, %v5647
          %v5698 = vpack.c.b16 %v5652, %v5650
          %v5699 = vpack.c.b16 %v5653, %v5651
          %v5700 = vpack.c.b16 %v5656, %v5654
          %v5701 = vpack.c.b16 %v5657, %v5655
          %v5702 = vpack.c.b16 %v5660, %v5658
          %v5703 = vpack.c.b16 %v5661, %v5659
          %v5704 = vpack.c.b16 %v5664, %v5662
          %v5705 = vpack.c.b16 %v5665, %v5663
          %v5706 = vpack.c.b16 %v5668, %v5666
          %v5707 = vpack.c.b16 %v5669, %v5667
          %v5708 = vpack.c.b16 %v5672, %v5670
          %v5709 = vpack.c.b16 %v5673, %v5671
          %v5710 = vpack.c.b16 %v5676, %v5674
          %v5711 = vpack.c.b16 %v5677, %v5675
          %v5712 = vpack.c.b16 %v5680, %v5678
          %v5713 = vpack.c.b16 %v5681, %v5679
          %v5754 = vunpack.c.l.b16 %v5562
          %v5755 = vunpack.c.l.b16 %v5563
          %v5756 = vunpack.c.l.b16 %v5564
          %v5757 = vunpack.c.l.b16 %v5565
          %v5758 = vunpack.c.l.b16 %v5566
          %v5759 = vunpack.c.l.b16 %v5567
          %v5760 = vunpack.c.l.b16 %v5568
          %v5761 = vunpack.c.l.b16 %v5569
          %v5762 = vunpack.c.l.b16 %v5570
          %v5763 = vunpack.c.l.b16 %v5571
          %v5764 = vunpack.c.l.b16 %v5572
          %v5765 = vunpack.c.l.b16 %v5573
          %v5766 = vunpack.c.l.b16 %v5574
          %v5767 = vunpack.c.l.b16 %v5575
          %v5768 = vunpack.c.l.b16 %v5576
          %v5769 = vunpack.c.l.b16 %v5577
          %v5770 = vunpack.c.l.b16 %v5578
          %v5771 = vunpack.c.l.b16 %v5579
          %v5772 = vunpack.c.l.b16 %v5580
          %v5773 = vunpack.c.l.b16 %v5581
          %v5774 = vunpack.c.l.b16 %v5582
          %v5775 = vunpack.c.l.b16 %v5583
          %v5776 = vunpack.c.l.b16 %v5584
          %v5777 = vunpack.c.l.b16 %v5585
          %v5778 = vpack.c.b16 %v5755, %v5754
          %v5779 = vpack.c.b16 %v5757, %v5756
          %v5780 = vpack.c.b16 %v5759, %v5758
          %v5781 = vpack.c.b16 %v5761, %v5760
          %v5782 = vpack.c.b16 %v5763, %v5762
          %v5783 = vpack.c.b16 %v5765, %v5764
          %v5784 = vpack.c.b16 %v5767, %v5766
          %v5785 = vpack.c.b16 %v5769, %v5768
          %v5786 = vpack.c.b16 %v5771, %v5770
          %v5787 = vpack.c.b16 %v5773, %v5772
          %v5788 = vpack.c.b16 %v5775, %v5774
          %v5789 = vpack.c.b16 %v5777, %v5776
          %v5803 = vsel %vm273, %v5683, 0
          %v5806 = vsel %vm273, %v5685, 0
          %v5809 = vsel %vm273, %v5687, 0
          %v5812 = vsel %vm273, %v5689, 0
          %v5815 = vsel %vm273, %v5691, 0
          %v5818 = vsel %vm273, %v5693, 0
          %v5821 = vsel %vm273, %v5695, 0
          %v5824 = vsel %vm273, %v5697, 0
          %v5827 = vsel %vm273, %v5699, 0
          %v5830 = vsel %vm273, %v5701, 0
          %v5833 = vsel %vm273, %v5703, 0
          %v5836 = vsel %vm273, %v5705, 0
          %v5839 = vsel %vm273, %v5707, 0
          %v5842 = vsel %vm273, %v5709, 0
          %v5845 = vsel %vm273, %v5711, 0
          %v5848 = vsel %vm273, %v5713, 0
          %5850 = vmatpush.bf16.msra.mxu0 %v5785
          %5851 = vmatpush.bf16.msra.mxu0 %v5784
          %5852 = vmatpush.bf16.msra.mxu0 %v5783
          %5853 = vmatpush.bf16.msra.mxu0 %v5782
          %5854 = vmatpush.bf16.msra.mxu0 %v5781
          %5855 = vmatpush.bf16.msra.mxu0 %v5780
          %5856 = vmatpush.bf16.msra.mxu0 %v5779
          %5857 = vmatpush.bf16.msra.mxu0 %v5778
          %5858 = vmatmul.bf16.gmra.mxu0 %v5682
          %v5859 = vpop.f32.mrf.mxu0
          %v5860 = vadd.f32 0.0, %v5859
          %v5861 = vpop.f32.mrf.mxu0
          %v5862 = vadd.f32 0.0, %v5861
          %5863 = vmatmul.bf16.gmra.mxu0 %v5684
          %v5864 = vpop.f32.mrf.mxu0
          %v5865 = vadd.f32 0.0, %v5864
          %v5866 = vpop.f32.mrf.mxu0
          %v5867 = vadd.f32 0.0, %v5866
          %5868 = vmatmul.bf16.gmra.mxu0 %v5686
          %v5869 = vpop.f32.mrf.mxu0
          %v5870 = vadd.f32 0.0, %v5869
          %v5871 = vpop.f32.mrf.mxu0
          %v5872 = vadd.f32 0.0, %v5871
          %5873 = vmatmul.bf16.gmra.mxu0 %v5688
          %v5874 = vpop.f32.mrf.mxu0
          %v5875 = vadd.f32 0.0, %v5874
          %v5876 = vpop.f32.mrf.mxu0
          %v5877 = vadd.f32 0.0, %v5876
          %5878 = vmatmul.bf16.gmra.mxu0 %v5690
          %v5879 = vpop.f32.mrf.mxu0
          %v5880 = vadd.f32 0.0, %v5879
          %v5881 = vpop.f32.mrf.mxu0
          %v5882 = vadd.f32 0.0, %v5881
          %5883 = vmatmul.bf16.gmra.mxu0 %v5692
          %v5884 = vpop.f32.mrf.mxu0
          %v5885 = vadd.f32 0.0, %v5884
          %v5886 = vpop.f32.mrf.mxu0
          %v5887 = vadd.f32 0.0, %v5886
          %5888 = vmatmul.bf16.gmra.mxu0 %v5694
          %v5889 = vpop.f32.mrf.mxu0
          %v5890 = vadd.f32 0.0, %v5889
          %v5891 = vpop.f32.mrf.mxu0
          %v5892 = vadd.f32 0.0, %v5891
          %5893 = vmatmul.bf16.gmra.mxu0 %v5696
          %v5894 = vpop.f32.mrf.mxu0
          %v5895 = vadd.f32 0.0, %v5894
          %v5896 = vpop.f32.mrf.mxu0
          %v5897 = vadd.f32 0.0, %v5896
          %5898 = vmatmul.bf16.gmra.mxu0 %v5698
          %v5899 = vpop.f32.mrf.mxu0
          %v5900 = vadd.f32 0.0, %v5899
          %v5901 = vpop.f32.mrf.mxu0
          %v5902 = vadd.f32 0.0, %v5901
          %5903 = vmatmul.bf16.gmra.mxu0 %v5700
          %v5904 = vpop.f32.mrf.mxu0
          %v5905 = vadd.f32 0.0, %v5904
          %v5906 = vpop.f32.mrf.mxu0
          %v5907 = vadd.f32 0.0, %v5906
          %5908 = vmatmul.bf16.gmra.mxu0 %v5702
          %v5909 = vpop.f32.mrf.mxu0
          %v5910 = vadd.f32 0.0, %v5909
          %v5911 = vpop.f32.mrf.mxu0
          %v5912 = vadd.f32 0.0, %v5911
          %5913 = vmatmul.bf16.gmra.mxu0 %v5704
          %v5914 = vpop.f32.mrf.mxu0
          %v5915 = vadd.f32 0.0, %v5914
          %v5916 = vpop.f32.mrf.mxu0
          %v5917 = vadd.f32 0.0, %v5916
          %5918 = vmatmul.bf16.gmra.mxu0 %v5706
          %v5919 = vpop.f32.mrf.mxu0
          %v5920 = vadd.f32 0.0, %v5919
          %v5921 = vpop.f32.mrf.mxu0
          %v5922 = vadd.f32 0.0, %v5921
          %5923 = vmatmul.bf16.gmra.mxu0 %v5708
          %v5924 = vpop.f32.mrf.mxu0
          %v5925 = vadd.f32 0.0, %v5924
          %v5926 = vpop.f32.mrf.mxu0
          %v5927 = vadd.f32 0.0, %v5926
          %5928 = vmatmul.bf16.gmra.mxu0 %v5710
          %v5929 = vpop.f32.mrf.mxu0
          %v5930 = vadd.f32 0.0, %v5929
          %v5931 = vpop.f32.mrf.mxu0
          %v5932 = vadd.f32 0.0, %v5931
          %5933 = vmatmul.bf16.gmra.mxu0 %v5712
          %v5934 = vpop.f32.mrf.mxu0
          %v5935 = vadd.f32 0.0, %v5934
          %v5936 = vpop.f32.mrf.mxu0
          %v5937 = vadd.f32 0.0, %v5936
          %5938 = vdwg.mxu0
          %5939 = vmatpush.bf16.msra.mxu0 0
          %5940 = vmatpush.bf16.msra.mxu0 0
          %5941 = vmatpush.bf16.msra.mxu0 0
          %5942 = vmatpush.bf16.msra.mxu0 0
          %5943 = vmatpush.bf16.msra.mxu0 %v5789
          %5944 = vmatpush.bf16.msra.mxu0 %v5788
          %5945 = vmatpush.bf16.msra.mxu0 %v5787
          %5946 = vmatpush.bf16.msra.mxu0 %v5786
          %5947 = vmatmul.bf16.gmra.mxu0 %v5803
          %v5948 = vpop.f32.mrf.mxu0
          %v5949 = vadd.f32 %v5860, %v5948
          %v5950 = vpop.f32.mrf.mxu0
          %v5951 = vadd.f32 %v5862, %v5950
          %5952 = vmatmul.bf16.gmra.mxu0 %v5806
          %v5953 = vpop.f32.mrf.mxu0
          %v5954 = vadd.f32 %v5865, %v5953
          %v5955 = vpop.f32.mrf.mxu0
          %v5956 = vadd.f32 %v5867, %v5955
          %5957 = vmatmul.bf16.gmra.mxu0 %v5809
          %v5958 = vpop.f32.mrf.mxu0
          %v5959 = vadd.f32 %v5870, %v5958
          %v5960 = vpop.f32.mrf.mxu0
          %v5961 = vadd.f32 %v5872, %v5960
          %5962 = vmatmul.bf16.gmra.mxu0 %v5812
          %v5963 = vpop.f32.mrf.mxu0
          %v5964 = vadd.f32 %v5875, %v5963
          %v5965 = vpop.f32.mrf.mxu0
          %v5966 = vadd.f32 %v5877, %v5965
          %5967 = vmatmul.bf16.gmra.mxu0 %v5815
          %v5968 = vpop.f32.mrf.mxu0
          %v5969 = vadd.f32 %v5880, %v5968
          %v5970 = vpop.f32.mrf.mxu0
          %v5971 = vadd.f32 %v5882, %v5970
          %5972 = vmatmul.bf16.gmra.mxu0 %v5818
          %v5973 = vpop.f32.mrf.mxu0
          %v5974 = vadd.f32 %v5885, %v5973
          %v5975 = vpop.f32.mrf.mxu0
          %v5976 = vadd.f32 %v5887, %v5975
          %5977 = vmatmul.bf16.gmra.mxu0 %v5821
          %v5978 = vpop.f32.mrf.mxu0
          %v5979 = vadd.f32 %v5890, %v5978
          %v5980 = vpop.f32.mrf.mxu0
          %v5981 = vadd.f32 %v5892, %v5980
          %5982 = vmatmul.bf16.gmra.mxu0 %v5824
          %v5983 = vpop.f32.mrf.mxu0
          %v5984 = vadd.f32 %v5895, %v5983
          %v5985 = vpop.f32.mrf.mxu0
          %v5986 = vadd.f32 %v5897, %v5985
          %5987 = vmatmul.bf16.gmra.mxu0 %v5827
          %v5988 = vpop.f32.mrf.mxu0
          %v5989 = vadd.f32 %v5900, %v5988
          %v5990 = vpop.f32.mrf.mxu0
          %v5991 = vadd.f32 %v5902, %v5990
          %5992 = vmatmul.bf16.gmra.mxu0 %v5830
          %v5993 = vpop.f32.mrf.mxu0
          %v5994 = vadd.f32 %v5905, %v5993
          %v5995 = vpop.f32.mrf.mxu0
          %v5996 = vadd.f32 %v5907, %v5995
          %5997 = vmatmul.bf16.gmra.mxu0 %v5833
          %v5998 = vpop.f32.mrf.mxu0
          %v5999 = vadd.f32 %v5910, %v5998
          %v6000 = vpop.f32.mrf.mxu0
          %v6001 = vadd.f32 %v5912, %v6000
          %6002 = vmatmul.bf16.gmra.mxu0 %v5836
          %v6003 = vpop.f32.mrf.mxu0
          %v6004 = vadd.f32 %v5915, %v6003
          %v6005 = vpop.f32.mrf.mxu0
          %v6006 = vadd.f32 %v5917, %v6005
          %6007 = vmatmul.bf16.gmra.mxu0 %v5839
          %v6008 = vpop.f32.mrf.mxu0
          %v6009 = vadd.f32 %v5920, %v6008
          %v6010 = vpop.f32.mrf.mxu0
          %v6011 = vadd.f32 %v5922, %v6010
          %6012 = vmatmul.bf16.gmra.mxu0 %v5842
          %v6013 = vpop.f32.mrf.mxu0
          %v6014 = vadd.f32 %v5925, %v6013
          %v6015 = vpop.f32.mrf.mxu0
          %v6016 = vadd.f32 %v5927, %v6015
          %6017 = vmatmul.bf16.gmra.mxu0 %v5845
          %v6018 = vpop.f32.mrf.mxu0
          %v6019 = vadd.f32 %v5930, %v6018
          %v6020 = vpop.f32.mrf.mxu0
          %v6021 = vadd.f32 %v5932, %v6020
          %6022 = vmatmul.bf16.gmra.mxu0 %v5848
          %v6023 = vpop.f32.mrf.mxu0
          %v6024 = vadd.f32 %v5935, %v6023
          %v6025 = vpop.f32.mrf.mxu0
          %v6026 = vadd.f32 %v5937, %v6025
          %6027 = vdwg.mxu0
          %v6028 = vadd.f32 %v5447, %v5949
          %v6029 = vadd.f32 %v5449, %v5951
          %v6030 = vadd.f32 %v5452, %v5954
          %v6031 = vadd.f32 %v5454, %v5956
          %v6032 = vadd.f32 %v5457, %v5959
          %v6033 = vadd.f32 %v5459, %v5961
          %v6034 = vadd.f32 %v5462, %v5964
          %v6035 = vadd.f32 %v5464, %v5966
          %v6036 = vadd.f32 %v5467, %v5969
          %v6037 = vadd.f32 %v5469, %v5971
          %v6038 = vadd.f32 %v5472, %v5974
          %v6039 = vadd.f32 %v5474, %v5976
          %v6040 = vadd.f32 %v5477, %v5979
          %v6041 = vadd.f32 %v5479, %v5981
          %v6042 = vadd.f32 %v5482, %v5984
          %v6043 = vadd.f32 %v5484, %v5986
          %v6044 = vadd.f32 %v5487, %v5989
          %v6045 = vadd.f32 %v5489, %v5991
          %v6046 = vadd.f32 %v5492, %v5994
          %v6047 = vadd.f32 %v5494, %v5996
          %v6048 = vadd.f32 %v5497, %v5999
          %v6049 = vadd.f32 %v5499, %v6001
          %v6050 = vadd.f32 %v5502, %v6004
          %v6051 = vadd.f32 %v5504, %v6006
          %v6052 = vadd.f32 %v5507, %v6009
          %v6053 = vadd.f32 %v5509, %v6011
          %v6054 = vadd.f32 %v5512, %v6014
          %v6055 = vadd.f32 %v5514, %v6016
          %v6056 = vadd.f32 %v5517, %v6019
          %v6057 = vadd.f32 %v5519, %v6021
          %v6058 = vadd.f32 %v5522, %v6024
          %v6059 = vadd.f32 %v5524, %v6026
          %s6060 = sld [smem:[#allocation6 + %s3723]]
          %vm6061 = vcmp.gt.f32.partialorder %v6028, 0.0
          %vm6062 = vcmp.gt.f32.partialorder %v6029, 0.0
          %vm6063 = vcmp.gt.f32.partialorder %v6030, 0.0
          %vm6064 = vcmp.gt.f32.partialorder %v6031, 0.0
          %vm6065 = vcmp.gt.f32.partialorder %v6032, 0.0
          %vm6066 = vcmp.gt.f32.partialorder %v6033, 0.0
          %vm6067 = vcmp.gt.f32.partialorder %v6034, 0.0
          %vm6068 = vcmp.gt.f32.partialorder %v6035, 0.0
          %vm6069 = vcmp.gt.f32.partialorder %v6036, 0.0
          %vm6070 = vcmp.gt.f32.partialorder %v6037, 0.0
          %vm6071 = vcmp.gt.f32.partialorder %v6038, 0.0
          %vm6072 = vcmp.gt.f32.partialorder %v6039, 0.0
          %vm6073 = vcmp.gt.f32.partialorder %v6040, 0.0
          %vm6074 = vcmp.gt.f32.partialorder %v6041, 0.0
          %vm6075 = vcmp.gt.f32.partialorder %v6042, 0.0
          %vm6076 = vcmp.gt.f32.partialorder %v6043, 0.0
          %vm6077 = vcmp.gt.f32.partialorder %v6044, 0.0
          %vm6078 = vcmp.gt.f32.partialorder %v6045, 0.0
          %vm6079 = vcmp.gt.f32.partialorder %v6046, 0.0
          %vm6080 = vcmp.gt.f32.partialorder %v6047, 0.0
          %vm6081 = vcmp.gt.f32.partialorder %v6048, 0.0
          %vm6082 = vcmp.gt.f32.partialorder %v6049, 0.0
          %vm6083 = vcmp.gt.f32.partialorder %v6050, 0.0
          %vm6084 = vcmp.gt.f32.partialorder %v6051, 0.0
          %vm6085 = vcmp.gt.f32.partialorder %v6052, 0.0
          %vm6086 = vcmp.gt.f32.partialorder %v6053, 0.0
          %vm6087 = vcmp.gt.f32.partialorder %v6054, 0.0
          %vm6088 = vcmp.gt.f32.partialorder %v6055, 0.0
          %vm6089 = vcmp.gt.f32.partialorder %v6056, 0.0
          %vm6090 = vcmp.gt.f32.partialorder %v6057, 0.0
          %vm6091 = vcmp.gt.f32.partialorder %v6058, 0.0
          %vm6092 = vcmp.gt.f32.partialorder %v6059, 0.0
          %v6093 = vstv %s6060
          %v6094 = vmul.f32 %v6093, %v6028
          %v6095 = vmul.f32 %v6093, %v6029
          %v6096 = vmul.f32 %v6093, %v6030
          %v6097 = vmul.f32 %v6093, %v6031
          %v6098 = vmul.f32 %v6093, %v6032
          %v6099 = vmul.f32 %v6093, %v6033
          %v6100 = vmul.f32 %v6093, %v6034
          %v6101 = vmul.f32 %v6093, %v6035
          %v6102 = vmul.f32 %v6093, %v6036
          %v6103 = vmul.f32 %v6093, %v6037
          %v6104 = vmul.f32 %v6093, %v6038
          %v6105 = vmul.f32 %v6093, %v6039
          %v6106 = vmul.f32 %v6093, %v6040
          %v6107 = vmul.f32 %v6093, %v6041
          %v6108 = vmul.f32 %v6093, %v6042
          %v6109 = vmul.f32 %v6093, %v6043
          %v6110 = vmul.f32 %v6093, %v6044
          %v6111 = vmul.f32 %v6093, %v6045
          %v6112 = vmul.f32 %v6093, %v6046
          %v6113 = vmul.f32 %v6093, %v6047
          %v6114 = vmul.f32 %v6093, %v6048
          %v6115 = vmul.f32 %v6093, %v6049
          %v6116 = vmul.f32 %v6093, %v6050
          %v6117 = vmul.f32 %v6093, %v6051
          %v6118 = vmul.f32 %v6093, %v6052
          %v6119 = vmul.f32 %v6093, %v6053
          %v6120 = vmul.f32 %v6093, %v6054
          %v6121 = vmul.f32 %v6093, %v6055
          %v6122 = vmul.f32 %v6093, %v6056
          %v6123 = vmul.f32 %v6093, %v6057
          %v6124 = vmul.f32 %v6093, %v6058
          %v6125 = vmul.f32 %v6093, %v6059
          %v6126 = vsel %vm6061, %v6028, %v6094
          %v6127 = vsel %vm6062, %v6029, %v6095
          %v6128 = vsel %vm6063, %v6030, %v6096
          %v6129 = vsel %vm6064, %v6031, %v6097
          %v6130 = vsel %vm6065, %v6032, %v6098
          %v6131 = vsel %vm6066, %v6033, %v6099
          %v6132 = vsel %vm6067, %v6034, %v6100
          %v6133 = vsel %vm6068, %v6035, %v6101
          %v6134 = vsel %vm6069, %v6036, %v6102
          %v6135 = vsel %vm6070, %v6037, %v6103
          %v6136 = vsel %vm6071, %v6038, %v6104
          %v6137 = vsel %vm6072, %v6039, %v6105
          %v6138 = vsel %vm6073, %v6040, %v6106
          %v6139 = vsel %vm6074, %v6041, %v6107
          %v6140 = vsel %vm6075, %v6042, %v6108
          %v6141 = vsel %vm6076, %v6043, %v6109
          %v6142 = vsel %vm6077, %v6044, %v6110
          %v6143 = vsel %vm6078, %v6045, %v6111
          %v6144 = vsel %vm6079, %v6046, %v6112
          %v6145 = vsel %vm6080, %v6047, %v6113
          %v6146 = vsel %vm6081, %v6048, %v6114
          %v6147 = vsel %vm6082, %v6049, %v6115
          %v6148 = vsel %vm6083, %v6050, %v6116
          %v6149 = vsel %vm6084, %v6051, %v6117
          %v6150 = vsel %vm6085, %v6052, %v6118
          %v6151 = vsel %vm6086, %v6053, %v6119
          %v6152 = vsel %vm6087, %v6054, %v6120
          %v6153 = vsel %vm6088, %v6055, %v6121
          %v6154 = vsel %vm6089, %v6056, %v6122
          %v6155 = vsel %vm6090, %v6057, %v6123
          %v6156 = vsel %vm6091, %v6058, %v6124
          %v6157 = vsel %vm6092, %v6059, %v6125
          %v6158 = vld [vmem:[#allocation5] sm:$0xff]
          %v6159 = vld [vmem:[#allocation5 + $0x8] sm:$0xff]
          %v6160 = vld [vmem:[#allocation5 + $0x10] sm:$0xff]
          %v6161 = vld [vmem:[#allocation5 + $0x18] sm:$0xff]
          %v6162 = vld [vmem:[#allocation5 + $0x20] sm:$0xff]
          %v6163 = vld [vmem:[#allocation5 + $0x28] sm:$0xff]
          %v6164 = vld [vmem:[#allocation5 + $0x30] sm:$0xff]
          %v6165 = vld [vmem:[#allocation5 + $0x38] sm:$0xff]
          %v6166 = vld [vmem:[#allocation5 + $0x40] sm:$0xff]
          %v6167 = vld [vmem:[#allocation5 + $0x48] sm:$0xff]
          %v6168 = vld [vmem:[#allocation5 + $0x50] sm:$0xff]
          %v6169 = vld [vmem:[#allocation5 + $0x58] sm:$0xff]
          %v6170 = vld [vmem:[#allocation5 + $0x60] sm:$0xff]
          %v6171 = vld [vmem:[#allocation5 + $0x68] sm:$0xff]
          %v6172 = vld [vmem:[#allocation5 + $0x70] sm:$0xff]
          %v6173 = vld [vmem:[#allocation5 + $0x78] sm:$0xff]
          %v6174 = vld [vmem:[#allocation5 + $0x80] sm:$0xff]
          %v6175 = vld [vmem:[#allocation5 + $0x88] sm:$0xff]
          %v6176 = vld [vmem:[#allocation5 + $0x90] sm:$0xff]
          %v6177 = vld [vmem:[#allocation5 + $0x98] sm:$0xff]
          %v6178 = vld [vmem:[#allocation5 + $0xa0] sm:$0xff]
          %v6179 = vld [vmem:[#allocation5 + $0xa8] sm:$0xff]
          %v6180 = vld [vmem:[#allocation5 + $0xb0] sm:$0xff]
          %v6181 = vld [vmem:[#allocation5 + $0xb8] sm:$0xff]
          %v6182 = vld [vmem:[#allocation5 + $0xc0] sm:$0xff]
          %v6183 = vld [vmem:[#allocation5 + $0xc8] sm:$0xff]
          %v6184 = vld [vmem:[#allocation5 + $0xd0] sm:$0xff]
          %v6185 = vld [vmem:[#allocation5 + $0xd8] sm:$0xff]
          %v6186 = vld [vmem:[#allocation5 + $0xe0] sm:$0xff]
          %v6187 = vld [vmem:[#allocation5 + $0xe8] sm:$0xff]
          %v6188 = vld [vmem:[#allocation5 + $0xf0] sm:$0xff]
          %v6189 = vld [vmem:[#allocation5 + $0xf8] sm:$0xff]
          %v6190 = vadd.f32 %v6126, %v6158
          %v6191 = vadd.f32 %v6127, %v6159
          %v6192 = vadd.f32 %v6128, %v6160
          %v6193 = vadd.f32 %v6129, %v6161
          %v6194 = vadd.f32 %v6130, %v6162
          %v6195 = vadd.f32 %v6131, %v6163
          %v6196 = vadd.f32 %v6132, %v6164
          %v6197 = vadd.f32 %v6133, %v6165
          %v6198 = vadd.f32 %v6134, %v6166
          %v6199 = vadd.f32 %v6135, %v6167
          %v6200 = vadd.f32 %v6136, %v6168
          %v6201 = vadd.f32 %v6137, %v6169
          %v6202 = vadd.f32 %v6138, %v6170
          %v6203 = vadd.f32 %v6139, %v6171
          %v6204 = vadd.f32 %v6140, %v6172
          %v6205 = vadd.f32 %v6141, %v6173
          %v6206 = vadd.f32 %v6142, %v6174
          %v6207 = vadd.f32 %v6143, %v6175
          %v6208 = vadd.f32 %v6144, %v6176
          %v6209 = vadd.f32 %v6145, %v6177
          %v6210 = vadd.f32 %v6146, %v6178
          %v6211 = vadd.f32 %v6147, %v6179
          %v6212 = vadd.f32 %v6148, %v6180
          %v6213 = vadd.f32 %v6149, %v6181
          %v6214 = vadd.f32 %v6150, %v6182
          %v6215 = vadd.f32 %v6151, %v6183
          %v6216 = vadd.f32 %v6152, %v6184
          %v6217 = vadd.f32 %v6153, %v6185
          %v6218 = vadd.f32 %v6154, %v6186
          %v6219 = vadd.f32 %v6155, %v6187
          %v6220 = vadd.f32 %v6156, %v6188
          %v6221 = vadd.f32 %v6157, %v6189
          %v6222 = vpack.c.bf16 %v6190, %v6190
          %v6223 = vpack.c.bf16 %v6191, %v6191
          %v6224 = vpack.c.bf16 %v6192, %v6192
          %v6225 = vpack.c.bf16 %v6193, %v6193
          %v6226 = vpack.c.bf16 %v6194, %v6194
          %v6227 = vpack.c.bf16 %v6195, %v6195
          %v6228 = vpack.c.bf16 %v6196, %v6196
          %v6229 = vpack.c.bf16 %v6197, %v6197
          %v6230 = vpack.c.bf16 %v6198, %v6198
          %v6231 = vpack.c.bf16 %v6199, %v6199
          %v6232 = vpack.c.bf16 %v6200, %v6200
          %v6233 = vpack.c.bf16 %v6201, %v6201
          %v6234 = vpack.c.bf16 %v6202, %v6202
          %v6235 = vpack.c.bf16 %v6203, %v6203
          %v6236 = vpack.c.bf16 %v6204, %v6204
          %v6237 = vpack.c.bf16 %v6205, %v6205
          %v6238 = vpack.c.bf16 %v6206, %v6206
          %v6239 = vpack.c.bf16 %v6207, %v6207
          %v6240 = vpack.c.bf16 %v6208, %v6208
          %v6241 = vpack.c.bf16 %v6209, %v6209
          %v6242 = vpack.c.bf16 %v6210, %v6210
          %v6243 = vpack.c.bf16 %v6211, %v6211
          %v6244 = vpack.c.bf16 %v6212, %v6212
          %v6245 = vpack.c.bf16 %v6213, %v6213
          %v6246 = vpack.c.bf16 %v6214, %v6214
          %v6247 = vpack.c.bf16 %v6215, %v6215
          %v6248 = vpack.c.bf16 %v6216, %v6216
          %v6249 = vpack.c.bf16 %v6217, %v6217
          %v6250 = vpack.c.bf16 %v6218, %v6218
          %v6251 = vpack.c.bf16 %v6219, %v6219
          %v6252 = vpack.c.bf16 %v6220, %v6220
          %v6253 = vpack.c.bf16 %v6221, %v6221
          %v6255 = vshrl.u32 %v6222, 16
          %v6257 = vrot.slane %v6255, 7
          %v6258 = vshll.u32 %v6222, 16
          %v6260 = vor.u32 %v6257, %v6258
          %v6261 = vrot.slane %v6257, 4
          %v6263 = vshrl.u32 %v6223, 16
          %v6265 = vrot.slane %v6263, 7
          %v6266 = vshll.u32 %v6223, 16
          %v6268 = vor.u32 %v6265, %v6266
          %v6269 = vsel %vm372, %v6261, %v6268
          %v6270 = vrot.slane %v6265, 4
          %v6272 = vshrl.u32 %v6224, 16
          %v6274 = vrot.slane %v6272, 7
          %v6275 = vshll.u32 %v6224, 16
          %v6277 = vor.u32 %v6274, %v6275
          %v6278 = vrot.slane %v6274, 4
          %v6280 = vshrl.u32 %v6225, 16
          %v6282 = vrot.slane %v6280, 7
          %v6283 = vshll.u32 %v6225, 16
          %v6285 = vor.u32 %v6282, %v6283
          %v6286 = vsel %vm372, %v6278, %v6285
          %v6287 = vrot.slane %v6282, 4
          %v6289 = vshrl.u32 %v6226, 16
          %v6291 = vrot.slane %v6289, 7
          %v6292 = vshll.u32 %v6226, 16
          %v6294 = vor.u32 %v6291, %v6292
          %v6295 = vrot.slane %v6291, 4
          %v6297 = vshrl.u32 %v6227, 16
          %v6299 = vrot.slane %v6297, 7
          %v6300 = vshll.u32 %v6227, 16
          %v6302 = vor.u32 %v6299, %v6300
          %v6303 = vsel %vm372, %v6295, %v6302
          %v6304 = vrot.slane %v6299, 4
          %v6306 = vshrl.u32 %v6228, 16
          %v6308 = vrot.slane %v6306, 7
          %v6309 = vshll.u32 %v6228, 16
          %v6311 = vor.u32 %v6308, %v6309
          %v6312 = vrot.slane %v6308, 4
          %v6314 = vshrl.u32 %v6229, 16
          %v6316 = vrot.slane %v6314, 7
          %v6317 = vshll.u32 %v6229, 16
          %v6319 = vor.u32 %v6316, %v6317
          %v6320 = vsel %vm372, %v6312, %v6319
          %v6321 = vrot.slane %v6316, 4
          %v6323 = vshrl.u32 %v6230, 16
          %v6325 = vrot.slane %v6323, 7
          %v6326 = vshll.u32 %v6230, 16
          %v6328 = vor.u32 %v6325, %v6326
          %v6329 = vrot.slane %v6325, 4
          %v6331 = vshrl.u32 %v6231, 16
          %v6333 = vrot.slane %v6331, 7
          %v6334 = vshll.u32 %v6231, 16
          %v6336 = vor.u32 %v6333, %v6334
          %v6337 = vsel %vm372, %v6329, %v6336
          %v6338 = vrot.slane %v6333, 4
          %v6340 = vshrl.u32 %v6232, 16
          %v6342 = vrot.slane %v6340, 7
          %v6343 = vshll.u32 %v6232, 16
          %v6345 = vor.u32 %v6342, %v6343
          %v6346 = vrot.slane %v6342, 4
          %v6348 = vshrl.u32 %v6233, 16
          %v6350 = vrot.slane %v6348, 7
          %v6351 = vshll.u32 %v6233, 16
          %v6353 = vor.u32 %v6350, %v6351
          %v6354 = vsel %vm372, %v6346, %v6353
          %v6355 = vrot.slane %v6350, 4
          %v6357 = vshrl.u32 %v6234, 16
          %v6359 = vrot.slane %v6357, 7
          %v6360 = vshll.u32 %v6234, 16
          %v6362 = vor.u32 %v6359, %v6360
          %v6363 = vrot.slane %v6359, 4
          %v6365 = vshrl.u32 %v6235, 16
          %v6367 = vrot.slane %v6365, 7
          %v6368 = vshll.u32 %v6235, 16
          %v6370 = vor.u32 %v6367, %v6368
          %v6371 = vsel %vm372, %v6363, %v6370
          %v6372 = vrot.slane %v6367, 4
          %v6374 = vshrl.u32 %v6236, 16
          %v6376 = vrot.slane %v6374, 7
          %v6377 = vshll.u32 %v6236, 16
          %v6379 = vor.u32 %v6376, %v6377
          %v6380 = vrot.slane %v6376, 4
          %v6382 = vshrl.u32 %v6237, 16
          %v6384 = vrot.slane %v6382, 7
          %v6385 = vshll.u32 %v6237, 16
          %v6387 = vor.u32 %v6384, %v6385
          %v6388 = vsel %vm372, %v6380, %v6387
          %v6389 = vrot.slane %v6384, 4
          %v6391 = vshrl.u32 %v6238, 16
          %v6393 = vrot.slane %v6391, 7
          %v6394 = vshll.u32 %v6238, 16
          %v6396 = vor.u32 %v6393, %v6394
          %v6397 = vrot.slane %v6393, 4
          %v6399 = vshrl.u32 %v6239, 16
          %v6401 = vrot.slane %v6399, 7
          %v6402 = vshll.u32 %v6239, 16
          %v6404 = vor.u32 %v6401, %v6402
          %v6405 = vsel %vm372, %v6397, %v6404
          %v6406 = vrot.slane %v6401, 4
          %v6408 = vshrl.u32 %v6240, 16
          %v6410 = vrot.slane %v6408, 7
          %v6411 = vshll.u32 %v6240, 16
          %v6413 = vor.u32 %v6410, %v6411
          %v6414 = vrot.slane %v6410, 4
          %v6416 = vshrl.u32 %v6241, 16
          %v6418 = vrot.slane %v6416, 7
          %v6419 = vshll.u32 %v6241, 16
          %v6421 = vor.u32 %v6418, %v6419
          %v6422 = vsel %vm372, %v6414, %v6421
          %v6423 = vrot.slane %v6418, 4
          %v6425 = vshrl.u32 %v6242, 16
          %v6427 = vrot.slane %v6425, 7
          %v6428 = vshll.u32 %v6242, 16
          %v6430 = vor.u32 %v6427, %v6428
          %v6431 = vrot.slane %v6427, 4
          %v6433 = vshrl.u32 %v6243, 16
          %v6435 = vrot.slane %v6433, 7
          %v6436 = vshll.u32 %v6243, 16
          %v6438 = vor.u32 %v6435, %v6436
          %v6439 = vsel %vm372, %v6431, %v6438
          %v6440 = vrot.slane %v6435, 4
          %v6442 = vshrl.u32 %v6244, 16
          %v6444 = vrot.slane %v6442, 7
          %v6445 = vshll.u32 %v6244, 16
          %v6447 = vor.u32 %v6444, %v6445
          %v6448 = vrot.slane %v6444, 4
          %v6450 = vshrl.u32 %v6245, 16
          %v6452 = vrot.slane %v6450, 7
          %v6453 = vshll.u32 %v6245, 16
          %v6455 = vor.u32 %v6452, %v6453
          %v6456 = vsel %vm372, %v6448, %v6455
          %v6457 = vrot.slane %v6452, 4
          %v6459 = vshrl.u32 %v6246, 16
          %v6461 = vrot.slane %v6459, 7
          %v6462 = vshll.u32 %v6246, 16
          %v6464 = vor.u32 %v6461, %v6462
          %v6465 = vrot.slane %v6461, 4
          %v6467 = vshrl.u32 %v6247, 16
          %v6469 = vrot.slane %v6467, 7
          %v6470 = vshll.u32 %v6247, 16
          %v6472 = vor.u32 %v6469, %v6470
          %v6473 = vsel %vm372, %v6465, %v6472
          %v6474 = vrot.slane %v6469, 4
          %v6476 = vshrl.u32 %v6248, 16
          %v6478 = vrot.slane %v6476, 7
          %v6479 = vshll.u32 %v6248, 16
          %v6481 = vor.u32 %v6478, %v6479
          %v6482 = vrot.slane %v6478, 4
          %v6484 = vshrl.u32 %v6249, 16
          %v6486 = vrot.slane %v6484, 7
          %v6487 = vshll.u32 %v6249, 16
          %v6489 = vor.u32 %v6486, %v6487
          %v6490 = vsel %vm372, %v6482, %v6489
          %v6491 = vrot.slane %v6486, 4
          %v6493 = vshrl.u32 %v6250, 16
          %v6495 = vrot.slane %v6493, 7
          %v6496 = vshll.u32 %v6250, 16
          %v6498 = vor.u32 %v6495, %v6496
          %v6499 = vrot.slane %v6495, 4
          %v6501 = vshrl.u32 %v6251, 16
          %v6503 = vrot.slane %v6501, 7
          %v6504 = vshll.u32 %v6251, 16
          %v6506 = vor.u32 %v6503, %v6504
          %v6507 = vsel %vm372, %v6499, %v6506
          %v6508 = vrot.slane %v6503, 4
          %v6510 = vshrl.u32 %v6252, 16
          %v6512 = vrot.slane %v6510, 7
          %v6513 = vshll.u32 %v6252, 16
          %v6515 = vor.u32 %v6512, %v6513
          %v6516 = vrot.slane %v6512, 4
          %v6518 = vshrl.u32 %v6253, 16
          %v6520 = vrot.slane %v6518, 7
          %v6521 = vshll.u32 %v6253, 16
          %v6523 = vor.u32 %v6520, %v6521
          %v6524 = vsel %vm372, %v6516, %v6523
          %v6525 = vrot.slane %v6520, 4
          %v6574 = vld [vmem:[%s693] sm:$0xf]
          %v6575 = vsel %vm696, %v6260, %v6574
          %6576 = vst [vmem:[%s693] sm:$0xf] %v6575
          %6577 = vst.msk [vmem:[%s693 + $0x4] sm:$0xf] %vm186, %v6269
          %v6578 = vld [vmem:[%s693 + $0x8] sm:$0x1]
          %v6579 = vsel %vm702, %v6270, %v6578
          %6580 = vst [vmem:[%s693 + $0x8] sm:$0x1] %v6579
          %v6581 = vld [vmem:[%s693 + $0xc] sm:$0xf]
          %v6582 = vsel %vm696, %v6277, %v6581
          %6583 = vst [vmem:[%s693 + $0xc] sm:$0xf] %v6582
          %6584 = vst.msk [vmem:[%s693 + $0x10] sm:$0xf] %vm186, %v6286
          %v6585 = vld [vmem:[%s693 + $0x14] sm:$0x1]
          %v6586 = vsel %vm702, %v6287, %v6585
          %6587 = vst [vmem:[%s693 + $0x14] sm:$0x1] %v6586
          %v6588 = vld [vmem:[%s693 + $0x18] sm:$0xf]
          %v6589 = vsel %vm696, %v6294, %v6588
          %6590 = vst [vmem:[%s693 + $0x18] sm:$0xf] %v6589
          %6591 = vst.msk [vmem:[%s693 + $0x1c] sm:$0xf] %vm186, %v6303
          %v6592 = vld [vmem:[%s693 + $0x20] sm:$0x1]
          %v6593 = vsel %vm702, %v6304, %v6592
          %6594 = vst [vmem:[%s693 + $0x20] sm:$0x1] %v6593
          %v6595 = vld [vmem:[%s693 + $0x24] sm:$0xf]
          %v6596 = vsel %vm696, %v6311, %v6595
          %6597 = vst [vmem:[%s693 + $0x24] sm:$0xf] %v6596
          %6598 = vst.msk [vmem:[%s693 + $0x28] sm:$0xf] %vm186, %v6320
          %v6599 = vld [vmem:[%s693 + $0x2c] sm:$0x1]
          %v6600 = vsel %vm702, %v6321, %v6599
          %6601 = vst [vmem:[%s693 + $0x2c] sm:$0x1] %v6600
          %v6602 = vld [vmem:[%s693 + $0x30] sm:$0xf]
          %v6603 = vsel %vm696, %v6328, %v6602
          %6604 = vst [vmem:[%s693 + $0x30] sm:$0xf] %v6603
          %6605 = vst.msk [vmem:[%s693 + $0x34] sm:$0xf] %vm186, %v6337
          %v6606 = vld [vmem:[%s693 + $0x38] sm:$0x1]
          %v6607 = vsel %vm702, %v6338, %v6606
          %6608 = vst [vmem:[%s693 + $0x38] sm:$0x1] %v6607
          %v6609 = vld [vmem:[%s693 + $0x3c] sm:$0xf]
          %v6610 = vsel %vm696, %v6345, %v6609
          %6611 = vst [vmem:[%s693 + $0x3c] sm:$0xf] %v6610
          %6612 = vst.msk [vmem:[%s693 + $0x40] sm:$0xf] %vm186, %v6354
          %v6613 = vld [vmem:[%s693 + $0x44] sm:$0x1]
          %v6614 = vsel %vm702, %v6355, %v6613
          %6615 = vst [vmem:[%s693 + $0x44] sm:$0x1] %v6614
          %v6616 = vld [vmem:[%s693 + $0x48] sm:$0xf]
          %v6617 = vsel %vm696, %v6362, %v6616
          %6618 = vst [vmem:[%s693 + $0x48] sm:$0xf] %v6617
          %6619 = vst.msk [vmem:[%s693 + $0x4c] sm:$0xf] %vm186, %v6371
          %v6620 = vld [vmem:[%s693 + $0x50] sm:$0x1]
          %v6621 = vsel %vm702, %v6372, %v6620
          %6622 = vst [vmem:[%s693 + $0x50] sm:$0x1] %v6621
          %v6623 = vld [vmem:[%s693 + $0x54] sm:$0xf]
          %v6624 = vsel %vm696, %v6379, %v6623
          %6625 = vst [vmem:[%s693 + $0x54] sm:$0xf] %v6624
          %6626 = vst.msk [vmem:[%s693 + $0x58] sm:$0xf] %vm186, %v6388
          %v6627 = vld [vmem:[%s693 + $0x5c] sm:$0x1]
          %v6628 = vsel %vm702, %v6389, %v6627
          %6629 = vst [vmem:[%s693 + $0x5c] sm:$0x1] %v6628
          %v6630 = vld [vmem:[%s693 + $0x60] sm:$0xf]
          %v6631 = vsel %vm696, %v6396, %v6630
          %6632 = vst [vmem:[%s693 + $0x60] sm:$0xf] %v6631
          %6633 = vst.msk [vmem:[%s693 + $0x64] sm:$0xf] %vm186, %v6405
          %v6634 = vld [vmem:[%s693 + $0x68] sm:$0x1]
          %v6635 = vsel %vm702, %v6406, %v6634
          %6636 = vst [vmem:[%s693 + $0x68] sm:$0x1] %v6635
          %v6637 = vld [vmem:[%s693 + $0x6c] sm:$0xf]
          %v6638 = vsel %vm696, %v6413, %v6637
          %6639 = vst [vmem:[%s693 + $0x6c] sm:$0xf] %v6638
          %6640 = vst.msk [vmem:[%s693 + $0x70] sm:$0xf] %vm186, %v6422
          %v6641 = vld [vmem:[%s693 + $0x74] sm:$0x1]
          %v6642 = vsel %vm702, %v6423, %v6641
          %6643 = vst [vmem:[%s693 + $0x74] sm:$0x1] %v6642
          %v6644 = vld [vmem:[%s693 + $0x78] sm:$0xf]
          %v6645 = vsel %vm696, %v6430, %v6644
          %6646 = vst [vmem:[%s693 + $0x78] sm:$0xf] %v6645
          %6647 = vst.msk [vmem:[%s693 + $0x7c] sm:$0xf] %vm186, %v6439
          %v6648 = vld [vmem:[%s693 + $0x80] sm:$0x1]
          %v6649 = vsel %vm702, %v6440, %v6648
          %6650 = vst [vmem:[%s693 + $0x80] sm:$0x1] %v6649
          %v6651 = vld [vmem:[%s693 + $0x84] sm:$0xf]
          %v6652 = vsel %vm696, %v6447, %v6651
          %6653 = vst [vmem:[%s693 + $0x84] sm:$0xf] %v6652
          %6654 = vst.msk [vmem:[%s693 + $0x88] sm:$0xf] %vm186, %v6456
          %v6655 = vld [vmem:[%s693 + $0x8c] sm:$0x1]
          %v6656 = vsel %vm702, %v6457, %v6655
          %6657 = vst [vmem:[%s693 + $0x8c] sm:$0x1] %v6656
          %v6658 = vld [vmem:[%s693 + $0x90] sm:$0xf]
          %v6659 = vsel %vm696, %v6464, %v6658
          %6660 = vst [vmem:[%s693 + $0x90] sm:$0xf] %v6659
          %6661 = vst.msk [vmem:[%s693 + $0x94] sm:$0xf] %vm186, %v6473
          %v6662 = vld [vmem:[%s693 + $0x98] sm:$0x1]
          %v6663 = vsel %vm702, %v6474, %v6662
          %6664 = vst [vmem:[%s693 + $0x98] sm:$0x1] %v6663
          %v6665 = vld [vmem:[%s693 + $0x9c] sm:$0xf]
          %v6666 = vsel %vm696, %v6481, %v6665
          %6667 = vst [vmem:[%s693 + $0x9c] sm:$0xf] %v6666
          %6668 = vst.msk [vmem:[%s693 + $0xa0] sm:$0xf] %vm186, %v6490
          %v6669 = vld [vmem:[%s693 + $0xa4] sm:$0x1]
          %v6670 = vsel %vm702, %v6491, %v6669
          %6671 = vst [vmem:[%s693 + $0xa4] sm:$0x1] %v6670
          %v6672 = vld [vmem:[%s693 + $0xa8] sm:$0xf]
          %v6673 = vsel %vm696, %v6498, %v6672
          %6674 = vst [vmem:[%s693 + $0xa8] sm:$0xf] %v6673
          %6675 = vst.msk [vmem:[%s693 + $0xac] sm:$0xf] %vm186, %v6507
          %v6676 = vld [vmem:[%s693 + $0xb0] sm:$0x1]
          %v6677 = vsel %vm702, %v6508, %v6676
          %6678 = vst [vmem:[%s693 + $0xb0] sm:$0x1] %v6677
          %v6679 = vld [vmem:[%s693 + $0xb4] sm:$0xf]
          %v6680 = vsel %vm696, %v6515, %v6679
          %6681 = vst [vmem:[%s693 + $0xb4] sm:$0xf] %v6680
          %6682 = vst.msk [vmem:[%s693 + $0xb8] sm:$0xf] %vm186, %v6524
          %v6683 = vld [vmem:[%s693 + $0xbc] sm:$0x1]
          %v6684 = vsel %vm702, %v6525, %v6683
          %6685 = vst [vmem:[%s693 + $0xbc] sm:$0x1] %v6684
          %6686 = vst.msk [vmem:[#allocation5] sm:$0xff] %vm273, %v6190
          %6687 = vst.msk [vmem:[#allocation5 + $0x8] sm:$0xff] %vm273, %v6191
          %6688 = vst.msk [vmem:[#allocation5 + $0x10] sm:$0xff] %vm273, %v6192
          %6689 = vst.msk [vmem:[#allocation5 + $0x18] sm:$0xff] %vm273, %v6193
          %6690 = vst.msk [vmem:[#allocation5 + $0x20] sm:$0xff] %vm273, %v6194
          %6691 = vst.msk [vmem:[#allocation5 + $0x28] sm:$0xff] %vm273, %v6195
          %6692 = vst.msk [vmem:[#allocation5 + $0x30] sm:$0xff] %vm273, %v6196
          %6693 = vst.msk [vmem:[#allocation5 + $0x38] sm:$0xff] %vm273, %v6197
          %6694 = vst.msk [vmem:[#allocation5 + $0x40] sm:$0xff] %vm273, %v6198
          %6695 = vst.msk [vmem:[#allocation5 + $0x48] sm:$0xff] %vm273, %v6199
          %6696 = vst.msk [vmem:[#allocation5 + $0x50] sm:$0xff] %vm273, %v6200
          %6697 = vst.msk [vmem:[#allocation5 + $0x58] sm:$0xff] %vm273, %v6201
          %6698 = vst.msk [vmem:[#allocation5 + $0x60] sm:$0xff] %vm273, %v6202
          %6699 = vst.msk [vmem:[#allocation5 + $0x68] sm:$0xff] %vm273, %v6203
          %6700 = vst.msk [vmem:[#allocation5 + $0x70] sm:$0xff] %vm273, %v6204
          %6701 = vst.msk [vmem:[#allocation5 + $0x78] sm:$0xff] %vm273, %v6205
          %6702 = vst.msk [vmem:[#allocation5 + $0x80] sm:$0xff] %vm273, %v6206
          %6703 = vst.msk [vmem:[#allocation5 + $0x88] sm:$0xff] %vm273, %v6207
          %6704 = vst.msk [vmem:[#allocation5 + $0x90] sm:$0xff] %vm273, %v6208
          %6705 = vst.msk [vmem:[#allocation5 + $0x98] sm:$0xff] %vm273, %v6209
          %6706 = vst.msk [vmem:[#allocation5 + $0xa0] sm:$0xff] %vm273, %v6210
          %6707 = vst.msk [vmem:[#allocation5 + $0xa8] sm:$0xff] %vm273, %v6211
          %6708 = vst.msk [vmem:[#allocation5 + $0xb0] sm:$0xff] %vm273, %v6212
          %6709 = vst.msk [vmem:[#allocation5 + $0xb8] sm:$0xff] %vm273, %v6213
          %6710 = vst.msk [vmem:[#allocation5 + $0xc0] sm:$0xff] %vm273, %v6214
          %6711 = vst.msk [vmem:[#allocation5 + $0xc8] sm:$0xff] %vm273, %v6215
          %6712 = vst.msk [vmem:[#allocation5 + $0xd0] sm:$0xff] %vm273, %v6216
          %6713 = vst.msk [vmem:[#allocation5 + $0xd8] sm:$0xff] %vm273, %v6217
          %6714 = vst.msk [vmem:[#allocation5 + $0xe0] sm:$0xff] %vm273, %v6218
          %6715 = vst.msk [vmem:[#allocation5 + $0xe8] sm:$0xff] %vm273, %v6219
          %6716 = vst.msk [vmem:[#allocation5 + $0xf0] sm:$0xff] %vm273, %v6220
          %6717 = vst.msk [vmem:[#allocation5 + $0xf8] sm:$0xff] %vm273, %v6221
        $region41: #{tpu_custom_call.1} parent=31 // loop_footer
          %s816 = sadd.s32 1, %s812
        $region42: #{tpu_custom_call.1} parent=31 // loop_footer_branch
          %811 = sbr.rel target = $region38
        $region43: #{tpu_custom_call.1} parent=31 // loop_exit
          _
        %v6718 = vld [vmem:[#allocation2] sm:$0xf]
        %v6719 = vld [vmem:[#allocation2 + $0x4] sm:$0xf]
        %v6720 = vld [vmem:[#allocation2 + $0xc] sm:$0xf]
        %v6721 = vld [vmem:[#allocation2 + $0x10] sm:$0xf]
        %v6722 = vld [vmem:[#allocation2 + $0x18] sm:$0xf]
        %v6723 = vld [vmem:[#allocation2 + $0x1c] sm:$0xf]
        %v6724 = vld [vmem:[#allocation2 + $0x24] sm:$0xf]
        %v6725 = vld [vmem:[#allocation2 + $0x28] sm:$0xf]
        %v6726 = vld [vmem:[#allocation2 + $0x30] sm:$0xf]
        %v6727 = vld [vmem:[#allocation2 + $0x34] sm:$0xf]
        %v6728 = vld [vmem:[#allocation2 + $0x3c] sm:$0xf]
        %v6729 = vld [vmem:[#allocation2 + $0x40] sm:$0xf]
        %v6730 = vld [vmem:[#allocation2 + $0x48] sm:$0xf]
        %v6731 = vld [vmem:[#allocation2 + $0x4c] sm:$0xf]
        %v6732 = vld [vmem:[#allocation2 + $0x54] sm:$0xf]
        %v6733 = vld [vmem:[#allocation2 + $0x58] sm:$0xf]
        %v6734 = vld [vmem:[#allocation2 + $0x60] sm:$0xf]
        %v6735 = vld [vmem:[#allocation2 + $0x64] sm:$0xf]
        %v6736 = vld [vmem:[#allocation2 + $0x6c] sm:$0xf]
        %v6737 = vld [vmem:[#allocation2 + $0x70] sm:$0xf]
        %v6738 = vld [vmem:[#allocation2 + $0x78] sm:$0xf]
        %v6739 = vld [vmem:[#allocation2 + $0x7c] sm:$0xf]
        %v6740 = vld [vmem:[#allocation2 + $0x84] sm:$0xf]
        %v6741 = vld [vmem:[#allocation2 + $0x88] sm:$0xf]
        %v6742 = vld [vmem:[#allocation2 + $0x90] sm:$0xf]
        %v6743 = vld [vmem:[#allocation2 + $0x94] sm:$0xf]
        %v6744 = vld [vmem:[#allocation2 + $0x9c] sm:$0xf]
        %v6745 = vld [vmem:[#allocation2 + $0xa0] sm:$0xf]
        %v6746 = vld [vmem:[#allocation2 + $0xa8] sm:$0xf]
        %v6747 = vld [vmem:[#allocation2 + $0xac] sm:$0xf]
        %v6748 = vld [vmem:[#allocation2 + $0xb4] sm:$0xf]
        %v6749 = vld [vmem:[#allocation2 + $0xb8] sm:$0xf]
        %v6750 = vld [vmem:[#allocation2 + $0xc0] sm:$0xf]
        %v6751 = vld [vmem:[#allocation2 + $0xc4] sm:$0xf]
        %v6752 = vld [vmem:[#allocation2 + $0xcc] sm:$0xf]
        %v6753 = vld [vmem:[#allocation2 + $0xd0] sm:$0xf]
        %6754 = vst.msk [vmem:[#allocation3] sm:$0xf] %vm186, %v6718
        %6755 = vst.msk [vmem:[#allocation3 + $0x8] sm:$0xf] %vm186, %v6719
        %6756 = vst.msk [vmem:[#allocation3 + $0x10] sm:$0xf] %vm186, %v6720
        %6757 = vst.msk [vmem:[#allocation3 + $0x18] sm:$0xf] %vm186, %v6721
        %6758 = vst.msk [vmem:[#allocation3 + $0x20] sm:$0xf] %vm186, %v6722
        %6759 = vst.msk [vmem:[#allocation3 + $0x28] sm:$0xf] %vm186, %v6723
        %6760 = vst.msk [vmem:[#allocation3 + $0x30] sm:$0xf] %vm186, %v6724
        %6761 = vst.msk [vmem:[#allocation3 + $0x38] sm:$0xf] %vm186, %v6725
        %6762 = vst.msk [vmem:[#allocation3 + $0x40] sm:$0xf] %vm186, %v6726
        %6763 = vst.msk [vmem:[#allocation3 + $0x48] sm:$0xf] %vm186, %v6727
        %6764 = vst.msk [vmem:[#allocation3 + $0x50] sm:$0xf] %vm186, %v6728
        %6765 = vst.msk [vmem:[#allocation3 + $0x58] sm:$0xf] %vm186, %v6729
        %6766 = vst.msk [vmem:[#allocation3 + $0x60] sm:$0xf] %vm186, %v6730
        %6767 = vst.msk [vmem:[#allocation3 + $0x68] sm:$0xf] %vm186, %v6731
        %6768 = vst.msk [vmem:[#allocation3 + $0x70] sm:$0xf] %vm186, %v6732
        %6769 = vst.msk [vmem:[#allocation3 + $0x78] sm:$0xf] %vm186, %v6733
        %6770 = vst.msk [vmem:[#allocation3 + $0x80] sm:$0xf] %vm186, %v6734
        %6771 = vst.msk [vmem:[#allocation3 + $0x88] sm:$0xf] %vm186, %v6735
        %6772 = vst.msk [vmem:[#allocation3 + $0x90] sm:$0xf] %vm186, %v6736
        %6773 = vst.msk [vmem:[#allocation3 + $0x98] sm:$0xf] %vm186, %v6737
        %6774 = vst.msk [vmem:[#allocation3 + $0xa0] sm:$0xf] %vm186, %v6738
        %6775 = vst.msk [vmem:[#allocation3 + $0xa8] sm:$0xf] %vm186, %v6739
        %6776 = vst.msk [vmem:[#allocation3 + $0xb0] sm:$0xf] %vm186, %v6740
        %6777 = vst.msk [vmem:[#allocation3 + $0xb8] sm:$0xf] %vm186, %v6741
        %6778 = vst.msk [vmem:[#allocation3 + $0xc0] sm:$0xf] %vm186, %v6742
        %6779 = vst.msk [vmem:[#allocation3 + $0xc8] sm:$0xf] %vm186, %v6743
        %6780 = vst.msk [vmem:[#allocation3 + $0xd0] sm:$0xf] %vm186, %v6744
        %6781 = vst.msk [vmem:[#allocation3 + $0xd8] sm:$0xf] %vm186, %v6745
        %6782 = vst.msk [vmem:[#allocation3 + $0xe0] sm:$0xf] %vm186, %v6746
        %6783 = vst.msk [vmem:[#allocation3 + $0xe8] sm:$0xf] %vm186, %v6747
        %6784 = vst.msk [vmem:[#allocation3 + $0xf0] sm:$0xf] %vm186, %v6748
        %6785 = vst.msk [vmem:[#allocation3 + $0xf8] sm:$0xf] %vm186, %v6749
        %6786 = vst.msk [vmem:[#allocation3 + $0x100] sm:$0xf] %vm186, %v6750
        %6787 = vst.msk [vmem:[#allocation3 + $0x108] sm:$0xf] %vm186, %v6751
        %6788 = vst.msk [vmem:[#allocation3 + $0x110] sm:$0xf] %vm186, %v6752
        %6789 = vst.msk [vmem:[#allocation3 + $0x118] sm:$0xf] %vm186, %v6753
        %v6790 = vld [vmem:[#allocation2] sm:$0xf]
        %v6791 = vld [vmem:[#allocation2 + $0x4] sm:$0xf]
        %v6792 = vld [vmem:[#allocation2 + $0x8] sm:$0x1]
        %v6793 = vld [vmem:[#allocation2 + $0xc] sm:$0xf]
        %v6794 = vld [vmem:[#allocation2 + $0x10] sm:$0xf]
        %v6795 = vld [vmem:[#allocation2 + $0x14] sm:$0x1]
        %v6796 = vld [vmem:[#allocation2 + $0x18] sm:$0xf]
        %v6797 = vld [vmem:[#allocation2 + $0x1c] sm:$0xf]
        %v6798 = vld [vmem:[#allocation2 + $0x20] sm:$0x1]
        %v6799 = vld [vmem:[#allocation2 + $0x24] sm:$0xf]
        %v6800 = vld [vmem:[#allocation2 + $0x28] sm:$0xf]
        %v6801 = vld [vmem:[#allocation2 + $0x2c] sm:$0x1]
        %v6802 = vld [vmem:[#allocation2 + $0x30] sm:$0xf]
        %v6803 = vld [vmem:[#allocation2 + $0x34] sm:$0xf]
        %v6804 = vld [vmem:[#allocation2 + $0x38] sm:$0x1]
        %v6805 = vld [vmem:[#allocation2 + $0x3c] sm:$0xf]
        %v6806 = vld [vmem:[#allocation2 + $0x40] sm:$0xf]
        %v6807 = vld [vmem:[#allocation2 + $0x44] sm:$0x1]
        %v6808 = vld [vmem:[#allocation2 + $0x48] sm:$0xf]
        %v6809 = vld [vmem:[#allocation2 + $0x4c] sm:$0xf]
        %v6810 = vld [vmem:[#allocation2 + $0x50] sm:$0x1]
        %v6811 = vld [vmem:[#allocation2 + $0x54] sm:$0xf]
        %v6812 = vld [vmem:[#allocation2 + $0x58] sm:$0xf]
        %v6813 = vld [vmem:[#allocation2 + $0x5c] sm:$0x1]
        %v6814 = vld [vmem:[#allocation2 + $0x60] sm:$0xf]
        %v6815 = vld [vmem:[#allocation2 + $0x64] sm:$0xf]
        %v6816 = vld [vmem:[#allocation2 + $0x68] sm:$0x1]
        %v6817 = vld [vmem:[#allocation2 + $0x6c] sm:$0xf]
        %v6818 = vld [vmem:[#allocation2 + $0x70] sm:$0xf]
        %v6819 = vld [vmem:[#allocation2 + $0x74] sm:$0x1]
        %v6820 = vld [vmem:[#allocation2 + $0x78] sm:$0xf]
        %v6821 = vld [vmem:[#allocation2 + $0x7c] sm:$0xf]
        %v6822 = vld [vmem:[#allocation2 + $0x80] sm:$0x1]
        %v6823 = vld [vmem:[#allocation2 + $0x84] sm:$0xf]
        %v6824 = vld [vmem:[#allocation2 + $0x88] sm:$0xf]
        %v6825 = vld [vmem:[#allocation2 + $0x8c] sm:$0x1]
        %v6826 = vld [vmem:[#allocation2 + $0x90] sm:$0xf]
        %v6827 = vld [vmem:[#allocation2 + $0x94] sm:$0xf]
        %v6828 = vld [vmem:[#allocation2 + $0x98] sm:$0x1]
        %v6829 = vld [vmem:[#allocation2 + $0x9c] sm:$0xf]
        %v6830 = vld [vmem:[#allocation2 + $0xa0] sm:$0xf]
        %v6831 = vld [vmem:[#allocation2 + $0xa4] sm:$0x1]
        %v6832 = vld [vmem:[#allocation2 + $0xa8] sm:$0xf]
        %v6833 = vld [vmem:[#allocation2 + $0xac] sm:$0xf]
        %v6834 = vld [vmem:[#allocation2 + $0xb0] sm:$0x1]
        %v6835 = vld [vmem:[#allocation2 + $0xb4] sm:$0xf]
        %v6836 = vld [vmem:[#allocation2 + $0xb8] sm:$0xf]
        %v6837 = vld [vmem:[#allocation2 + $0xbc] sm:$0x1]
        %v6838 = vld [vmem:[#allocation2 + $0xc0] sm:$0xf]
        %v6839 = vld [vmem:[#allocation2 + $0xc4] sm:$0xf]
        %v6840 = vld [vmem:[#allocation2 + $0xc8] sm:$0x1]
        %v6841 = vld [vmem:[#allocation2 + $0xcc] sm:$0xf]
        %v6842 = vld [vmem:[#allocation2 + $0xd0] sm:$0xf]
        %v6843 = vld [vmem:[#allocation2 + $0xd4] sm:$0x1]
        %vm6844 = vsmask.f32 3328
        %vm6845 = vsmask.f32 7440
        %vm6846 = vmor %vm6844, %vm6845
        %v6848 = vshrl.u32 %v6790, 16
        %v6850 = vrot.slane %v6848, 4
        %v6851 = vshll.u32 %v6790, 16
        %v6853 = vrot.slane %v6851, 5
        %v6854 = vor.u32 %v6850, %v6853
        %v6855 = vrot.slane %v6854, 4
        %v6857 = vshll.u32 %v6791, 16
        %v6859 = vrot.slane %v6857, 5
        %v6860 = vsel %vm6846, %v6855, %v6859
        %v6861 = vshrl.u32 %v6791, 16
        %v6863 = vrot.slane %v6861, 4
        %v6864 = vor.u32 %v6863, %v6859
        %v6865 = vrot.slane %v6864, 4
        %v6867 = vshll.u32 %v6792, 16
        %v6869 = vrot.slane %v6867, 5
        %v6870 = vsel %vm6846, %v6865, %v6869
        %v6872 = vshrl.u32 %v6793, 16
        %v6874 = vrot.slane %v6872, 4
        %v6875 = vshll.u32 %v6793, 16
        %v6877 = vrot.slane %v6875, 5
        %v6878 = vor.u32 %v6874, %v6877
        %v6879 = vrot.slane %v6878, 4
        %v6881 = vshll.u32 %v6794, 16
        %v6883 = vrot.slane %v6881, 5
        %v6884 = vsel %vm6846, %v6879, %v6883
        %v6885 = vshrl.u32 %v6794, 16
        %v6887 = vrot.slane %v6885, 4
        %v6888 = vor.u32 %v6887, %v6883
        %v6889 = vrot.slane %v6888, 4
        %v6891 = vshll.u32 %v6795, 16
        %v6893 = vrot.slane %v6891, 5
        %v6894 = vsel %vm6846, %v6889, %v6893
        %v6896 = vshrl.u32 %v6796, 16
        %v6898 = vrot.slane %v6896, 4
        %v6899 = vshll.u32 %v6796, 16
        %v6901 = vrot.slane %v6899, 5
        %v6902 = vor.u32 %v6898, %v6901
        %v6903 = vrot.slane %v6902, 4
        %v6905 = vshll.u32 %v6797, 16
        %v6907 = vrot.slane %v6905, 5
        %v6908 = vsel %vm6846, %v6903, %v6907
        %v6909 = vshrl.u32 %v6797, 16
        %v6911 = vrot.slane %v6909, 4
        %v6912 = vor.u32 %v6911, %v6907
        %v6913 = vrot.slane %v6912, 4
        %v6915 = vshll.u32 %v6798, 16
        %v6917 = vrot.slane %v6915, 5
        %v6918 = vsel %vm6846, %v6913, %v6917
        %v6920 = vshrl.u32 %v6799, 16
        %v6922 = vrot.slane %v6920, 4
        %v6923 = vshll.u32 %v6799, 16
        %v6925 = vrot.slane %v6923, 5
        %v6926 = vor.u32 %v6922, %v6925
        %v6927 = vrot.slane %v6926, 4
        %v6929 = vshll.u32 %v6800, 16
        %v6931 = vrot.slane %v6929, 5
        %v6932 = vsel %vm6846, %v6927, %v6931
        %v6933 = vshrl.u32 %v6800, 16
        %v6935 = vrot.slane %v6933, 4
        %v6936 = vor.u32 %v6935, %v6931
        %v6937 = vrot.slane %v6936, 4
        %v6939 = vshll.u32 %v6801, 16
        %v6941 = vrot.slane %v6939, 5
        %v6942 = vsel %vm6846, %v6937, %v6941
        %v6944 = vshrl.u32 %v6802, 16
        %v6946 = vrot.slane %v6944, 4
        %v6947 = vshll.u32 %v6802, 16
        %v6949 = vrot.slane %v6947, 5
        %v6950 = vor.u32 %v6946, %v6949
        %v6951 = vrot.slane %v6950, 4
        %v6953 = vshll.u32 %v6803, 16
        %v6955 = vrot.slane %v6953, 5
        %v6956 = vsel %vm6846, %v6951, %v6955
        %v6957 = vshrl.u32 %v6803, 16
        %v6959 = vrot.slane %v6957, 4
        %v6960 = vor.u32 %v6959, %v6955
        %v6961 = vrot.slane %v6960, 4
        %v6963 = vshll.u32 %v6804, 16
        %v6965 = vrot.slane %v6963, 5
        %v6966 = vsel %vm6846, %v6961, %v6965
        %v6968 = vshrl.u32 %v6805, 16
        %v6970 = vrot.slane %v6968, 4
        %v6971 = vshll.u32 %v6805, 16
        %v6973 = vrot.slane %v6971, 5
        %v6974 = vor.u32 %v6970, %v6973
        %v6975 = vrot.slane %v6974, 4
        %v6977 = vshll.u32 %v6806, 16
        %v6979 = vrot.slane %v6977, 5
        %v6980 = vsel %vm6846, %v6975, %v6979
        %v6981 = vshrl.u32 %v6806, 16
        %v6983 = vrot.slane %v6981, 4
        %v6984 = vor.u32 %v6983, %v6979
        %v6985 = vrot.slane %v6984, 4
        %v6987 = vshll.u32 %v6807, 16
        %v6989 = vrot.slane %v6987, 5
        %v6990 = vsel %vm6846, %v6985, %v6989
        %v6992 = vshrl.u32 %v6808, 16
        %v6994 = vrot.slane %v6992, 4
        %v6995 = vshll.u32 %v6808, 16
        %v6997 = vrot.slane %v6995, 5
        %v6998 = vor.u32 %v6994, %v6997
        %v6999 = vrot.slane %v6998, 4
        %v7001 = vshll.u32 %v6809, 16
        %v7003 = vrot.slane %v7001, 5
        %v7004 = vsel %vm6846, %v6999, %v7003
        %v7005 = vshrl.u32 %v6809, 16
        %v7007 = vrot.slane %v7005, 4
        %v7008 = vor.u32 %v7007, %v7003
        %v7009 = vrot.slane %v7008, 4
        %v7011 = vshll.u32 %v6810, 16
        %v7013 = vrot.slane %v7011, 5
        %v7014 = vsel %vm6846, %v7009, %v7013
        %v7016 = vshrl.u32 %v6811, 16
        %v7018 = vrot.slane %v7016, 4
        %v7019 = vshll.u32 %v6811, 16
        %v7021 = vrot.slane %v7019, 5
        %v7022 = vor.u32 %v7018, %v7021
        %v7023 = vrot.slane %v7022, 4
        %v7025 = vshll.u32 %v6812, 16
        %v7027 = vrot.slane %v7025, 5
        %v7028 = vsel %vm6846, %v7023, %v7027
        %v7029 = vshrl.u32 %v6812, 16
        %v7031 = vrot.slane %v7029, 4
        %v7032 = vor.u32 %v7031, %v7027
        %v7033 = vrot.slane %v7032, 4
        %v7035 = vshll.u32 %v6813, 16
        %v7037 = vrot.slane %v7035, 5
        %v7038 = vsel %vm6846, %v7033, %v7037
        %v7040 = vshrl.u32 %v6814, 16
        %v7042 = vrot.slane %v7040, 4
        %v7043 = vshll.u32 %v6814, 16
        %v7045 = vrot.slane %v7043, 5
        %v7046 = vor.u32 %v7042, %v7045
        %v7047 = vrot.slane %v7046, 4
        %v7049 = vshll.u32 %v6815, 16
        %v7051 = vrot.slane %v7049, 5
        %v7052 = vsel %vm6846, %v7047, %v7051
        %v7053 = vshrl.u32 %v6815, 16
        %v7055 = vrot.slane %v7053, 4
        %v7056 = vor.u32 %v7055, %v7051
        %v7057 = vrot.slane %v7056, 4
        %v7059 = vshll.u32 %v6816, 16
        %v7061 = vrot.slane %v7059, 5
        %v7062 = vsel %vm6846, %v7057, %v7061
        %v7064 = vshrl.u32 %v6817, 16
        %v7066 = vrot.slane %v7064, 4
        %v7067 = vshll.u32 %v6817, 16
        %v7069 = vrot.slane %v7067, 5
        %v7070 = vor.u32 %v7066, %v7069
        %v7071 = vrot.slane %v7070, 4
        %v7073 = vshll.u32 %v6818, 16
        %v7075 = vrot.slane %v7073, 5
        %v7076 = vsel %vm6846, %v7071, %v7075
        %v7077 = vshrl.u32 %v6818, 16
        %v7079 = vrot.slane %v7077, 4
        %v7080 = vor.u32 %v7079, %v7075
        %v7081 = vrot.slane %v7080, 4
        %v7083 = vshll.u32 %v6819, 16
        %v7085 = vrot.slane %v7083, 5
        %v7086 = vsel %vm6846, %v7081, %v7085
        %v7088 = vshrl.u32 %v6820, 16
        %v7090 = vrot.slane %v7088, 4
        %v7091 = vshll.u32 %v6820, 16
        %v7093 = vrot.slane %v7091, 5
        %v7094 = vor.u32 %v7090, %v7093
        %v7095 = vrot.slane %v7094, 4
        %v7097 = vshll.u32 %v6821, 16
        %v7099 = vrot.slane %v7097, 5
        %v7100 = vsel %vm6846, %v7095, %v7099
        %v7101 = vshrl.u32 %v6821, 16
        %v7103 = vrot.slane %v7101, 4
        %v7104 = vor.u32 %v7103, %v7099
        %v7105 = vrot.slane %v7104, 4
        %v7107 = vshll.u32 %v6822, 16
        %v7109 = vrot.slane %v7107, 5
        %v7110 = vsel %vm6846, %v7105, %v7109
        %v7112 = vshrl.u32 %v6823, 16
        %v7114 = vrot.slane %v7112, 4
        %v7115 = vshll.u32 %v6823, 16
        %v7117 = vrot.slane %v7115, 5
        %v7118 = vor.u32 %v7114, %v7117
        %v7119 = vrot.slane %v7118, 4
        %v7121 = vshll.u32 %v6824, 16
        %v7123 = vrot.slane %v7121, 5
        %v7124 = vsel %vm6846, %v7119, %v7123
        %v7125 = vshrl.u32 %v6824, 16
        %v7127 = vrot.slane %v7125, 4
        %v7128 = vor.u32 %v7127, %v7123
        %v7129 = vrot.slane %v7128, 4
        %v7131 = vshll.u32 %v6825, 16
        %v7133 = vrot.slane %v7131, 5
        %v7134 = vsel %vm6846, %v7129, %v7133
        %v7136 = vshrl.u32 %v6826, 16
        %v7138 = vrot.slane %v7136, 4
        %v7139 = vshll.u32 %v6826, 16
        %v7141 = vrot.slane %v7139, 5
        %v7142 = vor.u32 %v7138, %v7141
        %v7143 = vrot.slane %v7142, 4
        %v7145 = vshll.u32 %v6827, 16
        %v7147 = vrot.slane %v7145, 5
        %v7148 = vsel %vm6846, %v7143, %v7147
        %v7149 = vshrl.u32 %v6827, 16
        %v7151 = vrot.slane %v7149, 4
        %v7152 = vor.u32 %v7151, %v7147
        %v7153 = vrot.slane %v7152, 4
        %v7155 = vshll.u32 %v6828, 16
        %v7157 = vrot.slane %v7155, 5
        %v7158 = vsel %vm6846, %v7153, %v7157
        %v7160 = vshrl.u32 %v6829, 16
        %v7162 = vrot.slane %v7160, 4
        %v7163 = vshll.u32 %v6829, 16
        %v7165 = vrot.slane %v7163, 5
        %v7166 = vor.u32 %v7162, %v7165
        %v7167 = vrot.slane %v7166, 4
        %v7169 = vshll.u32 %v6830, 16
        %v7171 = vrot.slane %v7169, 5
        %v7172 = vsel %vm6846, %v7167, %v7171
        %v7173 = vshrl.u32 %v6830, 16
        %v7175 = vrot.slane %v7173, 4
        %v7176 = vor.u32 %v7175, %v7171
        %v7177 = vrot.slane %v7176, 4
        %v7179 = vshll.u32 %v6831, 16
        %v7181 = vrot.slane %v7179, 5
        %v7182 = vsel %vm6846, %v7177, %v7181
        %v7184 = vshrl.u32 %v6832, 16
        %v7186 = vrot.slane %v7184, 4
        %v7187 = vshll.u32 %v6832, 16
        %v7189 = vrot.slane %v7187, 5
        %v7190 = vor.u32 %v7186, %v7189
        %v7191 = vrot.slane %v7190, 4
        %v7193 = vshll.u32 %v6833, 16
        %v7195 = vrot.slane %v7193, 5
        %v7196 = vsel %vm6846, %v7191, %v7195
        %v7197 = vshrl.u32 %v6833, 16
        %v7199 = vrot.slane %v7197, 4
        %v7200 = vor.u32 %v7199, %v7195
        %v7201 = vrot.slane %v7200, 4
        %v7203 = vshll.u32 %v6834, 16
        %v7205 = vrot.slane %v7203, 5
        %v7206 = vsel %vm6846, %v7201, %v7205
        %v7208 = vshrl.u32 %v6835, 16
        %v7210 = vrot.slane %v7208, 4
        %v7211 = vshll.u32 %v6835, 16
        %v7213 = vrot.slane %v7211, 5
        %v7214 = vor.u32 %v7210, %v7213
        %v7215 = vrot.slane %v7214, 4
        %v7217 = vshll.u32 %v6836, 16
        %v7219 = vrot.slane %v7217, 5
        %v7220 = vsel %vm6846, %v7215, %v7219
        %v7221 = vshrl.u32 %v6836, 16
        %v7223 = vrot.slane %v7221, 4
        %v7224 = vor.u32 %v7223, %v7219
        %v7225 = vrot.slane %v7224, 4
        %v7227 = vshll.u32 %v6837, 16
        %v7229 = vrot.slane %v7227, 5
        %v7230 = vsel %vm6846, %v7225, %v7229
        %v7232 = vshrl.u32 %v6838, 16
        %v7234 = vrot.slane %v7232, 4
        %v7235 = vshll.u32 %v6838, 16
        %v7237 = vrot.slane %v7235, 5
        %v7238 = vor.u32 %v7234, %v7237
        %v7239 = vrot.slane %v7238, 4
        %v7241 = vshll.u32 %v6839, 16
        %v7243 = vrot.slane %v7241, 5
        %v7244 = vsel %vm6846, %v7239, %v7243
        %v7245 = vshrl.u32 %v6839, 16
        %v7247 = vrot.slane %v7245, 4
        %v7248 = vor.u32 %v7247, %v7243
        %v7249 = vrot.slane %v7248, 4
        %v7251 = vshll.u32 %v6840, 16
        %v7253 = vrot.slane %v7251, 5
        %v7254 = vsel %vm6846, %v7249, %v7253
        %v7256 = vshrl.u32 %v6841, 16
        %v7258 = vrot.slane %v7256, 4
        %v7259 = vshll.u32 %v6841, 16
        %v7261 = vrot.slane %v7259, 5
        %v7262 = vor.u32 %v7258, %v7261
        %v7263 = vrot.slane %v7262, 4
        %v7265 = vshll.u32 %v6842, 16
        %v7267 = vrot.slane %v7265, 5
        %v7268 = vsel %vm6846, %v7263, %v7267
        %v7269 = vshrl.u32 %v6842, 16
        %v7271 = vrot.slane %v7269, 4
        %v7272 = vor.u32 %v7271, %v7267
        %v7273 = vrot.slane %v7272, 4
        %v7275 = vshll.u32 %v6843, 16
        %v7277 = vrot.slane %v7275, 5
        %v7278 = vsel %vm6846, %v7273, %v7277
        %7279 = vrot.lane.b32.xlu0 %v6860, 64
        %v7280 = vpop.permute.xlu0 %7279
        %7281 = vrot.lane.b32.xlu0 %v6870, 64
        %v7282 = vpop.permute.xlu0 %7281
        %7283 = vrot.lane.b32.xlu0 %v6884, 64
        %v7284 = vpop.permute.xlu0 %7283
        %7285 = vrot.lane.b32.xlu0 %v6894, 64
        %v7286 = vpop.permute.xlu0 %7285
        %7287 = vrot.lane.b32.xlu0 %v6908, 64
        %v7288 = vpop.permute.xlu0 %7287
        %7289 = vrot.lane.b32.xlu0 %v6918, 64
        %v7290 = vpop.permute.xlu0 %7289
        %7291 = vrot.lane.b32.xlu0 %v6932, 64
        %v7292 = vpop.permute.xlu0 %7291
        %7293 = vrot.lane.b32.xlu0 %v6942, 64
        %v7294 = vpop.permute.xlu0 %7293
        %7295 = vrot.lane.b32.xlu0 %v6956, 64
        %v7296 = vpop.permute.xlu0 %7295
        %7297 = vrot.lane.b32.xlu0 %v6966, 64
        %v7298 = vpop.permute.xlu0 %7297
        %7299 = vrot.lane.b32.xlu0 %v6980, 64
        %v7300 = vpop.permute.xlu0 %7299
        %7301 = vrot.lane.b32.xlu0 %v6990, 64
        %v7302 = vpop.permute.xlu0 %7301
        %7303 = vrot.lane.b32.xlu0 %v7004, 64
        %v7304 = vpop.permute.xlu0 %7303
        %7305 = vrot.lane.b32.xlu0 %v7014, 64
        %v7306 = vpop.permute.xlu0 %7305
        %7307 = vrot.lane.b32.xlu0 %v7028, 64
        %v7308 = vpop.permute.xlu0 %7307
        %7309 = vrot.lane.b32.xlu0 %v7038, 64
        %v7310 = vpop.permute.xlu0 %7309
        %7311 = vrot.lane.b32.xlu0 %v7052, 64
        %v7312 = vpop.permute.xlu0 %7311
        %7313 = vrot.lane.b32.xlu0 %v7062, 64
        %v7314 = vpop.permute.xlu0 %7313
        %7315 = vrot.lane.b32.xlu0 %v7076, 64
        %v7316 = vpop.permute.xlu0 %7315
        %7317 = vrot.lane.b32.xlu0 %v7086, 64
        %v7318 = vpop.permute.xlu0 %7317
        %7319 = vrot.lane.b32.xlu0 %v7100, 64
        %v7320 = vpop.permute.xlu0 %7319
        %7321 = vrot.lane.b32.xlu0 %v7110, 64
        %v7322 = vpop.permute.xlu0 %7321
        %7323 = vrot.lane.b32.xlu0 %v7124, 64
        %v7324 = vpop.permute.xlu0 %7323
        %7325 = vrot.lane.b32.xlu0 %v7134, 64
        %v7326 = vpop.permute.xlu0 %7325
        %7327 = vrot.lane.b32.xlu0 %v7148, 64
        %v7328 = vpop.permute.xlu0 %7327
        %7329 = vrot.lane.b32.xlu0 %v7158, 64
        %v7330 = vpop.permute.xlu0 %7329
        %7331 = vrot.lane.b32.xlu0 %v7172, 64
        %v7332 = vpop.permute.xlu0 %7331
        %7333 = vrot.lane.b32.xlu0 %v7182, 64
        %v7334 = vpop.permute.xlu0 %7333
        %7335 = vrot.lane.b32.xlu0 %v7196, 64
        %v7336 = vpop.permute.xlu0 %7335
        %7337 = vrot.lane.b32.xlu0 %v7206, 64
        %v7338 = vpop.permute.xlu0 %7337
        %7339 = vrot.lane.b32.xlu0 %v7220, 64
        %v7340 = vpop.permute.xlu0 %7339
        %7341 = vrot.lane.b32.xlu0 %v7230, 64
        %v7342 = vpop.permute.xlu0 %7341
        %7343 = vrot.lane.b32.xlu0 %v7244, 64
        %v7344 = vpop.permute.xlu0 %7343
        %7345 = vrot.lane.b32.xlu0 %v7254, 64
        %v7346 = vpop.permute.xlu0 %7345
        %7347 = vrot.lane.b32.xlu0 %v7268, 64
        %v7348 = vpop.permute.xlu0 %7347
        %7349 = vrot.lane.b32.xlu0 %v7278, 64
        %v7350 = vpop.permute.xlu0 %7349
        %vm7387 = vcmask 1043968
        %7388 = vst.msk [vmem:[#allocation3] sm:$0xf] %vm7387, %v7280
        %7389 = vst.msk [vmem:[#allocation3 + $0x8] sm:$0xf] %vm7387, %v7282
        %7390 = vst.msk [vmem:[#allocation3 + $0x10] sm:$0xf] %vm7387, %v7284
        %7391 = vst.msk [vmem:[#allocation3 + $0x18] sm:$0xf] %vm7387, %v7286
        %7392 = vst.msk [vmem:[#allocation3 + $0x20] sm:$0xf] %vm7387, %v7288
        %7393 = vst.msk [vmem:[#allocation3 + $0x28] sm:$0xf] %vm7387, %v7290
        %7394 = vst.msk [vmem:[#allocation3 + $0x30] sm:$0xf] %vm7387, %v7292
        %7395 = vst.msk [vmem:[#allocation3 + $0x38] sm:$0xf] %vm7387, %v7294
        %7396 = vst.msk [vmem:[#allocation3 + $0x40] sm:$0xf] %vm7387, %v7296
        %7397 = vst.msk [vmem:[#allocation3 + $0x48] sm:$0xf] %vm7387, %v7298
        %7398 = vst.msk [vmem:[#allocation3 + $0x50] sm:$0xf] %vm7387, %v7300
        %7399 = vst.msk [vmem:[#allocation3 + $0x58] sm:$0xf] %vm7387, %v7302
        %7400 = vst.msk [vmem:[#allocation3 + $0x60] sm:$0xf] %vm7387, %v7304
        %7401 = vst.msk [vmem:[#allocation3 + $0x68] sm:$0xf] %vm7387, %v7306
        %7402 = vst.msk [vmem:[#allocation3 + $0x70] sm:$0xf] %vm7387, %v7308
        %7403 = vst.msk [vmem:[#allocation3 + $0x78] sm:$0xf] %vm7387, %v7310
        %7404 = vst.msk [vmem:[#allocation3 + $0x80] sm:$0xf] %vm7387, %v7312
        %7405 = vst.msk [vmem:[#allocation3 + $0x88] sm:$0xf] %vm7387, %v7314
        %7406 = vst.msk [vmem:[#allocation3 + $0x90] sm:$0xf] %vm7387, %v7316
        %7407 = vst.msk [vmem:[#allocation3 + $0x98] sm:$0xf] %vm7387, %v7318
        %7408 = vst.msk [vmem:[#allocation3 + $0xa0] sm:$0xf] %vm7387, %v7320
        %7409 = vst.msk [vmem:[#allocation3 + $0xa8] sm:$0xf] %vm7387, %v7322
        %7410 = vst.msk [vmem:[#allocation3 + $0xb0] sm:$0xf] %vm7387, %v7324
        %7411 = vst.msk [vmem:[#allocation3 + $0xb8] sm:$0xf] %vm7387, %v7326
        %7412 = vst.msk [vmem:[#allocation3 + $0xc0] sm:$0xf] %vm7387, %v7328
        %7413 = vst.msk [vmem:[#allocation3 + $0xc8] sm:$0xf] %vm7387, %v7330
        %7414 = vst.msk [vmem:[#allocation3 + $0xd0] sm:$0xf] %vm7387, %v7332
        %7415 = vst.msk [vmem:[#allocation3 + $0xd8] sm:$0xf] %vm7387, %v7334
        %7416 = vst.msk [vmem:[#allocation3 + $0xe0] sm:$0xf] %vm7387, %v7336
        %7417 = vst.msk [vmem:[#allocation3 + $0xe8] sm:$0xf] %vm7387, %v7338
        %7418 = vst.msk [vmem:[#allocation3 + $0xf0] sm:$0xf] %vm7387, %v7340
        %7419 = vst.msk [vmem:[#allocation3 + $0xf8] sm:$0xf] %vm7387, %v7342
        %7420 = vst.msk [vmem:[#allocation3 + $0x100] sm:$0xf] %vm7387, %v7344
        %7421 = vst.msk [vmem:[#allocation3 + $0x108] sm:$0xf] %vm7387, %v7346
        %7422 = vst.msk [vmem:[#allocation3 + $0x110] sm:$0xf] %vm7387, %v7348
        %7423 = vst.msk [vmem:[#allocation3 + $0x118] sm:$0xf] %vm7387, %v7350
        %v7424 = vld [vmem:[#allocation2] sm:$0xe]
        %v7425 = vld [vmem:[#allocation2 + $0x4] sm:$0xf]
        %v7426 = vld [vmem:[#allocation2 + $0x8] sm:$0x1]
        %v7427 = vld [vmem:[#allocation2 + $0xc] sm:$0xe]
        %v7428 = vld [vmem:[#allocation2 + $0x10] sm:$0xf]
        %v7429 = vld [vmem:[#allocation2 + $0x14] sm:$0x1]
        %v7430 = vld [vmem:[#allocation2 + $0x18] sm:$0xe]
        %v7431 = vld [vmem:[#allocation2 + $0x1c] sm:$0xf]
        %v7432 = vld [vmem:[#allocation2 + $0x20] sm:$0x1]
        %v7433 = vld [vmem:[#allocation2 + $0x24] sm:$0xe]
        %v7434 = vld [vmem:[#allocation2 + $0x28] sm:$0xf]
        %v7435 = vld [vmem:[#allocation2 + $0x2c] sm:$0x1]
        %v7436 = vld [vmem:[#allocation2 + $0x30] sm:$0xe]
        %v7437 = vld [vmem:[#allocation2 + $0x34] sm:$0xf]
        %v7438 = vld [vmem:[#allocation2 + $0x38] sm:$0x1]
        %v7439 = vld [vmem:[#allocation2 + $0x3c] sm:$0xe]
        %v7440 = vld [vmem:[#allocation2 + $0x40] sm:$0xf]
        %v7441 = vld [vmem:[#allocation2 + $0x44] sm:$0x1]
        %v7442 = vld [vmem:[#allocation2 + $0x48] sm:$0xe]
        %v7443 = vld [vmem:[#allocation2 + $0x4c] sm:$0xf]
        %v7444 = vld [vmem:[#allocation2 + $0x50] sm:$0x1]
        %v7445 = vld [vmem:[#allocation2 + $0x54] sm:$0xe]
        %v7446 = vld [vmem:[#allocation2 + $0x58] sm:$0xf]
        %v7447 = vld [vmem:[#allocation2 + $0x5c] sm:$0x1]
        %v7448 = vld [vmem:[#allocation2 + $0x60] sm:$0xe]
        %v7449 = vld [vmem:[#allocation2 + $0x64] sm:$0xf]
        %v7450 = vld [vmem:[#allocation2 + $0x68] sm:$0x1]
        %v7451 = vld [vmem:[#allocation2 + $0x6c] sm:$0xe]
        %v7452 = vld [vmem:[#allocation2 + $0x70] sm:$0xf]
        %v7453 = vld [vmem:[#allocation2 + $0x74] sm:$0x1]
        %v7454 = vld [vmem:[#allocation2 + $0x78] sm:$0xe]
        %v7455 = vld [vmem:[#allocation2 + $0x7c] sm:$0xf]
        %v7456 = vld [vmem:[#allocation2 + $0x80] sm:$0x1]
        %v7457 = vld [vmem:[#allocation2 + $0x84] sm:$0xe]
        %v7458 = vld [vmem:[#allocation2 + $0x88] sm:$0xf]
        %v7459 = vld [vmem:[#allocation2 + $0x8c] sm:$0x1]
        %v7460 = vld [vmem:[#allocation2 + $0x90] sm:$0xe]
        %v7461 = vld [vmem:[#allocation2 + $0x94] sm:$0xf]
        %v7462 = vld [vmem:[#allocation2 + $0x98] sm:$0x1]
        %v7463 = vld [vmem:[#allocation2 + $0x9c] sm:$0xe]
        %v7464 = vld [vmem:[#allocation2 + $0xa0] sm:$0xf]
        %v7465 = vld [vmem:[#allocation2 + $0xa4] sm:$0x1]
        %v7466 = vld [vmem:[#allocation2 + $0xa8] sm:$0xe]
        %v7467 = vld [vmem:[#allocation2 + $0xac] sm:$0xf]
        %v7468 = vld [vmem:[#allocation2 + $0xb0] sm:$0x1]
        %v7469 = vld [vmem:[#allocation2 + $0xb4] sm:$0xe]
        %v7470 = vld [vmem:[#allocation2 + $0xb8] sm:$0xf]
        %v7471 = vld [vmem:[#allocation2 + $0xbc] sm:$0x1]
        %v7472 = vld [vmem:[#allocation2 + $0xc0] sm:$0xe]
        %v7473 = vld [vmem:[#allocation2 + $0xc4] sm:$0xf]
        %v7474 = vld [vmem:[#allocation2 + $0xc8] sm:$0x1]
        %v7475 = vld [vmem:[#allocation2 + $0xcc] sm:$0xe]
        %v7476 = vld [vmem:[#allocation2 + $0xd0] sm:$0xf]
        %v7477 = vld [vmem:[#allocation2 + $0xd4] sm:$0x1]
        %vm7532 = vcmask 1042432
        %vm7533 = vcmask 1046532
        %vm7534 = vmor %vm7532, %vm7533
        %v7535 = vrot.slane %v7424, 5
        %v7536 = vrot.slane %v7535, 4
        %v7537 = vrot.slane %v7425, 5
        %v7538 = vsel %vm7534, %v7536, %v7537
        %v7539 = vrot.slane %v7537, 4
        %v7540 = vrot.slane %v7426, 5
        %v7541 = vsel %vm7534, %v7539, %v7540
        %v7542 = vrot.slane %v7427, 5
        %v7543 = vrot.slane %v7542, 4
        %v7544 = vrot.slane %v7428, 5
        %v7545 = vsel %vm7534, %v7543, %v7544
        %v7546 = vrot.slane %v7544, 4
        %v7547 = vrot.slane %v7429, 5
        %v7548 = vsel %vm7534, %v7546, %v7547
        %v7549 = vrot.slane %v7430, 5
        %v7550 = vrot.slane %v7549, 4
        %v7551 = vrot.slane %v7431, 5
        %v7552 = vsel %vm7534, %v7550, %v7551
        %v7553 = vrot.slane %v7551, 4
        %v7554 = vrot.slane %v7432, 5
        %v7555 = vsel %vm7534, %v7553, %v7554
        %v7556 = vrot.slane %v7433, 5
        %v7557 = vrot.slane %v7556, 4
        %v7558 = vrot.slane %v7434, 5
        %v7559 = vsel %vm7534, %v7557, %v7558
        %v7560 = vrot.slane %v7558, 4
        %v7561 = vrot.slane %v7435, 5
        %v7562 = vsel %vm7534, %v7560, %v7561
        %v7563 = vrot.slane %v7436, 5
        %v7564 = vrot.slane %v7563, 4
        %v7565 = vrot.slane %v7437, 5
        %v7566 = vsel %vm7534, %v7564, %v7565
        %v7567 = vrot.slane %v7565, 4
        %v7568 = vrot.slane %v7438, 5
        %v7569 = vsel %vm7534, %v7567, %v7568
        %v7570 = vrot.slane %v7439, 5
        %v7571 = vrot.slane %v7570, 4
        %v7572 = vrot.slane %v7440, 5
        %v7573 = vsel %vm7534, %v7571, %v7572
        %v7574 = vrot.slane %v7572, 4
        %v7575 = vrot.slane %v7441, 5
        %v7576 = vsel %vm7534, %v7574, %v7575
        %v7577 = vrot.slane %v7442, 5
        %v7578 = vrot.slane %v7577, 4
        %v7579 = vrot.slane %v7443, 5
        %v7580 = vsel %vm7534, %v7578, %v7579
        %v7581 = vrot.slane %v7579, 4
        %v7582 = vrot.slane %v7444, 5
        %v7583 = vsel %vm7534, %v7581, %v7582
        %v7584 = vrot.slane %v7445, 5
        %v7585 = vrot.slane %v7584, 4
        %v7586 = vrot.slane %v7446, 5
        %v7587 = vsel %vm7534, %v7585, %v7586
        %v7588 = vrot.slane %v7586, 4
        %v7589 = vrot.slane %v7447, 5
        %v7590 = vsel %vm7534, %v7588, %v7589
        %v7591 = vrot.slane %v7448, 5
        %v7592 = vrot.slane %v7591, 4
        %v7593 = vrot.slane %v7449, 5
        %v7594 = vsel %vm7534, %v7592, %v7593
        %v7595 = vrot.slane %v7593, 4
        %v7596 = vrot.slane %v7450, 5
        %v7597 = vsel %vm7534, %v7595, %v7596
        %v7598 = vrot.slane %v7451, 5
        %v7599 = vrot.slane %v7598, 4
        %v7600 = vrot.slane %v7452, 5
        %v7601 = vsel %vm7534, %v7599, %v7600
        %v7602 = vrot.slane %v7600, 4
        %v7603 = vrot.slane %v7453, 5
        %v7604 = vsel %vm7534, %v7602, %v7603
        %v7605 = vrot.slane %v7454, 5
        %v7606 = vrot.slane %v7605, 4
        %v7607 = vrot.slane %v7455, 5
        %v7608 = vsel %vm7534, %v7606, %v7607
        %v7609 = vrot.slane %v7607, 4
        %v7610 = vrot.slane %v7456, 5
        %v7611 = vsel %vm7534, %v7609, %v7610
        %v7612 = vrot.slane %v7457, 5
        %v7613 = vrot.slane %v7612, 4
        %v7614 = vrot.slane %v7458, 5
        %v7615 = vsel %vm7534, %v7613, %v7614
        %v7616 = vrot.slane %v7614, 4
        %v7617 = vrot.slane %v7459, 5
        %v7618 = vsel %vm7534, %v7616, %v7617
        %v7619 = vrot.slane %v7460, 5
        %v7620 = vrot.slane %v7619, 4
        %v7621 = vrot.slane %v7461, 5
        %v7622 = vsel %vm7534, %v7620, %v7621
        %v7623 = vrot.slane %v7621, 4
        %v7624 = vrot.slane %v7462, 5
        %v7625 = vsel %vm7534, %v7623, %v7624
        %v7626 = vrot.slane %v7463, 5
        %v7627 = vrot.slane %v7626, 4
        %v7628 = vrot.slane %v7464, 5
        %v7629 = vsel %vm7534, %v7627, %v7628
        %v7630 = vrot.slane %v7628, 4
        %v7631 = vrot.slane %v7465, 5
        %v7632 = vsel %vm7534, %v7630, %v7631
        %v7633 = vrot.slane %v7466, 5
        %v7634 = vrot.slane %v7633, 4
        %v7635 = vrot.slane %v7467, 5
        %v7636 = vsel %vm7534, %v7634, %v7635
        %v7637 = vrot.slane %v7635, 4
        %v7638 = vrot.slane %v7468, 5
        %v7639 = vsel %vm7534, %v7637, %v7638
        %v7640 = vrot.slane %v7469, 5
        %v7641 = vrot.slane %v7640, 4
        %v7642 = vrot.slane %v7470, 5
        %v7643 = vsel %vm7534, %v7641, %v7642
        %v7644 = vrot.slane %v7642, 4
        %v7645 = vrot.slane %v7471, 5
        %v7646 = vsel %vm7534, %v7644, %v7645
        %v7647 = vrot.slane %v7472, 5
        %v7648 = vrot.slane %v7647, 4
        %v7649 = vrot.slane %v7473, 5
        %v7650 = vsel %vm7534, %v7648, %v7649
        %v7651 = vrot.slane %v7649, 4
        %v7652 = vrot.slane %v7474, 5
        %v7653 = vsel %vm7534, %v7651, %v7652
        %v7654 = vrot.slane %v7475, 5
        %v7655 = vrot.slane %v7654, 4
        %v7656 = vrot.slane %v7476, 5
        %v7657 = vsel %vm7534, %v7655, %v7656
        %v7658 = vrot.slane %v7656, 4
        %v7659 = vrot.slane %v7477, 5
        %v7660 = vsel %vm7534, %v7658, %v7659
        %7697 = vst.msk [vmem:[#allocation3 + $0x4] sm:$0xf] %vm186, %v7538
        %7698 = vst.msk [vmem:[#allocation3 + $0xc] sm:$0xf] %vm186, %v7541
        %7699 = vst.msk [vmem:[#allocation3 + $0x14] sm:$0xf] %vm186, %v7545
        %7700 = vst.msk [vmem:[#allocation3 + $0x1c] sm:$0xf] %vm186, %v7548
        %7701 = vst.msk [vmem:[#allocation3 + $0x24] sm:$0xf] %vm186, %v7552
        %7702 = vst.msk [vmem:[#allocation3 + $0x2c] sm:$0xf] %vm186, %v7555
        %7703 = vst.msk [vmem:[#allocation3 + $0x34] sm:$0xf] %vm186, %v7559
        %7704 = vst.msk [vmem:[#allocation3 + $0x3c] sm:$0xf] %vm186, %v7562
        %7705 = vst.msk [vmem:[#allocation3 + $0x44] sm:$0xf] %vm186, %v7566
        %7706 = vst.msk [vmem:[#allocation3 + $0x4c] sm:$0xf] %vm186, %v7569
        %7707 = vst.msk [vmem:[#allocation3 + $0x54] sm:$0xf] %vm186, %v7573
        %7708 = vst.msk [vmem:[#allocation3 + $0x5c] sm:$0xf] %vm186, %v7576
        %7709 = vst.msk [vmem:[#allocation3 + $0x64] sm:$0xf] %vm186, %v7580
        %7710 = vst.msk [vmem:[#allocation3 + $0x6c] sm:$0xf] %vm186, %v7583
        %7711 = vst.msk [vmem:[#allocation3 + $0x74] sm:$0xf] %vm186, %v7587
        %7712 = vst.msk [vmem:[#allocation3 + $0x7c] sm:$0xf] %vm186, %v7590
        %7713 = vst.msk [vmem:[#allocation3 + $0x84] sm:$0xf] %vm186, %v7594
        %7714 = vst.msk [vmem:[#allocation3 + $0x8c] sm:$0xf] %vm186, %v7597
        %7715 = vst.msk [vmem:[#allocation3 + $0x94] sm:$0xf] %vm186, %v7601
        %7716 = vst.msk [vmem:[#allocation3 + $0x9c] sm:$0xf] %vm186, %v7604
        %7717 = vst.msk [vmem:[#allocation3 + $0xa4] sm:$0xf] %vm186, %v7608
        %7718 = vst.msk [vmem:[#allocation3 + $0xac] sm:$0xf] %vm186, %v7611
        %7719 = vst.msk [vmem:[#allocation3 + $0xb4] sm:$0xf] %vm186, %v7615
        %7720 = vst.msk [vmem:[#allocation3 + $0xbc] sm:$0xf] %vm186, %v7618
        %7721 = vst.msk [vmem:[#allocation3 + $0xc4] sm:$0xf] %vm186, %v7622
        %7722 = vst.msk [vmem:[#allocation3 + $0xcc] sm:$0xf] %vm186, %v7625
        %7723 = vst.msk [vmem:[#allocation3 + $0xd4] sm:$0xf] %vm186, %v7629
        %7724 = vst.msk [vmem:[#allocation3 + $0xdc] sm:$0xf] %vm186, %v7632
        %7725 = vst.msk [vmem:[#allocation3 + $0xe4] sm:$0xf] %vm186, %v7636
        %7726 = vst.msk [vmem:[#allocation3 + $0xec] sm:$0xf] %vm186, %v7639
        %7727 = vst.msk [vmem:[#allocation3 + $0xf4] sm:$0xf] %vm186, %v7643
        %7728 = vst.msk [vmem:[#allocation3 + $0xfc] sm:$0xf] %vm186, %v7646
        %7729 = vst.msk [vmem:[#allocation3 + $0x104] sm:$0xf] %vm186, %v7650
        %7730 = vst.msk [vmem:[#allocation3 + $0x10c] sm:$0xf] %vm186, %v7653
        %7731 = vst.msk [vmem:[#allocation3 + $0x114] sm:$0xf] %vm186, %v7657
        %7732 = vst.msk [vmem:[#allocation3 + $0x11c] sm:$0xf] %vm186, %v7660
        %v7733 = vld [vmem:[#allocation3] sm:$0xff]
        %v7734 = vld [vmem:[#allocation3 + $0x8] sm:$0xff]
        %v7735 = vld [vmem:[#allocation3 + $0x10] sm:$0xff]
        %v7736 = vld [vmem:[#allocation3 + $0x18] sm:$0xff]
        %v7737 = vld [vmem:[#allocation3 + $0x20] sm:$0xff]
        %v7738 = vld [vmem:[#allocation3 + $0x28] sm:$0xff]
        %v7739 = vld [vmem:[#allocation3 + $0x30] sm:$0xff]
        %v7740 = vld [vmem:[#allocation3 + $0x38] sm:$0xff]
        %v7741 = vld [vmem:[#allocation3 + $0x40] sm:$0xff]
        %v7742 = vld [vmem:[#allocation3 + $0x48] sm:$0xff]
        %v7743 = vld [vmem:[#allocation3 + $0x50] sm:$0xff]
        %v7744 = vld [vmem:[#allocation3 + $0x58] sm:$0xff]
        %v7745 = vld [vmem:[#allocation3 + $0x60] sm:$0xff]
        %v7746 = vld [vmem:[#allocation3 + $0x68] sm:$0xff]
        %v7747 = vld [vmem:[#allocation3 + $0x70] sm:$0xff]
        %v7748 = vld [vmem:[#allocation3 + $0x78] sm:$0xff]
        %v7749 = vld [vmem:[#allocation3 + $0x80] sm:$0xff]
        %v7750 = vld [vmem:[#allocation3 + $0x88] sm:$0xff]
        %v7751 = vld [vmem:[#allocation3 + $0x90] sm:$0xff]
        %v7752 = vld [vmem:[#allocation3 + $0x98] sm:$0xff]
        %v7753 = vld [vmem:[#allocation3 + $0xa0] sm:$0xff]
        %v7754 = vld [vmem:[#allocation3 + $0xa8] sm:$0xff]
        %v7755 = vld [vmem:[#allocation3 + $0xb0] sm:$0xff]
        %v7756 = vld [vmem:[#allocation3 + $0xb8] sm:$0xff]
        %v7757 = vld [vmem:[#allocation3 + $0xc0] sm:$0xff]
        %v7758 = vld [vmem:[#allocation3 + $0xc8] sm:$0xff]
        %v7759 = vld [vmem:[#allocation3 + $0xd0] sm:$0xff]
        %v7760 = vld [vmem:[#allocation3 + $0xd8] sm:$0xff]
        %v7761 = vld [vmem:[#allocation3 + $0xe0] sm:$0xff]
        %v7762 = vld [vmem:[#allocation3 + $0xe8] sm:$0xff]
        %v7763 = vld [vmem:[#allocation3 + $0xf0] sm:$0xff]
        %v7764 = vld [vmem:[#allocation3 + $0xf8] sm:$0xff]
        %s7765 = scalar_lea.vmem %s1, 2304
        %v7766 = vld [vmem:[%s7765] sm:$0xf]
        %v7767 = vld [vmem:[%s7765 + $0x4] sm:$0xf]
        %v7768 = vld [vmem:[%s7765 + $0x8] sm:$0xf]
        %v7769 = vld [vmem:[%s7765 + $0xc] sm:$0xf]
        %v7770 = vld [vmem:[%s7765 + $0x10] sm:$0xf]
        %v7771 = vld [vmem:[%s7765 + $0x14] sm:$0xf]
        %v7772 = vld [vmem:[%s7765 + $0x18] sm:$0xf]
        %v7773 = vld [vmem:[%s7765 + $0x1c] sm:$0xf]
        %v7774 = vld [vmem:[%s7765 + $0x20] sm:$0xf]
        %v7775 = vld [vmem:[%s7765 + $0x24] sm:$0xf]
        %v7776 = vld [vmem:[%s7765 + $0x28] sm:$0xf]
        %v7777 = vld [vmem:[%s7765 + $0x2c] sm:$0xf]
        %v7778 = vld [vmem:[%s7765 + $0x30] sm:$0xf]
        %v7779 = vld [vmem:[%s7765 + $0x34] sm:$0xf]
        %v7780 = vld [vmem:[%s7765 + $0x38] sm:$0xf]
        %v7781 = vld [vmem:[%s7765 + $0x3c] sm:$0xf]
        %v7782 = vld [vmem:[%s7765 + $0x40] sm:$0xf]
        %v7783 = vld [vmem:[%s7765 + $0x44] sm:$0xf]
        %v7784 = vld [vmem:[%s7765 + $0x48] sm:$0xf]
        %v7785 = vld [vmem:[%s7765 + $0x4c] sm:$0xf]
        %v7786 = vld [vmem:[%s7765 + $0x50] sm:$0xf]
        %v7787 = vld [vmem:[%s7765 + $0x54] sm:$0xf]
        %v7788 = vld [vmem:[%s7765 + $0x58] sm:$0xf]
        %v7789 = vld [vmem:[%s7765 + $0x5c] sm:$0xf]
        %v7790 = vld [vmem:[#allocation3 + $0x100] sm:$0xff]
        %v7791 = vld [vmem:[#allocation3 + $0x108] sm:$0xff]
        %s7792 = scalar_lea.vmem %s1, 2400
        %v7793 = vld [vmem:[%s7792] sm:$0xf]
        %v7794 = vld [vmem:[%s7792 + $0x4] sm:$0xf]
        %v7795 = vld [vmem:[%s7792 + $0x8] sm:$0xf]
        %v7796 = vld [vmem:[%s7792 + $0xc] sm:$0xf]
        %v7797 = vld [vmem:[%s7792 + $0x10] sm:$0xf]
        %v7798 = vld [vmem:[%s7792 + $0x14] sm:$0xf]
        %v7799 = vld [vmem:[%s7792 + $0x18] sm:$0xf]
        %v7800 = vld [vmem:[%s7792 + $0x1c] sm:$0xf]
        %v7801 = vld [vmem:[%s7792 + $0x20] sm:$0xf]
        %v7802 = vld [vmem:[%s7792 + $0x24] sm:$0xf]
        %v7803 = vld [vmem:[%s7792 + $0x28] sm:$0xf]
        %v7804 = vld [vmem:[%s7792 + $0x2c] sm:$0xf]
        %v7805 = vld [vmem:[%s7792 + $0x30] sm:$0xf]
        %v7806 = vld [vmem:[%s7792 + $0x34] sm:$0xf]
        %v7807 = vld [vmem:[%s7792 + $0x38] sm:$0xf]
        %v7808 = vld [vmem:[%s7792 + $0x3c] sm:$0xf]
        %v7809 = vld [vmem:[%s7792 + $0x40] sm:$0xf]
        %v7810 = vld [vmem:[%s7792 + $0x44] sm:$0xf]
        %v7811 = vld [vmem:[%s7792 + $0x48] sm:$0xf]
        %v7812 = vld [vmem:[%s7792 + $0x4c] sm:$0xf]
        %v7813 = vld [vmem:[%s7792 + $0x50] sm:$0xf]
        %v7814 = vld [vmem:[%s7792 + $0x54] sm:$0xf]
        %v7815 = vld [vmem:[%s7792 + $0x58] sm:$0xf]
        %v7816 = vld [vmem:[%s7792 + $0x5c] sm:$0xf]
        %v7849 = vunpack.c.l.b16 %v7735
        %v7850 = vunpack.c.h.b16 %v7735
        %v7851 = vunpack.c.l.b16 %v7736
        %v7852 = vunpack.c.h.b16 %v7736
        %v7853 = vunpack.c.l.b16 %v7737
        %v7854 = vunpack.c.h.b16 %v7737
        %v7855 = vunpack.c.l.b16 %v7738
        %v7856 = vunpack.c.h.b16 %v7738
        %v7857 = vunpack.c.l.b16 %v7739
        %v7858 = vunpack.c.h.b16 %v7739
        %v7859 = vunpack.c.l.b16 %v7740
        %v7860 = vunpack.c.h.b16 %v7740
        %v7861 = vunpack.c.l.b16 %v7741
        %v7862 = vunpack.c.h.b16 %v7741
        %v7863 = vunpack.c.l.b16 %v7742
        %v7864 = vunpack.c.h.b16 %v7742
        %v7865 = vunpack.c.l.b16 %v7743
        %v7866 = vunpack.c.h.b16 %v7743
        %v7867 = vunpack.c.l.b16 %v7744
        %v7868 = vunpack.c.h.b16 %v7744
        %v7869 = vunpack.c.l.b16 %v7745
        %v7870 = vunpack.c.h.b16 %v7745
        %v7871 = vunpack.c.l.b16 %v7746
        %v7872 = vunpack.c.h.b16 %v7746
        %v7873 = vunpack.c.l.b16 %v7747
        %v7874 = vunpack.c.h.b16 %v7747
        %v7875 = vunpack.c.l.b16 %v7748
        %v7876 = vunpack.c.h.b16 %v7748
        %v7877 = vunpack.c.l.b16 %v7749
        %v7878 = vunpack.c.h.b16 %v7749
        %v7879 = vunpack.c.l.b16 %v7750
        %v7880 = vunpack.c.h.b16 %v7750
        %v7881 = vunpack.c.l.b16 %v7751
        %v7882 = vunpack.c.h.b16 %v7751
        %v7883 = vunpack.c.l.b16 %v7752
        %v7884 = vunpack.c.h.b16 %v7752
        %v7885 = vunpack.c.l.b16 %v7753
        %v7886 = vunpack.c.h.b16 %v7753
        %v7887 = vunpack.c.l.b16 %v7754
        %v7888 = vunpack.c.h.b16 %v7754
        %v7889 = vunpack.c.l.b16 %v7755
        %v7890 = vunpack.c.h.b16 %v7755
        %v7891 = vunpack.c.l.b16 %v7756
        %v7892 = vunpack.c.h.b16 %v7756
        %v7893 = vunpack.c.l.b16 %v7757
        %v7894 = vunpack.c.h.b16 %v7757
        %v7895 = vunpack.c.l.b16 %v7758
        %v7896 = vunpack.c.h.b16 %v7758
        %v7897 = vunpack.c.l.b16 %v7759
        %v7898 = vunpack.c.h.b16 %v7759
        %v7899 = vunpack.c.l.b16 %v7760
        %v7900 = vunpack.c.h.b16 %v7760
        %v7901 = vunpack.c.l.b16 %v7761
        %v7902 = vunpack.c.h.b16 %v7761
        %v7903 = vunpack.c.l.b16 %v7762
        %v7904 = vunpack.c.h.b16 %v7762
        %v7905 = vunpack.c.l.b16 %v7763
        %v7906 = vunpack.c.h.b16 %v7763
        %v7907 = vunpack.c.l.b16 %v7764
        %v7908 = vunpack.c.h.b16 %v7764
        %v7909 = vunpack.c.l.b16 %v7790
        %v7910 = vunpack.c.h.b16 %v7790
        %v7911 = vunpack.c.l.b16 %v7791
        %v7912 = vunpack.c.h.b16 %v7791
        %v7913 = vpack.c.b16 %v7851, %v7849
        %v7914 = vpack.c.b16 %v7852, %v7850
        %v7915 = vpack.c.b16 %v7855, %v7853
        %v7916 = vpack.c.b16 %v7856, %v7854
        %v7917 = vpack.c.b16 %v7859, %v7857
        %v7918 = vpack.c.b16 %v7860, %v7858
        %v7919 = vpack.c.b16 %v7863, %v7861
        %v7920 = vpack.c.b16 %v7864, %v7862
        %v7921 = vpack.c.b16 %v7867, %v7865
        %v7922 = vpack.c.b16 %v7868, %v7866
        %v7923 = vpack.c.b16 %v7871, %v7869
        %v7924 = vpack.c.b16 %v7872, %v7870
        %v7925 = vpack.c.b16 %v7875, %v7873
        %v7926 = vpack.c.b16 %v7876, %v7874
        %v7927 = vpack.c.b16 %v7879, %v7877
        %v7928 = vpack.c.b16 %v7880, %v7878
        %v7929 = vpack.c.b16 %v7883, %v7881
        %v7930 = vpack.c.b16 %v7884, %v7882
        %v7931 = vpack.c.b16 %v7887, %v7885
        %v7932 = vpack.c.b16 %v7888, %v7886
        %v7933 = vpack.c.b16 %v7891, %v7889
        %v7934 = vpack.c.b16 %v7892, %v7890
        %v7935 = vpack.c.b16 %v7895, %v7893
        %v7936 = vpack.c.b16 %v7896, %v7894
        %v7937 = vpack.c.b16 %v7899, %v7897
        %v7938 = vpack.c.b16 %v7900, %v7898
        %v7939 = vpack.c.b16 %v7903, %v7901
        %v7940 = vpack.c.b16 %v7904, %v7902
        %v7941 = vpack.c.b16 %v7907, %v7905
        %v7942 = vpack.c.b16 %v7908, %v7906
        %v7943 = vpack.c.b16 %v7911, %v7909
        %v7944 = vpack.c.b16 %v7912, %v7910
        %v7985 = vunpack.c.l.b16 %v7793
        %v7986 = vunpack.c.l.b16 %v7794
        %v7987 = vunpack.c.l.b16 %v7795
        %v7988 = vunpack.c.l.b16 %v7796
        %v7989 = vunpack.c.l.b16 %v7797
        %v7990 = vunpack.c.l.b16 %v7798
        %v7991 = vunpack.c.l.b16 %v7799
        %v7992 = vunpack.c.l.b16 %v7800
        %v7993 = vunpack.c.l.b16 %v7801
        %v7994 = vunpack.c.l.b16 %v7802
        %v7995 = vunpack.c.l.b16 %v7803
        %v7996 = vunpack.c.l.b16 %v7804
        %v7997 = vunpack.c.l.b16 %v7805
        %v7998 = vunpack.c.l.b16 %v7806
        %v7999 = vunpack.c.l.b16 %v7807
        %v8000 = vunpack.c.l.b16 %v7808
        %v8001 = vunpack.c.l.b16 %v7809
        %v8002 = vunpack.c.l.b16 %v7810
        %v8003 = vunpack.c.l.b16 %v7811
        %v8004 = vunpack.c.l.b16 %v7812
        %v8005 = vunpack.c.l.b16 %v7813
        %v8006 = vunpack.c.l.b16 %v7814
        %v8007 = vunpack.c.l.b16 %v7815
        %v8008 = vunpack.c.l.b16 %v7816
        %v8009 = vpack.c.b16 %v7986, %v7985
        %v8010 = vpack.c.b16 %v7988, %v7987
        %v8011 = vpack.c.b16 %v7990, %v7989
        %v8012 = vpack.c.b16 %v7992, %v7991
        %v8013 = vpack.c.b16 %v7994, %v7993
        %v8014 = vpack.c.b16 %v7996, %v7995
        %v8015 = vpack.c.b16 %v7998, %v7997
        %v8016 = vpack.c.b16 %v8000, %v7999
        %v8017 = vpack.c.b16 %v8002, %v8001
        %v8018 = vpack.c.b16 %v8004, %v8003
        %v8019 = vpack.c.b16 %v8006, %v8005
        %v8020 = vpack.c.b16 %v8008, %v8007
        %v8034 = vsel %vm273, %v7914, 0
        %v8037 = vsel %vm273, %v7916, 0
        %v8040 = vsel %vm273, %v7918, 0
        %v8043 = vsel %vm273, %v7920, 0
        %v8046 = vsel %vm273, %v7922, 0
        %v8049 = vsel %vm273, %v7924, 0
        %v8052 = vsel %vm273, %v7926, 0
        %v8055 = vsel %vm273, %v7928, 0
        %v8058 = vsel %vm273, %v7930, 0
        %v8061 = vsel %vm273, %v7932, 0
        %v8064 = vsel %vm273, %v7934, 0
        %v8067 = vsel %vm273, %v7936, 0
        %v8070 = vsel %vm273, %v7938, 0
        %v8073 = vsel %vm273, %v7940, 0
        %v8076 = vsel %vm273, %v7942, 0
        %v8079 = vsel %vm273, %v7944, 0
        %8081 = vmatpush.bf16.msra.mxu0 %v8016
        %8082 = vmatpush.bf16.msra.mxu0 %v8015
        %8083 = vmatpush.bf16.msra.mxu0 %v8014
        %8084 = vmatpush.bf16.msra.mxu0 %v8013
        %8085 = vmatpush.bf16.msra.mxu0 %v8012
        %8086 = vmatpush.bf16.msra.mxu0 %v8011
        %8087 = vmatpush.bf16.msra.mxu0 %v8010
        %8088 = vmatpush.bf16.msra.mxu0 %v8009
        %8089 = vmatmul.bf16.gmra.mxu0 %v7913
        %v8090 = vpop.f32.mrf.mxu0
        %v8091 = vadd.f32 0.0, %v8090
        %v8092 = vpop.f32.mrf.mxu0
        %v8093 = vadd.f32 0.0, %v8092
        %8094 = vmatmul.bf16.gmra.mxu0 %v7915
        %v8095 = vpop.f32.mrf.mxu0
        %v8096 = vadd.f32 0.0, %v8095
        %v8097 = vpop.f32.mrf.mxu0
        %v8098 = vadd.f32 0.0, %v8097
        %8099 = vmatmul.bf16.gmra.mxu0 %v7917
        %v8100 = vpop.f32.mrf.mxu0
        %v8101 = vadd.f32 0.0, %v8100
        %v8102 = vpop.f32.mrf.mxu0
        %v8103 = vadd.f32 0.0, %v8102
        %8104 = vmatmul.bf16.gmra.mxu0 %v7919
        %v8105 = vpop.f32.mrf.mxu0
        %v8106 = vadd.f32 0.0, %v8105
        %v8107 = vpop.f32.mrf.mxu0
        %v8108 = vadd.f32 0.0, %v8107
        %8109 = vmatmul.bf16.gmra.mxu0 %v7921
        %v8110 = vpop.f32.mrf.mxu0
        %v8111 = vadd.f32 0.0, %v8110
        %v8112 = vpop.f32.mrf.mxu0
        %v8113 = vadd.f32 0.0, %v8112
        %8114 = vmatmul.bf16.gmra.mxu0 %v7923
        %v8115 = vpop.f32.mrf.mxu0
        %v8116 = vadd.f32 0.0, %v8115
        %v8117 = vpop.f32.mrf.mxu0
        %v8118 = vadd.f32 0.0, %v8117
        %8119 = vmatmul.bf16.gmra.mxu0 %v7925
        %v8120 = vpop.f32.mrf.mxu0
        %v8121 = vadd.f32 0.0, %v8120
        %v8122 = vpop.f32.mrf.mxu0
        %v8123 = vadd.f32 0.0, %v8122
        %8124 = vmatmul.bf16.gmra.mxu0 %v7927
        %v8125 = vpop.f32.mrf.mxu0
        %v8126 = vadd.f32 0.0, %v8125
        %v8127 = vpop.f32.mrf.mxu0
        %v8128 = vadd.f32 0.0, %v8127
        %8129 = vmatmul.bf16.gmra.mxu0 %v7929
        %v8130 = vpop.f32.mrf.mxu0
        %v8131 = vadd.f32 0.0, %v8130
        %v8132 = vpop.f32.mrf.mxu0
        %v8133 = vadd.f32 0.0, %v8132
        %8134 = vmatmul.bf16.gmra.mxu0 %v7931
        %v8135 = vpop.f32.mrf.mxu0
        %v8136 = vadd.f32 0.0, %v8135
        %v8137 = vpop.f32.mrf.mxu0
        %v8138 = vadd.f32 0.0, %v8137
        %8139 = vmatmul.bf16.gmra.mxu0 %v7933
        %v8140 = vpop.f32.mrf.mxu0
        %v8141 = vadd.f32 0.0, %v8140
        %v8142 = vpop.f32.mrf.mxu0
        %v8143 = vadd.f32 0.0, %v8142
        %8144 = vmatmul.bf16.gmra.mxu0 %v7935
        %v8145 = vpop.f32.mrf.mxu0
        %v8146 = vadd.f32 0.0, %v8145
        %v8147 = vpop.f32.mrf.mxu0
        %v8148 = vadd.f32 0.0, %v8147
        %8149 = vmatmul.bf16.gmra.mxu0 %v7937
        %v8150 = vpop.f32.mrf.mxu0
        %v8151 = vadd.f32 0.0, %v8150
        %v8152 = vpop.f32.mrf.mxu0
        %v8153 = vadd.f32 0.0, %v8152
        %8154 = vmatmul.bf16.gmra.mxu0 %v7939
        %v8155 = vpop.f32.mrf.mxu0
        %v8156 = vadd.f32 0.0, %v8155
        %v8157 = vpop.f32.mrf.mxu0
        %v8158 = vadd.f32 0.0, %v8157
        %8159 = vmatmul.bf16.gmra.mxu0 %v7941
        %v8160 = vpop.f32.mrf.mxu0
        %v8161 = vadd.f32 0.0, %v8160
        %v8162 = vpop.f32.mrf.mxu0
        %v8163 = vadd.f32 0.0, %v8162
        %8164 = vmatmul.bf16.gmra.mxu0 %v7943
        %v8165 = vpop.f32.mrf.mxu0
        %v8166 = vadd.f32 0.0, %v8165
        %v8167 = vpop.f32.mrf.mxu0
        %v8168 = vadd.f32 0.0, %v8167
        %8169 = vdwg.mxu0
        %8170 = vmatpush.bf16.msra.mxu0 0
        %8171 = vmatpush.bf16.msra.mxu0 0
        %8172 = vmatpush.bf16.msra.mxu0 0
        %8173 = vmatpush.bf16.msra.mxu0 0
        %8174 = vmatpush.bf16.msra.mxu0 %v8020
        %8175 = vmatpush.bf16.msra.mxu0 %v8019
        %8176 = vmatpush.bf16.msra.mxu0 %v8018
        %8177 = vmatpush.bf16.msra.mxu0 %v8017
        %8178 = vmatmul.bf16.gmra.mxu0 %v8034
        %v8179 = vpop.f32.mrf.mxu0
        %v8180 = vadd.f32 %v8091, %v8179
        %v8181 = vpop.f32.mrf.mxu0
        %v8182 = vadd.f32 %v8093, %v8181
        %8183 = vmatmul.bf16.gmra.mxu0 %v8037
        %v8184 = vpop.f32.mrf.mxu0
        %v8185 = vadd.f32 %v8096, %v8184
        %v8186 = vpop.f32.mrf.mxu0
        %v8187 = vadd.f32 %v8098, %v8186
        %8188 = vmatmul.bf16.gmra.mxu0 %v8040
        %v8189 = vpop.f32.mrf.mxu0
        %v8190 = vadd.f32 %v8101, %v8189
        %v8191 = vpop.f32.mrf.mxu0
        %v8192 = vadd.f32 %v8103, %v8191
        %8193 = vmatmul.bf16.gmra.mxu0 %v8043
        %v8194 = vpop.f32.mrf.mxu0
        %v8195 = vadd.f32 %v8106, %v8194
        %v8196 = vpop.f32.mrf.mxu0
        %v8197 = vadd.f32 %v8108, %v8196
        %8198 = vmatmul.bf16.gmra.mxu0 %v8046
        %v8199 = vpop.f32.mrf.mxu0
        %v8200 = vadd.f32 %v8111, %v8199
        %v8201 = vpop.f32.mrf.mxu0
        %v8202 = vadd.f32 %v8113, %v8201
        %8203 = vmatmul.bf16.gmra.mxu0 %v8049
        %v8204 = vpop.f32.mrf.mxu0
        %v8205 = vadd.f32 %v8116, %v8204
        %v8206 = vpop.f32.mrf.mxu0
        %v8207 = vadd.f32 %v8118, %v8206
        %8208 = vmatmul.bf16.gmra.mxu0 %v8052
        %v8209 = vpop.f32.mrf.mxu0
        %v8210 = vadd.f32 %v8121, %v8209
        %v8211 = vpop.f32.mrf.mxu0
        %v8212 = vadd.f32 %v8123, %v8211
        %8213 = vmatmul.bf16.gmra.mxu0 %v8055
        %v8214 = vpop.f32.mrf.mxu0
        %v8215 = vadd.f32 %v8126, %v8214
        %v8216 = vpop.f32.mrf.mxu0
        %v8217 = vadd.f32 %v8128, %v8216
        %8218 = vmatmul.bf16.gmra.mxu0 %v8058
        %v8219 = vpop.f32.mrf.mxu0
        %v8220 = vadd.f32 %v8131, %v8219
        %v8221 = vpop.f32.mrf.mxu0
        %v8222 = vadd.f32 %v8133, %v8221
        %8223 = vmatmul.bf16.gmra.mxu0 %v8061
        %v8224 = vpop.f32.mrf.mxu0
        %v8225 = vadd.f32 %v8136, %v8224
        %v8226 = vpop.f32.mrf.mxu0
        %v8227 = vadd.f32 %v8138, %v8226
        %8228 = vmatmul.bf16.gmra.mxu0 %v8064
        %v8229 = vpop.f32.mrf.mxu0
        %v8230 = vadd.f32 %v8141, %v8229
        %v8231 = vpop.f32.mrf.mxu0
        %v8232 = vadd.f32 %v8143, %v8231
        %8233 = vmatmul.bf16.gmra.mxu0 %v8067
        %v8234 = vpop.f32.mrf.mxu0
        %v8235 = vadd.f32 %v8146, %v8234
        %v8236 = vpop.f32.mrf.mxu0
        %v8237 = vadd.f32 %v8148, %v8236
        %8238 = vmatmul.bf16.gmra.mxu0 %v8070
        %v8239 = vpop.f32.mrf.mxu0
        %v8240 = vadd.f32 %v8151, %v8239
        %v8241 = vpop.f32.mrf.mxu0
        %v8242 = vadd.f32 %v8153, %v8241
        %8243 = vmatmul.bf16.gmra.mxu0 %v8073
        %v8244 = vpop.f32.mrf.mxu0
        %v8245 = vadd.f32 %v8156, %v8244
        %v8246 = vpop.f32.mrf.mxu0
        %v8247 = vadd.f32 %v8158, %v8246
        %8248 = vmatmul.bf16.gmra.mxu0 %v8076
        %v8249 = vpop.f32.mrf.mxu0
        %v8250 = vadd.f32 %v8161, %v8249
        %v8251 = vpop.f32.mrf.mxu0
        %v8252 = vadd.f32 %v8163, %v8251
        %8253 = vmatmul.bf16.gmra.mxu0 %v8079
        %v8254 = vpop.f32.mrf.mxu0
        %v8255 = vadd.f32 %v8166, %v8254
        %v8256 = vpop.f32.mrf.mxu0
        %v8257 = vadd.f32 %v8168, %v8256
        %8258 = vdwg.mxu0
        %v8261 = vunpack.c.l.b16 %v7733
        %v8262 = vunpack.c.h.b16 %v7733
        %v8263 = vunpack.c.l.b16 %v7734
        %v8264 = vunpack.c.h.b16 %v7734
        %v8265 = vpack.c.b16 %v8263, %v8261
        %v8266 = vpack.c.b16 %v8264, %v8262
        %v8292 = vunpack.c.l.b16 %v7766
        %v8293 = vunpack.c.l.b16 %v7767
        %v8294 = vunpack.c.l.b16 %v7768
        %v8295 = vunpack.c.l.b16 %v7769
        %v8296 = vunpack.c.l.b16 %v7770
        %v8297 = vunpack.c.l.b16 %v7771
        %v8298 = vunpack.c.l.b16 %v7772
        %v8299 = vunpack.c.l.b16 %v7773
        %v8300 = vunpack.c.l.b16 %v7774
        %v8301 = vunpack.c.l.b16 %v7775
        %v8302 = vunpack.c.l.b16 %v7776
        %v8303 = vunpack.c.l.b16 %v7777
        %v8304 = vunpack.c.l.b16 %v7778
        %v8305 = vunpack.c.l.b16 %v7779
        %v8306 = vunpack.c.l.b16 %v7780
        %v8307 = vunpack.c.l.b16 %v7781
        %v8308 = vunpack.c.l.b16 %v7782
        %v8309 = vunpack.c.l.b16 %v7783
        %v8310 = vunpack.c.l.b16 %v7784
        %v8311 = vunpack.c.l.b16 %v7785
        %v8312 = vunpack.c.l.b16 %v7786
        %v8313 = vunpack.c.l.b16 %v7787
        %v8314 = vunpack.c.l.b16 %v7788
        %v8315 = vunpack.c.l.b16 %v7789
        %v8316 = vpack.c.b16 %v8293, %v8292
        %v8317 = vpack.c.b16 %v8295, %v8294
        %v8318 = vpack.c.b16 %v8297, %v8296
        %v8319 = vpack.c.b16 %v8299, %v8298
        %v8320 = vpack.c.b16 %v8301, %v8300
        %v8321 = vpack.c.b16 %v8303, %v8302
        %v8322 = vpack.c.b16 %v8305, %v8304
        %v8323 = vpack.c.b16 %v8307, %v8306
        %v8324 = vpack.c.b16 %v8309, %v8308
        %v8325 = vpack.c.b16 %v8311, %v8310
        %v8326 = vpack.c.b16 %v8313, %v8312
        %v8327 = vpack.c.b16 %v8315, %v8314
        %v8341 = vsel %vm273, %v8266, 0
        %8343 = vmatpush.bf16.msra.mxu0 %v8323
        %8344 = vmatpush.bf16.msra.mxu0 %v8322
        %8345 = vmatpush.bf16.msra.mxu0 %v8321
        %8346 = vmatpush.bf16.msra.mxu0 %v8320
        %8347 = vmatpush.bf16.msra.mxu0 %v8319
        %8348 = vmatpush.bf16.msra.mxu0 %v8318
        %8349 = vmatpush.bf16.msra.mxu0 %v8317
        %8350 = vmatpush.bf16.msra.mxu0 %v8316
        %8351 = vmatmul.bf16.gmra.mxu0 %v8265
        %v8352 = vpop.f32.mrf.mxu0
        %v8353 = vadd.f32 %v8180, %v8352
        %v8354 = vpop.f32.mrf.mxu0
        %v8355 = vadd.f32 %v8182, %v8354
        %8356 = vmatmul.bf16.gmra.mxu0 %v7913
        %v8357 = vpop.f32.mrf.mxu0
        %v8358 = vadd.f32 %v8185, %v8357
        %v8359 = vpop.f32.mrf.mxu0
        %v8360 = vadd.f32 %v8187, %v8359
        %8361 = vmatmul.bf16.gmra.mxu0 %v7915
        %v8362 = vpop.f32.mrf.mxu0
        %v8363 = vadd.f32 %v8190, %v8362
        %v8364 = vpop.f32.mrf.mxu0
        %v8365 = vadd.f32 %v8192, %v8364
        %8366 = vmatmul.bf16.gmra.mxu0 %v7917
        %v8367 = vpop.f32.mrf.mxu0
        %v8368 = vadd.f32 %v8195, %v8367
        %v8369 = vpop.f32.mrf.mxu0
        %v8370 = vadd.f32 %v8197, %v8369
        %8371 = vmatmul.bf16.gmra.mxu0 %v7919
        %v8372 = vpop.f32.mrf.mxu0
        %v8373 = vadd.f32 %v8200, %v8372
        %v8374 = vpop.f32.mrf.mxu0
        %v8375 = vadd.f32 %v8202, %v8374
        %8376 = vmatmul.bf16.gmra.mxu0 %v7921
        %v8377 = vpop.f32.mrf.mxu0
        %v8378 = vadd.f32 %v8205, %v8377
        %v8379 = vpop.f32.mrf.mxu0
        %v8380 = vadd.f32 %v8207, %v8379
        %8381 = vmatmul.bf16.gmra.mxu0 %v7923
        %v8382 = vpop.f32.mrf.mxu0
        %v8383 = vadd.f32 %v8210, %v8382
        %v8384 = vpop.f32.mrf.mxu0
        %v8385 = vadd.f32 %v8212, %v8384
        %8386 = vmatmul.bf16.gmra.mxu0 %v7925
        %v8387 = vpop.f32.mrf.mxu0
        %v8388 = vadd.f32 %v8215, %v8387
        %v8389 = vpop.f32.mrf.mxu0
        %v8390 = vadd.f32 %v8217, %v8389
        %8391 = vmatmul.bf16.gmra.mxu0 %v7927
        %v8392 = vpop.f32.mrf.mxu0
        %v8393 = vadd.f32 %v8220, %v8392
        %v8394 = vpop.f32.mrf.mxu0
        %v8395 = vadd.f32 %v8222, %v8394
        %8396 = vmatmul.bf16.gmra.mxu0 %v7929
        %v8397 = vpop.f32.mrf.mxu0
        %v8398 = vadd.f32 %v8225, %v8397
        %v8399 = vpop.f32.mrf.mxu0
        %v8400 = vadd.f32 %v8227, %v8399
        %8401 = vmatmul.bf16.gmra.mxu0 %v7931
        %v8402 = vpop.f32.mrf.mxu0
        %v8403 = vadd.f32 %v8230, %v8402
        %v8404 = vpop.f32.mrf.mxu0
        %v8405 = vadd.f32 %v8232, %v8404
        %8406 = vmatmul.bf16.gmra.mxu0 %v7933
        %v8407 = vpop.f32.mrf.mxu0
        %v8408 = vadd.f32 %v8235, %v8407
        %v8409 = vpop.f32.mrf.mxu0
        %v8410 = vadd.f32 %v8237, %v8409
        %8411 = vmatmul.bf16.gmra.mxu0 %v7935
        %v8412 = vpop.f32.mrf.mxu0
        %v8413 = vadd.f32 %v8240, %v8412
        %v8414 = vpop.f32.mrf.mxu0
        %v8415 = vadd.f32 %v8242, %v8414
        %8416 = vmatmul.bf16.gmra.mxu0 %v7937
        %v8417 = vpop.f32.mrf.mxu0
        %v8418 = vadd.f32 %v8245, %v8417
        %v8419 = vpop.f32.mrf.mxu0
        %v8420 = vadd.f32 %v8247, %v8419
        %8421 = vmatmul.bf16.gmra.mxu0 %v7939
        %v8422 = vpop.f32.mrf.mxu0
        %v8423 = vadd.f32 %v8250, %v8422
        %v8424 = vpop.f32.mrf.mxu0
        %v8425 = vadd.f32 %v8252, %v8424
        %8426 = vmatmul.bf16.gmra.mxu0 %v7941
        %v8427 = vpop.f32.mrf.mxu0
        %v8428 = vadd.f32 %v8255, %v8427
        %v8429 = vpop.f32.mrf.mxu0
        %v8430 = vadd.f32 %v8257, %v8429
        %8431 = vdwg.mxu0
        %8432 = vmatpush.bf16.msra.mxu0 0
        %8433 = vmatpush.bf16.msra.mxu0 0
        %8434 = vmatpush.bf16.msra.mxu0 0
        %8435 = vmatpush.bf16.msra.mxu0 0
        %8436 = vmatpush.bf16.msra.mxu0 %v8327
        %8437 = vmatpush.bf16.msra.mxu0 %v8326
        %8438 = vmatpush.bf16.msra.mxu0 %v8325
        %8439 = vmatpush.bf16.msra.mxu0 %v8324
        %8440 = vmatmul.bf16.gmra.mxu0 %v8341
        %v8441 = vpop.f32.mrf.mxu0
        %v8442 = vadd.f32 %v8353, %v8441
        %v8443 = vpop.f32.mrf.mxu0
        %v8444 = vadd.f32 %v8355, %v8443
        %8445 = vmatmul.bf16.gmra.mxu0 %v8034
        %v8446 = vpop.f32.mrf.mxu0
        %v8447 = vadd.f32 %v8358, %v8446
        %v8448 = vpop.f32.mrf.mxu0
        %v8449 = vadd.f32 %v8360, %v8448
        %8450 = vmatmul.bf16.gmra.mxu0 %v8037
        %v8451 = vpop.f32.mrf.mxu0
        %v8452 = vadd.f32 %v8363, %v8451
        %v8453 = vpop.f32.mrf.mxu0
        %v8454 = vadd.f32 %v8365, %v8453
        %8455 = vmatmul.bf16.gmra.mxu0 %v8040
        %v8456 = vpop.f32.mrf.mxu0
        %v8457 = vadd.f32 %v8368, %v8456
        %v8458 = vpop.f32.mrf.mxu0
        %v8459 = vadd.f32 %v8370, %v8458
        %8460 = vmatmul.bf16.gmra.mxu0 %v8043
        %v8461 = vpop.f32.mrf.mxu0
        %v8462 = vadd.f32 %v8373, %v8461
        %v8463 = vpop.f32.mrf.mxu0
        %v8464 = vadd.f32 %v8375, %v8463
        %8465 = vmatmul.bf16.gmra.mxu0 %v8046
        %v8466 = vpop.f32.mrf.mxu0
        %v8467 = vadd.f32 %v8378, %v8466
        %v8468 = vpop.f32.mrf.mxu0
        %v8469 = vadd.f32 %v8380, %v8468
        %8470 = vmatmul.bf16.gmra.mxu0 %v8049
        %v8471 = vpop.f32.mrf.mxu0
        %v8472 = vadd.f32 %v8383, %v8471
        %v8473 = vpop.f32.mrf.mxu0
        %v8474 = vadd.f32 %v8385, %v8473
        %8475 = vmatmul.bf16.gmra.mxu0 %v8052
        %v8476 = vpop.f32.mrf.mxu0
        %v8477 = vadd.f32 %v8388, %v8476
        %v8478 = vpop.f32.mrf.mxu0
        %v8479 = vadd.f32 %v8390, %v8478
        %8480 = vmatmul.bf16.gmra.mxu0 %v8055
        %v8481 = vpop.f32.mrf.mxu0
        %v8482 = vadd.f32 %v8393, %v8481
        %v8483 = vpop.f32.mrf.mxu0
        %v8484 = vadd.f32 %v8395, %v8483
        %8485 = vmatmul.bf16.gmra.mxu0 %v8058
        %v8486 = vpop.f32.mrf.mxu0
        %v8487 = vadd.f32 %v8398, %v8486
        %v8488 = vpop.f32.mrf.mxu0
        %v8489 = vadd.f32 %v8400, %v8488
        %8490 = vmatmul.bf16.gmra.mxu0 %v8061
        %v8491 = vpop.f32.mrf.mxu0
        %v8492 = vadd.f32 %v8403, %v8491
        %v8493 = vpop.f32.mrf.mxu0
        %v8494 = vadd.f32 %v8405, %v8493
        %8495 = vmatmul.bf16.gmra.mxu0 %v8064
        %v8496 = vpop.f32.mrf.mxu0
        %v8497 = vadd.f32 %v8408, %v8496
        %v8498 = vpop.f32.mrf.mxu0
        %v8499 = vadd.f32 %v8410, %v8498
        %8500 = vmatmul.bf16.gmra.mxu0 %v8067
        %v8501 = vpop.f32.mrf.mxu0
        %v8502 = vadd.f32 %v8413, %v8501
        %v8503 = vpop.f32.mrf.mxu0
        %v8504 = vadd.f32 %v8415, %v8503
        %8505 = vmatmul.bf16.gmra.mxu0 %v8070
        %v8506 = vpop.f32.mrf.mxu0
        %v8507 = vadd.f32 %v8418, %v8506
        %v8508 = vpop.f32.mrf.mxu0
        %v8509 = vadd.f32 %v8420, %v8508
        %8510 = vmatmul.bf16.gmra.mxu0 %v8073
        %v8511 = vpop.f32.mrf.mxu0
        %v8512 = vadd.f32 %v8423, %v8511
        %v8513 = vpop.f32.mrf.mxu0
        %v8514 = vadd.f32 %v8425, %v8513
        %8515 = vmatmul.bf16.gmra.mxu0 %v8076
        %v8516 = vpop.f32.mrf.mxu0
        %v8517 = vadd.f32 %v8428, %v8516
        %v8518 = vpop.f32.mrf.mxu0
        %v8519 = vadd.f32 %v8430, %v8518
        %8520 = vdwg.mxu0
        %v8521 = vld [vmem:[#allocation3 + $0x20] sm:$0xff]
        %v8522 = vld [vmem:[#allocation3 + $0x28] sm:$0xff]
        %v8523 = vld [vmem:[#allocation3 + $0x30] sm:$0xff]
        %v8524 = vld [vmem:[#allocation3 + $0x38] sm:$0xff]
        %v8525 = vld [vmem:[#allocation3 + $0x40] sm:$0xff]
        %v8526 = vld [vmem:[#allocation3 + $0x48] sm:$0xff]
        %v8527 = vld [vmem:[#allocation3 + $0x50] sm:$0xff]
        %v8528 = vld [vmem:[#allocation3 + $0x58] sm:$0xff]
        %v8529 = vld [vmem:[#allocation3 + $0x60] sm:$0xff]
        %v8530 = vld [vmem:[#allocation3 + $0x68] sm:$0xff]
        %v8531 = vld [vmem:[#allocation3 + $0x70] sm:$0xff]
        %v8532 = vld [vmem:[#allocation3 + $0x78] sm:$0xff]
        %v8533 = vld [vmem:[#allocation3 + $0x80] sm:$0xff]
        %v8534 = vld [vmem:[#allocation3 + $0x88] sm:$0xff]
        %v8535 = vld [vmem:[#allocation3 + $0x90] sm:$0xff]
        %v8536 = vld [vmem:[#allocation3 + $0x98] sm:$0xff]
        %v8537 = vld [vmem:[#allocation3 + $0xa0] sm:$0xff]
        %v8538 = vld [vmem:[#allocation3 + $0xa8] sm:$0xff]
        %v8539 = vld [vmem:[#allocation3 + $0xb0] sm:$0xff]
        %v8540 = vld [vmem:[#allocation3 + $0xb8] sm:$0xff]
        %v8541 = vld [vmem:[#allocation3 + $0xc0] sm:$0xff]
        %v8542 = vld [vmem:[#allocation3 + $0xc8] sm:$0xff]
        %v8543 = vld [vmem:[#allocation3 + $0xd0] sm:$0xff]
        %v8544 = vld [vmem:[#allocation3 + $0xd8] sm:$0xff]
        %v8545 = vld [vmem:[#allocation3 + $0xe0] sm:$0xff]
        %v8546 = vld [vmem:[#allocation3 + $0xe8] sm:$0xff]
        %v8547 = vld [vmem:[#allocation3 + $0xf0] sm:$0xff]
        %v8548 = vld [vmem:[#allocation3 + $0xf8] sm:$0xff]
        %v8549 = vld [vmem:[#allocation3 + $0x100] sm:$0xff]
        %v8550 = vld [vmem:[#allocation3 + $0x108] sm:$0xff]
        %v8551 = vld [vmem:[#allocation3 + $0x110] sm:$0xff]
        %v8552 = vld [vmem:[#allocation3 + $0x118] sm:$0xff]
        %s8553 = scalar_lea.vmem %s1, 2496
        %v8554 = vld [vmem:[%s8553] sm:$0xf]
        %v8555 = vld [vmem:[%s8553 + $0x4] sm:$0xf]
        %v8556 = vld [vmem:[%s8553 + $0x8] sm:$0xf]
        %v8557 = vld [vmem:[%s8553 + $0xc] sm:$0xf]
        %v8558 = vld [vmem:[%s8553 + $0x10] sm:$0xf]
        %v8559 = vld [vmem:[%s8553 + $0x14] sm:$0xf]
        %v8560 = vld [vmem:[%s8553 + $0x18] sm:$0xf]
        %v8561 = vld [vmem:[%s8553 + $0x1c] sm:$0xf]
        %v8562 = vld [vmem:[%s8553 + $0x20] sm:$0xf]
        %v8563 = vld [vmem:[%s8553 + $0x24] sm:$0xf]
        %v8564 = vld [vmem:[%s8553 + $0x28] sm:$0xf]
        %v8565 = vld [vmem:[%s8553 + $0x2c] sm:$0xf]
        %v8566 = vld [vmem:[%s8553 + $0x30] sm:$0xf]
        %v8567 = vld [vmem:[%s8553 + $0x34] sm:$0xf]
        %v8568 = vld [vmem:[%s8553 + $0x38] sm:$0xf]
        %v8569 = vld [vmem:[%s8553 + $0x3c] sm:$0xf]
        %v8570 = vld [vmem:[%s8553 + $0x40] sm:$0xf]
        %v8571 = vld [vmem:[%s8553 + $0x44] sm:$0xf]
        %v8572 = vld [vmem:[%s8553 + $0x48] sm:$0xf]
        %v8573 = vld [vmem:[%s8553 + $0x4c] sm:$0xf]
        %v8574 = vld [vmem:[%s8553 + $0x50] sm:$0xf]
        %v8575 = vld [vmem:[%s8553 + $0x54] sm:$0xf]
        %v8576 = vld [vmem:[%s8553 + $0x58] sm:$0xf]
        %v8577 = vld [vmem:[%s8553 + $0x5c] sm:$0xf]
        %v8610 = vunpack.c.l.b16 %v8521
        %v8611 = vunpack.c.h.b16 %v8521
        %v8612 = vunpack.c.l.b16 %v8522
        %v8613 = vunpack.c.h.b16 %v8522
        %v8614 = vunpack.c.l.b16 %v8523
        %v8615 = vunpack.c.h.b16 %v8523
        %v8616 = vunpack.c.l.b16 %v8524
        %v8617 = vunpack.c.h.b16 %v8524
        %v8618 = vunpack.c.l.b16 %v8525
        %v8619 = vunpack.c.h.b16 %v8525
        %v8620 = vunpack.c.l.b16 %v8526
        %v8621 = vunpack.c.h.b16 %v8526
        %v8622 = vunpack.c.l.b16 %v8527
        %v8623 = vunpack.c.h.b16 %v8527
        %v8624 = vunpack.c.l.b16 %v8528
        %v8625 = vunpack.c.h.b16 %v8528
        %v8626 = vunpack.c.l.b16 %v8529
        %v8627 = vunpack.c.h.b16 %v8529
        %v8628 = vunpack.c.l.b16 %v8530
        %v8629 = vunpack.c.h.b16 %v8530
        %v8630 = vunpack.c.l.b16 %v8531
        %v8631 = vunpack.c.h.b16 %v8531
        %v8632 = vunpack.c.l.b16 %v8532
        %v8633 = vunpack.c.h.b16 %v8532
        %v8634 = vunpack.c.l.b16 %v8533
        %v8635 = vunpack.c.h.b16 %v8533
        %v8636 = vunpack.c.l.b16 %v8534
        %v8637 = vunpack.c.h.b16 %v8534
        %v8638 = vunpack.c.l.b16 %v8535
        %v8639 = vunpack.c.h.b16 %v8535
        %v8640 = vunpack.c.l.b16 %v8536
        %v8641 = vunpack.c.h.b16 %v8536
        %v8642 = vunpack.c.l.b16 %v8537
        %v8643 = vunpack.c.h.b16 %v8537
        %v8644 = vunpack.c.l.b16 %v8538
        %v8645 = vunpack.c.h.b16 %v8538
        %v8646 = vunpack.c.l.b16 %v8539
        %v8647 = vunpack.c.h.b16 %v8539
        %v8648 = vunpack.c.l.b16 %v8540
        %v8649 = vunpack.c.h.b16 %v8540
        %v8650 = vunpack.c.l.b16 %v8541
        %v8651 = vunpack.c.h.b16 %v8541
        %v8652 = vunpack.c.l.b16 %v8542
        %v8653 = vunpack.c.h.b16 %v8542
        %v8654 = vunpack.c.l.b16 %v8543
        %v8655 = vunpack.c.h.b16 %v8543
        %v8656 = vunpack.c.l.b16 %v8544
        %v8657 = vunpack.c.h.b16 %v8544
        %v8658 = vunpack.c.l.b16 %v8545
        %v8659 = vunpack.c.h.b16 %v8545
        %v8660 = vunpack.c.l.b16 %v8546
        %v8661 = vunpack.c.h.b16 %v8546
        %v8662 = vunpack.c.l.b16 %v8547
        %v8663 = vunpack.c.h.b16 %v8547
        %v8664 = vunpack.c.l.b16 %v8548
        %v8665 = vunpack.c.h.b16 %v8548
        %v8666 = vunpack.c.l.b16 %v8549
        %v8667 = vunpack.c.h.b16 %v8549
        %v8668 = vunpack.c.l.b16 %v8550
        %v8669 = vunpack.c.h.b16 %v8550
        %v8670 = vunpack.c.l.b16 %v8551
        %v8671 = vunpack.c.h.b16 %v8551
        %v8672 = vunpack.c.l.b16 %v8552
        %v8673 = vunpack.c.h.b16 %v8552
        %v8674 = vpack.c.b16 %v8612, %v8610
        %v8675 = vpack.c.b16 %v8613, %v8611
        %v8676 = vpack.c.b16 %v8616, %v8614
        %v8677 = vpack.c.b16 %v8617, %v8615
        %v8678 = vpack.c.b16 %v8620, %v8618
        %v8679 = vpack.c.b16 %v8621, %v8619
        %v8680 = vpack.c.b16 %v8624, %v8622
        %v8681 = vpack.c.b16 %v8625, %v8623
        %v8682 = vpack.c.b16 %v8628, %v8626
        %v8683 = vpack.c.b16 %v8629, %v8627
        %v8684 = vpack.c.b16 %v8632, %v8630
        %v8685 = vpack.c.b16 %v8633, %v8631
        %v8686 = vpack.c.b16 %v8636, %v8634
        %v8687 = vpack.c.b16 %v8637, %v8635
        %v8688 = vpack.c.b16 %v8640, %v8638
        %v8689 = vpack.c.b16 %v8641, %v8639
        %v8690 = vpack.c.b16 %v8644, %v8642
        %v8691 = vpack.c.b16 %v8645, %v8643
        %v8692 = vpack.c.b16 %v8648, %v8646
        %v8693 = vpack.c.b16 %v8649, %v8647
        %v8694 = vpack.c.b16 %v8652, %v8650
        %v8695 = vpack.c.b16 %v8653, %v8651
        %v8696 = vpack.c.b16 %v8656, %v8654
        %v8697 = vpack.c.b16 %v8657, %v8655
        %v8698 = vpack.c.b16 %v8660, %v8658
        %v8699 = vpack.c.b16 %v8661, %v8659
        %v8700 = vpack.c.b16 %v8664, %v8662
        %v8701 = vpack.c.b16 %v8665, %v8663
        %v8702 = vpack.c.b16 %v8668, %v8666
        %v8703 = vpack.c.b16 %v8669, %v8667
        %v8704 = vpack.c.b16 %v8672, %v8670
        %v8705 = vpack.c.b16 %v8673, %v8671
        %v8746 = vunpack.c.l.b16 %v8554
        %v8747 = vunpack.c.l.b16 %v8555
        %v8748 = vunpack.c.l.b16 %v8556
        %v8749 = vunpack.c.l.b16 %v8557
        %v8750 = vunpack.c.l.b16 %v8558
        %v8751 = vunpack.c.l.b16 %v8559
        %v8752 = vunpack.c.l.b16 %v8560
        %v8753 = vunpack.c.l.b16 %v8561
        %v8754 = vunpack.c.l.b16 %v8562
        %v8755 = vunpack.c.l.b16 %v8563
        %v8756 = vunpack.c.l.b16 %v8564
        %v8757 = vunpack.c.l.b16 %v8565
        %v8758 = vunpack.c.l.b16 %v8566
        %v8759 = vunpack.c.l.b16 %v8567
        %v8760 = vunpack.c.l.b16 %v8568
        %v8761 = vunpack.c.l.b16 %v8569
        %v8762 = vunpack.c.l.b16 %v8570
        %v8763 = vunpack.c.l.b16 %v8571
        %v8764 = vunpack.c.l.b16 %v8572
        %v8765 = vunpack.c.l.b16 %v8573
        %v8766 = vunpack.c.l.b16 %v8574
        %v8767 = vunpack.c.l.b16 %v8575
        %v8768 = vunpack.c.l.b16 %v8576
        %v8769 = vunpack.c.l.b16 %v8577
        %v8770 = vpack.c.b16 %v8747, %v8746
        %v8771 = vpack.c.b16 %v8749, %v8748
        %v8772 = vpack.c.b16 %v8751, %v8750
        %v8773 = vpack.c.b16 %v8753, %v8752
        %v8774 = vpack.c.b16 %v8755, %v8754
        %v8775 = vpack.c.b16 %v8757, %v8756
        %v8776 = vpack.c.b16 %v8759, %v8758
        %v8777 = vpack.c.b16 %v8761, %v8760
        %v8778 = vpack.c.b16 %v8763, %v8762
        %v8779 = vpack.c.b16 %v8765, %v8764
        %v8780 = vpack.c.b16 %v8767, %v8766
        %v8781 = vpack.c.b16 %v8769, %v8768
        %v8795 = vsel %vm273, %v8675, 0
        %v8798 = vsel %vm273, %v8677, 0
        %v8801 = vsel %vm273, %v8679, 0
        %v8804 = vsel %vm273, %v8681, 0
        %v8807 = vsel %vm273, %v8683, 0
        %v8810 = vsel %vm273, %v8685, 0
        %v8813 = vsel %vm273, %v8687, 0
        %v8816 = vsel %vm273, %v8689, 0
        %v8819 = vsel %vm273, %v8691, 0
        %v8822 = vsel %vm273, %v8693, 0
        %v8825 = vsel %vm273, %v8695, 0
        %v8828 = vsel %vm273, %v8697, 0
        %v8831 = vsel %vm273, %v8699, 0
        %v8834 = vsel %vm273, %v8701, 0
        %v8837 = vsel %vm273, %v8703, 0
        %v8840 = vsel %vm273, %v8705, 0
        %8842 = vmatpush.bf16.msra.mxu0 %v8777
        %8843 = vmatpush.bf16.msra.mxu0 %v8776
        %8844 = vmatpush.bf16.msra.mxu0 %v8775
        %8845 = vmatpush.bf16.msra.mxu0 %v8774
        %8846 = vmatpush.bf16.msra.mxu0 %v8773
        %8847 = vmatpush.bf16.msra.mxu0 %v8772
        %8848 = vmatpush.bf16.msra.mxu0 %v8771
        %8849 = vmatpush.bf16.msra.mxu0 %v8770
        %8850 = vmatmul.bf16.gmra.mxu0 %v8674
        %v8851 = vpop.f32.mrf.mxu0
        %v8852 = vadd.f32 0.0, %v8851
        %v8853 = vpop.f32.mrf.mxu0
        %v8854 = vadd.f32 0.0, %v8853
        %8855 = vmatmul.bf16.gmra.mxu0 %v8676
        %v8856 = vpop.f32.mrf.mxu0
        %v8857 = vadd.f32 0.0, %v8856
        %v8858 = vpop.f32.mrf.mxu0
        %v8859 = vadd.f32 0.0, %v8858
        %8860 = vmatmul.bf16.gmra.mxu0 %v8678
        %v8861 = vpop.f32.mrf.mxu0
        %v8862 = vadd.f32 0.0, %v8861
        %v8863 = vpop.f32.mrf.mxu0
        %v8864 = vadd.f32 0.0, %v8863
        %8865 = vmatmul.bf16.gmra.mxu0 %v8680
        %v8866 = vpop.f32.mrf.mxu0
        %v8867 = vadd.f32 0.0, %v8866
        %v8868 = vpop.f32.mrf.mxu0
        %v8869 = vadd.f32 0.0, %v8868
        %8870 = vmatmul.bf16.gmra.mxu0 %v8682
        %v8871 = vpop.f32.mrf.mxu0
        %v8872 = vadd.f32 0.0, %v8871
        %v8873 = vpop.f32.mrf.mxu0
        %v8874 = vadd.f32 0.0, %v8873
        %8875 = vmatmul.bf16.gmra.mxu0 %v8684
        %v8876 = vpop.f32.mrf.mxu0
        %v8877 = vadd.f32 0.0, %v8876
        %v8878 = vpop.f32.mrf.mxu0
        %v8879 = vadd.f32 0.0, %v8878
        %8880 = vmatmul.bf16.gmra.mxu0 %v8686
        %v8881 = vpop.f32.mrf.mxu0
        %v8882 = vadd.f32 0.0, %v8881
        %v8883 = vpop.f32.mrf.mxu0
        %v8884 = vadd.f32 0.0, %v8883
        %8885 = vmatmul.bf16.gmra.mxu0 %v8688
        %v8886 = vpop.f32.mrf.mxu0
        %v8887 = vadd.f32 0.0, %v8886
        %v8888 = vpop.f32.mrf.mxu0
        %v8889 = vadd.f32 0.0, %v8888
        %8890 = vmatmul.bf16.gmra.mxu0 %v8690
        %v8891 = vpop.f32.mrf.mxu0
        %v8892 = vadd.f32 0.0, %v8891
        %v8893 = vpop.f32.mrf.mxu0
        %v8894 = vadd.f32 0.0, %v8893
        %8895 = vmatmul.bf16.gmra.mxu0 %v8692
        %v8896 = vpop.f32.mrf.mxu0
        %v8897 = vadd.f32 0.0, %v8896
        %v8898 = vpop.f32.mrf.mxu0
        %v8899 = vadd.f32 0.0, %v8898
        %8900 = vmatmul.bf16.gmra.mxu0 %v8694
        %v8901 = vpop.f32.mrf.mxu0
        %v8902 = vadd.f32 0.0, %v8901
        %v8903 = vpop.f32.mrf.mxu0
        %v8904 = vadd.f32 0.0, %v8903
        %8905 = vmatmul.bf16.gmra.mxu0 %v8696
        %v8906 = vpop.f32.mrf.mxu0
        %v8907 = vadd.f32 0.0, %v8906
        %v8908 = vpop.f32.mrf.mxu0
        %v8909 = vadd.f32 0.0, %v8908
        %8910 = vmatmul.bf16.gmra.mxu0 %v8698
        %v8911 = vpop.f32.mrf.mxu0
        %v8912 = vadd.f32 0.0, %v8911
        %v8913 = vpop.f32.mrf.mxu0
        %v8914 = vadd.f32 0.0, %v8913
        %8915 = vmatmul.bf16.gmra.mxu0 %v8700
        %v8916 = vpop.f32.mrf.mxu0
        %v8917 = vadd.f32 0.0, %v8916
        %v8918 = vpop.f32.mrf.mxu0
        %v8919 = vadd.f32 0.0, %v8918
        %8920 = vmatmul.bf16.gmra.mxu0 %v8702
        %v8921 = vpop.f32.mrf.mxu0
        %v8922 = vadd.f32 0.0, %v8921
        %v8923 = vpop.f32.mrf.mxu0
        %v8924 = vadd.f32 0.0, %v8923
        %8925 = vmatmul.bf16.gmra.mxu0 %v8704
        %v8926 = vpop.f32.mrf.mxu0
        %v8927 = vadd.f32 0.0, %v8926
        %v8928 = vpop.f32.mrf.mxu0
        %v8929 = vadd.f32 0.0, %v8928
        %8930 = vdwg.mxu0
        %8931 = vmatpush.bf16.msra.mxu0 0
        %8932 = vmatpush.bf16.msra.mxu0 0
        %8933 = vmatpush.bf16.msra.mxu0 0
        %8934 = vmatpush.bf16.msra.mxu0 0
        %8935 = vmatpush.bf16.msra.mxu0 %v8781
        %8936 = vmatpush.bf16.msra.mxu0 %v8780
        %8937 = vmatpush.bf16.msra.mxu0 %v8779
        %8938 = vmatpush.bf16.msra.mxu0 %v8778
        %8939 = vmatmul.bf16.gmra.mxu0 %v8795
        %v8940 = vpop.f32.mrf.mxu0
        %v8941 = vadd.f32 %v8852, %v8940
        %v8942 = vpop.f32.mrf.mxu0
        %v8943 = vadd.f32 %v8854, %v8942
        %8944 = vmatmul.bf16.gmra.mxu0 %v8798
        %v8945 = vpop.f32.mrf.mxu0
        %v8946 = vadd.f32 %v8857, %v8945
        %v8947 = vpop.f32.mrf.mxu0
        %v8948 = vadd.f32 %v8859, %v8947
        %8949 = vmatmul.bf16.gmra.mxu0 %v8801
        %v8950 = vpop.f32.mrf.mxu0
        %v8951 = vadd.f32 %v8862, %v8950
        %v8952 = vpop.f32.mrf.mxu0
        %v8953 = vadd.f32 %v8864, %v8952
        %8954 = vmatmul.bf16.gmra.mxu0 %v8804
        %v8955 = vpop.f32.mrf.mxu0
        %v8956 = vadd.f32 %v8867, %v8955
        %v8957 = vpop.f32.mrf.mxu0
        %v8958 = vadd.f32 %v8869, %v8957
        %8959 = vmatmul.bf16.gmra.mxu0 %v8807
        %v8960 = vpop.f32.mrf.mxu0
        %v8961 = vadd.f32 %v8872, %v8960
        %v8962 = vpop.f32.mrf.mxu0
        %v8963 = vadd.f32 %v8874, %v8962
        %8964 = vmatmul.bf16.gmra.mxu0 %v8810
        %v8965 = vpop.f32.mrf.mxu0
        %v8966 = vadd.f32 %v8877, %v8965
        %v8967 = vpop.f32.mrf.mxu0
        %v8968 = vadd.f32 %v8879, %v8967
        %8969 = vmatmul.bf16.gmra.mxu0 %v8813
        %v8970 = vpop.f32.mrf.mxu0
        %v8971 = vadd.f32 %v8882, %v8970
        %v8972 = vpop.f32.mrf.mxu0
        %v8973 = vadd.f32 %v8884, %v8972
        %8974 = vmatmul.bf16.gmra.mxu0 %v8816
        %v8975 = vpop.f32.mrf.mxu0
        %v8976 = vadd.f32 %v8887, %v8975
        %v8977 = vpop.f32.mrf.mxu0
        %v8978 = vadd.f32 %v8889, %v8977
        %8979 = vmatmul.bf16.gmra.mxu0 %v8819
        %v8980 = vpop.f32.mrf.mxu0
        %v8981 = vadd.f32 %v8892, %v8980
        %v8982 = vpop.f32.mrf.mxu0
        %v8983 = vadd.f32 %v8894, %v8982
        %8984 = vmatmul.bf16.gmra.mxu0 %v8822
        %v8985 = vpop.f32.mrf.mxu0
        %v8986 = vadd.f32 %v8897, %v8985
        %v8987 = vpop.f32.mrf.mxu0
        %v8988 = vadd.f32 %v8899, %v8987
        %8989 = vmatmul.bf16.gmra.mxu0 %v8825
        %v8990 = vpop.f32.mrf.mxu0
        %v8991 = vadd.f32 %v8902, %v8990
        %v8992 = vpop.f32.mrf.mxu0
        %v8993 = vadd.f32 %v8904, %v8992
        %8994 = vmatmul.bf16.gmra.mxu0 %v8828
        %v8995 = vpop.f32.mrf.mxu0
        %v8996 = vadd.f32 %v8907, %v8995
        %v8997 = vpop.f32.mrf.mxu0
        %v8998 = vadd.f32 %v8909, %v8997
        %8999 = vmatmul.bf16.gmra.mxu0 %v8831
        %v9000 = vpop.f32.mrf.mxu0
        %v9001 = vadd.f32 %v8912, %v9000
        %v9002 = vpop.f32.mrf.mxu0
        %v9003 = vadd.f32 %v8914, %v9002
        %9004 = vmatmul.bf16.gmra.mxu0 %v8834
        %v9005 = vpop.f32.mrf.mxu0
        %v9006 = vadd.f32 %v8917, %v9005
        %v9007 = vpop.f32.mrf.mxu0
        %v9008 = vadd.f32 %v8919, %v9007
        %9009 = vmatmul.bf16.gmra.mxu0 %v8837
        %v9010 = vpop.f32.mrf.mxu0
        %v9011 = vadd.f32 %v8922, %v9010
        %v9012 = vpop.f32.mrf.mxu0
        %v9013 = vadd.f32 %v8924, %v9012
        %9014 = vmatmul.bf16.gmra.mxu0 %v8840
        %v9015 = vpop.f32.mrf.mxu0
        %v9016 = vadd.f32 %v8927, %v9015
        %v9017 = vpop.f32.mrf.mxu0
        %v9018 = vadd.f32 %v8929, %v9017
        %9019 = vdwg.mxu0
        %v9020 = vadd.f32 %v8442, %v8941
        %v9021 = vadd.f32 %v8444, %v8943
        %v9022 = vadd.f32 %v8447, %v8946
        %v9023 = vadd.f32 %v8449, %v8948
        %v9024 = vadd.f32 %v8452, %v8951
        %v9025 = vadd.f32 %v8454, %v8953
        %v9026 = vadd.f32 %v8457, %v8956
        %v9027 = vadd.f32 %v8459, %v8958
        %v9028 = vadd.f32 %v8462, %v8961
        %v9029 = vadd.f32 %v8464, %v8963
        %v9030 = vadd.f32 %v8467, %v8966
        %v9031 = vadd.f32 %v8469, %v8968
        %v9032 = vadd.f32 %v8472, %v8971
        %v9033 = vadd.f32 %v8474, %v8973
        %v9034 = vadd.f32 %v8477, %v8976
        %v9035 = vadd.f32 %v8479, %v8978
        %v9036 = vadd.f32 %v8482, %v8981
        %v9037 = vadd.f32 %v8484, %v8983
        %v9038 = vadd.f32 %v8487, %v8986
        %v9039 = vadd.f32 %v8489, %v8988
        %v9040 = vadd.f32 %v8492, %v8991
        %v9041 = vadd.f32 %v8494, %v8993
        %v9042 = vadd.f32 %v8497, %v8996
        %v9043 = vadd.f32 %v8499, %v8998
        %v9044 = vadd.f32 %v8502, %v9001
        %v9045 = vadd.f32 %v8504, %v9003
        %v9046 = vadd.f32 %v8507, %v9006
        %v9047 = vadd.f32 %v8509, %v9008
        %v9048 = vadd.f32 %v8512, %v9011
        %v9049 = vadd.f32 %v8514, %v9013
        %v9050 = vadd.f32 %v8517, %v9016
        %v9051 = vadd.f32 %v8519, %v9018
        %v9052 = vld [vmem:[#allocation4] sm:$0xff]
        %v9053 = vld [vmem:[#allocation4 + $0x8] sm:$0xff]
        %v9054 = vld [vmem:[#allocation4 + $0x10] sm:$0xff]
        %v9055 = vld [vmem:[#allocation4 + $0x18] sm:$0xff]
        %v9056 = vld [vmem:[#allocation4 + $0x20] sm:$0xff]
        %v9057 = vld [vmem:[#allocation4 + $0x28] sm:$0xff]
        %v9058 = vld [vmem:[#allocation4 + $0x30] sm:$0xff]
        %v9059 = vld [vmem:[#allocation4 + $0x38] sm:$0xff]
        %v9060 = vld [vmem:[#allocation4 + $0x40] sm:$0xff]
        %v9061 = vld [vmem:[#allocation4 + $0x48] sm:$0xff]
        %v9062 = vld [vmem:[#allocation4 + $0x50] sm:$0xff]
        %v9063 = vld [vmem:[#allocation4 + $0x58] sm:$0xff]
        %v9064 = vld [vmem:[#allocation4 + $0x60] sm:$0xff]
        %v9065 = vld [vmem:[#allocation4 + $0x68] sm:$0xff]
        %v9066 = vld [vmem:[#allocation4 + $0x70] sm:$0xff]
        %v9067 = vld [vmem:[#allocation4 + $0x78] sm:$0xff]
        %v9068 = vld [vmem:[#allocation4 + $0x80] sm:$0xff]
        %v9069 = vld [vmem:[#allocation4 + $0x88] sm:$0xff]
        %v9070 = vld [vmem:[#allocation4 + $0x90] sm:$0xff]
        %v9071 = vld [vmem:[#allocation4 + $0x98] sm:$0xff]
        %v9072 = vld [vmem:[#allocation4 + $0xa0] sm:$0xff]
        %v9073 = vld [vmem:[#allocation4 + $0xa8] sm:$0xff]
        %v9074 = vld [vmem:[#allocation4 + $0xb0] sm:$0xff]
        %v9075 = vld [vmem:[#allocation4 + $0xb8] sm:$0xff]
        %v9076 = vld [vmem:[#allocation4 + $0xc0] sm:$0xff]
        %v9077 = vld [vmem:[#allocation4 + $0xc8] sm:$0xff]
        %v9078 = vld [vmem:[#allocation4 + $0xd0] sm:$0xff]
        %v9079 = vld [vmem:[#allocation4 + $0xd8] sm:$0xff]
        %v9080 = vld [vmem:[#allocation4 + $0xe0] sm:$0xff]
        %v9081 = vld [vmem:[#allocation4 + $0xe8] sm:$0xff]
        %v9082 = vld [vmem:[#allocation4 + $0xf0] sm:$0xff]
        %v9083 = vld [vmem:[#allocation4 + $0xf8] sm:$0xff]
        %v9084 = vadd.f32 %v9020, %v9052
        %v9085 = vadd.f32 %v9021, %v9053
        %v9086 = vadd.f32 %v9022, %v9054
        %v9087 = vadd.f32 %v9023, %v9055
        %v9088 = vadd.f32 %v9024, %v9056
        %v9089 = vadd.f32 %v9025, %v9057
        %v9090 = vadd.f32 %v9026, %v9058
        %v9091 = vadd.f32 %v9027, %v9059
        %v9092 = vadd.f32 %v9028, %v9060
        %v9093 = vadd.f32 %v9029, %v9061
        %v9094 = vadd.f32 %v9030, %v9062
        %v9095 = vadd.f32 %v9031, %v9063
        %v9096 = vadd.f32 %v9032, %v9064
        %v9097 = vadd.f32 %v9033, %v9065
        %v9098 = vadd.f32 %v9034, %v9066
        %v9099 = vadd.f32 %v9035, %v9067
        %v9100 = vadd.f32 %v9036, %v9068
        %v9101 = vadd.f32 %v9037, %v9069
        %v9102 = vadd.f32 %v9038, %v9070
        %v9103 = vadd.f32 %v9039, %v9071
        %v9104 = vadd.f32 %v9040, %v9072
        %v9105 = vadd.f32 %v9041, %v9073
        %v9106 = vadd.f32 %v9042, %v9074
        %v9107 = vadd.f32 %v9043, %v9075
        %v9108 = vadd.f32 %v9044, %v9076
        %v9109 = vadd.f32 %v9045, %v9077
        %v9110 = vadd.f32 %v9046, %v9078
        %v9111 = vadd.f32 %v9047, %v9079
        %v9112 = vadd.f32 %v9048, %v9080
        %v9113 = vadd.f32 %v9049, %v9081
        %v9114 = vadd.f32 %v9050, %v9082
        %v9115 = vadd.f32 %v9051, %v9083
        %9116 = vst.msk [vmem:[%s184] sm:$0xff] %vm273, %v9084
        %9117 = vst.msk [vmem:[%s184 + $0x8] sm:$0xff] %vm273, %v9085
        %9118 = vst.msk [vmem:[%s184 + $0x10] sm:$0xff] %vm273, %v9086
        %9119 = vst.msk [vmem:[%s184 + $0x18] sm:$0xff] %vm273, %v9087
        %9120 = vst.msk [vmem:[%s184 + $0x20] sm:$0xff] %vm273, %v9088
        %9121 = vst.msk [vmem:[%s184 + $0x28] sm:$0xff] %vm273, %v9089
        %9122 = vst.msk [vmem:[%s184 + $0x30] sm:$0xff] %vm273, %v9090
        %9123 = vst.msk [vmem:[%s184 + $0x38] sm:$0xff] %vm273, %v9091
        %9124 = vst.msk [vmem:[%s184 + $0x40] sm:$0xff] %vm273, %v9092
        %9125 = vst.msk [vmem:[%s184 + $0x48] sm:$0xff] %vm273, %v9093
        %9126 = vst.msk [vmem:[%s184 + $0x50] sm:$0xff] %vm273, %v9094
        %9127 = vst.msk [vmem:[%s184 + $0x58] sm:$0xff] %vm273, %v9095
        %9128 = vst.msk [vmem:[%s184 + $0x60] sm:$0xff] %vm273, %v9096
        %9129 = vst.msk [vmem:[%s184 + $0x68] sm:$0xff] %vm273, %v9097
        %9130 = vst.msk [vmem:[%s184 + $0x70] sm:$0xff] %vm273, %v9098
        %9131 = vst.msk [vmem:[%s184 + $0x78] sm:$0xff] %vm273, %v9099
        %9132 = vst.msk [vmem:[%s184 + $0x80] sm:$0xff] %vm273, %v9100
        %9133 = vst.msk [vmem:[%s184 + $0x88] sm:$0xff] %vm273, %v9101
        %9134 = vst.msk [vmem:[%s184 + $0x90] sm:$0xff] %vm273, %v9102
        %9135 = vst.msk [vmem:[%s184 + $0x98] sm:$0xff] %vm273, %v9103
        %9136 = vst.msk [vmem:[%s184 + $0xa0] sm:$0xff] %vm273, %v9104
        %9137 = vst.msk [vmem:[%s184 + $0xa8] sm:$0xff] %vm273, %v9105
        %9138 = vst.msk [vmem:[%s184 + $0xb0] sm:$0xff] %vm273, %v9106
        %9139 = vst.msk [vmem:[%s184 + $0xb8] sm:$0xff] %vm273, %v9107
        %9140 = vst.msk [vmem:[%s184 + $0xc0] sm:$0xff] %vm273, %v9108
        %9141 = vst.msk [vmem:[%s184 + $0xc8] sm:$0xff] %vm273, %v9109
        %9142 = vst.msk [vmem:[%s184 + $0xd0] sm:$0xff] %vm273, %v9110
        %9143 = vst.msk [vmem:[%s184 + $0xd8] sm:$0xff] %vm273, %v9111
        %9144 = vst.msk [vmem:[%s184 + $0xe0] sm:$0xff] %vm273, %v9112
        %9145 = vst.msk [vmem:[%s184 + $0xe8] sm:$0xff] %vm273, %v9113
        %9146 = vst.msk [vmem:[%s184 + $0xf0] sm:$0xff] %vm273, %v9114
        %9147 = vst.msk [vmem:[%s184 + $0xf8] sm:$0xff] %vm273, %v9115
        %p9148 = scmp.lt.s32.totalorder %s15, 1
        %s9149 = scalar_select %p9148, %s15, 1
        %s9150 = smul.addr %s9149, 32
        %s9151 = smul.addr %s9150, 8
        %s9152 = scalar_lea.vmem %s3, %s9151
        // Predicated region
        $region44: #{tpu_custom_call.1} parent=31 // pred_check
          %p9153 = pneg %p101
        $region45: #{tpu_custom_call.1} parent=31 // pred_check_branch
          %9155 = sbr.rel (%p9153) target = $region47
        $region46: #{tpu_custom_call.1} parent=31 // pred_region
          _
        $region47: #{tpu_custom_call.1} parent=31 // pred_fallthru
          _
      $region32: #{tpu_custom_call.1} parent=5 // pred_fallthru
        _
      %p9156 = scmp.le.s32.totalorder 2, %s10
      // Predicated region
      $region48: #{tpu_custom_call.1} parent=5 // pred_check
        %p9157 = pneg %p9156
      $region49: #{tpu_custom_call.1} parent=5 // pred_check_branch
        %9159 = sbr.rel (%p9157) target = $region51
      $region50: #{tpu_custom_call.1} parent=5 // pred_region
        %s9160 = ssub.s32 %s10, 2
        // Predicated region
        $region52: #{tpu_custom_call.1} parent=50 // pred_check
          %p9161 = pneg %p107
        $region53: #{tpu_custom_call.1} parent=50 // pred_check_branch
          %9163 = sbr.rel (%p9161) target = $region55
        $region54: #{tpu_custom_call.1} parent=50 // pred_region
          %p9164 = scmp.lt.s32.totalorder %s16, 1
          %s9165 = scalar_select %p9164, %s16, 1
          %s9166 = smul.addr %s9165, 32
          %s9167 = smul.addr %s9166, 8
          %s9168 = scalar_lea.vmem %s3, %s9167
        $region55: #{tpu_custom_call.1} parent=50 // pred_fallthru
          _
      $region51: #{tpu_custom_call.1} parent=5 // pred_fallthru
        _
    $region6: #{tpu_custom_call.1} parent=1 // loop_footer
      %s14 = sadd.s32 1, %s10
    $region7: #{tpu_custom_call.1} parent=1 // loop_footer_branch
      %9 = sbr.rel target = $region3
    $region8: #{tpu_custom_call.1} parent=1 // loop_exit
      _
    %9169 = vsyncpa [#allocation7], 1
    %s9170 = scalar_lea.sflag [#allocation7], 1
    %9171 = vsyncpa %s9170, 1

</llo_original>
